<compile_context>
chip_gen: v5e
topology: v5e:2x2
jax: 0.10.0
libtpu: 0.0.40
codegen_flags: <defaults>
</compile_context>

<pallas_src>
import functools

import jax
import jax.numpy as jnp
from jax.experimental import pallas as pl
from jax.experimental.pallas import tpu as pltpu

CONF_ATTN_UP = dict(key_ratio=1, value_ratio=1, num_heads=2,
                    dropout_rate=0.0, use_softmax=True, use_bias=False)
EPS = 1e-5
VMEM_LIMIT = 32 * 1024 * 1024     # scoped-VMEM budget safe on v5e / v6e / v7x


def _pick_div(m, cap):
    """Largest divisor of m that is <= cap, preferring multiples of 8.

    Never returns more than cap unless m <= cap, so an oversized dimension can
    not silently blow the (v7x 64 MiB) VMEM budget; worst case it degrades to a
    small divisor instead of the whole axis.
    """
    cap = int(max(1, min(m, cap)))
    best = 1
    for t in range(cap, 0, -1):
        if m % t == 0:
            if t % 8 == 0:
                return t
            best = max(best, t)
    return best


# ----------------------------- Pallas kernels -----------------------------

def _bn_proj_kernel(x_ref, xn_ref, scale_ref, shift_ref, cmask_ref, w_ref,
                    o_s_ref, o_q_ref, o_k_ref, o_v_ref, *,
                    wpix, nh, dkh, dvh, f, kd, vd):
    """Fused BN+ReLU, 4-phase sub-pixel views, and the big projection matmul."""
    thw, c = x_ref.shape

    # fused inference BatchNorm + ReLU on the tile and on the +1-row halo
    scale = scale_ref[...]                            # (1, c) f32
    shift = shift_ref[...]
    y = jnp.maximum(x_ref[...] * scale + shift, 0.0)  # (thw, c) f32
    yn = jnp.maximum(xn_ref[...] * scale + shift, 0.0)  # (wpix, c) halo row
    is_last = pl.program_id(1) == pl.num_programs(1) - 1
    yn = yn * jnp.where(is_last, 0.0, 1.0)            # zero padding below image

    # 4 shifted views: [y(i,j) | y(i,j+1) | y(i+1,j) | y(i+1,j+1)]
    zrow = jnp.zeros((1, c), y.dtype)
    cmask = cmask_ref[...]                            # (thw,1); 0.0 at j == w-1
    y10 = jnp.concatenate([y[wpix:], yn], axis=0)                 # y(i+1, j)
    y01 = cmask * jnp.concatenate([y[1:], zrow], axis=0)          # y(i, j+1)
    y11 = cmask * jnp.concatenate([y10[1:], zrow], axis=0)        # y(i+1, j+1)
    x4 = jnp.concatenate([y, y01, y10, y11], axis=-1).astype(jnp.bfloat16)

    # ONE matmul: [shortcut 4-phase | q 4-phase (head-major) | k 1x1 | v 1x1]
    acc = jnp.dot(x4, w_ref[...], preferred_element_type=jnp.float32)

    o_s_ref[...] = acc[:, :4 * f].astype(o_s_ref.dtype)           # bf16 shortcut
    qo = 4 * f
    ko = qo + 4 * kd
    vo = ko + kd
    for hh in range(nh):       # static unroll; q slices are 128-lane aligned
        o_q_ref[hh] = acc[:, qo + hh * 4 * dkh: qo + (hh + 1) * 4 * dkh].astype(o_q_ref.dtype)
        o_k_ref[hh] = acc[:, ko + hh * dkh: ko + (hh + 1) * dkh].astype(o_k_ref.dtype)
        o_v_ref[hh] = acc[:, vo + hh * dvh: vo + (hh + 1) * dvh].astype(o_v_ref.dtype)


def _attn_out_kernel(q_ref, k_ref, v_ref, wo_ref, sc_ref, o_ref,
                     m_ref, l_ref, acc_ref, *, use_softmax):
    """Flash attention; finalize fuses the output projection + residual add.

    Grid = (batch, q-tile, head, kv-tile); head and kv-tile are reductions into
    the same output block (resident in VMEM across both).
    """
    hd = pl.program_id(2)
    ki = pl.program_id(3)

    @pl.when(ki == 0)
    def _():
        m_ref[...] = jnp.full_like(m_ref, -jnp.inf)
        l_ref[...] = jnp.zeros_like(l_ref)
        acc_ref[...] = jnp.zeros_like(acc_ref)

    q = q_ref[0, 0]                    # (tq, dkh) bf16 (1/sqrt(dkh) pre-folded)
    k = k_ref[0, 0]                    # (tk, dkh) bf16
    v = v_ref[0, 0]                    # (tk, dvh) bf16
    s = jax.lax.dot_general(q, k, (((1,), (1,)), ((), ())),
                            preferred_element_type=jnp.float32)     # (tq, tk)
    if use_softmax:
        m_prev = m_ref[...]
        m_new = jnp.maximum(m_prev, jnp.max(s, axis=-1, keepdims=True))
        alpha = jnp.exp(m_prev - m_new)
        p = jnp.exp(s - m_new)
        l_ref[...] = alpha * l_ref[...] + jnp.sum(p, axis=-1, keepdims=True)
        acc_ref[...] = alpha * acc_ref[...] + jnp.dot(
            p.astype(v.dtype), v, preferred_element_type=jnp.float32)
        m_ref[...] = m_new
    else:
        # TODO(synk): verify the reference applies the 1/sqrt(dk) scale when
        #             softmax is disabled (it is folded into w_q here).
        acc_ref[...] = acc_ref[...] + jnp.dot(
            s.astype(v.dtype), v, preferred_element_type=jnp.float32)

    @pl.when(ki == pl.num_programs(3) - 1)
    def _():
        if use_softmax:
            o_h = acc_ref[...] * pl.reciprocal(l_ref[...], approx=True)
        else:
            o_h = acc_ref[...]
        # fused 1x1 output projection for this head (w_o head-slice resident)
        proj = jnp.dot(o_h.astype(jnp.bfloat16), wo_ref[0],
                       preferred_element_type=jnp.float32)          # (tq, f)

        @pl.when(hd == 0)
        def _():
            o_ref[0] = sc_ref[0].astype(jnp.float32) + proj         # + shortcut

        @pl.when(hd > 0)
        def _():
            o_ref[0] = o_ref[0] + proj                              # head accumulate


# ----------------------------- weight re-packing ---------------------------

def _deconv_phase_weights(w_t):
    """Re-pack ConvTranspose2d(3, stride=2, pad=1, out_pad=1) weights for the
    4-phase sub-pixel decomposition.

    w_t: (Cin, Cout, 3, 3) (PyTorch ConvTranspose2d layout).
    Returns (4*Cin, 4*Cout): row block s = 2*sy+sx corresponds to the shifted
    view y[i+sy, j+sx]; column block p = 2*dy+dx is the output parity (dy, dx).
    """
    cin, cout = w_t.shape[0], w_t.shape[1]
    zeros = jnp.zeros((cin, cout), w_t.dtype)
    cols = []
    for dy in range(2):
        for dx in range(2):
            rows = []
            for sy in range(2):
                for sx in range(2):
                    ky, kx = 2 * sy + 1 - dy, 2 * sx + 1 - dx
                    if 0 <= ky <= 2 and 0 <= kx <= 2:
                        rows.append(w_t[:, :, 2 - ky, 2 - kx])
                    else:
                        rows.append(zeros)
            cols.append(jnp.concatenate(rows, axis=0))
    return jnp.concatenate(cols, axis=1)


# ----------------------------- module forward ------------------------------

def upgto_v1_forward(x_nchw, params, conf=CONF_ATTN_UP):
    nh = conf['num_heads']
    use_softmax = conf['use_softmax']

    x = jnp.transpose(x_nchw, (0, 2, 3, 1)).astype(jnp.float32)   # NCHW -> NHWC
    n, h, w, c = x.shape
    m = n * h * w

    f = params['w_shortcut'].shape[1]
    kd = params['w_q'].shape[1]
    vd = params['w_v'].shape[1]
    assert kd % nh == 0 and vd % nh == 0
    dkh, dvh = kd // nh, vd // nh

    # ---- inference-BN scale/shift -----------------------------------------
    scale = (params['bn_gamma'] / jnp.sqrt(params['bn_var'] + EPS)).reshape(1, c)
    shift = params['bn_beta'].reshape(1, c) - params['bn_mean'].reshape(1, c) * scale
    scale = scale.astype(jnp.float32)
    shift = shift.astype(jnp.float32)

    # ---- fused projection weight [shortcut | q (head-major) | k | v] -------
    w_short4 = _deconv_phase_weights(params['w_shortcut'])            # (4c, 4f)
    q_scale = 1.0 / (dkh ** 0.5)                                      # fold QK^T scale
    w_q4 = _deconv_phase_weights(params['w_q']) * q_scale             # (4c, 4kd) [phase][head]
    w_q4 = w_q4.reshape(4 * c, 4, nh, dkh).transpose(0, 2, 1, 3).reshape(4 * c, 4 * kd)
    # TODO(synk): if 4c grows past one MXU contraction pass (>256 on v6e/v7x),
    #             split the k/v 1x1 conv into its own matmul instead of zero rows.
    w_kv = jnp.concatenate(
        [jnp.concatenate([params['w_k'], params['w_v']], axis=1),
         jnp.zeros((3 * c, kd + vd), jnp.float32)], axis=0)           # only view (0,0)
    w_big = jnp.concatenate([w_short4, w_q4, w_kv], axis=1).astype(jnp.bfloat16)
    d_all = w_big.shape[1]

    # ---- kernel A: BN+ReLU + sub-pixel views + fused projection matmul -----
    th = _pick_div(h, max(1, 1024 // w))            # ~<=1024 matmul rows / step
    nht = h // th
    thw = th * w
    x_flat = x.reshape(m, c)
    cmask = jnp.tile(
        jnp.concatenate([jnp.ones((w - 1, 1), jnp.float32),
                         jnp.zeros((1, 1), jnp.float32)], axis=0), (th, 1))

    kern_a = functools.partial(_bn_proj_kernel, wpix=w, nh=nh, dkh=dkh,
                               dvh=dvh, f=f, kd=kd, vd=vd)
    short4, q, k_, v_ = pl.pallas_call(
        kern_a,
        out_shape=(jax.ShapeDtypeStruct((m, 4 * f), jnp.bfloat16),
                   jax.ShapeDtypeStruct((nh, m, 4 * dkh), jnp.bfloat16),
                   jax.ShapeDtypeStruct((nh, m, dkh), jnp.bfloat16),
                   jax.ShapeDtypeStruct((nh, m, dvh), jnp.bfloat16)),
        grid=(n, nht),
        in_specs=[
            pl.BlockSpec((thw, c), lambda b, i: (b * nht + i, 0)),
            # +1-row halo: first image-row of the next tile (clamped; masked
            # to zero in-kernel on the last tile of each image).
            pl.BlockSpec((w, c),
                         lambda b, i: (jnp.minimum(b * h + (i + 1) * th,
                                                   n * h - 1), 0)),
            pl.BlockSpec((1, c), lambda b, i: (0, 0)),
            pl.BlockSpec((1, c), lambda b, i: (0, 0)),
            pl.BlockSpec((thw, 1), lambda b, i: (0, 0)),
            pl.BlockSpec((4 * c, d_all), lambda b, i: (0, 0)),
        ],
        out_specs=(
            pl.BlockSpec((thw, 4 * f), lambda b, i: (b * nht + i, 0)),
            pl.BlockSpec((nh, thw, 4 * dkh), lambda b, i: (0, b * nht + i, 0)),
            pl.BlockSpec((nh, thw, dkh), lambda b, i: (0, b * nht + i, 0)),
            pl.BlockSpec((nh, thw, dvh), lambda b, i: (0, b * nht + i, 0)),
        ),
        compiler_params=pltpu.CompilerParams(
            dimension_semantics=("parallel", "parallel"),
            vmem_limit_bytes=VMEM_LIMIT),
    )(x_flat, x_flat, scale, shift, cmask, w_big)

    lq, lk = 4 * h * w, h * w
    q = q.reshape(nh, n, lq, dkh)          # rows: (pixel, phase) -- pure reshape
    k_ = k_.reshape(nh, n, lk, dkh)
    v_ = v_.reshape(nh, n, lk, dvh)
    sc = short4.reshape(n, lq, f)          # same (pixel, phase) row order
    wo = params['w_o'].reshape(nh, dvh, f).astype(jnp.bfloat16)

    # ---- kernel B: flash attention + fused out-projection + residual add ---
    tq = _pick_div(lq, 512)
    # KV tile: byte-budgeted (k+v blocks, 128-lane padded, double buffered);
    # whole KV resident when it fits -> single softmax pass.
    tk = _pick_div(lk, max(128, (4 * 1024 * 1024) // 1024))
    nk = lk // tk
    kern_b = functools.partial(_attn_out_kernel, use_softmax=use_softmax)
    out = pl.pallas_call(
        kern_b,
        out_shape=jax.ShapeDtypeStruct((n, lq, f), jnp.float32),
        grid=(n, lq // tq, nh, nk),
        in_specs=[
            pl.BlockSpec((1, 1, tq, dkh), lambda b, qi, hd, ki: (hd, b, qi, 0)),
            pl.BlockSpec((1, 1, tk, dkh), lambda b, qi, hd, ki: (hd, b, ki, 0)),
            pl.BlockSpec((1, 1, tk, dvh), lambda b, qi, hd, ki: (hd, b, ki, 0)),
            pl.BlockSpec((1, dvh, f), lambda b, qi, hd, ki: (hd, 0, 0)),
            pl.BlockSpec((1, tq, f), lambda b, qi, hd, ki: (b, qi, 0)),
        ],
        out_specs=pl.BlockSpec((1, tq, f), lambda b, qi, hd, ki: (b, qi, 0)),
        scratch_shapes=[pltpu.VMEM((tq, 1), jnp.float32),
                        pltpu.VMEM((tq, 1), jnp.float32),
                        pltpu.VMEM((tq, dvh), jnp.float32)],
        compiler_params=pltpu.CompilerParams(
            dimension_semantics=("parallel", "parallel", "arbitrary", "arbitrary"),
            vmem_limit_bytes=VMEM_LIMIT),
    )(q, k_, v_, wo, sc)
    # TODO(synk): dropout_rate == 0.0 (inference) -> attention dropout is a no-op.

    # ---- single layout epilogue: pixel-shuffle + NHWC->NCHW in one transpose
    out = out.reshape(n, h, w, 2, 2, f)
    out = jnp.transpose(out, (0, 5, 1, 3, 2, 4)).reshape(n, f, 2 * h, 2 * w)
    return out


def init_params(key, in_channels, output_filters, conf):
    kd = output_filters // conf['key_ratio']
    vd = output_filters // conf['value_ratio']
    ks = jax.random.split(key, 9)
    # use_bias=False -> no projection biases.
    return dict(
        bn_gamma=1.0 + 0.1 * jax.random.normal(ks[0], (in_channels,), jnp.float32),
        bn_beta=0.1 * jax.random.normal(ks[1], (in_channels,), jnp.float32),
        bn_mean=0.1 * jax.random.normal(ks[2], (in_channels,), jnp.float32),
        bn_var=jnp.abs(jax.random.normal(ks[3], (in_channels,), jnp.float32)) + 0.5,
        # PyTorch ConvTranspose2d weight layout: (in, out, kh, kw)
        w_shortcut=0.1 * jax.random.normal(ks[4], (in_channels, output_filters, 3, 3), jnp.float32),
        w_q=0.1 * jax.random.normal(ks[5], (in_channels, kd, 3, 3), jnp.float32),
        w_k=0.1 * jax.random.normal(ks[6], (in_channels, kd), jnp.float32),
        w_v=0.1 * jax.random.normal(ks[7], (in_channels, vd), jnp.float32),
        w_o=0.1 * jax.random.normal(ks[8], (vd, output_filters), jnp.float32),
    )


if __name__ == "__main__":
    in_channels, output_filters = 32, 64
    batch, height, width = 2, 16, 16

    key = jax.random.PRNGKey(0)
    kx, kp = jax.random.split(key)
    x = jax.random.normal(kx, (batch, in_channels, height, width), jnp.float32)
    params = init_params(kp, in_channels, output_filters, CONF_ATTN_UP)

    out = jax.jit(upgto_v1_forward)(x, params)
    jax.block_until_ready(out)
    assert out.shape == (batch, output_filters, 2 * height, 2 * width), out.shape
    assert bool(jnp.all(jnp.isfinite(out)))
    print("KERNEL_OK")
</pallas_src>

<mosaic_0001>
module attributes {stable_mosaic.version = 11 : i64} {
  func.func @_bn_proj_kernel(%arg0: i32, %arg1: i32, %arg2: memref<256x32xf32, #tpu.memory_space<vmem>>, %arg3: memref<16x32xf32, #tpu.memory_space<vmem>>, %arg4: memref<1x32xf32, #tpu.memory_space<vmem>>, %arg5: memref<1x32xf32, #tpu.memory_space<vmem>>, %arg6: memref<256x1xf32, #tpu.memory_space<vmem>>, %arg7: memref<128x640xbf16, #tpu.memory_space<vmem>>, %arg8: memref<256x256xbf16, #tpu.memory_space<vmem>>, %arg9: memref<2x256x128xbf16, #tpu.memory_space<vmem>>, %arg10: memref<2x256x32xbf16, #tpu.memory_space<vmem>>, %arg11: memref<2x256x32xbf16, #tpu.memory_space<vmem>>) attributes {dimension_semantics = [#tpu.dimension_semantics<parallel>, #tpu.dimension_semantics<parallel>], iteration_bounds = array<i64: 2, 1>, scalar_prefetch = 0 : i64, scratch_operands = 0 : i64, tpu.core_type = #tpu.core_type<tc>, window_params = [{transform_indices = @transform_0, window_bounds = array<i64: 256, 32>}, {transform_indices = @transform_1, window_bounds = array<i64: 16, 32>}, {pipeline_mode = #tpu.pipeline_mode<synchronous>, transform_indices = @transform_2, window_bounds = array<i64: 1, 32>}, {pipeline_mode = #tpu.pipeline_mode<synchronous>, transform_indices = @transform_3, window_bounds = array<i64: 1, 32>}, {pipeline_mode = #tpu.pipeline_mode<synchronous>, transform_indices = @transform_4, window_bounds = array<i64: 256, 1>}, {pipeline_mode = #tpu.pipeline_mode<synchronous>, transform_indices = @transform_5, window_bounds = array<i64: 128, 640>}, {transform_indices = @transform_6, window_bounds = array<i64: 256, 256>}, {transform_indices = @transform_7, window_bounds = array<i64: 2, 256, 128>}, {transform_indices = @transform_8, window_bounds = array<i64: 2, 256, 32>}, {transform_indices = @transform_9, window_bounds = array<i64: 2, 256, 32>}]} {
    %c0 = arith.constant 0 : index
    %c0_0 = arith.constant 0 : index
    %0 = vector.load %arg4[%c0, %c0_0] : memref<1x32xf32, #tpu.memory_space<vmem>>, vector<1x32xf32>
    %c0_1 = arith.constant 0 : index
    %c0_2 = arith.constant 0 : index
    %1 = vector.load %arg5[%c0_1, %c0_2] : memref<1x32xf32, #tpu.memory_space<vmem>>, vector<1x32xf32>
    %c0_3 = arith.constant 0 : index
    %c0_4 = arith.constant 0 : index
    %2 = vector.load %arg2[%c0_3, %c0_4] : memref<256x32xf32, #tpu.memory_space<vmem>>, vector<256x32xf32>
    %3 = vector.broadcast %0 : vector<1x32xf32> to vector<256x32xf32>
    %4 = arith.mulf %2, %3 : vector<256x32xf32>
    %5 = vector.broadcast %1 : vector<1x32xf32> to vector<256x32xf32>
    %6 = arith.addf %4, %5 : vector<256x32xf32>
    %cst = arith.constant 0.000000e+00 : f32
    %7 = vector.broadcast %cst : f32 to vector<256x32xf32>
    %8 = arith.maximumf %6, %7 : vector<256x32xf32>
    %c0_5 = arith.constant 0 : index
    %c0_6 = arith.constant 0 : index
    %9 = vector.load %arg3[%c0_5, %c0_6] : memref<16x32xf32, #tpu.memory_space<vmem>>, vector<16x32xf32>
    %10 = vector.broadcast %0 : vector<1x32xf32> to vector<16x32xf32>
    %11 = arith.mulf %9, %10 : vector<16x32xf32>
    %12 = vector.broadcast %1 : vector<1x32xf32> to vector<16x32xf32>
    %13 = arith.addf %11, %12 : vector<16x32xf32>
    %cst_7 = arith.constant 0.000000e+00 : f32
    %14 = vector.broadcast %cst_7 : f32 to vector<16x32xf32>
    %15 = arith.maximumf %13, %14 : vector<16x32xf32>
    %c0_i32 = arith.constant 0 : i32
    %16 = arith.cmpi eq, %arg1, %c0_i32 : i32
    %cst_8 = arith.constant 0.000000e+00 : f32
    %cst_9 = arith.constant 1.000000e+00 : f32
    %17 = arith.select %16, %cst_8, %cst_9 : f32
    %18 = vector.broadcast %17 : f32 to vector<16x32xf32>
    %19 = arith.mulf %15, %18 : vector<16x32xf32>
    %cst_10 = arith.constant 0.000000e+00 : f32
    %20 = vector.broadcast %cst_10 : f32 to vector<1x32xf32>
    %c0_11 = arith.constant 0 : index
    %c0_12 = arith.constant 0 : index
    %21 = vector.load %arg6[%c0_11, %c0_12] : memref<256x1xf32, #tpu.memory_space<vmem>>, vector<256x1xf32>
    %22 = vector.extract_strided_slice %8 {offsets = [16, 0], sizes = [240, 32], strides = [1, 1]} : vector<256x32xf32> to vector<240x32xf32>
    %23 = tpu.concatenate %22, %19 in 0 : vector<240x32xf32>, vector<16x32xf32> -> vector<256x32xf32>
    %24 = vector.extract_strided_slice %8 {offsets = [1, 0], sizes = [255, 32], strides = [1, 1]} : vector<256x32xf32> to vector<255x32xf32>
    %25 = tpu.concatenate %24, %20 in 0 : vector<255x32xf32>, vector<1x32xf32> -> vector<256x32xf32>
    %26 = vector.broadcast %21 : vector<256x1xf32> to vector<256x32xf32>
    %27 = arith.mulf %26, %25 : vector<256x32xf32>
    %28 = vector.extract_strided_slice %23 {offsets = [1, 0], sizes = [255, 32], strides = [1, 1]} : vector<256x32xf32> to vector<255x32xf32>
    %29 = tpu.concatenate %28, %20 in 0 : vector<255x32xf32>, vector<1x32xf32> -> vector<256x32xf32>
    %30 = vector.broadcast %21 : vector<256x1xf32> to vector<256x32xf32>
    %31 = arith.mulf %30, %29 : vector<256x32xf32>
    %32 = tpu.concatenate %8, %27, %23, %31 in 1 : vector<256x32xf32>, vector<256x32xf32>, vector<256x32xf32>, vector<256x32xf32> -> vector<256x128xf32>
    %33 = arith.truncf %32 : vector<256x128xf32> to vector<256x128xbf16>
    %c0_13 = arith.constant 0 : index
    %c0_14 = arith.constant 0 : index
    %34 = vector.load %arg7[%c0_13, %c0_14] : memref<128x640xbf16, #tpu.memory_space<vmem>>, vector<128x640xbf16>
    %cst_15 = arith.constant dense<0.000000e+00> : vector<256x640xf32>
    %35 = tpu.matmul %33, %34, %cst_15 {dimension_numbers = #tpu.dot_dimension_numbers<[1], [0], [0], [1], [0, 0, 1, 1], [], []>} : vector<256x128xbf16>, vector<128x640xbf16>, vector<256x640xf32> -> vector<256x640xf32>
    %36 = vector.extract_strided_slice %35 {offsets = [0, 0], sizes = [256, 256], strides = [1, 1]} : vector<256x640xf32> to vector<256x256xf32>
    %37 = arith.truncf %36 : vector<256x256xf32> to vector<256x256xbf16>
    %c0_16 = arith.constant 0 : index
    %c0_17 = arith.constant 0 : index
    %38 = vector.load %arg8[%c0_16, %c0_17] : memref<256x256xbf16, #tpu.memory_space<vmem>>, vector<256x256xbf16>
    tpu.vector_store %arg8[%c0_16, %c0_17], %37 {strides = array<i32>} : memref<256x256xbf16, #tpu.memory_space<vmem>>, vector<256x256xbf16>,
    %39 = vector.extract_strided_slice %35 {offsets = [0, 256], sizes = [256, 128], strides = [1, 1]} : vector<256x640xf32> to vector<256x128xf32>
    %40 = arith.truncf %39 : vector<256x128xf32> to vector<256x128xbf16>
    %c0_18 = arith.constant 0 : index
    %c0_19 = arith.constant 0 : index
    %c0_20 = arith.constant 0 : index
    %41 = vector.load %arg9[%c0_18, %c0_19, %c0_20] : memref<2x256x128xbf16, #tpu.memory_space<vmem>>, vector<1x256x128xbf16>
    %42 = vector.shape_cast %41 : vector<1x256x128xbf16> to vector<256x128xbf16>
    %43 = vector.shape_cast %40 : vector<256x128xbf16> to vector<1x256x128xbf16>
    tpu.vector_store %arg9[%c0_18, %c0_19, %c0_20], %43 {strides = array<i32>} : memref<2x256x128xbf16, #tpu.memory_space<vmem>>, vector<1x256x128xbf16>,
    %44 = vector.extract_strided_slice %35 {offsets = [0, 512], sizes = [256, 32], strides = [1, 1]} : vector<256x640xf32> to vector<256x32xf32>
    %45 = arith.truncf %44 : vector<256x32xf32> to vector<256x32xbf16>
    %c0_21 = arith.constant 0 : index
    %c0_22 = arith.constant 0 : index
    %c0_23 = arith.constant 0 : index
    %46 = vector.load %arg10[%c0_21, %c0_22, %c0_23] : memref<2x256x32xbf16, #tpu.memory_space<vmem>>, vector<1x256x32xbf16>
    %47 = vector.shape_cast %46 : vector<1x256x32xbf16> to vector<256x32xbf16>
    %48 = vector.shape_cast %45 : vector<256x32xbf16> to vector<1x256x32xbf16>
    tpu.vector_store %arg10[%c0_21, %c0_22, %c0_23], %48 {strides = array<i32>} : memref<2x256x32xbf16, #tpu.memory_space<vmem>>, vector<1x256x32xbf16>,
    %49 = vector.extract_strided_slice %35 {offsets = [0, 576], sizes = [256, 32], strides = [1, 1]} : vector<256x640xf32> to vector<256x32xf32>
    %50 = arith.truncf %49 : vector<256x32xf32> to vector<256x32xbf16>
    %c0_24 = arith.constant 0 : index
    %c0_25 = arith.constant 0 : index
    %c0_26 = arith.constant 0 : index
    %51 = vector.load %arg11[%c0_24, %c0_25, %c0_26] : memref<2x256x32xbf16, #tpu.memory_space<vmem>>, vector<1x256x32xbf16>
    %52 = vector.shape_cast %51 : vector<1x256x32xbf16> to vector<256x32xbf16>
    %53 = vector.shape_cast %50 : vector<256x32xbf16> to vector<1x256x32xbf16>
    tpu.vector_store %arg11[%c0_24, %c0_25, %c0_26], %53 {strides = array<i32>} : memref<2x256x32xbf16, #tpu.memory_space<vmem>>, vector<1x256x32xbf16>,
    %54 = vector.extract_strided_slice %35 {offsets = [0, 384], sizes = [256, 128], strides = [1, 1]} : vector<256x640xf32> to vector<256x128xf32>
    %55 = arith.truncf %54 : vector<256x128xf32> to vector<256x128xbf16>
    %c1 = arith.constant 1 : index
    %c0_27 = arith.constant 0 : index
    %c0_28 = arith.constant 0 : index
    %56 = vector.load %arg9[%c1, %c0_27, %c0_28] : memref<2x256x128xbf16, #tpu.memory_space<vmem>>, vector<1x256x128xbf16>
    %57 = vector.shape_cast %56 : vector<1x256x128xbf16> to vector<256x128xbf16>
    %58 = vector.shape_cast %55 : vector<256x128xbf16> to vector<1x256x128xbf16>
    tpu.vector_store %arg9[%c1, %c0_27, %c0_28], %58 {strides = array<i32>} : memref<2x256x128xbf16, #tpu.memory_space<vmem>>, vector<1x256x128xbf16>,
    %59 = vector.extract_strided_slice %35 {offsets = [0, 544], sizes = [256, 32], strides = [1, 1]} : vector<256x640xf32> to vector<256x32xf32>
    %60 = arith.truncf %59 : vector<256x32xf32> to vector<256x32xbf16>
    %c1_29 = arith.constant 1 : index
    %c0_30 = arith.constant 0 : index
    %c0_31 = arith.constant 0 : index
    %61 = vector.load %arg10[%c1_29, %c0_30, %c0_31] : memref<2x256x32xbf16, #tpu.memory_space<vmem>>, vector<1x256x32xbf16>
    %62 = vector.shape_cast %61 : vector<1x256x32xbf16> to vector<256x32xbf16>
    %63 = vector.shape_cast %60 : vector<256x32xbf16> to vector<1x256x32xbf16>
    tpu.vector_store %arg10[%c1_29, %c0_30, %c0_31], %63 {strides = array<i32>} : memref<2x256x32xbf16, #tpu.memory_space<vmem>>, vector<1x256x32xbf16>,
    %64 = vector.extract_strided_slice %35 {offsets = [0, 608], sizes = [256, 32], strides = [1, 1]} : vector<256x640xf32> to vector<256x32xf32>
    %65 = arith.truncf %64 : vector<256x32xf32> to vector<256x32xbf16>
    %c1_32 = arith.constant 1 : index
    %c0_33 = arith.constant 0 : index
    %c0_34 = arith.constant 0 : index
    %66 = vector.load %arg11[%c1_32, %c0_33, %c0_34] : memref<2x256x32xbf16, #tpu.memory_space<vmem>>, vector<1x256x32xbf16>
    %67 = vector.shape_cast %66 : vector<1x256x32xbf16> to vector<256x32xbf16>
    %68 = vector.shape_cast %65 : vector<256x32xbf16> to vector<1x256x32xbf16>
    tpu.vector_store %arg11[%c1_32, %c0_33, %c0_34], %68 {strides = array<i32>} : memref<2x256x32xbf16, #tpu.memory_space<vmem>>, vector<1x256x32xbf16>,
    return
  }
  func.func @transform_0(%arg0: i32, %arg1: i32) -> (i32, i32) {
    %c1_i32 = arith.constant 1 : i32
    %0 = arith.muli %arg0, %c1_i32 : i32
    %1 = arith.addi %0, %arg1 : i32
    %c0_i32 = arith.constant 0 : i32
    %c0_i32_0 = arith.constant 0 : i32
    return %1, %c0_i32 : i32, i32
  }
  func.func @transform_1(%arg0: i32, %arg1: i32) -> (i32, i32) {
    %c16_i32 = arith.constant 16 : i32
    %0 = arith.muli %arg0, %c16_i32 : i32
    %c1_i32 = arith.constant 1 : i32
    %1 = arith.addi %arg1, %c1_i32 : i32
    %c16_i32_0 = arith.constant 16 : i32
    %2 = arith.muli %1, %c16_i32_0 : i32
    %3 = arith.addi %0, %2 : i32
    %c31_i32 = arith.constant 31 : i32
    %4 = arith.minsi %3, %c31_i32 : i32
    %c0_i32 = arith.constant 0 : i32
    %c0_i32_1 = arith.constant 0 : i32
    return %4, %c0_i32 : i32, i32
  }
  func.func @transform_2(%arg0: i32, %arg1: i32) -> (i32, i32) {
    %c0_i32 = arith.constant 0 : i32
    %c0_i32_0 = arith.constant 0 : i32
    %c0_i32_1 = arith.constant 0 : i32
    return %c0_i32, %c0_i32_0 : i32, i32
  }
  func.func @transform_3(%arg0: i32, %arg1: i32) -> (i32, i32) {
    %c0_i32 = arith.constant 0 : i32
    %c0_i32_0 = arith.constant 0 : i32
    %c0_i32_1 = arith.constant 0 : i32
    return %c0_i32, %c0_i32_0 : i32, i32
  }
  func.func @transform_4(%arg0: i32, %arg1: i32) -> (i32, i32) {
    %c0_i32 = arith.constant 0 : i32
    %c0_i32_0 = arith.constant 0 : i32
    %c0_i32_1 = arith.constant 0 : i32
    return %c0_i32, %c0_i32_0 : i32, i32
  }
  func.func @transform_5(%arg0: i32, %arg1: i32) -> (i32, i32) {
    %c0_i32 = arith.constant 0 : i32
    %c0_i32_0 = arith.constant 0 : i32
    %c0_i32_1 = arith.constant 0 : i32
    return %c0_i32, %c0_i32_0 : i32, i32
  }
  func.func @transform_6(%arg0: i32, %arg1: i32) -> (i32, i32) {
    %c1_i32 = arith.constant 1 : i32
    %0 = arith.muli %arg0, %c1_i32 : i32
    %1 = arith.addi %0, %arg1 : i32
    %c0_i32 = arith.constant 0 : i32
    %c0_i32_0 = arith.constant 0 : i32
    return %1, %c0_i32 : i32, i32
  }
  func.func @transform_7(%arg0: i32, %arg1: i32) -> (i32, i32, i32) {
    %c1_i32 = arith.constant 1 : i32
    %0 = arith.muli %arg0, %c1_i32 : i32
    %1 = arith.addi %0, %arg1 : i32
    %c0_i32 = arith.constant 0 : i32
    %c0_i32_0 = arith.constant 0 : i32
    %c0_i32_1 = arith.constant 0 : i32
    return %c0_i32, %1, %c0_i32_0 : i32, i32, i32
  }
  func.func @transform_8(%arg0: i32, %arg1: i32) -> (i32, i32, i32) {
    %c1_i32 = arith.constant 1 : i32
    %0 = arith.muli %arg0, %c1_i32 : i32
    %1 = arith.addi %0, %arg1 : i32
    %c0_i32 = arith.constant 0 : i32
    %c0_i32_0 = arith.constant 0 : i32
    %c0_i32_1 = arith.constant 0 : i32
    return %c0_i32, %1, %c0_i32_0 : i32, i32, i32
  }
  func.func @transform_9(%arg0: i32, %arg1: i32) -> (i32, i32, i32) {
    %c1_i32 = arith.constant 1 : i32
    %0 = arith.muli %arg0, %c1_i32 : i32
    %1 = arith.addi %0, %arg1 : i32
    %c0_i32 = arith.constant 0 : i32
    %c0_i32_0 = arith.constant 0 : i32
    %c0_i32_1 = arith.constant 0 : i32
    return %c0_i32, %1, %c0_i32_0 : i32, i32, i32
  }
}

module attributes {stable_mosaic.version = 11 : i64} {
  func.func @_attn_out_kernel(%arg0: i32, %arg1: i32, %arg2: i32, %arg3: i32, %arg4: memref<1x1x512x32xbf16, #tpu.memory_space<vmem>>, %arg5: memref<1x1x256x32xbf16, #tpu.memory_space<vmem>>, %arg6: memref<1x1x256x32xbf16, #tpu.memory_space<vmem>>, %arg7: memref<1x32x64xbf16, #tpu.memory_space<vmem>>, %arg8: memref<1x512x64xbf16, #tpu.memory_space<vmem>>, %arg9: memref<1x512x64xf32, #tpu.memory_space<vmem>>, %arg10: memref<512x1xf32, #tpu.memory_space<vmem>>, %arg11: memref<512x1xf32, #tpu.memory_space<vmem>>, %arg12: memref<512x32xf32, #tpu.memory_space<vmem>>) attributes {dimension_semantics = [#tpu.dimension_semantics<parallel>, #tpu.dimension_semantics<parallel>, #tpu.dimension_semantics<arbitrary>, #tpu.dimension_semantics<arbitrary>], iteration_bounds = array<i64: 2, 2, 2, 1>, scalar_prefetch = 0 : i64, scratch_operands = 3 : i64, tpu.core_type = #tpu.core_type<tc>, window_params = [{transform_indices = @transform_0, window_bounds = array<i64: 1, 1, 512, 32>}, {transform_indices = @transform_1, window_bounds = array<i64: 1, 1, 256, 32>}, {transform_indices = @transform_2, window_bounds = array<i64: 1, 1, 256, 32>}, {transform_indices = @transform_3, window_bounds = array<i64: 1, 32, 64>}, {transform_indices = @transform_4, window_bounds = array<i64: 1, 512, 64>}, {transform_indices = @transform_5, window_bounds = array<i64: 1, 512, 64>}]} {
    %c0_i32 = arith.constant 0 : i32
    %0 = arith.cmpi eq, %arg3, %c0_i32 : i32
    %1 = arith.extui %0 : i1 to i32
    %c0_i32_0 = arith.constant 0 : i32
    %2 = arith.cmpi ne, %1, %c0_i32_0 : i32
    scf.if %2 {
      %cst_29 = arith.constant 0xFF800000 : f32
      %36 = vector.broadcast %cst_29 : f32 to vector<512x1xf32>
      %c0_30 = arith.constant 0 : index
      %c0_31 = arith.constant 0 : index
      %37 = vector.load %arg10[%c0_30, %c0_31] : memref<512x1xf32, #tpu.memory_space<vmem>>, vector<512x1xf32>
      tpu.vector_store %arg10[%c0_30, %c0_31], %36 {strides = array<i32>} : memref<512x1xf32, #tpu.memory_space<vmem>>, vector<512x1xf32>,
      %cst_32 = arith.constant 0.000000e+00 : f32
      %38 = vector.broadcast %cst_32 : f32 to vector<512x1xf32>
      %c0_33 = arith.constant 0 : index
      %c0_34 = arith.constant 0 : index
      %39 = vector.load %arg11[%c0_33, %c0_34] : memref<512x1xf32, #tpu.memory_space<vmem>>, vector<512x1xf32>
      tpu.vector_store %arg11[%c0_33, %c0_34], %38 {strides = array<i32>} : memref<512x1xf32, #tpu.memory_space<vmem>>, vector<512x1xf32>,
      %cst_35 = arith.constant 0.000000e+00 : f32
      %40 = vector.broadcast %cst_35 : f32 to vector<512x32xf32>
      %c0_36 = arith.constant 0 : index
      %c0_37 = arith.constant 0 : index
      %41 = vector.load %arg12[%c0_36, %c0_37] : memref<512x32xf32, #tpu.memory_space<vmem>>, vector<512x32xf32>
      tpu.vector_store %arg12[%c0_36, %c0_37], %40 {strides = array<i32>} : memref<512x32xf32, #tpu.memory_space<vmem>>, vector<512x32xf32>,
    } else {
    }
    %c0 = arith.constant 0 : index
    %c0_1 = arith.constant 0 : index
    %c0_2 = arith.constant 0 : index
    %c0_3 = arith.constant 0 : index
    %3 = vector.load %arg4[%c0, %c0_1, %c0_2, %c0_3] : memref<1x1x512x32xbf16, #tpu.memory_space<vmem>>, vector<1x1x512x32xbf16>
    %4 = vector.shape_cast %3 : vector<1x1x512x32xbf16> to vector<512x32xbf16>
    %c0_4 = arith.constant 0 : index
    %c0_5 = arith.constant 0 : index
    %c0_6 = arith.constant 0 : index
    %c0_7 = arith.constant 0 : index
    %5 = vector.load %arg5[%c0_4, %c0_5, %c0_6, %c0_7] : memref<1x1x256x32xbf16, #tpu.memory_space<vmem>>, vector<1x1x256x32xbf16>
    %6 = vector.shape_cast %5 : vector<1x1x256x32xbf16> to vector<256x32xbf16>
    %c0_8 = arith.constant 0 : index
    %c0_9 = arith.constant 0 : index
    %c0_10 = arith.constant 0 : index
    %c0_11 = arith.constant 0 : index
    %7 = vector.load %arg6[%c0_8, %c0_9, %c0_10, %c0_11] : memref<1x1x256x32xbf16, #tpu.memory_space<vmem>>, vector<1x1x256x32xbf16>
    %8 = vector.shape_cast %7 : vector<1x1x256x32xbf16> to vector<256x32xbf16>
    %cst = arith.constant dense<0.000000e+00> : vector<512x256xf32>
    %9 = tpu.matmul %4, %6, %cst {dimension_numbers = #tpu.dot_dimension_numbers<[1], [1], [0], [0], [0, 0, 1, 0], [], []>} : vector<512x32xbf16>, vector<256x32xbf16>, vector<512x256xf32> -> vector<512x256xf32>
    %c0_12 = arith.constant 0 : index
    %c0_13 = arith.constant 0 : index
    %10 = vector.load %arg10[%c0_12, %c0_13] : memref<512x1xf32, #tpu.memory_space<vmem>>, vector<512x1xf32>
    %cst_14 = arith.constant dense<0xFF800000> : vector<512xf32>
    %11 = vector.multi_reduction <maximumf>, %9, %cst_14 [1] : vector<512x256xf32> to vector<512xf32>
    %12 = vector.shape_cast %11 : vector<512xf32> to vector<512x1xf32>
    %13 = arith.maximumf %10, %12 : vector<512x1xf32>
    %14 = arith.subf %10, %13 : vector<512x1xf32>
    %15 = math.exp %14 : vector<512x1xf32>
    %16 = vector.broadcast %13 : vector<512x1xf32> to vector<512x256xf32>
    %17 = arith.subf %9, %16 : vector<512x256xf32>
    %18 = math.exp %17 : vector<512x256xf32>
    %c0_15 = arith.constant 0 : index
    %c0_16 = arith.constant 0 : index
    %19 = vector.load %arg11[%c0_15, %c0_16] : memref<512x1xf32, #tpu.memory_space<vmem>>, vector<512x1xf32>
    %20 = arith.mulf %15, %19 : vector<512x1xf32>
    %cst_17 = arith.constant dense<0.000000e+00> : vector<512xf32>
    %21 = vector.multi_reduction <add>, %18, %cst_17 [1] : vector<512x256xf32> to vector<512xf32>
    %22 = vector.shape_cast %21 : vector<512xf32> to vector<512x1xf32>
    %23 = arith.addf %20, %22 : vector<512x1xf32>
    %c0_18 = arith.constant 0 : index
    %c0_19 = arith.constant 0 : index
    %24 = vector.load %arg11[%c0_18, %c0_19] : memref<512x1xf32, #tpu.memory_space<vmem>>, vector<512x1xf32>
    tpu.vector_store %arg11[%c0_18, %c0_19], %23 {strides = array<i32>} : memref<512x1xf32, #tpu.memory_space<vmem>>, vector<512x1xf32>,
    %c0_20 = arith.constant 0 : index
    %c0_21 = arith.constant 0 : index
    %25 = vector.load %arg12[%c0_20, %c0_21] : memref<512x32xf32, #tpu.memory_space<vmem>>, vector<512x32xf32>
    %26 = vector.broadcast %15 : vector<512x1xf32> to vector<512x32xf32>
    %27 = arith.mulf %26, %25 : vector<512x32xf32>
    %28 = arith.truncf %18 : vector<512x256xf32> to vector<512x256xbf16>
    %cst_22 = arith.constant dense<0.000000e+00> : vector<512x32xf32>
    %29 = tpu.matmul %28, %8, %cst_22 {dimension_numbers = #tpu.dot_dimension_numbers<[1], [0], [0], [1], [0, 0, 1, 1], [], []>} : vector<512x256xbf16>, vector<256x32xbf16>, vector<512x32xf32> -> vector<512x32xf32>
    %30 = arith.addf %27, %29 : vector<512x32xf32>
    %c0_23 = arith.constant 0 : index
    %c0_24 = arith.constant 0 : index
    %31 = vector.load %arg12[%c0_23, %c0_24] : memref<512x32xf32, #tpu.memory_space<vmem>>, vector<512x32xf32>
    tpu.vector_store %arg12[%c0_23, %c0_24], %30 {strides = array<i32>} : memref<512x32xf32, #tpu.memory_space<vmem>>, vector<512x32xf32>,
    %c0_25 = arith.constant 0 : index
    %c0_26 = arith.constant 0 : index
    %32 = vector.load %arg10[%c0_25, %c0_26] : memref<512x1xf32, #tpu.memory_space<vmem>>, vector<512x1xf32>
    tpu.vector_store %arg10[%c0_25, %c0_26], %13 {strides = array<i32>} : memref<512x1xf32, #tpu.memory_space<vmem>>, vector<512x1xf32>,
    %c0_i32_27 = arith.constant 0 : i32
    %33 = arith.cmpi eq, %arg3, %c0_i32_27 : i32
    %34 = arith.extui %33 : i1 to i32
    %c0_i32_28 = arith.constant 0 : i32
    %35 = arith.cmpi ne, %34, %c0_i32_28 : i32
    scf.if %35 {
      %c0_29 = arith.constant 0 : index
      %c0_30 = arith.constant 0 : index
      %36 = vector.load %arg12[%c0_29, %c0_30] : memref<512x32xf32, #tpu.memory_space<vmem>>, vector<512x32xf32>
      %c0_31 = arith.constant 0 : index
      %c0_32 = arith.constant 0 : index
      %37 = vector.load %arg11[%c0_31, %c0_32] : memref<512x1xf32, #tpu.memory_space<vmem>>, vector<512x1xf32>
      %38 = tpu.reciprocal %37 {approx = true} : vector<512x1xf32> -> vector<512x1xf32>
      %39 = vector.broadcast %38 : vector<512x1xf32> to vector<512x32xf32>
      %40 = arith.mulf %36, %39 : vector<512x32xf32>
      %41 = arith.truncf %40 : vector<512x32xf32> to vector<512x32xbf16>
      %c0_33 = arith.constant 0 : index
      %c0_34 = arith.constant 0 : index
      %c0_35 = arith.constant 0 : index
      %42 = vector.load %arg7[%c0_33, %c0_34, %c0_35] : memref<1x32x64xbf16, #tpu.memory_space<vmem>>, vector<1x32x64xbf16>
      %43 = vector.shape_cast %42 : vector<1x32x64xbf16> to vector<32x64xbf16>
      %cst_36 = arith.constant dense<0.000000e+00> : vector<512x64xf32>
      %44 = tpu.matmul %41, %43, %cst_36 {dimension_numbers = #tpu.dot_dimension_numbers<[1], [0], [0], [1], [0, 0, 1, 1], [], []>} : vector<512x32xbf16>, vector<32x64xbf16>, vector<512x64xf32> -> vector<512x64xf32>
      %c0_i32_37 = arith.constant 0 : i32
      %45 = arith.cmpi eq, %arg2, %c0_i32_37 : i32
      %46 = arith.extui %45 : i1 to i32
      %c0_i32_38 = arith.constant 0 : i32
      %47 = arith.cmpi ne, %46, %c0_i32_38 : i32
      scf.if %47 {
        %c0_41 = arith.constant 0 : index
        %c0_42 = arith.constant 0 : index
        %c0_43 = arith.constant 0 : index
        %51 = vector.load %arg8[%c0_41, %c0_42, %c0_43] : memref<1x512x64xbf16, #tpu.memory_space<vmem>>, vector<1x512x64xbf16>
        %52 = vector.shape_cast %51 : vector<1x512x64xbf16> to vector<512x64xbf16>
        %53 = arith.extf %52 : vector<512x64xbf16> to vector<512x64xf32>
        %54 = arith.addf %53, %44 : vector<512x64xf32>
        %c0_44 = arith.constant 0 : index
        %c0_45 = arith.constant 0 : index
        %c0_46 = arith.constant 0 : index
        %55 = vector.load %arg9[%c0_44, %c0_45, %c0_46] : memref<1x512x64xf32, #tpu.memory_space<vmem>>, vector<1x512x64xf32>
        %56 = vector.shape_cast %55 : vector<1x512x64xf32> to vector<512x64xf32>
        %57 = vector.shape_cast %54 : vector<512x64xf32> to vector<1x512x64xf32>
        tpu.vector_store %arg9[%c0_44, %c0_45, %c0_46], %57 {strides = array<i32>} : memref<1x512x64xf32, #tpu.memory_space<vmem>>, vector<1x512x64xf32>,
      } else {
      }
      %c0_i32_39 = arith.constant 0 : i32
      %48 = arith.cmpi sgt, %arg2, %c0_i32_39 : i32
      %49 = arith.extui %48 : i1 to i32
      %c0_i32_40 = arith.constant 0 : i32
      %50 = arith.cmpi ne, %49, %c0_i32_40 : i32
      scf.if %50 {
        %c0_41 = arith.constant 0 : index
        %c0_42 = arith.constant 0 : index
        %c0_43 = arith.constant 0 : index
        %51 = vector.load %arg9[%c0_41, %c0_42, %c0_43] : memref<1x512x64xf32, #tpu.memory_space<vmem>>, vector<1x512x64xf32>
        %52 = vector.shape_cast %51 : vector<1x512x64xf32> to vector<512x64xf32>
        %53 = arith.addf %52, %44 : vector<512x64xf32>
        %c0_44 = arith.constant 0 : index
        %c0_45 = arith.constant 0 : index
        %c0_46 = arith.constant 0 : index
        %54 = vector.load %arg9[%c0_44, %c0_45, %c0_46] : memref<1x512x64xf32, #tpu.memory_space<vmem>>, vector<1x512x64xf32>
        %55 = vector.shape_cast %54 : vector<1x512x64xf32> to vector<512x64xf32>
        %56 = vector.shape_cast %53 : vector<512x64xf32> to vector<1x512x64xf32>
        tpu.vector_store %arg9[%c0_44, %c0_45, %c0_46], %56 {strides = array<i32>} : memref<1x512x64xf32, #tpu.memory_space<vmem>>, vector<1x512x64xf32>,
      } else {
      }
    } else {
    }
    return
  }
  func.func @transform_0(%arg0: i32, %arg1: i32, %arg2: i32, %arg3: i32) -> (i32, i32, i32, i32) {
    %c0_i32 = arith.constant 0 : i32
    %c0_i32_0 = arith.constant 0 : i32
    return %arg2, %arg0, %arg1, %c0_i32 : i32, i32, i32, i32
  }
  func.func @transform_1(%arg0: i32, %arg1: i32, %arg2: i32, %arg3: i32) -> (i32, i32, i32, i32) {
    %c0_i32 = arith.constant 0 : i32
    %c0_i32_0 = arith.constant 0 : i32
    return %arg2, %arg0, %arg3, %c0_i32 : i32, i32, i32, i32
  }
  func.func @transform_2(%arg0: i32, %arg1: i32, %arg2: i32, %arg3: i32) -> (i32, i32, i32, i32) {
    %c0_i32 = arith.constant 0 : i32
    %c0_i32_0 = arith.constant 0 : i32
    return %arg2, %arg0, %arg3, %c0_i32 : i32, i32, i32, i32
  }
  func.func @transform_3(%arg0: i32, %arg1: i32, %arg2: i32, %arg3: i32) -> (i32, i32, i32) {
    %c0_i32 = arith.constant 0 : i32
    %c0_i32_0 = arith.constant 0 : i32
    %c0_i32_1 = arith.constant 0 : i32
    return %arg2, %c0_i32, %c0_i32_0 : i32, i32, i32
  }
  func.func @transform_4(%arg0: i32, %arg1: i32, %arg2: i32, %arg3: i32) -> (i32, i32, i32) {
    %c0_i32 = arith.constant 0 : i32
    %c0_i32_0 = arith.constant 0 : i32
    return %arg0, %arg1, %c0_i32 : i32, i32, i32
  }
  func.func @transform_5(%arg0: i32, %arg1: i32, %arg2: i32, %arg3: i32) -> (i32, i32, i32) {
    %c0_i32 = arith.constant 0 : i32
    %c0_i32_0 = arith.constant 0 : i32
    return %arg0, %arg1, %c0_i32 : i32, i32, i32
  }
}

</mosaic_0001>

<llo_original>
// kernel: upgto_v1_forward.2
$region0: #{upgto_v1_forward.2}
  #allocation0 [shape = 'u32[]', space=smem, size = 0x4, offset = 0x4, fixed_abs, tag = 'smem constant byte address 0x4 - core index']
  #allocation1 [shape = 'u32[72,128]{1,0:T(1,128)}', space=vmem, size = 0x9000, scoped, tag = 'internal scratch']
  %s0 = inlined_call_operand.vmem [shape: f32[512,32], index: 0, kind: input, shape index: {}, may-alias: {0,1}]
  %s1 = inlined_call_operand.vmem [shape: f32[512,32], index: 1, kind: input, shape index: {}, may-alias: {0,1}]
  %s2 = inlined_call_operand.vmem [shape: f32[1,32], index: 2, kind: input, shape index: {}]
  %s3 = inlined_call_operand.vmem [shape: f32[1,32], index: 3, kind: input, shape index: {}]
  %s4 = inlined_call_operand.vmem [shape: f32[256,1], index: 4, kind: input, shape index: {}]
  %s5 = inlined_call_operand.vmem [shape: bf16[128,640], index: 5, kind: input, shape index: {}]
  %s6 = inlined_call_operand.vmem [shape: bf16[512,256], index: 6, kind: output, shape index: {0}]
  %s7 = inlined_call_operand.vmem [shape: bf16[2,512,128], index: 7, kind: output, shape index: {1}]
  %s8 = inlined_call_operand.vmem [shape: bf16[2,512,32], index: 8, kind: output, shape index: {2}]
  %s9 = inlined_call_operand.vmem [shape: bf16[2,512,32], index: 9, kind: output, shape index: {3}]
  %10 = xla_tuple %s6, %s7, %s8, %s9
  %s11 = sld [smem:[#allocation0]]
  $region192: #{upgto_v1_forward.2} parent=0
    _
  %s13 = ssub.s32 1, %s11
  %s14 = scalar_select 0, %s13, %s11
  $region1: #{upgto_v1_forward.2} parent=0
    #allocation2 [shape = 'u8[262144]{0}', space=vmem, size = 0x40000, scoped, tag = 'output window, operand 1']
    #allocation3 [shape = 'u8[262144]{0}', space=vmem, size = 0x40000, scoped, tag = 'output window, operand 2']
    #allocation4 [shape = 'u8[262144]{0}', space=vmem, size = 0x40000, scoped, tag = 'output window, operand 3']
    loop: start=0, step=1, limit=4
    $region2: #{upgto_v1_forward.2} parent=1 // loop_pre_header
      _
    $region3: #{upgto_v1_forward.2} parent=1 // loop_header
      %s16 = sphi 0, %s20
      %p17 = scmp.ge.s32.totalorder %s16, 4
      %s23 = sphi 0, %s35
      %s24 = sphi 0, %s31
      %s25 = sphi 0, %s23
      %s26 = sphi 0, %s24
      %s27 = sphi 0, %s25
      %s28 = sphi 0, %s26
      %s40 = sphi 0, %s42
      %s43 = sphi 0, %s40
      %s44 = sphi 0, %s43
      %s60 = sphi 0, %s44
      %s78 = sphi 0, %s80
      %s81 = sphi 0, %s78
      %s82 = sphi 0, %s81
      %s98 = sphi 0, %s82
      %s102 = sphi 0, %s102
      %s104 = sphi 0, %s102
      %s105 = sphi 0, %s104
      %s119 = sphi 0, %s105
      %s123 = sphi 0, %s123
      %s125 = sphi 0, %s123
      %s126 = sphi 0, %s125
      %s140 = sphi 0, %s126
      %s144 = sphi 0, %s144
      %s146 = sphi 0, %s144
      %s147 = sphi 0, %s146
      %s161 = sphi 0, %s147
      %s165 = sphi 0, %s165
      %s167 = sphi 0, %s165
      %s168 = sphi 0, %s167
      %s182 = sphi 0, %s168
      %s190 = sphi 0, %s192
      %s193 = sphi 0, %s190
      %s194 = sphi 0, %s193
      %s210 = sphi 0, %s194
      %s218 = sphi 0, %s220
      %s221 = sphi 0, %s218
      %s222 = sphi 0, %s221
      %s238 = sphi 0, %s222
      %s246 = sphi 0, %s248
      %s249 = sphi 0, %s246
      %s250 = sphi 0, %s249
      %s266 = sphi 0, %s250
      %s274 = sphi 0, %s276
      %s277 = sphi 0, %s274
      %s278 = sphi 0, %s277
      %s294 = sphi 0, %s278
    $region4: #{upgto_v1_forward.2} parent=1 // loop_header_branch
      %19 = sbr.rel (%p17) target = $region8
    $region5: #{upgto_v1_forward.2} parent=1 // loop_body
      %s21 = ssub.s32 %s16, 1
      %s22 = ssub.s32 %s16, 2
      %s29 = sadd.s32 1, %s24
      %p30 = scmp.ge.s32.totalorder %s29, 1
      %s31 = scalar_select %p30, 0, %s29
      %s32 = sadd.s32 1, %s23
      %s33 = scalar_select %p30, %s32, %s23
      %p34 = scmp.ge.s32.totalorder %s33, 2
      %s35 = scalar_select %p34, 0, %s33
      %s36 = sadd.s32 %s23, %s24
      %s37 = sadd.s32 %s35, %s31
      %s38 = ssub.s32 %s36, %s37
      %p39 = scmp.eq.s32.totalorder %s38, 0
      %s41 = sadd.s32 %s40, 1
      %s42 = scalar_select %p39, %s40, %s41
      %p45 = pneg %p39
      %p46 = scmp.eq.s32.totalorder %s16, 1
      %p47 = por %p45, %p46
      %p48 = scmp.ne.s32.totalorder %s40, %s43
      %p49 = scmp.eq.s32.totalorder %s16, 0
      %p50 = por %p48, %p49
      %p51 = scmp.ne.s32.totalorder %s40, %s43
      %p52 = scmp.eq.s32.totalorder %s21, 1
      %p53 = por %p51, %p52
      %p54 = scmp.ne.s32.totalorder %s43, %s44
      %p55 = scmp.eq.s32.totalorder %s21, 0
      %p56 = por %p54, %p55
      %p57 = scmp.ne.s32.totalorder %s43, %s44
      %p58 = scmp.eq.s32.totalorder %s22, 1
      %p59 = por %p57, %p58
      %p61 = scmp.ne.s32.totalorder %s44, %s60
      %p62 = scmp.eq.s32.totalorder %s22, 0
      %p63 = por %p61, %p62
      %s64 = smul.u32 %s23, 16
      %s65 = sadd.s32 %s24, 1
      %s66 = smul.u32 %s65, 16
      %s67 = sadd.s32 %s64, %s66
      %p68 = scmp.lt.s32.totalorder %s67, 31
      %s69 = scalar_select %p68, %s67, 31
      %s70 = smul.u32 %s35, 16
      %s71 = sadd.s32 %s31, 1
      %s72 = smul.u32 %s71, 16
      %s73 = sadd.s32 %s70, %s72
      %p74 = scmp.lt.s32.totalorder %s73, 31
      %s75 = scalar_select %p74, %s73, 31
      %s76 = ssub.s32 %s69, %s75
      %p77 = scmp.eq.s32.totalorder %s76, 0
      %s79 = sadd.s32 %s78, 1
      %s80 = scalar_select %p77, %s78, %s79
      %p83 = pneg %p77
      %p84 = scmp.eq.s32.totalorder %s16, 1
      %p85 = por %p83, %p84
      %p86 = scmp.ne.s32.totalorder %s78, %s81
      %p87 = scmp.eq.s32.totalorder %s16, 0
      %p88 = por %p86, %p87
      %p89 = scmp.ne.s32.totalorder %s78, %s81
      %p90 = scmp.eq.s32.totalorder %s21, 1
      %p91 = por %p89, %p90
      %p92 = scmp.ne.s32.totalorder %s81, %s82
      %p93 = scmp.eq.s32.totalorder %s21, 0
      %p94 = por %p92, %p93
      %p95 = scmp.ne.s32.totalorder %s81, %s82
      %p96 = scmp.eq.s32.totalorder %s22, 1
      %p97 = por %p95, %p96
      %p99 = scmp.ne.s32.totalorder %s82, %s98
      %p100 = scmp.eq.s32.totalorder %s22, 0
      %p101 = por %p99, %p100
      %s103 = sadd.s32 %s102, 1
      %p106 = scmp.eq.s32.totalorder %s16, 1
      %p107 = scmp.ne.s32.totalorder %s102, %s104
      %p108 = scmp.eq.s32.totalorder %s16, 0
      %p109 = por %p107, %p108
      %p110 = scmp.ne.s32.totalorder %s102, %s104
      %p111 = scmp.eq.s32.totalorder %s21, 1
      %p112 = por %p110, %p111
      %p113 = scmp.ne.s32.totalorder %s104, %s105
      %p114 = scmp.eq.s32.totalorder %s21, 0
      %p115 = por %p113, %p114
      %p116 = scmp.ne.s32.totalorder %s104, %s105
      %p117 = scmp.eq.s32.totalorder %s22, 1
      %p118 = por %p116, %p117
      %p120 = scmp.ne.s32.totalorder %s105, %s119
      %p121 = scmp.eq.s32.totalorder %s22, 0
      %p122 = por %p120, %p121
      %s124 = sadd.s32 %s123, 1
      %p127 = scmp.eq.s32.totalorder %s16, 1
      %p128 = scmp.ne.s32.totalorder %s123, %s125
      %p129 = scmp.eq.s32.totalorder %s16, 0
      %p130 = por %p128, %p129
      %p131 = scmp.ne.s32.totalorder %s123, %s125
      %p132 = scmp.eq.s32.totalorder %s21, 1
      %p133 = por %p131, %p132
      %p134 = scmp.ne.s32.totalorder %s125, %s126
      %p135 = scmp.eq.s32.totalorder %s21, 0
      %p136 = por %p134, %p135
      %p137 = scmp.ne.s32.totalorder %s125, %s126
      %p138 = scmp.eq.s32.totalorder %s22, 1
      %p139 = por %p137, %p138
      %p141 = scmp.ne.s32.totalorder %s126, %s140
      %p142 = scmp.eq.s32.totalorder %s22, 0
      %p143 = por %p141, %p142
      %s145 = sadd.s32 %s144, 1
      %p148 = scmp.eq.s32.totalorder %s16, 1
      %p149 = scmp.ne.s32.totalorder %s144, %s146
      %p150 = scmp.eq.s32.totalorder %s16, 0
      %p151 = por %p149, %p150
      %p152 = scmp.ne.s32.totalorder %s144, %s146
      %p153 = scmp.eq.s32.totalorder %s21, 1
      %p154 = por %p152, %p153
      %p155 = scmp.ne.s32.totalorder %s146, %s147
      %p156 = scmp.eq.s32.totalorder %s21, 0
      %p157 = por %p155, %p156
      %p158 = scmp.ne.s32.totalorder %s146, %s147
      %p159 = scmp.eq.s32.totalorder %s22, 1
      %p160 = por %p158, %p159
      %p162 = scmp.ne.s32.totalorder %s147, %s161
      %p163 = scmp.eq.s32.totalorder %s22, 0
      %p164 = por %p162, %p163
      %s166 = sadd.s32 %s165, 1
      %p169 = scmp.eq.s32.totalorder %s16, 1
      %p170 = scmp.ne.s32.totalorder %s165, %s167
      %p171 = scmp.eq.s32.totalorder %s16, 0
      %p172 = por %p170, %p171
      %p173 = scmp.ne.s32.totalorder %s165, %s167
      %p174 = scmp.eq.s32.totalorder %s21, 1
      %p175 = por %p173, %p174
      %p176 = scmp.ne.s32.totalorder %s167, %s168
      %p177 = scmp.eq.s32.totalorder %s21, 0
      %p178 = por %p176, %p177
      %p179 = scmp.ne.s32.totalorder %s167, %s168
      %p180 = scmp.eq.s32.totalorder %s22, 1
      %p181 = por %p179, %p180
      %p183 = scmp.ne.s32.totalorder %s168, %s182
      %p184 = scmp.eq.s32.totalorder %s22, 0
      %p185 = por %p183, %p184
      %s186 = sadd.s32 %s23, %s24
      %s187 = sadd.s32 %s35, %s31
      %s188 = ssub.s32 %s186, %s187
      %p189 = scmp.eq.s32.totalorder %s188, 0
      %s191 = sadd.s32 %s190, 1
      %s192 = scalar_select %p189, %s190, %s191
      %p195 = pneg %p189
      %p196 = scmp.eq.s32.totalorder %s16, 1
      %p197 = por %p195, %p196
      %p198 = scmp.ne.s32.totalorder %s190, %s193
      %p199 = scmp.eq.s32.totalorder %s16, 0
      %p200 = por %p198, %p199
      %p201 = scmp.ne.s32.totalorder %s190, %s193
      %p202 = scmp.eq.s32.totalorder %s21, 1
      %p203 = por %p201, %p202
      %p204 = scmp.ne.s32.totalorder %s193, %s194
      %p205 = scmp.eq.s32.totalorder %s21, 0
      %p206 = por %p204, %p205
      %p207 = scmp.ne.s32.totalorder %s193, %s194
      %p208 = scmp.eq.s32.totalorder %s22, 1
      %p209 = por %p207, %p208
      %p211 = scmp.ne.s32.totalorder %s194, %s210
      %p212 = scmp.eq.s32.totalorder %s22, 0
      %p213 = por %p211, %p212
      %s214 = sadd.s32 %s23, %s24
      %s215 = sadd.s32 %s35, %s31
      %s216 = ssub.s32 %s214, %s215
      %p217 = scmp.eq.s32.totalorder %s216, 0
      %s219 = sadd.s32 %s218, 1
      %s220 = scalar_select %p217, %s218, %s219
      %p223 = pneg %p217
      %p224 = scmp.eq.s32.totalorder %s16, 1
      %p225 = por %p223, %p224
      %p226 = scmp.ne.s32.totalorder %s218, %s221
      %p227 = scmp.eq.s32.totalorder %s16, 0
      %p228 = por %p226, %p227
      %p229 = scmp.ne.s32.totalorder %s218, %s221
      %p230 = scmp.eq.s32.totalorder %s21, 1
      %p231 = por %p229, %p230
      %p232 = scmp.ne.s32.totalorder %s221, %s222
      %p233 = scmp.eq.s32.totalorder %s21, 0
      %p234 = por %p232, %p233
      %p235 = scmp.ne.s32.totalorder %s221, %s222
      %p236 = scmp.eq.s32.totalorder %s22, 1
      %p237 = por %p235, %p236
      %p239 = scmp.ne.s32.totalorder %s222, %s238
      %p240 = scmp.eq.s32.totalorder %s22, 0
      %p241 = por %p239, %p240
      %s242 = sadd.s32 %s23, %s24
      %s243 = sadd.s32 %s35, %s31
      %s244 = ssub.s32 %s242, %s243
      %p245 = scmp.eq.s32.totalorder %s244, 0
      %s247 = sadd.s32 %s246, 1
      %s248 = scalar_select %p245, %s246, %s247
      %p251 = pneg %p245
      %p252 = scmp.eq.s32.totalorder %s16, 1
      %p253 = por %p251, %p252
      %p254 = scmp.ne.s32.totalorder %s246, %s249
      %p255 = scmp.eq.s32.totalorder %s16, 0
      %p256 = por %p254, %p255
      %p257 = scmp.ne.s32.totalorder %s246, %s249
      %p258 = scmp.eq.s32.totalorder %s21, 1
      %p259 = por %p257, %p258
      %p260 = scmp.ne.s32.totalorder %s249, %s250
      %p261 = scmp.eq.s32.totalorder %s21, 0
      %p262 = por %p260, %p261
      %p263 = scmp.ne.s32.totalorder %s249, %s250
      %p264 = scmp.eq.s32.totalorder %s22, 1
      %p265 = por %p263, %p264
      %p267 = scmp.ne.s32.totalorder %s250, %s266
      %p268 = scmp.eq.s32.totalorder %s22, 0
      %p269 = por %p267, %p268
      %s270 = sadd.s32 %s23, %s24
      %s271 = sadd.s32 %s35, %s31
      %s272 = ssub.s32 %s270, %s271
      %p273 = scmp.eq.s32.totalorder %s272, 0
      %s275 = sadd.s32 %s274, 1
      %s276 = scalar_select %p273, %s274, %s275
      %p279 = pneg %p273
      %p280 = scmp.eq.s32.totalorder %s16, 1
      %p281 = por %p279, %p280
      %p282 = scmp.ne.s32.totalorder %s274, %s277
      %p283 = scmp.eq.s32.totalorder %s16, 0
      %p284 = por %p282, %p283
      %p285 = scmp.ne.s32.totalorder %s274, %s277
      %p286 = scmp.eq.s32.totalorder %s21, 1
      %p287 = por %p285, %p286
      %p288 = scmp.ne.s32.totalorder %s277, %s278
      %p289 = scmp.eq.s32.totalorder %s21, 0
      %p290 = por %p288, %p289
      %p291 = scmp.ne.s32.totalorder %s277, %s278
      %p292 = scmp.eq.s32.totalorder %s22, 1
      %p293 = por %p291, %p292
      %p295 = scmp.ne.s32.totalorder %s278, %s294
      %p296 = scmp.eq.s32.totalorder %s22, 0
      %p297 = por %p295, %p296
      %p298 = scmp.le.s32.totalorder 1, %s16
      %p299 = scmp.lt.s32.totalorder %s16, 3
      %p300 = pnand %p298, %p299
      %p301 = pneg %p300
      // Predicated region
      $region9: #{upgto_v1_forward.2} parent=5 // pred_check
        _
      $region10: #{upgto_v1_forward.2} parent=5 // pred_check_branch
        %303 = sbr.rel (%p300) target = $region12
      $region11: #{upgto_v1_forward.2} parent=5 // pred_region
        %s304 = ssub.s32 %s16, 1
        // Predicated region
        $region13: #{upgto_v1_forward.2} parent=11 // pred_check
          %p305 = pneg %p115
        $region14: #{upgto_v1_forward.2} parent=11 // pred_check_branch
          %307 = sbr.rel (%p305) target = $region16
        $region15: #{upgto_v1_forward.2} parent=11 // pred_region
          _
        $region16: #{upgto_v1_forward.2} parent=11 // pred_fallthru
          _
        // Predicated region
        $region17: #{upgto_v1_forward.2} parent=11 // pred_check
          %p308 = pneg %p136
        $region18: #{upgto_v1_forward.2} parent=11 // pred_check_branch
          %310 = sbr.rel (%p308) target = $region20
        $region19: #{upgto_v1_forward.2} parent=11 // pred_region
          _
        $region20: #{upgto_v1_forward.2} parent=11 // pred_fallthru
          _
        // Predicated region
        $region21: #{upgto_v1_forward.2} parent=11 // pred_check
          %p311 = pneg %p157
        $region22: #{upgto_v1_forward.2} parent=11 // pred_check_branch
          %313 = sbr.rel (%p311) target = $region24
        $region23: #{upgto_v1_forward.2} parent=11 // pred_region
          _
        $region24: #{upgto_v1_forward.2} parent=11 // pred_fallthru
          _
        // Predicated region
        $region25: #{upgto_v1_forward.2} parent=11 // pred_check
          %p314 = pneg %p178
        $region26: #{upgto_v1_forward.2} parent=11 // pred_check_branch
          %316 = sbr.rel (%p314) target = $region28
        $region27: #{upgto_v1_forward.2} parent=11 // pred_region
          _
        $region28: #{upgto_v1_forward.2} parent=11 // pred_fallthru
          _
      $region12: #{upgto_v1_forward.2} parent=5 // pred_fallthru
        _
      %p317 = scmp.lt.s32.totalorder %s16, 2
      // Predicated region
      $region29: #{upgto_v1_forward.2} parent=5 // pred_check
        %p318 = pneg %p317
      $region30: #{upgto_v1_forward.2} parent=5 // pred_check_branch
        %320 = sbr.rel (%p318) target = $region32
      $region31: #{upgto_v1_forward.2} parent=5 // pred_region
        // Predicated region
        $region33: #{upgto_v1_forward.2} parent=31 // pred_check
          %p321 = pneg %p50
        $region34: #{upgto_v1_forward.2} parent=31 // pred_check_branch
          %323 = sbr.rel (%p321) target = $region36
        $region35: #{upgto_v1_forward.2} parent=31 // pred_region
          %s324 = sadd.s32 %s23, %s24
          %s325 = smul.u32 32, %s324
          %p326 = scmp.lt.s32.totalorder %s325, 63
          %s327 = scalar_select %p326, %s325, 63
          %s328 = smul.addr %s327, 8
          %s329 = scalar_lea.vmem %s0, %s328
          %s330 = sadd.s32 %s23, %s24
          %s331 = smul.u32 32, %s330
        $region36: #{upgto_v1_forward.2} parent=31 // pred_fallthru
          _
        // Predicated region
        $region37: #{upgto_v1_forward.2} parent=31 // pred_check
          %p332 = pneg %p88
        $region38: #{upgto_v1_forward.2} parent=31 // pred_check_branch
          %334 = sbr.rel (%p332) target = $region40
        $region39: #{upgto_v1_forward.2} parent=31 // pred_region
          %s335 = smul.u32 %s23, 16
          %s336 = sadd.s32 %s24, 1
          %s337 = smul.u32 %s336, 16
          %s338 = sadd.s32 %s335, %s337
          %p339 = scmp.lt.s32.totalorder %s338, 31
          %s340 = scalar_select %p339, %s338, 31
          %s341 = smul.u32 2, %s340
          %p342 = scmp.lt.s32.totalorder %s341, 63
          %s343 = scalar_select %p342, %s341, 63
          %s344 = smul.addr %s343, 8
          %s345 = scalar_lea.vmem %s1, %s344
          %s346 = smul.u32 %s23, 16
          %s347 = sadd.s32 %s24, 1
          %s348 = smul.u32 %s347, 16
          %s349 = sadd.s32 %s346, %s348
          %p350 = scmp.lt.s32.totalorder %s349, 31
          %s351 = scalar_select %p350, %s349, 31
          %s352 = smul.u32 2, %s351
        $region40: #{upgto_v1_forward.2} parent=31 // pred_fallthru
          _
      $region32: #{upgto_v1_forward.2} parent=5 // pred_fallthru
        _
      %p353 = scmp.le.s32.totalorder 1, %s16
      %p354 = scmp.lt.s32.totalorder %s16, 3
      %p355 = pnand %p353, %p354
      %p356 = pneg %p355
      // Predicated region
      $region41: #{upgto_v1_forward.2} parent=5 // pred_check
        _
      $region42: #{upgto_v1_forward.2} parent=5 // pred_check_branch
        %358 = sbr.rel (%p355) target = $region44
      $region43: #{upgto_v1_forward.2} parent=5 // pred_region
        %s359 = ssub.s32 %s16, 1
        %s360 = sadd.s32 %s25, %s26
        %s361 = smul.u32 32, %s360
        %p362 = scmp.lt.s32.totalorder %s361, 63
        %s363 = scalar_select %p362, %s361, 63
        %s364 = smul.addr %s363, 8
        %s365 = scalar_lea.vmem %s0, %s364
        %p366 = pneg %p56
        %p367 = pneg %p53
        %s368 = smul.u32 %s25, 16
        %s369 = sadd.s32 %s26, 1
        %s370 = smul.u32 %s369, 16
        %s371 = sadd.s32 %s368, %s370
        %p372 = scmp.lt.s32.totalorder %s371, 31
        %s373 = scalar_select %p372, %s371, 31
        %s374 = smul.u32 2, %s373
        %p375 = scmp.lt.s32.totalorder %s374, 63
        %s376 = scalar_select %p375, %s374, 63
        %s377 = smul.addr %s376, 8
        %s378 = scalar_lea.vmem %s1, %s377
        %p379 = pneg %p94
        %p380 = pneg %p91
        %p381 = pneg %p115
        %p382 = pneg %p112
        %p383 = pneg %p136
        %p384 = pneg %p133
        %p385 = pneg %p157
        %p386 = pneg %p154
        %p387 = pneg %p178
        %p388 = pneg %p175
        %p389 = pneg %p206
        %p390 = pneg %p203
        %s391 = sadd.s32 %s25, %s26
        %s392 = smul.u32 32, %s391
        %p393 = scmp.lt.s32.totalorder %s392, 63
        %s394 = scalar_select %p393, %s392, 63
        %s395 = smul.addr %s394, 2
        %s396 = smul.addr %s395, 4
        %s397 = scalar_lea.vmem %s6, %s396
        %p398 = pneg %p234
        %p399 = pneg %p231
        %s400 = sand.u32 %s221, 1
        %s401 = sand.u32 %s221, 1
        %s402 = smul.addr %s401, 256
        %s403 = scalar_lea.vmem [#allocation2], %s402
        %p404 = pneg %p262
        %p405 = pneg %p259
        %s406 = sand.u32 %s249, 1
        %s407 = sand.u32 %s249, 1
        %s408 = smul.addr %s407, 256
        %s409 = scalar_lea.vmem [#allocation3], %s408
        %p410 = pneg %p290
        %p411 = pneg %p287
        %s412 = sand.u32 %s277, 1
        %s413 = sand.u32 %s277, 1
        %s414 = smul.addr %s413, 256
        %s415 = scalar_lea.vmem [#allocation4], %s414
        %s416 = sadd.s32 %s25, %s26
        %s417 = smul.u32 32, %s416
        %p418 = scmp.lt.s32.totalorder %s417, 63
        %s419 = scalar_select %p418, %s417, 63
        %s420 = smul.addr %s419, 8
        %s421 = scalar_lea.vmem %s0, %s420
        %s422 = sadd.s32 %s25, %s26
        %s423 = smul.u32 32, %s422
        %s424 = smul.u32 %s25, 16
        %s425 = sadd.s32 %s26, 1
        %s426 = smul.u32 %s425, 16
        %s427 = sadd.s32 %s424, %s426
        %p428 = scmp.lt.s32.totalorder %s427, 31
        %s429 = scalar_select %p428, %s427, 31
        %s430 = smul.u32 2, %s429
        %p431 = scmp.lt.s32.totalorder %s430, 63
        %s432 = scalar_select %p431, %s430, 63
        %s433 = smul.addr %s432, 8
        %s434 = scalar_lea.vmem %s1, %s433
        %s435 = smul.u32 %s25, 16
        %s436 = sadd.s32 %s26, 1
        %s437 = smul.u32 %s436, 16
        %s438 = sadd.s32 %s435, %s437
        %p439 = scmp.lt.s32.totalorder %s438, 31
        %s440 = scalar_select %p439, %s438, 31
        %s441 = smul.u32 2, %s440
        %s442 = sadd.s32 %s25, %s26
        %s443 = smul.u32 32, %s442
        %p444 = scmp.lt.s32.totalorder %s443, 63
        %s445 = scalar_select %p444, %s443, 63
        %s446 = smul.addr %s445, 2
        %s447 = smul.addr %s446, 4
        %s448 = scalar_lea.vmem %s6, %s447
        %s449 = sadd.s32 %s25, %s26
        %s450 = smul.u32 32, %s449
        %s451 = sadd.s32 %s25, %s26
        %s452 = smul.u32 32, %s451
        %s453 = sadd.s32 %s25, %s26
        %s454 = smul.u32 32, %s453
        %s455 = sadd.s32 %s25, %s26
        %s456 = smul.u32 32, %s455
        %v457 = vld [vmem:[%s2] sm:$0x1]
        %v458 = vld [vmem:[%s3] sm:$0x1]
        %v459 = vld [vmem:[%s421] sm:$0xff]
        %v460 = vld [vmem:[%s421 + $0x8] sm:$0xff]
        %v461 = vld [vmem:[%s421 + $0x10] sm:$0xff]
        %v462 = vld [vmem:[%s421 + $0x18] sm:$0xff]
        %v463 = vld [vmem:[%s421 + $0x20] sm:$0xff]
        %v464 = vld [vmem:[%s421 + $0x28] sm:$0xff]
        %v465 = vld [vmem:[%s421 + $0x30] sm:$0xff]
        %v466 = vld [vmem:[%s421 + $0x38] sm:$0xff]
        %v467 = vld [vmem:[%s421 + $0x40] sm:$0xff]
        %v468 = vld [vmem:[%s421 + $0x48] sm:$0xff]
        %v469 = vld [vmem:[%s421 + $0x50] sm:$0xff]
        %v470 = vld [vmem:[%s421 + $0x58] sm:$0xff]
        %v471 = vld [vmem:[%s421 + $0x60] sm:$0xff]
        %v472 = vld [vmem:[%s421 + $0x68] sm:$0xff]
        %v473 = vld [vmem:[%s421 + $0x70] sm:$0xff]
        %v474 = vld [vmem:[%s421 + $0x78] sm:$0xff]
        %v475 = vld [vmem:[%s421 + $0x80] sm:$0xff]
        %v476 = vld [vmem:[%s421 + $0x88] sm:$0xff]
        %v477 = vld [vmem:[%s421 + $0x90] sm:$0xff]
        %v478 = vld [vmem:[%s421 + $0x98] sm:$0xff]
        %v479 = vld [vmem:[%s421 + $0xa0] sm:$0xff]
        %v480 = vld [vmem:[%s421 + $0xa8] sm:$0xff]
        %v481 = vld [vmem:[%s421 + $0xb0] sm:$0xff]
        %v482 = vld [vmem:[%s421 + $0xb8] sm:$0xff]
        %v483 = vld [vmem:[%s421 + $0xc0] sm:$0xff]
        %v484 = vld [vmem:[%s421 + $0xc8] sm:$0xff]
        %v485 = vld [vmem:[%s421 + $0xd0] sm:$0xff]
        %v486 = vld [vmem:[%s421 + $0xd8] sm:$0xff]
        %v487 = vld [vmem:[%s421 + $0xe0] sm:$0xff]
        %v488 = vld [vmem:[%s421 + $0xe8] sm:$0xff]
        %v489 = vld [vmem:[%s421 + $0xf0] sm:$0xff]
        %v490 = vld [vmem:[%s421 + $0xf8] sm:$0xff]
        %v492 = vperm.slane %v457, 0
        %v494 = vmul.f32 %v459, %v492
        %v495 = vmul.f32 %v460, %v492
        %v496 = vmul.f32 %v461, %v492
        %v497 = vmul.f32 %v462, %v492
        %v498 = vmul.f32 %v463, %v492
        %v499 = vmul.f32 %v464, %v492
        %v500 = vmul.f32 %v465, %v492
        %v501 = vmul.f32 %v466, %v492
        %v502 = vmul.f32 %v467, %v492
        %v503 = vmul.f32 %v468, %v492
        %v504 = vmul.f32 %v469, %v492
        %v505 = vmul.f32 %v470, %v492
        %v506 = vmul.f32 %v471, %v492
        %v507 = vmul.f32 %v472, %v492
        %v508 = vmul.f32 %v473, %v492
        %v509 = vmul.f32 %v474, %v492
        %v510 = vmul.f32 %v475, %v492
        %v511 = vmul.f32 %v476, %v492
        %v512 = vmul.f32 %v477, %v492
        %v513 = vmul.f32 %v478, %v492
        %v514 = vmul.f32 %v479, %v492
        %v515 = vmul.f32 %v480, %v492
        %v516 = vmul.f32 %v481, %v492
        %v517 = vmul.f32 %v482, %v492
        %v518 = vmul.f32 %v483, %v492
        %v519 = vmul.f32 %v484, %v492
        %v520 = vmul.f32 %v485, %v492
        %v521 = vmul.f32 %v486, %v492
        %v522 = vmul.f32 %v487, %v492
        %v523 = vmul.f32 %v488, %v492
        %v524 = vmul.f32 %v489, %v492
        %v525 = vmul.f32 %v490, %v492
        %v527 = vperm.slane %v458, 0
        %v529 = vadd.f32 %v494, %v527
        %v530 = vadd.f32 %v495, %v527
        %v531 = vadd.f32 %v496, %v527
        %v532 = vadd.f32 %v497, %v527
        %v533 = vadd.f32 %v498, %v527
        %v534 = vadd.f32 %v499, %v527
        %v535 = vadd.f32 %v500, %v527
        %v536 = vadd.f32 %v501, %v527
        %v537 = vadd.f32 %v502, %v527
        %v538 = vadd.f32 %v503, %v527
        %v539 = vadd.f32 %v504, %v527
        %v540 = vadd.f32 %v505, %v527
        %v541 = vadd.f32 %v506, %v527
        %v542 = vadd.f32 %v507, %v527
        %v543 = vadd.f32 %v508, %v527
        %v544 = vadd.f32 %v509, %v527
        %v545 = vadd.f32 %v510, %v527
        %v546 = vadd.f32 %v511, %v527
        %v547 = vadd.f32 %v512, %v527
        %v548 = vadd.f32 %v513, %v527
        %v549 = vadd.f32 %v514, %v527
        %v550 = vadd.f32 %v515, %v527
        %v551 = vadd.f32 %v516, %v527
        %v552 = vadd.f32 %v517, %v527
        %v553 = vadd.f32 %v518, %v527
        %v554 = vadd.f32 %v519, %v527
        %v555 = vadd.f32 %v520, %v527
        %v556 = vadd.f32 %v521, %v527
        %v557 = vadd.f32 %v522, %v527
        %v558 = vadd.f32 %v523, %v527
        %v559 = vadd.f32 %v524, %v527
        %v560 = vadd.f32 %v525, %v527
        %v561 = vmax.f32 %v529, 0.0
        %v562 = vmax.f32 %v530, 0.0
        %v563 = vmax.f32 %v531, 0.0
        %v564 = vmax.f32 %v532, 0.0
        %v565 = vmax.f32 %v533, 0.0
        %v566 = vmax.f32 %v534, 0.0
        %v567 = vmax.f32 %v535, 0.0
        %v568 = vmax.f32 %v536, 0.0
        %v569 = vmax.f32 %v537, 0.0
        %v570 = vmax.f32 %v538, 0.0
        %v571 = vmax.f32 %v539, 0.0
        %v572 = vmax.f32 %v540, 0.0
        %v573 = vmax.f32 %v541, 0.0
        %v574 = vmax.f32 %v542, 0.0
        %v575 = vmax.f32 %v543, 0.0
        %v576 = vmax.f32 %v544, 0.0
        %v577 = vmax.f32 %v545, 0.0
        %v578 = vmax.f32 %v546, 0.0
        %v579 = vmax.f32 %v547, 0.0
        %v580 = vmax.f32 %v548, 0.0
        %v581 = vmax.f32 %v549, 0.0
        %v582 = vmax.f32 %v550, 0.0
        %v583 = vmax.f32 %v551, 0.0
        %v584 = vmax.f32 %v552, 0.0
        %v585 = vmax.f32 %v553, 0.0
        %v586 = vmax.f32 %v554, 0.0
        %v587 = vmax.f32 %v555, 0.0
        %v588 = vmax.f32 %v556, 0.0
        %v589 = vmax.f32 %v557, 0.0
        %v590 = vmax.f32 %v558, 0.0
        %v591 = vmax.f32 %v559, 0.0
        %v592 = vmax.f32 %v560, 0.0
        %v593 = vld [vmem:[%s434] sm:$0xff]
        %v594 = vld [vmem:[%s434 + $0x8] sm:$0xff]
        %v595 = vmul.f32 %v593, %v492
        %v596 = vmul.f32 %v594, %v492
        %v597 = vadd.f32 %v595, %v527
        %v598 = vadd.f32 %v596, %v527
        %v599 = vmax.f32 %v597, 0.0
        %v600 = vmax.f32 %v598, 0.0
        %p601 = scmp.eq.s32.totalorder %s26, 0
        %s602 = scalar_select %p601, 0.0, 1.0
        %v603 = vstv %s602
        %v604 = vmul.f32 %v599, %v603
        %v605 = vmul.f32 %v600, %v603
        %v606 = vld [vmem:[%s4] sm:$0xff]
        %v607 = vld [vmem:[%s4 + $0x8] sm:$0xff]
        %v608 = vld [vmem:[%s4 + $0x10] sm:$0xff]
        %v609 = vld [vmem:[%s4 + $0x18] sm:$0xff]
        %v610 = vld [vmem:[%s4 + $0x20] sm:$0xff]
        %v611 = vld [vmem:[%s4 + $0x28] sm:$0xff]
        %v612 = vld [vmem:[%s4 + $0x30] sm:$0xff]
        %v613 = vld [vmem:[%s4 + $0x38] sm:$0xff]
        %v614 = vld [vmem:[%s4 + $0x40] sm:$0xff]
        %v615 = vld [vmem:[%s4 + $0x48] sm:$0xff]
        %v616 = vld [vmem:[%s4 + $0x50] sm:$0xff]
        %v617 = vld [vmem:[%s4 + $0x58] sm:$0xff]
        %v618 = vld [vmem:[%s4 + $0x60] sm:$0xff]
        %v619 = vld [vmem:[%s4 + $0x68] sm:$0xff]
        %v620 = vld [vmem:[%s4 + $0x70] sm:$0xff]
        %v621 = vld [vmem:[%s4 + $0x78] sm:$0xff]
        %v622 = vld [vmem:[%s4 + $0x80] sm:$0xff]
        %v623 = vld [vmem:[%s4 + $0x88] sm:$0xff]
        %v624 = vld [vmem:[%s4 + $0x90] sm:$0xff]
        %v625 = vld [vmem:[%s4 + $0x98] sm:$0xff]
        %v626 = vld [vmem:[%s4 + $0xa0] sm:$0xff]
        %v627 = vld [vmem:[%s4 + $0xa8] sm:$0xff]
        %v628 = vld [vmem:[%s4 + $0xb0] sm:$0xff]
        %v629 = vld [vmem:[%s4 + $0xb8] sm:$0xff]
        %v630 = vld [vmem:[%s4 + $0xc0] sm:$0xff]
        %v631 = vld [vmem:[%s4 + $0xc8] sm:$0xff]
        %v632 = vld [vmem:[%s4 + $0xd0] sm:$0xff]
        %v633 = vld [vmem:[%s4 + $0xd8] sm:$0xff]
        %v634 = vld [vmem:[%s4 + $0xe0] sm:$0xff]
        %v635 = vld [vmem:[%s4 + $0xe8] sm:$0xff]
        %v636 = vld [vmem:[%s4 + $0xf0] sm:$0xff]
        %v637 = vld [vmem:[%s4 + $0xf8] sm:$0xff]
        %vm670 = vcmask 1046528
        %v671 = vrot.slane %v561, 1
        %v672 = vrot.slane %v562, 1
        %v673 = vsel %vm670, %v671, %v672
        %v674 = vrot.slane %v563, 1
        %v675 = vsel %vm670, %v672, %v674
        %v676 = vrot.slane %v564, 1
        %v677 = vsel %vm670, %v674, %v676
        %v678 = vrot.slane %v565, 1
        %v679 = vsel %vm670, %v676, %v678
        %v680 = vrot.slane %v566, 1
        %v681 = vsel %vm670, %v678, %v680
        %v682 = vrot.slane %v567, 1
        %v683 = vsel %vm670, %v680, %v682
        %v684 = vrot.slane %v568, 1
        %v685 = vsel %vm670, %v682, %v684
        %v686 = vrot.slane %v569, 1
        %v687 = vsel %vm670, %v684, %v686
        %v688 = vrot.slane %v570, 1
        %v689 = vsel %vm670, %v686, %v688
        %v690 = vrot.slane %v571, 1
        %v691 = vsel %vm670, %v688, %v690
        %v692 = vrot.slane %v572, 1
        %v693 = vsel %vm670, %v690, %v692
        %v694 = vrot.slane %v573, 1
        %v695 = vsel %vm670, %v692, %v694
        %v696 = vrot.slane %v574, 1
        %v697 = vsel %vm670, %v694, %v696
        %v698 = vrot.slane %v575, 1
        %v699 = vsel %vm670, %v696, %v698
        %v700 = vrot.slane %v576, 1
        %v701 = vsel %vm670, %v698, %v700
        %v702 = vrot.slane %v577, 1
        %v703 = vsel %vm670, %v700, %v702
        %v704 = vrot.slane %v578, 1
        %v705 = vsel %vm670, %v702, %v704
        %v706 = vrot.slane %v579, 1
        %v707 = vsel %vm670, %v704, %v706
        %v708 = vrot.slane %v580, 1
        %v709 = vsel %vm670, %v706, %v708
        %v710 = vrot.slane %v581, 1
        %v711 = vsel %vm670, %v708, %v710
        %v712 = vrot.slane %v582, 1
        %v713 = vsel %vm670, %v710, %v712
        %v714 = vrot.slane %v583, 1
        %v715 = vsel %vm670, %v712, %v714
        %v716 = vrot.slane %v584, 1
        %v717 = vsel %vm670, %v714, %v716
        %v718 = vrot.slane %v585, 1
        %v719 = vsel %vm670, %v716, %v718
        %v720 = vrot.slane %v586, 1
        %v721 = vsel %vm670, %v718, %v720
        %v722 = vrot.slane %v587, 1
        %v723 = vsel %vm670, %v720, %v722
        %v724 = vrot.slane %v588, 1
        %v725 = vsel %vm670, %v722, %v724
        %v726 = vrot.slane %v589, 1
        %v727 = vsel %vm670, %v724, %v726
        %v728 = vrot.slane %v590, 1
        %v729 = vsel %vm670, %v726, %v728
        %v730 = vrot.slane %v591, 1
        %v731 = vsel %vm670, %v728, %v730
        %v732 = vrot.slane %v592, 1
        %v733 = vsel %vm670, %v730, %v732
        %v766 = vsel %vm670, %v732, 0.0
        %768 = vset.pattern.permute.xlu0 0
        %769 = vperm.xlu0 %768, %v606
        %v770 = vpop.permute.xlu0 %769
        %773 = vset.pattern.permute.xlu0 0
        %774 = vperm.xlu0 %773, %v607
        %v775 = vpop.permute.xlu0 %774
        %778 = vset.pattern.permute.xlu0 0
        %779 = vperm.xlu0 %778, %v608
        %v780 = vpop.permute.xlu0 %779
        %783 = vset.pattern.permute.xlu0 0
        %784 = vperm.xlu0 %783, %v609
        %v785 = vpop.permute.xlu0 %784
        %788 = vset.pattern.permute.xlu0 0
        %789 = vperm.xlu0 %788, %v610
        %v790 = vpop.permute.xlu0 %789
        %793 = vset.pattern.permute.xlu0 0
        %794 = vperm.xlu0 %793, %v611
        %v795 = vpop.permute.xlu0 %794
        %798 = vset.pattern.permute.xlu0 0
        %799 = vperm.xlu0 %798, %v612
        %v800 = vpop.permute.xlu0 %799
        %803 = vset.pattern.permute.xlu0 0
        %804 = vperm.xlu0 %803, %v613
        %v805 = vpop.permute.xlu0 %804
        %808 = vset.pattern.permute.xlu0 0
        %809 = vperm.xlu0 %808, %v614
        %v810 = vpop.permute.xlu0 %809
        %813 = vset.pattern.permute.xlu0 0
        %814 = vperm.xlu0 %813, %v615
        %v815 = vpop.permute.xlu0 %814
        %818 = vset.pattern.permute.xlu0 0
        %819 = vperm.xlu0 %818, %v616
        %v820 = vpop.permute.xlu0 %819
        %823 = vset.pattern.permute.xlu0 0
        %824 = vperm.xlu0 %823, %v617
        %v825 = vpop.permute.xlu0 %824
        %828 = vset.pattern.permute.xlu0 0
        %829 = vperm.xlu0 %828, %v618
        %v830 = vpop.permute.xlu0 %829
        %833 = vset.pattern.permute.xlu0 0
        %834 = vperm.xlu0 %833, %v619
        %v835 = vpop.permute.xlu0 %834
        %838 = vset.pattern.permute.xlu0 0
        %839 = vperm.xlu0 %838, %v620
        %v840 = vpop.permute.xlu0 %839
        %843 = vset.pattern.permute.xlu0 0
        %844 = vperm.xlu0 %843, %v621
        %v845 = vpop.permute.xlu0 %844
        %848 = vset.pattern.permute.xlu0 0
        %849 = vperm.xlu0 %848, %v622
        %v850 = vpop.permute.xlu0 %849
        %853 = vset.pattern.permute.xlu0 0
        %854 = vperm.xlu0 %853, %v623
        %v855 = vpop.permute.xlu0 %854
        %858 = vset.pattern.permute.xlu0 0
        %859 = vperm.xlu0 %858, %v624
        %v860 = vpop.permute.xlu0 %859
        %863 = vset.pattern.permute.xlu0 0
        %864 = vperm.xlu0 %863, %v625
        %v865 = vpop.permute.xlu0 %864
        %868 = vset.pattern.permute.xlu0 0
        %869 = vperm.xlu0 %868, %v626
        %v870 = vpop.permute.xlu0 %869
        %873 = vset.pattern.permute.xlu0 0
        %874 = vperm.xlu0 %873, %v627
        %v875 = vpop.permute.xlu0 %874
        %878 = vset.pattern.permute.xlu0 0
        %879 = vperm.xlu0 %878, %v628
        %v880 = vpop.permute.xlu0 %879
        %883 = vset.pattern.permute.xlu0 0
        %884 = vperm.xlu0 %883, %v629
        %v885 = vpop.permute.xlu0 %884
        %888 = vset.pattern.permute.xlu0 0
        %889 = vperm.xlu0 %888, %v630
        %v890 = vpop.permute.xlu0 %889
        %893 = vset.pattern.permute.xlu0 0
        %894 = vperm.xlu0 %893, %v631
        %v895 = vpop.permute.xlu0 %894
        %898 = vset.pattern.permute.xlu0 0
        %899 = vperm.xlu0 %898, %v632
        %v900 = vpop.permute.xlu0 %899
        %903 = vset.pattern.permute.xlu0 0
        %904 = vperm.xlu0 %903, %v633
        %v905 = vpop.permute.xlu0 %904
        %908 = vset.pattern.permute.xlu0 0
        %909 = vperm.xlu0 %908, %v634
        %v910 = vpop.permute.xlu0 %909
        %913 = vset.pattern.permute.xlu0 0
        %914 = vperm.xlu0 %913, %v635
        %v915 = vpop.permute.xlu0 %914
        %918 = vset.pattern.permute.xlu0 0
        %919 = vperm.xlu0 %918, %v636
        %v920 = vpop.permute.xlu0 %919
        %923 = vset.pattern.permute.xlu0 0
        %924 = vperm.xlu0 %923, %v637
        %v925 = vpop.permute.xlu0 %924
        %v927 = vmul.f32 %v770, %v673
        %v928 = vmul.f32 %v775, %v675
        %v929 = vmul.f32 %v780, %v677
        %v930 = vmul.f32 %v785, %v679
        %v931 = vmul.f32 %v790, %v681
        %v932 = vmul.f32 %v795, %v683
        %v933 = vmul.f32 %v800, %v685
        %v934 = vmul.f32 %v805, %v687
        %v935 = vmul.f32 %v810, %v689
        %v936 = vmul.f32 %v815, %v691
        %v937 = vmul.f32 %v820, %v693
        %v938 = vmul.f32 %v825, %v695
        %v939 = vmul.f32 %v830, %v697
        %v940 = vmul.f32 %v835, %v699
        %v941 = vmul.f32 %v840, %v701
        %v942 = vmul.f32 %v845, %v703
        %v943 = vmul.f32 %v850, %v705
        %v944 = vmul.f32 %v855, %v707
        %v945 = vmul.f32 %v860, %v709
        %v946 = vmul.f32 %v865, %v711
        %v947 = vmul.f32 %v870, %v713
        %v948 = vmul.f32 %v875, %v715
        %v949 = vmul.f32 %v880, %v717
        %v950 = vmul.f32 %v885, %v719
        %v951 = vmul.f32 %v890, %v721
        %v952 = vmul.f32 %v895, %v723
        %v953 = vmul.f32 %v900, %v725
        %v954 = vmul.f32 %v905, %v727
        %v955 = vmul.f32 %v910, %v729
        %v956 = vmul.f32 %v915, %v731
        %v957 = vmul.f32 %v920, %v733
        %v958 = vmul.f32 %v925, %v766
        %v961 = vrot.slane %v604, 1
        %v962 = vsel %vm670, %v732, %v961
        %v963 = vrot.slane %v605, 1
        %v964 = vsel %vm670, %v961, %v963
        %v968 = vsel %vm670, %v963, 0.0
        %v969 = vmul.f32 %v770, %v677
        %v970 = vmul.f32 %v775, %v679
        %v971 = vmul.f32 %v780, %v681
        %v972 = vmul.f32 %v785, %v683
        %v973 = vmul.f32 %v790, %v685
        %v974 = vmul.f32 %v795, %v687
        %v975 = vmul.f32 %v800, %v689
        %v976 = vmul.f32 %v805, %v691
        %v977 = vmul.f32 %v810, %v693
        %v978 = vmul.f32 %v815, %v695
        %v979 = vmul.f32 %v820, %v697
        %v980 = vmul.f32 %v825, %v699
        %v981 = vmul.f32 %v830, %v701
        %v982 = vmul.f32 %v835, %v703
        %v983 = vmul.f32 %v840, %v705
        %v984 = vmul.f32 %v845, %v707
        %v985 = vmul.f32 %v850, %v709
        %v986 = vmul.f32 %v855, %v711
        %v987 = vmul.f32 %v860, %v713
        %v988 = vmul.f32 %v865, %v715
        %v989 = vmul.f32 %v870, %v717
        %v990 = vmul.f32 %v875, %v719
        %v991 = vmul.f32 %v880, %v721
        %v992 = vmul.f32 %v885, %v723
        %v993 = vmul.f32 %v890, %v725
        %v994 = vmul.f32 %v895, %v727
        %v995 = vmul.f32 %v900, %v729
        %v996 = vmul.f32 %v905, %v731
        %v997 = vmul.f32 %v910, %v733
        %v998 = vmul.f32 %v915, %v962
        %v999 = vmul.f32 %v920, %v964
        %v1000 = vmul.f32 %v925, %v968
        %1033 = vrot.lane.b32.xlu0 %v927, 32
        %v1034 = vpop.permute.xlu0 %1033
        %1035 = vrot.lane.b32.xlu0 %v928, 32
        %v1036 = vpop.permute.xlu0 %1035
        %1037 = vrot.lane.b32.xlu0 %v929, 32
        %v1038 = vpop.permute.xlu0 %1037
        %1039 = vrot.lane.b32.xlu0 %v930, 32
        %v1040 = vpop.permute.xlu0 %1039
        %1041 = vrot.lane.b32.xlu0 %v931, 32
        %v1042 = vpop.permute.xlu0 %1041
        %1043 = vrot.lane.b32.xlu0 %v932, 32
        %v1044 = vpop.permute.xlu0 %1043
        %1045 = vrot.lane.b32.xlu0 %v933, 32
        %v1046 = vpop.permute.xlu0 %1045
        %1047 = vrot.lane.b32.xlu0 %v934, 32
        %v1048 = vpop.permute.xlu0 %1047
        %1049 = vrot.lane.b32.xlu0 %v935, 32
        %v1050 = vpop.permute.xlu0 %1049
        %1051 = vrot.lane.b32.xlu0 %v936, 32
        %v1052 = vpop.permute.xlu0 %1051
        %1053 = vrot.lane.b32.xlu0 %v937, 32
        %v1054 = vpop.permute.xlu0 %1053
        %1055 = vrot.lane.b32.xlu0 %v938, 32
        %v1056 = vpop.permute.xlu0 %1055
        %1057 = vrot.lane.b32.xlu0 %v939, 32
        %v1058 = vpop.permute.xlu0 %1057
        %1059 = vrot.lane.b32.xlu0 %v940, 32
        %v1060 = vpop.permute.xlu0 %1059
        %1061 = vrot.lane.b32.xlu0 %v941, 32
        %v1062 = vpop.permute.xlu0 %1061
        %1063 = vrot.lane.b32.xlu0 %v942, 32
        %v1064 = vpop.permute.xlu0 %1063
        %1065 = vrot.lane.b32.xlu0 %v943, 32
        %v1066 = vpop.permute.xlu0 %1065
        %1067 = vrot.lane.b32.xlu0 %v944, 32
        %v1068 = vpop.permute.xlu0 %1067
        %1069 = vrot.lane.b32.xlu0 %v945, 32
        %v1070 = vpop.permute.xlu0 %1069
        %1071 = vrot.lane.b32.xlu0 %v946, 32
        %v1072 = vpop.permute.xlu0 %1071
        %1073 = vrot.lane.b32.xlu0 %v947, 32
        %v1074 = vpop.permute.xlu0 %1073
        %1075 = vrot.lane.b32.xlu0 %v948, 32
        %v1076 = vpop.permute.xlu0 %1075
        %1077 = vrot.lane.b32.xlu0 %v949, 32
        %v1078 = vpop.permute.xlu0 %1077
        %1079 = vrot.lane.b32.xlu0 %v950, 32
        %v1080 = vpop.permute.xlu0 %1079
        %1081 = vrot.lane.b32.xlu0 %v951, 32
        %v1082 = vpop.permute.xlu0 %1081
        %1083 = vrot.lane.b32.xlu0 %v952, 32
        %v1084 = vpop.permute.xlu0 %1083
        %1085 = vrot.lane.b32.xlu0 %v953, 32
        %v1086 = vpop.permute.xlu0 %1085
        %1087 = vrot.lane.b32.xlu0 %v954, 32
        %v1088 = vpop.permute.xlu0 %1087
        %1089 = vrot.lane.b32.xlu0 %v955, 32
        %v1090 = vpop.permute.xlu0 %1089
        %1091 = vrot.lane.b32.xlu0 %v956, 32
        %v1092 = vpop.permute.xlu0 %1091
        %1093 = vrot.lane.b32.xlu0 %v957, 32
        %v1094 = vpop.permute.xlu0 %1093
        %1095 = vrot.lane.b32.xlu0 %v958, 32
        %v1096 = vpop.permute.xlu0 %1095
        %1129 = vrot.lane.b32.xlu0 %v563, 64
        %v1130 = vpop.permute.xlu0 %1129
        %1131 = vrot.lane.b32.xlu0 %v564, 64
        %v1132 = vpop.permute.xlu0 %1131
        %1133 = vrot.lane.b32.xlu0 %v565, 64
        %v1134 = vpop.permute.xlu0 %1133
        %1135 = vrot.lane.b32.xlu0 %v566, 64
        %v1136 = vpop.permute.xlu0 %1135
        %1137 = vrot.lane.b32.xlu0 %v567, 64
        %v1138 = vpop.permute.xlu0 %1137
        %1139 = vrot.lane.b32.xlu0 %v568, 64
        %v1140 = vpop.permute.xlu0 %1139
        %1141 = vrot.lane.b32.xlu0 %v569, 64
        %v1142 = vpop.permute.xlu0 %1141
        %1143 = vrot.lane.b32.xlu0 %v570, 64
        %v1144 = vpop.permute.xlu0 %1143
        %1145 = vrot.lane.b32.xlu0 %v571, 64
        %v1146 = vpop.permute.xlu0 %1145
        %1147 = vrot.lane.b32.xlu0 %v572, 64
        %v1148 = vpop.permute.xlu0 %1147
        %1149 = vrot.lane.b32.xlu0 %v573, 64
        %v1150 = vpop.permute.xlu0 %1149
        %1151 = vrot.lane.b32.xlu0 %v574, 64
        %v1152 = vpop.permute.xlu0 %1151
        %1153 = vrot.lane.b32.xlu0 %v575, 64
        %v1154 = vpop.permute.xlu0 %1153
        %1155 = vrot.lane.b32.xlu0 %v576, 64
        %v1156 = vpop.permute.xlu0 %1155
        %1157 = vrot.lane.b32.xlu0 %v577, 64
        %v1158 = vpop.permute.xlu0 %1157
        %1159 = vrot.lane.b32.xlu0 %v578, 64
        %v1160 = vpop.permute.xlu0 %1159
        %1161 = vrot.lane.b32.xlu0 %v579, 64
        %v1162 = vpop.permute.xlu0 %1161
        %1163 = vrot.lane.b32.xlu0 %v580, 64
        %v1164 = vpop.permute.xlu0 %1163
        %1165 = vrot.lane.b32.xlu0 %v581, 64
        %v1166 = vpop.permute.xlu0 %1165
        %1167 = vrot.lane.b32.xlu0 %v582, 64
        %v1168 = vpop.permute.xlu0 %1167
        %1169 = vrot.lane.b32.xlu0 %v583, 64
        %v1170 = vpop.permute.xlu0 %1169
        %1171 = vrot.lane.b32.xlu0 %v584, 64
        %v1172 = vpop.permute.xlu0 %1171
        %1173 = vrot.lane.b32.xlu0 %v585, 64
        %v1174 = vpop.permute.xlu0 %1173
        %1175 = vrot.lane.b32.xlu0 %v586, 64
        %v1176 = vpop.permute.xlu0 %1175
        %1177 = vrot.lane.b32.xlu0 %v587, 64
        %v1178 = vpop.permute.xlu0 %1177
        %1179 = vrot.lane.b32.xlu0 %v588, 64
        %v1180 = vpop.permute.xlu0 %1179
        %1181 = vrot.lane.b32.xlu0 %v589, 64
        %v1182 = vpop.permute.xlu0 %1181
        %1183 = vrot.lane.b32.xlu0 %v590, 64
        %v1184 = vpop.permute.xlu0 %1183
        %1185 = vrot.lane.b32.xlu0 %v591, 64
        %v1186 = vpop.permute.xlu0 %1185
        %1187 = vrot.lane.b32.xlu0 %v592, 64
        %v1188 = vpop.permute.xlu0 %1187
        %1189 = vrot.lane.b32.xlu0 %v604, 64
        %v1190 = vpop.permute.xlu0 %1189
        %1191 = vrot.lane.b32.xlu0 %v605, 64
        %v1192 = vpop.permute.xlu0 %1191
        %1257 = vrot.lane.b32.xlu0 %v969, 96
        %v1258 = vpop.permute.xlu0 %1257
        %1259 = vrot.lane.b32.xlu0 %v970, 96
        %v1260 = vpop.permute.xlu0 %1259
        %1261 = vrot.lane.b32.xlu0 %v971, 96
        %v1262 = vpop.permute.xlu0 %1261
        %1263 = vrot.lane.b32.xlu0 %v972, 96
        %v1264 = vpop.permute.xlu0 %1263
        %1265 = vrot.lane.b32.xlu0 %v973, 96
        %v1266 = vpop.permute.xlu0 %1265
        %1267 = vrot.lane.b32.xlu0 %v974, 96
        %v1268 = vpop.permute.xlu0 %1267
        %1269 = vrot.lane.b32.xlu0 %v975, 96
        %v1270 = vpop.permute.xlu0 %1269
        %1271 = vrot.lane.b32.xlu0 %v976, 96
        %v1272 = vpop.permute.xlu0 %1271
        %1273 = vrot.lane.b32.xlu0 %v977, 96
        %v1274 = vpop.permute.xlu0 %1273
        %1275 = vrot.lane.b32.xlu0 %v978, 96
        %v1276 = vpop.permute.xlu0 %1275
        %1277 = vrot.lane.b32.xlu0 %v979, 96
        %v1278 = vpop.permute.xlu0 %1277
        %1279 = vrot.lane.b32.xlu0 %v980, 96
        %v1280 = vpop.permute.xlu0 %1279
        %1281 = vrot.lane.b32.xlu0 %v981, 96
        %v1282 = vpop.permute.xlu0 %1281
        %1283 = vrot.lane.b32.xlu0 %v982, 96
        %v1284 = vpop.permute.xlu0 %1283
        %1285 = vrot.lane.b32.xlu0 %v983, 96
        %v1286 = vpop.permute.xlu0 %1285
        %1287 = vrot.lane.b32.xlu0 %v984, 96
        %v1288 = vpop.permute.xlu0 %1287
        %1289 = vrot.lane.b32.xlu0 %v985, 96
        %v1290 = vpop.permute.xlu0 %1289
        %1291 = vrot.lane.b32.xlu0 %v986, 96
        %v1292 = vpop.permute.xlu0 %1291
        %1293 = vrot.lane.b32.xlu0 %v987, 96
        %v1294 = vpop.permute.xlu0 %1293
        %1295 = vrot.lane.b32.xlu0 %v988, 96
        %v1296 = vpop.permute.xlu0 %1295
        %1297 = vrot.lane.b32.xlu0 %v989, 96
        %v1298 = vpop.permute.xlu0 %1297
        %1299 = vrot.lane.b32.xlu0 %v990, 96
        %v1300 = vpop.permute.xlu0 %1299
        %1301 = vrot.lane.b32.xlu0 %v991, 96
        %v1302 = vpop.permute.xlu0 %1301
        %1303 = vrot.lane.b32.xlu0 %v992, 96
        %v1304 = vpop.permute.xlu0 %1303
        %1305 = vrot.lane.b32.xlu0 %v993, 96
        %v1306 = vpop.permute.xlu0 %1305
        %1307 = vrot.lane.b32.xlu0 %v994, 96
        %v1308 = vpop.permute.xlu0 %1307
        %1309 = vrot.lane.b32.xlu0 %v995, 96
        %v1310 = vpop.permute.xlu0 %1309
        %1311 = vrot.lane.b32.xlu0 %v996, 96
        %v1312 = vpop.permute.xlu0 %1311
        %1313 = vrot.lane.b32.xlu0 %v997, 96
        %v1314 = vpop.permute.xlu0 %1313
        %1315 = vrot.lane.b32.xlu0 %v998, 96
        %v1316 = vpop.permute.xlu0 %1315
        %1317 = vrot.lane.b32.xlu0 %v999, 96
        %v1318 = vpop.permute.xlu0 %1317
        %1319 = vrot.lane.b32.xlu0 %v1000, 96
        %v1320 = vpop.permute.xlu0 %1319
        %vm1353 = vcmask 261120
        %v1354 = vsel %vm1353, %v561, %v1034
        %v1355 = vsel %vm1353, %v562, %v1036
        %v1356 = vsel %vm1353, %v563, %v1038
        %v1357 = vsel %vm1353, %v564, %v1040
        %v1358 = vsel %vm1353, %v565, %v1042
        %v1359 = vsel %vm1353, %v566, %v1044
        %v1360 = vsel %vm1353, %v567, %v1046
        %v1361 = vsel %vm1353, %v568, %v1048
        %v1362 = vsel %vm1353, %v569, %v1050
        %v1363 = vsel %vm1353, %v570, %v1052
        %v1364 = vsel %vm1353, %v571, %v1054
        %v1365 = vsel %vm1353, %v572, %v1056
        %v1366 = vsel %vm1353, %v573, %v1058
        %v1367 = vsel %vm1353, %v574, %v1060
        %v1368 = vsel %vm1353, %v575, %v1062
        %v1369 = vsel %vm1353, %v576, %v1064
        %v1370 = vsel %vm1353, %v577, %v1066
        %v1371 = vsel %vm1353, %v578, %v1068
        %v1372 = vsel %vm1353, %v579, %v1070
        %v1373 = vsel %vm1353, %v580, %v1072
        %v1374 = vsel %vm1353, %v581, %v1074
        %v1375 = vsel %vm1353, %v582, %v1076
        %v1376 = vsel %vm1353, %v583, %v1078
        %v1377 = vsel %vm1353, %v584, %v1080
        %v1378 = vsel %vm1353, %v585, %v1082
        %v1379 = vsel %vm1353, %v586, %v1084
        %v1380 = vsel %vm1353, %v587, %v1086
        %v1381 = vsel %vm1353, %v588, %v1088
        %v1382 = vsel %vm1353, %v589, %v1090
        %v1383 = vsel %vm1353, %v590, %v1092
        %v1384 = vsel %vm1353, %v591, %v1094
        %v1385 = vsel %vm1353, %v592, %v1096
        %vm1386 = vcmask 523264
        %v1387 = vsel %vm1386, %v1354, %v1130
        %v1388 = vsel %vm1386, %v1355, %v1132
        %v1389 = vsel %vm1386, %v1356, %v1134
        %v1390 = vsel %vm1386, %v1357, %v1136
        %v1391 = vsel %vm1386, %v1358, %v1138
        %v1392 = vsel %vm1386, %v1359, %v1140
        %v1393 = vsel %vm1386, %v1360, %v1142
        %v1394 = vsel %vm1386, %v1361, %v1144
        %v1395 = vsel %vm1386, %v1362, %v1146
        %v1396 = vsel %vm1386, %v1363, %v1148
        %v1397 = vsel %vm1386, %v1364, %v1150
        %v1398 = vsel %vm1386, %v1365, %v1152
        %v1399 = vsel %vm1386, %v1366, %v1154
        %v1400 = vsel %vm1386, %v1367, %v1156
        %v1401 = vsel %vm1386, %v1368, %v1158
        %v1402 = vsel %vm1386, %v1369, %v1160
        %v1403 = vsel %vm1386, %v1370, %v1162
        %v1404 = vsel %vm1386, %v1371, %v1164
        %v1405 = vsel %vm1386, %v1372, %v1166
        %v1406 = vsel %vm1386, %v1373, %v1168
        %v1407 = vsel %vm1386, %v1374, %v1170
        %v1408 = vsel %vm1386, %v1375, %v1172
        %v1409 = vsel %vm1386, %v1376, %v1174
        %v1410 = vsel %vm1386, %v1377, %v1176
        %v1411 = vsel %vm1386, %v1378, %v1178
        %v1412 = vsel %vm1386, %v1379, %v1180
        %v1413 = vsel %vm1386, %v1380, %v1182
        %v1414 = vsel %vm1386, %v1381, %v1184
        %v1415 = vsel %vm1386, %v1382, %v1186
        %v1416 = vsel %vm1386, %v1383, %v1188
        %v1417 = vsel %vm1386, %v1384, %v1190
        %v1418 = vsel %vm1386, %v1385, %v1192
        %vm1419 = vcmask 785408
        %v1420 = vsel %vm1419, %v1387, %v1258
        %v1421 = vsel %vm1419, %v1388, %v1260
        %v1422 = vsel %vm1419, %v1389, %v1262
        %v1423 = vsel %vm1419, %v1390, %v1264
        %v1424 = vsel %vm1419, %v1391, %v1266
        %v1425 = vsel %vm1419, %v1392, %v1268
        %v1426 = vsel %vm1419, %v1393, %v1270
        %v1427 = vsel %vm1419, %v1394, %v1272
        %v1428 = vsel %vm1419, %v1395, %v1274
        %v1429 = vsel %vm1419, %v1396, %v1276
        %v1430 = vsel %vm1419, %v1397, %v1278
        %v1431 = vsel %vm1419, %v1398, %v1280
        %v1432 = vsel %vm1419, %v1399, %v1282
        %v1433 = vsel %vm1419, %v1400, %v1284
        %v1434 = vsel %vm1419, %v1401, %v1286
        %v1435 = vsel %vm1419, %v1402, %v1288
        %v1436 = vsel %vm1419, %v1403, %v1290
        %v1437 = vsel %vm1419, %v1404, %v1292
        %v1438 = vsel %vm1419, %v1405, %v1294
        %v1439 = vsel %vm1419, %v1406, %v1296
        %v1440 = vsel %vm1419, %v1407, %v1298
        %v1441 = vsel %vm1419, %v1408, %v1300
        %v1442 = vsel %vm1419, %v1409, %v1302
        %v1443 = vsel %vm1419, %v1410, %v1304
        %v1444 = vsel %vm1419, %v1411, %v1306
        %v1445 = vsel %vm1419, %v1412, %v1308
        %v1446 = vsel %vm1419, %v1413, %v1310
        %v1447 = vsel %vm1419, %v1414, %v1312
        %v1448 = vsel %vm1419, %v1415, %v1314
        %v1449 = vsel %vm1419, %v1416, %v1316
        %v1450 = vsel %vm1419, %v1417, %v1318
        %v1451 = vsel %vm1419, %v1418, %v1320
        %v1452 = vpack.c.bf16 %v1421, %v1420
        %v1453 = vpack.c.bf16 %v1423, %v1422
        %v1454 = vpack.c.bf16 %v1425, %v1424
        %v1455 = vpack.c.bf16 %v1427, %v1426
        %v1456 = vpack.c.bf16 %v1429, %v1428
        %v1457 = vpack.c.bf16 %v1431, %v1430
        %v1458 = vpack.c.bf16 %v1433, %v1432
        %v1459 = vpack.c.bf16 %v1435, %v1434
        %v1460 = vpack.c.bf16 %v1437, %v1436
        %v1461 = vpack.c.bf16 %v1439, %v1438
        %v1462 = vpack.c.bf16 %v1441, %v1440
        %v1463 = vpack.c.bf16 %v1443, %v1442
        %v1464 = vpack.c.bf16 %v1445, %v1444
        %v1465 = vpack.c.bf16 %v1447, %v1446
        %v1466 = vpack.c.bf16 %v1449, %v1448
        %v1467 = vpack.c.bf16 %v1451, %v1450
        %v1468 = vld [vmem:[%s5] sm:$0xff]
        %v1469 = vld [vmem:[%s5 + $0x8] sm:$0xff]
        %v1470 = vld [vmem:[%s5 + $0x10] sm:$0xf]
        %v1471 = vld [vmem:[%s5 + $0x14] sm:$0xff]
        %v1472 = vld [vmem:[%s5 + $0x1c] sm:$0xff]
        %v1473 = vld [vmem:[%s5 + $0x24] sm:$0xf]
        %v1474 = vld [vmem:[%s5 + $0x28] sm:$0xff]
        %v1475 = vld [vmem:[%s5 + $0x30] sm:$0xff]
        %v1476 = vld [vmem:[%s5 + $0x38] sm:$0xf]
        %v1477 = vld [vmem:[%s5 + $0x3c] sm:$0xff]
        %v1478 = vld [vmem:[%s5 + $0x44] sm:$0xff]
        %v1479 = vld [vmem:[%s5 + $0x4c] sm:$0xf]
        %v1480 = vld [vmem:[%s5 + $0x50] sm:$0xff]
        %v1481 = vld [vmem:[%s5 + $0x58] sm:$0xff]
        %v1482 = vld [vmem:[%s5 + $0x60] sm:$0xf]
        %v1483 = vld [vmem:[%s5 + $0x64] sm:$0xff]
        %v1484 = vld [vmem:[%s5 + $0x6c] sm:$0xff]
        %v1485 = vld [vmem:[%s5 + $0x74] sm:$0xf]
        %v1486 = vld [vmem:[%s5 + $0x78] sm:$0xff]
        %v1487 = vld [vmem:[%s5 + $0x80] sm:$0xff]
        %v1488 = vld [vmem:[%s5 + $0x88] sm:$0xf]
        %v1489 = vld [vmem:[%s5 + $0x8c] sm:$0xff]
        %v1490 = vld [vmem:[%s5 + $0x94] sm:$0xff]
        %v1491 = vld [vmem:[%s5 + $0x9c] sm:$0xf]
        %v1492 = vld [vmem:[%s5 + $0xa0] sm:$0xff]
        %v1493 = vld [vmem:[%s5 + $0xa8] sm:$0xff]
        %v1494 = vld [vmem:[%s5 + $0xb0] sm:$0xf]
        %v1495 = vld [vmem:[%s5 + $0xb4] sm:$0xff]
        %v1496 = vld [vmem:[%s5 + $0xbc] sm:$0xff]
        %v1497 = vld [vmem:[%s5 + $0xc4] sm:$0xf]
        %v1498 = vld [vmem:[%s5 + $0xc8] sm:$0xff]
        %v1499 = vld [vmem:[%s5 + $0xd0] sm:$0xff]
        %v1500 = vld [vmem:[%s5 + $0xd8] sm:$0xf]
        %v1501 = vld [vmem:[%s5 + $0xdc] sm:$0xff]
        %v1502 = vld [vmem:[%s5 + $0xe4] sm:$0xff]
        %v1503 = vld [vmem:[%s5 + $0xec] sm:$0xf]
        %v1504 = vld [vmem:[%s5 + $0xf0] sm:$0xff]
        %v1505 = vld [vmem:[%s5 + $0xf8] sm:$0xff]
        %v1506 = vld [vmem:[%s5 + $0x100] sm:$0xf]
        %v1507 = vld [vmem:[%s5 + $0x104] sm:$0xff]
        %v1508 = vld [vmem:[%s5 + $0x10c] sm:$0xff]
        %v1509 = vld [vmem:[%s5 + $0x114] sm:$0xf]
        %v1510 = vld [vmem:[%s5 + $0x118] sm:$0xff]
        %v1511 = vld [vmem:[%s5 + $0x120] sm:$0xff]
        %v1512 = vld [vmem:[%s5 + $0x128] sm:$0xf]
        %v1513 = vld [vmem:[%s5 + $0x12c] sm:$0xff]
        %v1514 = vld [vmem:[%s5 + $0x134] sm:$0xff]
        %v1515 = vld [vmem:[%s5 + $0x13c] sm:$0xf]
        %v1564 = vunpack.c.l.b16 %v1468
        %v1565 = vunpack.c.h.b16 %v1468
        %v1566 = vunpack.c.l.b16 %v1469
        %v1567 = vunpack.c.h.b16 %v1469
        %v1568 = vunpack.c.l.b16 %v1470
        %v1569 = vunpack.c.l.b16 %v1471
        %v1570 = vunpack.c.h.b16 %v1471
        %v1571 = vunpack.c.l.b16 %v1472
        %v1572 = vunpack.c.h.b16 %v1472
        %v1573 = vunpack.c.l.b16 %v1473
        %v1574 = vunpack.c.l.b16 %v1474
        %v1575 = vunpack.c.h.b16 %v1474
        %v1576 = vunpack.c.l.b16 %v1475
        %v1577 = vunpack.c.h.b16 %v1475
        %v1578 = vunpack.c.l.b16 %v1476
        %v1579 = vunpack.c.l.b16 %v1477
        %v1580 = vunpack.c.h.b16 %v1477
        %v1581 = vunpack.c.l.b16 %v1478
        %v1582 = vunpack.c.h.b16 %v1478
        %v1583 = vunpack.c.l.b16 %v1479
        %v1584 = vunpack.c.l.b16 %v1480
        %v1585 = vunpack.c.h.b16 %v1480
        %v1586 = vunpack.c.l.b16 %v1481
        %v1587 = vunpack.c.h.b16 %v1481
        %v1588 = vunpack.c.l.b16 %v1482
        %v1589 = vunpack.c.l.b16 %v1483
        %v1590 = vunpack.c.h.b16 %v1483
        %v1591 = vunpack.c.l.b16 %v1484
        %v1592 = vunpack.c.h.b16 %v1484
        %v1593 = vunpack.c.l.b16 %v1485
        %v1594 = vunpack.c.l.b16 %v1486
        %v1595 = vunpack.c.h.b16 %v1486
        %v1596 = vunpack.c.l.b16 %v1487
        %v1597 = vunpack.c.h.b16 %v1487
        %v1598 = vunpack.c.l.b16 %v1488
        %v1599 = vunpack.c.l.b16 %v1489
        %v1600 = vunpack.c.h.b16 %v1489
        %v1601 = vunpack.c.l.b16 %v1490
        %v1602 = vunpack.c.h.b16 %v1490
        %v1603 = vunpack.c.l.b16 %v1491
        %v1604 = vunpack.c.l.b16 %v1492
        %v1605 = vunpack.c.h.b16 %v1492
        %v1606 = vunpack.c.l.b16 %v1493
        %v1607 = vunpack.c.h.b16 %v1493
        %v1608 = vunpack.c.l.b16 %v1494
        %v1609 = vunpack.c.l.b16 %v1495
        %v1610 = vunpack.c.h.b16 %v1495
        %v1611 = vunpack.c.l.b16 %v1496
        %v1612 = vunpack.c.h.b16 %v1496
        %v1613 = vunpack.c.l.b16 %v1497
        %v1614 = vunpack.c.l.b16 %v1498
        %v1615 = vunpack.c.h.b16 %v1498
        %v1616 = vunpack.c.l.b16 %v1499
        %v1617 = vunpack.c.h.b16 %v1499
        %v1618 = vunpack.c.l.b16 %v1500
        %v1619 = vunpack.c.l.b16 %v1501
        %v1620 = vunpack.c.h.b16 %v1501
        %v1621 = vunpack.c.l.b16 %v1502
        %v1622 = vunpack.c.h.b16 %v1502
        %v1623 = vunpack.c.l.b16 %v1503
        %v1624 = vunpack.c.l.b16 %v1504
        %v1625 = vunpack.c.h.b16 %v1504
        %v1626 = vunpack.c.l.b16 %v1505
        %v1627 = vunpack.c.h.b16 %v1505
        %v1628 = vunpack.c.l.b16 %v1506
        %v1629 = vunpack.c.l.b16 %v1507
        %v1630 = vunpack.c.h.b16 %v1507
        %v1631 = vunpack.c.l.b16 %v1508
        %v1632 = vunpack.c.h.b16 %v1508
        %v1633 = vunpack.c.l.b16 %v1509
        %v1634 = vunpack.c.l.b16 %v1510
        %v1635 = vunpack.c.h.b16 %v1510
        %v1636 = vunpack.c.l.b16 %v1511
        %v1637 = vunpack.c.h.b16 %v1511
        %v1638 = vunpack.c.l.b16 %v1512
        %v1639 = vunpack.c.l.b16 %v1513
        %v1640 = vunpack.c.h.b16 %v1513
        %v1641 = vunpack.c.l.b16 %v1514
        %v1642 = vunpack.c.h.b16 %v1514
        %v1643 = vunpack.c.l.b16 %v1515
        %v1644 = vpack.c.b16 %v1569, %v1564
        %v1645 = vpack.c.b16 %v1570, %v1565
        %v1646 = vpack.c.b16 %v1571, %v1566
        %v1647 = vpack.c.b16 %v1572, %v1567
        %v1648 = vpack.c.b16 %v1573, %v1568
        %v1649 = vpack.c.b16 %v1579, %v1574
        %v1650 = vpack.c.b16 %v1580, %v1575
        %v1651 = vpack.c.b16 %v1581, %v1576
        %v1652 = vpack.c.b16 %v1582, %v1577
        %v1653 = vpack.c.b16 %v1583, %v1578
        %v1654 = vpack.c.b16 %v1589, %v1584
        %v1655 = vpack.c.b16 %v1590, %v1585
        %v1656 = vpack.c.b16 %v1591, %v1586
        %v1657 = vpack.c.b16 %v1592, %v1587
        %v1658 = vpack.c.b16 %v1593, %v1588
        %v1659 = vpack.c.b16 %v1599, %v1594
        %v1660 = vpack.c.b16 %v1600, %v1595
        %v1661 = vpack.c.b16 %v1601, %v1596
        %v1662 = vpack.c.b16 %v1602, %v1597
        %v1663 = vpack.c.b16 %v1603, %v1598
        %v1664 = vpack.c.b16 %v1609, %v1604
        %v1665 = vpack.c.b16 %v1610, %v1605
        %v1666 = vpack.c.b16 %v1611, %v1606
        %v1667 = vpack.c.b16 %v1612, %v1607
        %v1668 = vpack.c.b16 %v1613, %v1608
        %v1669 = vpack.c.b16 %v1619, %v1614
        %v1670 = vpack.c.b16 %v1620, %v1615
        %v1671 = vpack.c.b16 %v1621, %v1616
        %v1672 = vpack.c.b16 %v1622, %v1617
        %v1673 = vpack.c.b16 %v1623, %v1618
        %v1674 = vpack.c.b16 %v1629, %v1624
        %v1675 = vpack.c.b16 %v1630, %v1625
        %v1676 = vpack.c.b16 %v1631, %v1626
        %v1677 = vpack.c.b16 %v1632, %v1627
        %v1678 = vpack.c.b16 %v1633, %v1628
        %v1679 = vpack.c.b16 %v1639, %v1634
        %v1680 = vpack.c.b16 %v1640, %v1635
        %v1681 = vpack.c.b16 %v1641, %v1636
        %v1682 = vpack.c.b16 %v1642, %v1637
        %v1683 = vpack.c.b16 %v1643, %v1638
        %1724 = vmatpush.bf16.msra.mxu0 %v1679
        %1725 = vmatpush.bf16.msra.mxu0 %v1674
        %1726 = vmatpush.bf16.msra.mxu0 %v1669
        %1727 = vmatpush.bf16.msra.mxu0 %v1664
        %1728 = vmatpush.bf16.msra.mxu0 %v1659
        %1729 = vmatpush.bf16.msra.mxu0 %v1654
        %1730 = vmatpush.bf16.msra.mxu0 %v1649
        %1731 = vmatpush.bf16.msra.mxu0 %v1644
        %1732 = vmatmul.bf16.gmra.mxu0 %v1452
        %v1733 = vpop.f32.mrf.mxu0
        %v1734 = vadd.f32 0.0, %v1733
        %v1735 = vpop.f32.mrf.mxu0
        %v1736 = vadd.f32 0.0, %v1735
        %1737 = vmatmul.bf16.gmra.mxu0 %v1453
        %v1738 = vpop.f32.mrf.mxu0
        %v1739 = vadd.f32 0.0, %v1738
        %v1740 = vpop.f32.mrf.mxu0
        %v1741 = vadd.f32 0.0, %v1740
        %1742 = vmatmul.bf16.gmra.mxu0 %v1454
        %v1743 = vpop.f32.mrf.mxu0
        %v1744 = vadd.f32 0.0, %v1743
        %v1745 = vpop.f32.mrf.mxu0
        %v1746 = vadd.f32 0.0, %v1745
        %1747 = vmatmul.bf16.gmra.mxu0 %v1455
        %v1748 = vpop.f32.mrf.mxu0
        %v1749 = vadd.f32 0.0, %v1748
        %v1750 = vpop.f32.mrf.mxu0
        %v1751 = vadd.f32 0.0, %v1750
        %1752 = vmatmul.bf16.gmra.mxu0 %v1456
        %v1753 = vpop.f32.mrf.mxu0
        %v1754 = vadd.f32 0.0, %v1753
        %v1755 = vpop.f32.mrf.mxu0
        %v1756 = vadd.f32 0.0, %v1755
        %1757 = vmatmul.bf16.gmra.mxu0 %v1457
        %v1758 = vpop.f32.mrf.mxu0
        %v1759 = vadd.f32 0.0, %v1758
        %v1760 = vpop.f32.mrf.mxu0
        %v1761 = vadd.f32 0.0, %v1760
        %1762 = vmatmul.bf16.gmra.mxu0 %v1458
        %v1763 = vpop.f32.mrf.mxu0
        %v1764 = vadd.f32 0.0, %v1763
        %v1765 = vpop.f32.mrf.mxu0
        %v1766 = vadd.f32 0.0, %v1765
        %1767 = vmatmul.bf16.gmra.mxu0 %v1459
        %v1768 = vpop.f32.mrf.mxu0
        %v1769 = vadd.f32 0.0, %v1768
        %v1770 = vpop.f32.mrf.mxu0
        %v1771 = vadd.f32 0.0, %v1770
        %1772 = vmatmul.bf16.gmra.mxu0 %v1460
        %v1773 = vpop.f32.mrf.mxu0
        %v1774 = vadd.f32 0.0, %v1773
        %v1775 = vpop.f32.mrf.mxu0
        %v1776 = vadd.f32 0.0, %v1775
        %1777 = vmatmul.bf16.gmra.mxu0 %v1461
        %v1778 = vpop.f32.mrf.mxu0
        %v1779 = vadd.f32 0.0, %v1778
        %v1780 = vpop.f32.mrf.mxu0
        %v1781 = vadd.f32 0.0, %v1780
        %1782 = vmatmul.bf16.gmra.mxu0 %v1462
        %v1783 = vpop.f32.mrf.mxu0
        %v1784 = vadd.f32 0.0, %v1783
        %v1785 = vpop.f32.mrf.mxu0
        %v1786 = vadd.f32 0.0, %v1785
        %1787 = vmatmul.bf16.gmra.mxu0 %v1463
        %v1788 = vpop.f32.mrf.mxu0
        %v1789 = vadd.f32 0.0, %v1788
        %v1790 = vpop.f32.mrf.mxu0
        %v1791 = vadd.f32 0.0, %v1790
        %1792 = vmatmul.bf16.gmra.mxu0 %v1464
        %v1793 = vpop.f32.mrf.mxu0
        %v1794 = vadd.f32 0.0, %v1793
        %v1795 = vpop.f32.mrf.mxu0
        %v1796 = vadd.f32 0.0, %v1795
        %1797 = vmatmul.bf16.gmra.mxu0 %v1465
        %v1798 = vpop.f32.mrf.mxu0
        %v1799 = vadd.f32 0.0, %v1798
        %v1800 = vpop.f32.mrf.mxu0
        %v1801 = vadd.f32 0.0, %v1800
        %1802 = vmatmul.bf16.gmra.mxu0 %v1466
        %v1803 = vpop.f32.mrf.mxu0
        %v1804 = vadd.f32 0.0, %v1803
        %v1805 = vpop.f32.mrf.mxu0
        %v1806 = vadd.f32 0.0, %v1805
        %1807 = vmatmul.bf16.gmra.mxu0 %v1467
        %v1808 = vpop.f32.mrf.mxu0
        %v1809 = vadd.f32 0.0, %v1808
        %v1810 = vpop.f32.mrf.mxu0
        %v1811 = vadd.f32 0.0, %v1810
        %1812 = vdwg.mxu0
        %1813 = vmatpush.bf16.msra.mxu0 %v1680
        %1814 = vmatpush.bf16.msra.mxu0 %v1675
        %1815 = vmatpush.bf16.msra.mxu0 %v1670
        %1816 = vmatpush.bf16.msra.mxu0 %v1665
        %1817 = vmatpush.bf16.msra.mxu0 %v1660
        %1818 = vmatpush.bf16.msra.mxu0 %v1655
        %1819 = vmatpush.bf16.msra.mxu0 %v1650
        %1820 = vmatpush.bf16.msra.mxu0 %v1645
        %1821 = vmatmul.bf16.gmra.mxu0 %v1452
        %v1822 = vpop.f32.mrf.mxu0
        %v1823 = vadd.f32 0.0, %v1822
        %v1824 = vpop.f32.mrf.mxu0
        %v1825 = vadd.f32 0.0, %v1824
        %1826 = vmatmul.bf16.gmra.mxu0 %v1453
        %v1827 = vpop.f32.mrf.mxu0
        %v1828 = vadd.f32 0.0, %v1827
        %v1829 = vpop.f32.mrf.mxu0
        %v1830 = vadd.f32 0.0, %v1829
        %1831 = vmatmul.bf16.gmra.mxu0 %v1454
        %v1832 = vpop.f32.mrf.mxu0
        %v1833 = vadd.f32 0.0, %v1832
        %v1834 = vpop.f32.mrf.mxu0
        %v1835 = vadd.f32 0.0, %v1834
        %1836 = vmatmul.bf16.gmra.mxu0 %v1455
        %v1837 = vpop.f32.mrf.mxu0
        %v1838 = vadd.f32 0.0, %v1837
        %v1839 = vpop.f32.mrf.mxu0
        %v1840 = vadd.f32 0.0, %v1839
        %1841 = vmatmul.bf16.gmra.mxu0 %v1456
        %v1842 = vpop.f32.mrf.mxu0
        %v1843 = vadd.f32 0.0, %v1842
        %v1844 = vpop.f32.mrf.mxu0
        %v1845 = vadd.f32 0.0, %v1844
        %1846 = vmatmul.bf16.gmra.mxu0 %v1457
        %v1847 = vpop.f32.mrf.mxu0
        %v1848 = vadd.f32 0.0, %v1847
        %v1849 = vpop.f32.mrf.mxu0
        %v1850 = vadd.f32 0.0, %v1849
        %1851 = vmatmul.bf16.gmra.mxu0 %v1458
        %v1852 = vpop.f32.mrf.mxu0
        %v1853 = vadd.f32 0.0, %v1852
        %v1854 = vpop.f32.mrf.mxu0
        %v1855 = vadd.f32 0.0, %v1854
        %1856 = vmatmul.bf16.gmra.mxu0 %v1459
        %v1857 = vpop.f32.mrf.mxu0
        %v1858 = vadd.f32 0.0, %v1857
        %v1859 = vpop.f32.mrf.mxu0
        %v1860 = vadd.f32 0.0, %v1859
        %1861 = vmatmul.bf16.gmra.mxu0 %v1460
        %v1862 = vpop.f32.mrf.mxu0
        %v1863 = vadd.f32 0.0, %v1862
        %v1864 = vpop.f32.mrf.mxu0
        %v1865 = vadd.f32 0.0, %v1864
        %1866 = vmatmul.bf16.gmra.mxu0 %v1461
        %v1867 = vpop.f32.mrf.mxu0
        %v1868 = vadd.f32 0.0, %v1867
        %v1869 = vpop.f32.mrf.mxu0
        %v1870 = vadd.f32 0.0, %v1869
        %1871 = vmatmul.bf16.gmra.mxu0 %v1462
        %v1872 = vpop.f32.mrf.mxu0
        %v1873 = vadd.f32 0.0, %v1872
        %v1874 = vpop.f32.mrf.mxu0
        %v1875 = vadd.f32 0.0, %v1874
        %1876 = vmatmul.bf16.gmra.mxu0 %v1463
        %v1877 = vpop.f32.mrf.mxu0
        %v1878 = vadd.f32 0.0, %v1877
        %v1879 = vpop.f32.mrf.mxu0
        %v1880 = vadd.f32 0.0, %v1879
        %1881 = vmatmul.bf16.gmra.mxu0 %v1464
        %v1882 = vpop.f32.mrf.mxu0
        %v1883 = vadd.f32 0.0, %v1882
        %v1884 = vpop.f32.mrf.mxu0
        %v1885 = vadd.f32 0.0, %v1884
        %1886 = vmatmul.bf16.gmra.mxu0 %v1465
        %v1887 = vpop.f32.mrf.mxu0
        %v1888 = vadd.f32 0.0, %v1887
        %v1889 = vpop.f32.mrf.mxu0
        %v1890 = vadd.f32 0.0, %v1889
        %1891 = vmatmul.bf16.gmra.mxu0 %v1466
        %v1892 = vpop.f32.mrf.mxu0
        %v1893 = vadd.f32 0.0, %v1892
        %v1894 = vpop.f32.mrf.mxu0
        %v1895 = vadd.f32 0.0, %v1894
        %1896 = vmatmul.bf16.gmra.mxu0 %v1467
        %v1897 = vpop.f32.mrf.mxu0
        %v1898 = vadd.f32 0.0, %v1897
        %v1899 = vpop.f32.mrf.mxu0
        %v1900 = vadd.f32 0.0, %v1899
        %1901 = vdwg.mxu0
        %1902 = vmatpush.bf16.msra.mxu0 %v1681
        %1903 = vmatpush.bf16.msra.mxu0 %v1676
        %1904 = vmatpush.bf16.msra.mxu0 %v1671
        %1905 = vmatpush.bf16.msra.mxu0 %v1666
        %1906 = vmatpush.bf16.msra.mxu0 %v1661
        %1907 = vmatpush.bf16.msra.mxu0 %v1656
        %1908 = vmatpush.bf16.msra.mxu0 %v1651
        %1909 = vmatpush.bf16.msra.mxu0 %v1646
        %1910 = vmatmul.bf16.gmra.mxu0 %v1452
        %v1911 = vpop.f32.mrf.mxu0
        %v1912 = vadd.f32 0.0, %v1911
        %v1913 = vpop.f32.mrf.mxu0
        %v1914 = vadd.f32 0.0, %v1913
        %1915 = vmatmul.bf16.gmra.mxu0 %v1453
        %v1916 = vpop.f32.mrf.mxu0
        %v1917 = vadd.f32 0.0, %v1916
        %v1918 = vpop.f32.mrf.mxu0
        %v1919 = vadd.f32 0.0, %v1918
        %1920 = vmatmul.bf16.gmra.mxu0 %v1454
        %v1921 = vpop.f32.mrf.mxu0
        %v1922 = vadd.f32 0.0, %v1921
        %v1923 = vpop.f32.mrf.mxu0
        %v1924 = vadd.f32 0.0, %v1923
        %1925 = vmatmul.bf16.gmra.mxu0 %v1455
        %v1926 = vpop.f32.mrf.mxu0
        %v1927 = vadd.f32 0.0, %v1926
        %v1928 = vpop.f32.mrf.mxu0
        %v1929 = vadd.f32 0.0, %v1928
        %1930 = vmatmul.bf16.gmra.mxu0 %v1456
        %v1931 = vpop.f32.mrf.mxu0
        %v1932 = vadd.f32 0.0, %v1931
        %v1933 = vpop.f32.mrf.mxu0
        %v1934 = vadd.f32 0.0, %v1933
        %1935 = vmatmul.bf16.gmra.mxu0 %v1457
        %v1936 = vpop.f32.mrf.mxu0
        %v1937 = vadd.f32 0.0, %v1936
        %v1938 = vpop.f32.mrf.mxu0
        %v1939 = vadd.f32 0.0, %v1938
        %1940 = vmatmul.bf16.gmra.mxu0 %v1458
        %v1941 = vpop.f32.mrf.mxu0
        %v1942 = vadd.f32 0.0, %v1941
        %v1943 = vpop.f32.mrf.mxu0
        %v1944 = vadd.f32 0.0, %v1943
        %1945 = vmatmul.bf16.gmra.mxu0 %v1459
        %v1946 = vpop.f32.mrf.mxu0
        %v1947 = vadd.f32 0.0, %v1946
        %v1948 = vpop.f32.mrf.mxu0
        %v1949 = vadd.f32 0.0, %v1948
        %1950 = vmatmul.bf16.gmra.mxu0 %v1460
        %v1951 = vpop.f32.mrf.mxu0
        %v1952 = vadd.f32 0.0, %v1951
        %v1953 = vpop.f32.mrf.mxu0
        %v1954 = vadd.f32 0.0, %v1953
        %1955 = vmatmul.bf16.gmra.mxu0 %v1461
        %v1956 = vpop.f32.mrf.mxu0
        %v1957 = vadd.f32 0.0, %v1956
        %v1958 = vpop.f32.mrf.mxu0
        %v1959 = vadd.f32 0.0, %v1958
        %1960 = vmatmul.bf16.gmra.mxu0 %v1462
        %v1961 = vpop.f32.mrf.mxu0
        %v1962 = vadd.f32 0.0, %v1961
        %v1963 = vpop.f32.mrf.mxu0
        %v1964 = vadd.f32 0.0, %v1963
        %1965 = vmatmul.bf16.gmra.mxu0 %v1463
        %v1966 = vpop.f32.mrf.mxu0
        %v1967 = vadd.f32 0.0, %v1966
        %v1968 = vpop.f32.mrf.mxu0
        %v1969 = vadd.f32 0.0, %v1968
        %1970 = vmatmul.bf16.gmra.mxu0 %v1464
        %v1971 = vpop.f32.mrf.mxu0
        %v1972 = vadd.f32 0.0, %v1971
        %v1973 = vpop.f32.mrf.mxu0
        %v1974 = vadd.f32 0.0, %v1973
        %1975 = vmatmul.bf16.gmra.mxu0 %v1465
        %v1976 = vpop.f32.mrf.mxu0
        %v1977 = vadd.f32 0.0, %v1976
        %v1978 = vpop.f32.mrf.mxu0
        %v1979 = vadd.f32 0.0, %v1978
        %1980 = vmatmul.bf16.gmra.mxu0 %v1466
        %v1981 = vpop.f32.mrf.mxu0
        %v1982 = vadd.f32 0.0, %v1981
        %v1983 = vpop.f32.mrf.mxu0
        %v1984 = vadd.f32 0.0, %v1983
        %1985 = vmatmul.bf16.gmra.mxu0 %v1467
        %v1986 = vpop.f32.mrf.mxu0
        %v1987 = vadd.f32 0.0, %v1986
        %v1988 = vpop.f32.mrf.mxu0
        %v1989 = vadd.f32 0.0, %v1988
        %1990 = vdwg.mxu0
        %1991 = vmatpush.bf16.msra.mxu0 %v1682
        %1992 = vmatpush.bf16.msra.mxu0 %v1677
        %1993 = vmatpush.bf16.msra.mxu0 %v1672
        %1994 = vmatpush.bf16.msra.mxu0 %v1667
        %1995 = vmatpush.bf16.msra.mxu0 %v1662
        %1996 = vmatpush.bf16.msra.mxu0 %v1657
        %1997 = vmatpush.bf16.msra.mxu0 %v1652
        %1998 = vmatpush.bf16.msra.mxu0 %v1647
        %1999 = vmatmul.bf16.gmra.mxu0 %v1452
        %v2000 = vpop.f32.mrf.mxu0
        %v2001 = vadd.f32 0.0, %v2000
        %v2002 = vpop.f32.mrf.mxu0
        %v2003 = vadd.f32 0.0, %v2002
        %2004 = vmatmul.bf16.gmra.mxu0 %v1453
        %v2005 = vpop.f32.mrf.mxu0
        %v2006 = vadd.f32 0.0, %v2005
        %v2007 = vpop.f32.mrf.mxu0
        %v2008 = vadd.f32 0.0, %v2007
        %2009 = vmatmul.bf16.gmra.mxu0 %v1454
        %v2010 = vpop.f32.mrf.mxu0
        %v2011 = vadd.f32 0.0, %v2010
        %v2012 = vpop.f32.mrf.mxu0
        %v2013 = vadd.f32 0.0, %v2012
        %2014 = vmatmul.bf16.gmra.mxu0 %v1455
        %v2015 = vpop.f32.mrf.mxu0
        %v2016 = vadd.f32 0.0, %v2015
        %v2017 = vpop.f32.mrf.mxu0
        %v2018 = vadd.f32 0.0, %v2017
        %2019 = vmatmul.bf16.gmra.mxu0 %v1456
        %v2020 = vpop.f32.mrf.mxu0
        %v2021 = vadd.f32 0.0, %v2020
        %v2022 = vpop.f32.mrf.mxu0
        %v2023 = vadd.f32 0.0, %v2022
        %2024 = vmatmul.bf16.gmra.mxu0 %v1457
        %v2025 = vpop.f32.mrf.mxu0
        %v2026 = vadd.f32 0.0, %v2025
        %v2027 = vpop.f32.mrf.mxu0
        %v2028 = vadd.f32 0.0, %v2027
        %2029 = vmatmul.bf16.gmra.mxu0 %v1458
        %v2030 = vpop.f32.mrf.mxu0
        %v2031 = vadd.f32 0.0, %v2030
        %v2032 = vpop.f32.mrf.mxu0
        %v2033 = vadd.f32 0.0, %v2032
        %2034 = vmatmul.bf16.gmra.mxu0 %v1459
        %v2035 = vpop.f32.mrf.mxu0
        %v2036 = vadd.f32 0.0, %v2035
        %v2037 = vpop.f32.mrf.mxu0
        %v2038 = vadd.f32 0.0, %v2037
        %2039 = vmatmul.bf16.gmra.mxu0 %v1460
        %v2040 = vpop.f32.mrf.mxu0
        %v2041 = vadd.f32 0.0, %v2040
        %v2042 = vpop.f32.mrf.mxu0
        %v2043 = vadd.f32 0.0, %v2042
        %2044 = vmatmul.bf16.gmra.mxu0 %v1461
        %v2045 = vpop.f32.mrf.mxu0
        %v2046 = vadd.f32 0.0, %v2045
        %v2047 = vpop.f32.mrf.mxu0
        %v2048 = vadd.f32 0.0, %v2047
        %2049 = vmatmul.bf16.gmra.mxu0 %v1462
        %v2050 = vpop.f32.mrf.mxu0
        %v2051 = vadd.f32 0.0, %v2050
        %v2052 = vpop.f32.mrf.mxu0
        %v2053 = vadd.f32 0.0, %v2052
        %2054 = vmatmul.bf16.gmra.mxu0 %v1463
        %v2055 = vpop.f32.mrf.mxu0
        %v2056 = vadd.f32 0.0, %v2055
        %v2057 = vpop.f32.mrf.mxu0
        %v2058 = vadd.f32 0.0, %v2057
        %2059 = vmatmul.bf16.gmra.mxu0 %v1464
        %v2060 = vpop.f32.mrf.mxu0
        %v2061 = vadd.f32 0.0, %v2060
        %v2062 = vpop.f32.mrf.mxu0
        %v2063 = vadd.f32 0.0, %v2062
        %2064 = vmatmul.bf16.gmra.mxu0 %v1465
        %v2065 = vpop.f32.mrf.mxu0
        %v2066 = vadd.f32 0.0, %v2065
        %v2067 = vpop.f32.mrf.mxu0
        %v2068 = vadd.f32 0.0, %v2067
        %2069 = vmatmul.bf16.gmra.mxu0 %v1466
        %v2070 = vpop.f32.mrf.mxu0
        %v2071 = vadd.f32 0.0, %v2070
        %v2072 = vpop.f32.mrf.mxu0
        %v2073 = vadd.f32 0.0, %v2072
        %2074 = vmatmul.bf16.gmra.mxu0 %v1467
        %v2075 = vpop.f32.mrf.mxu0
        %v2076 = vadd.f32 0.0, %v2075
        %v2077 = vpop.f32.mrf.mxu0
        %v2078 = vadd.f32 0.0, %v2077
        %2079 = vdwg.mxu0
        %2080 = vmatpush.bf16.msra.mxu0 %v1683
        %2081 = vmatpush.bf16.msra.mxu0 %v1678
        %2082 = vmatpush.bf16.msra.mxu0 %v1673
        %2083 = vmatpush.bf16.msra.mxu0 %v1668
        %2084 = vmatpush.bf16.msra.mxu0 %v1663
        %2085 = vmatpush.bf16.msra.mxu0 %v1658
        %2086 = vmatpush.bf16.msra.mxu0 %v1653
        %2087 = vmatpush.bf16.msra.mxu0 %v1648
        %2088 = vmatmul.bf16.gmra.mxu0 %v1452
        %v2089 = vpop.f32.mrf.mxu0
        %v2090 = vadd.f32 0.0, %v2089
        %v2091 = vpop.f32.mrf.mxu0
        %v2092 = vadd.f32 0.0, %v2091
        %2093 = vmatmul.bf16.gmra.mxu0 %v1453
        %v2094 = vpop.f32.mrf.mxu0
        %v2095 = vadd.f32 0.0, %v2094
        %v2096 = vpop.f32.mrf.mxu0
        %v2097 = vadd.f32 0.0, %v2096
        %2098 = vmatmul.bf16.gmra.mxu0 %v1454
        %v2099 = vpop.f32.mrf.mxu0
        %v2100 = vadd.f32 0.0, %v2099
        %v2101 = vpop.f32.mrf.mxu0
        %v2102 = vadd.f32 0.0, %v2101
        %2103 = vmatmul.bf16.gmra.mxu0 %v1455
        %v2104 = vpop.f32.mrf.mxu0
        %v2105 = vadd.f32 0.0, %v2104
        %v2106 = vpop.f32.mrf.mxu0
        %v2107 = vadd.f32 0.0, %v2106
        %2108 = vmatmul.bf16.gmra.mxu0 %v1456
        %v2109 = vpop.f32.mrf.mxu0
        %v2110 = vadd.f32 0.0, %v2109
        %v2111 = vpop.f32.mrf.mxu0
        %v2112 = vadd.f32 0.0, %v2111
        %2113 = vmatmul.bf16.gmra.mxu0 %v1457
        %v2114 = vpop.f32.mrf.mxu0
        %v2115 = vadd.f32 0.0, %v2114
        %v2116 = vpop.f32.mrf.mxu0
        %v2117 = vadd.f32 0.0, %v2116
        %2118 = vmatmul.bf16.gmra.mxu0 %v1458
        %v2119 = vpop.f32.mrf.mxu0
        %v2120 = vadd.f32 0.0, %v2119
        %v2121 = vpop.f32.mrf.mxu0
        %v2122 = vadd.f32 0.0, %v2121
        %2123 = vmatmul.bf16.gmra.mxu0 %v1459
        %v2124 = vpop.f32.mrf.mxu0
        %v2125 = vadd.f32 0.0, %v2124
        %v2126 = vpop.f32.mrf.mxu0
        %v2127 = vadd.f32 0.0, %v2126
        %2128 = vmatmul.bf16.gmra.mxu0 %v1460
        %v2129 = vpop.f32.mrf.mxu0
        %v2130 = vadd.f32 0.0, %v2129
        %v2131 = vpop.f32.mrf.mxu0
        %v2132 = vadd.f32 0.0, %v2131
        %2133 = vmatmul.bf16.gmra.mxu0 %v1461
        %v2134 = vpop.f32.mrf.mxu0
        %v2135 = vadd.f32 0.0, %v2134
        %v2136 = vpop.f32.mrf.mxu0
        %v2137 = vadd.f32 0.0, %v2136
        %2138 = vmatmul.bf16.gmra.mxu0 %v1462
        %v2139 = vpop.f32.mrf.mxu0
        %v2140 = vadd.f32 0.0, %v2139
        %v2141 = vpop.f32.mrf.mxu0
        %v2142 = vadd.f32 0.0, %v2141
        %2143 = vmatmul.bf16.gmra.mxu0 %v1463
        %v2144 = vpop.f32.mrf.mxu0
        %v2145 = vadd.f32 0.0, %v2144
        %v2146 = vpop.f32.mrf.mxu0
        %v2147 = vadd.f32 0.0, %v2146
        %2148 = vmatmul.bf16.gmra.mxu0 %v1464
        %v2149 = vpop.f32.mrf.mxu0
        %v2150 = vadd.f32 0.0, %v2149
        %v2151 = vpop.f32.mrf.mxu0
        %v2152 = vadd.f32 0.0, %v2151
        %2153 = vmatmul.bf16.gmra.mxu0 %v1465
        %v2154 = vpop.f32.mrf.mxu0
        %v2155 = vadd.f32 0.0, %v2154
        %v2156 = vpop.f32.mrf.mxu0
        %v2157 = vadd.f32 0.0, %v2156
        %2158 = vmatmul.bf16.gmra.mxu0 %v1466
        %v2159 = vpop.f32.mrf.mxu0
        %v2160 = vadd.f32 0.0, %v2159
        %v2161 = vpop.f32.mrf.mxu0
        %v2162 = vadd.f32 0.0, %v2161
        %2163 = vmatmul.bf16.gmra.mxu0 %v1467
        %v2164 = vpop.f32.mrf.mxu0
        %v2165 = vadd.f32 0.0, %v2164
        %v2166 = vpop.f32.mrf.mxu0
        %v2167 = vadd.f32 0.0, %v2166
        %2168 = vdwg.mxu0
        %v2169 = vpack.c.bf16 %v1823, %v1734
        %v2170 = vpack.c.bf16 %v1825, %v1736
        %v2171 = vpack.c.bf16 %v1828, %v1739
        %v2172 = vpack.c.bf16 %v1830, %v1741
        %v2173 = vpack.c.bf16 %v1833, %v1744
        %v2174 = vpack.c.bf16 %v1835, %v1746
        %v2175 = vpack.c.bf16 %v1838, %v1749
        %v2176 = vpack.c.bf16 %v1840, %v1751
        %v2177 = vpack.c.bf16 %v1843, %v1754
        %v2178 = vpack.c.bf16 %v1845, %v1756
        %v2179 = vpack.c.bf16 %v1848, %v1759
        %v2180 = vpack.c.bf16 %v1850, %v1761
        %v2181 = vpack.c.bf16 %v1853, %v1764
        %v2182 = vpack.c.bf16 %v1855, %v1766
        %v2183 = vpack.c.bf16 %v1858, %v1769
        %v2184 = vpack.c.bf16 %v1860, %v1771
        %v2185 = vpack.c.bf16 %v1863, %v1774
        %v2186 = vpack.c.bf16 %v1865, %v1776
        %v2187 = vpack.c.bf16 %v1868, %v1779
        %v2188 = vpack.c.bf16 %v1870, %v1781
        %v2189 = vpack.c.bf16 %v1873, %v1784
        %v2190 = vpack.c.bf16 %v1875, %v1786
        %v2191 = vpack.c.bf16 %v1878, %v1789
        %v2192 = vpack.c.bf16 %v1880, %v1791
        %v2193 = vpack.c.bf16 %v1883, %v1794
        %v2194 = vpack.c.bf16 %v1885, %v1796
        %v2195 = vpack.c.bf16 %v1888, %v1799
        %v2196 = vpack.c.bf16 %v1890, %v1801
        %v2197 = vpack.c.bf16 %v1893, %v1804
        %v2198 = vpack.c.bf16 %v1895, %v1806
        %v2199 = vpack.c.bf16 %v1898, %v1809
        %v2200 = vpack.c.bf16 %v1900, %v1811
        %2201 = vst [vmem:[%s448] sm:$0xff] %v2169
        %2202 = vst [vmem:[%s448 + $0x8] sm:$0xff] %v2170
        %2203 = vst [vmem:[%s448 + $0x10] sm:$0xff] %v2171
        %2204 = vst [vmem:[%s448 + $0x18] sm:$0xff] %v2172
        %2205 = vst [vmem:[%s448 + $0x20] sm:$0xff] %v2173
        %2206 = vst [vmem:[%s448 + $0x28] sm:$0xff] %v2174
        %2207 = vst [vmem:[%s448 + $0x30] sm:$0xff] %v2175
        %2208 = vst [vmem:[%s448 + $0x38] sm:$0xff] %v2176
        %2209 = vst [vmem:[%s448 + $0x40] sm:$0xff] %v2177
        %2210 = vst [vmem:[%s448 + $0x48] sm:$0xff] %v2178
        %2211 = vst [vmem:[%s448 + $0x50] sm:$0xff] %v2179
        %2212 = vst [vmem:[%s448 + $0x58] sm:$0xff] %v2180
        %2213 = vst [vmem:[%s448 + $0x60] sm:$0xff] %v2181
        %2214 = vst [vmem:[%s448 + $0x68] sm:$0xff] %v2182
        %2215 = vst [vmem:[%s448 + $0x70] sm:$0xff] %v2183
        %2216 = vst [vmem:[%s448 + $0x78] sm:$0xff] %v2184
        %2217 = vst [vmem:[%s448 + $0x80] sm:$0xff] %v2185
        %2218 = vst [vmem:[%s448 + $0x88] sm:$0xff] %v2186
        %2219 = vst [vmem:[%s448 + $0x90] sm:$0xff] %v2187
        %2220 = vst [vmem:[%s448 + $0x98] sm:$0xff] %v2188
        %2221 = vst [vmem:[%s448 + $0xa0] sm:$0xff] %v2189
        %2222 = vst [vmem:[%s448 + $0xa8] sm:$0xff] %v2190
        %2223 = vst [vmem:[%s448 + $0xb0] sm:$0xff] %v2191
        %2224 = vst [vmem:[%s448 + $0xb8] sm:$0xff] %v2192
        %2225 = vst [vmem:[%s448 + $0xc0] sm:$0xff] %v2193
        %2226 = vst [vmem:[%s448 + $0xc8] sm:$0xff] %v2194
        %2227 = vst [vmem:[%s448 + $0xd0] sm:$0xff] %v2195
        %2228 = vst [vmem:[%s448 + $0xd8] sm:$0xff] %v2196
        %2229 = vst [vmem:[%s448 + $0xe0] sm:$0xff] %v2197
        %2230 = vst [vmem:[%s448 + $0xe8] sm:$0xff] %v2198
        %2231 = vst [vmem:[%s448 + $0xf0] sm:$0xff] %v2199
        %2232 = vst [vmem:[%s448 + $0xf8] sm:$0xff] %v2200
        %v2233 = vpack.c.bf16 %v1912, %v1912
        %v2234 = vpack.c.bf16 %v1914, %v1914
        %v2235 = vpack.c.bf16 %v1917, %v1917
        %v2236 = vpack.c.bf16 %v1919, %v1919
        %v2237 = vpack.c.bf16 %v1922, %v1922
        %v2238 = vpack.c.bf16 %v1924, %v1924
        %v2239 = vpack.c.bf16 %v1927, %v1927
        %v2240 = vpack.c.bf16 %v1929, %v1929
        %v2241 = vpack.c.bf16 %v1932, %v1932
        %v2242 = vpack.c.bf16 %v1934, %v1934
        %v2243 = vpack.c.bf16 %v1937, %v1937
        %v2244 = vpack.c.bf16 %v1939, %v1939
        %v2245 = vpack.c.bf16 %v1942, %v1942
        %v2246 = vpack.c.bf16 %v1944, %v1944
        %v2247 = vpack.c.bf16 %v1947, %v1947
        %v2248 = vpack.c.bf16 %v1949, %v1949
        %v2249 = vpack.c.bf16 %v1952, %v1952
        %v2250 = vpack.c.bf16 %v1954, %v1954
        %v2251 = vpack.c.bf16 %v1957, %v1957
        %v2252 = vpack.c.bf16 %v1959, %v1959
        %v2253 = vpack.c.bf16 %v1962, %v1962
        %v2254 = vpack.c.bf16 %v1964, %v1964
        %v2255 = vpack.c.bf16 %v1967, %v1967
        %v2256 = vpack.c.bf16 %v1969, %v1969
        %v2257 = vpack.c.bf16 %v1972, %v1972
        %v2258 = vpack.c.bf16 %v1974, %v1974
        %v2259 = vpack.c.bf16 %v1977, %v1977
        %v2260 = vpack.c.bf16 %v1979, %v1979
        %v2261 = vpack.c.bf16 %v1982, %v1982
        %v2262 = vpack.c.bf16 %v1984, %v1984
        %v2263 = vpack.c.bf16 %v1987, %v1987
        %v2264 = vpack.c.bf16 %v1989, %v1989
        %2265 = vst [vmem:[%s403] sm:$0xf] %v2233
        %2266 = vst [vmem:[%s403 + $0x4] sm:$0xf] %v2234
        %2267 = vst [vmem:[%s403 + $0x8] sm:$0xf] %v2235
        %2268 = vst [vmem:[%s403 + $0xc] sm:$0xf] %v2236
        %2269 = vst [vmem:[%s403 + $0x10] sm:$0xf] %v2237
        %2270 = vst [vmem:[%s403 + $0x14] sm:$0xf] %v2238
        %2271 = vst [vmem:[%s403 + $0x18] sm:$0xf] %v2239
        %2272 = vst [vmem:[%s403 + $0x1c] sm:$0xf] %v2240
        %2273 = vst [vmem:[%s403 + $0x20] sm:$0xf] %v2241
        %2274 = vst [vmem:[%s403 + $0x24] sm:$0xf] %v2242
        %2275 = vst [vmem:[%s403 + $0x28] sm:$0xf] %v2243
        %2276 = vst [vmem:[%s403 + $0x2c] sm:$0xf] %v2244
        %2277 = vst [vmem:[%s403 + $0x30] sm:$0xf] %v2245
        %2278 = vst [vmem:[%s403 + $0x34] sm:$0xf] %v2246
        %2279 = vst [vmem:[%s403 + $0x38] sm:$0xf] %v2247
        %2280 = vst [vmem:[%s403 + $0x3c] sm:$0xf] %v2248
        %2281 = vst [vmem:[%s403 + $0x40] sm:$0xf] %v2249
        %2282 = vst [vmem:[%s403 + $0x44] sm:$0xf] %v2250
        %2283 = vst [vmem:[%s403 + $0x48] sm:$0xf] %v2251
        %2284 = vst [vmem:[%s403 + $0x4c] sm:$0xf] %v2252
        %2285 = vst [vmem:[%s403 + $0x50] sm:$0xf] %v2253
        %2286 = vst [vmem:[%s403 + $0x54] sm:$0xf] %v2254
        %2287 = vst [vmem:[%s403 + $0x58] sm:$0xf] %v2255
        %2288 = vst [vmem:[%s403 + $0x5c] sm:$0xf] %v2256
        %2289 = vst [vmem:[%s403 + $0x60] sm:$0xf] %v2257
        %2290 = vst [vmem:[%s403 + $0x64] sm:$0xf] %v2258
        %2291 = vst [vmem:[%s403 + $0x68] sm:$0xf] %v2259
        %2292 = vst [vmem:[%s403 + $0x6c] sm:$0xf] %v2260
        %2293 = vst [vmem:[%s403 + $0x70] sm:$0xf] %v2261
        %2294 = vst [vmem:[%s403 + $0x74] sm:$0xf] %v2262
        %2295 = vst [vmem:[%s403 + $0x78] sm:$0xf] %v2263
        %2296 = vst [vmem:[%s403 + $0x7c] sm:$0xf] %v2264
        %v2297 = vpack.c.bf16 %v2090, %v2090
        %v2298 = vpack.c.bf16 %v2092, %v2092
        %v2299 = vpack.c.bf16 %v2095, %v2095
        %v2300 = vpack.c.bf16 %v2097, %v2097
        %v2301 = vpack.c.bf16 %v2100, %v2100
        %v2302 = vpack.c.bf16 %v2102, %v2102
        %v2303 = vpack.c.bf16 %v2105, %v2105
        %v2304 = vpack.c.bf16 %v2107, %v2107
        %v2305 = vpack.c.bf16 %v2110, %v2110
        %v2306 = vpack.c.bf16 %v2112, %v2112
        %v2307 = vpack.c.bf16 %v2115, %v2115
        %v2308 = vpack.c.bf16 %v2117, %v2117
        %v2309 = vpack.c.bf16 %v2120, %v2120
        %v2310 = vpack.c.bf16 %v2122, %v2122
        %v2311 = vpack.c.bf16 %v2125, %v2125
        %v2312 = vpack.c.bf16 %v2127, %v2127
        %v2313 = vpack.c.bf16 %v2130, %v2130
        %v2314 = vpack.c.bf16 %v2132, %v2132
        %v2315 = vpack.c.bf16 %v2135, %v2135
        %v2316 = vpack.c.bf16 %v2137, %v2137
        %v2317 = vpack.c.bf16 %v2140, %v2140
        %v2318 = vpack.c.bf16 %v2142, %v2142
        %v2319 = vpack.c.bf16 %v2145, %v2145
        %v2320 = vpack.c.bf16 %v2147, %v2147
        %v2321 = vpack.c.bf16 %v2150, %v2150
        %v2322 = vpack.c.bf16 %v2152, %v2152
        %v2323 = vpack.c.bf16 %v2155, %v2155
        %v2324 = vpack.c.bf16 %v2157, %v2157
        %v2325 = vpack.c.bf16 %v2160, %v2160
        %v2326 = vpack.c.bf16 %v2162, %v2162
        %v2327 = vpack.c.bf16 %v2165, %v2165
        %v2328 = vpack.c.bf16 %v2167, %v2167
        %vm2329 = vcmask 257024
        %2330 = vst.msk [vmem:[%s409] sm:$0xf] %vm2329, %v2297
        %2331 = vst.msk [vmem:[%s409 + $0x4] sm:$0xf] %vm2329, %v2298
        %2332 = vst.msk [vmem:[%s409 + $0x8] sm:$0xf] %vm2329, %v2299
        %2333 = vst.msk [vmem:[%s409 + $0xc] sm:$0xf] %vm2329, %v2300
        %2334 = vst.msk [vmem:[%s409 + $0x10] sm:$0xf] %vm2329, %v2301
        %2335 = vst.msk [vmem:[%s409 + $0x14] sm:$0xf] %vm2329, %v2302
        %2336 = vst.msk [vmem:[%s409 + $0x18] sm:$0xf] %vm2329, %v2303
        %2337 = vst.msk [vmem:[%s409 + $0x1c] sm:$0xf] %vm2329, %v2304
        %2338 = vst.msk [vmem:[%s409 + $0x20] sm:$0xf] %vm2329, %v2305
        %2339 = vst.msk [vmem:[%s409 + $0x24] sm:$0xf] %vm2329, %v2306
        %2340 = vst.msk [vmem:[%s409 + $0x28] sm:$0xf] %vm2329, %v2307
        %2341 = vst.msk [vmem:[%s409 + $0x2c] sm:$0xf] %vm2329, %v2308
        %2342 = vst.msk [vmem:[%s409 + $0x30] sm:$0xf] %vm2329, %v2309
        %2343 = vst.msk [vmem:[%s409 + $0x34] sm:$0xf] %vm2329, %v2310
        %2344 = vst.msk [vmem:[%s409 + $0x38] sm:$0xf] %vm2329, %v2311
        %2345 = vst.msk [vmem:[%s409 + $0x3c] sm:$0xf] %vm2329, %v2312
        %2346 = vst.msk [vmem:[%s409 + $0x40] sm:$0xf] %vm2329, %v2313
        %2347 = vst.msk [vmem:[%s409 + $0x44] sm:$0xf] %vm2329, %v2314
        %2348 = vst.msk [vmem:[%s409 + $0x48] sm:$0xf] %vm2329, %v2315
        %2349 = vst.msk [vmem:[%s409 + $0x4c] sm:$0xf] %vm2329, %v2316
        %2350 = vst.msk [vmem:[%s409 + $0x50] sm:$0xf] %vm2329, %v2317
        %2351 = vst.msk [vmem:[%s409 + $0x54] sm:$0xf] %vm2329, %v2318
        %2352 = vst.msk [vmem:[%s409 + $0x58] sm:$0xf] %vm2329, %v2319
        %2353 = vst.msk [vmem:[%s409 + $0x5c] sm:$0xf] %vm2329, %v2320
        %2354 = vst.msk [vmem:[%s409 + $0x60] sm:$0xf] %vm2329, %v2321
        %2355 = vst.msk [vmem:[%s409 + $0x64] sm:$0xf] %vm2329, %v2322
        %2356 = vst.msk [vmem:[%s409 + $0x68] sm:$0xf] %vm2329, %v2323
        %2357 = vst.msk [vmem:[%s409 + $0x6c] sm:$0xf] %vm2329, %v2324
        %2358 = vst.msk [vmem:[%s409 + $0x70] sm:$0xf] %vm2329, %v2325
        %2359 = vst.msk [vmem:[%s409 + $0x74] sm:$0xf] %vm2329, %v2326
        %2360 = vst.msk [vmem:[%s409 + $0x78] sm:$0xf] %vm2329, %v2327
        %2361 = vst.msk [vmem:[%s409 + $0x7c] sm:$0xf] %vm2329, %v2328
        %2394 = vrot.lane.b32.xlu0 %v2297, 64
        %v2395 = vpop.permute.xlu0 %2394
        %2396 = vrot.lane.b32.xlu0 %v2298, 64
        %v2397 = vpop.permute.xlu0 %2396
        %2398 = vrot.lane.b32.xlu0 %v2299, 64
        %v2399 = vpop.permute.xlu0 %2398
        %2400 = vrot.lane.b32.xlu0 %v2300, 64
        %v2401 = vpop.permute.xlu0 %2400
        %2402 = vrot.lane.b32.xlu0 %v2301, 64
        %v2403 = vpop.permute.xlu0 %2402
        %2404 = vrot.lane.b32.xlu0 %v2302, 64
        %v2405 = vpop.permute.xlu0 %2404
        %2406 = vrot.lane.b32.xlu0 %v2303, 64
        %v2407 = vpop.permute.xlu0 %2406
        %2408 = vrot.lane.b32.xlu0 %v2304, 64
        %v2409 = vpop.permute.xlu0 %2408
        %2410 = vrot.lane.b32.xlu0 %v2305, 64
        %v2411 = vpop.permute.xlu0 %2410
        %2412 = vrot.lane.b32.xlu0 %v2306, 64
        %v2413 = vpop.permute.xlu0 %2412
        %2414 = vrot.lane.b32.xlu0 %v2307, 64
        %v2415 = vpop.permute.xlu0 %2414
        %2416 = vrot.lane.b32.xlu0 %v2308, 64
        %v2417 = vpop.permute.xlu0 %2416
        %2418 = vrot.lane.b32.xlu0 %v2309, 64
        %v2419 = vpop.permute.xlu0 %2418
        %2420 = vrot.lane.b32.xlu0 %v2310, 64
        %v2421 = vpop.permute.xlu0 %2420
        %2422 = vrot.lane.b32.xlu0 %v2311, 64
        %v2423 = vpop.permute.xlu0 %2422
        %2424 = vrot.lane.b32.xlu0 %v2312, 64
        %v2425 = vpop.permute.xlu0 %2424
        %2426 = vrot.lane.b32.xlu0 %v2313, 64
        %v2427 = vpop.permute.xlu0 %2426
        %2428 = vrot.lane.b32.xlu0 %v2314, 64
        %v2429 = vpop.permute.xlu0 %2428
        %2430 = vrot.lane.b32.xlu0 %v2315, 64
        %v2431 = vpop.permute.xlu0 %2430
        %2432 = vrot.lane.b32.xlu0 %v2316, 64
        %v2433 = vpop.permute.xlu0 %2432
        %2434 = vrot.lane.b32.xlu0 %v2317, 64
        %v2435 = vpop.permute.xlu0 %2434
        %2436 = vrot.lane.b32.xlu0 %v2318, 64
        %v2437 = vpop.permute.xlu0 %2436
        %2438 = vrot.lane.b32.xlu0 %v2319, 64
        %v2439 = vpop.permute.xlu0 %2438
        %2440 = vrot.lane.b32.xlu0 %v2320, 64
        %v2441 = vpop.permute.xlu0 %2440
        %2442 = vrot.lane.b32.xlu0 %v2321, 64
        %v2443 = vpop.permute.xlu0 %2442
        %2444 = vrot.lane.b32.xlu0 %v2322, 64
        %v2445 = vpop.permute.xlu0 %2444
        %2446 = vrot.lane.b32.xlu0 %v2323, 64
        %v2447 = vpop.permute.xlu0 %2446
        %2448 = vrot.lane.b32.xlu0 %v2324, 64
        %v2449 = vpop.permute.xlu0 %2448
        %2450 = vrot.lane.b32.xlu0 %v2325, 64
        %v2451 = vpop.permute.xlu0 %2450
        %2452 = vrot.lane.b32.xlu0 %v2326, 64
        %v2453 = vpop.permute.xlu0 %2452
        %2454 = vrot.lane.b32.xlu0 %v2327, 64
        %v2455 = vpop.permute.xlu0 %2454
        %2456 = vrot.lane.b32.xlu0 %v2328, 64
        %v2457 = vpop.permute.xlu0 %2456
        %2490 = vst.msk [vmem:[%s415] sm:$0xf] %vm2329, %v2395
        %2491 = vst.msk [vmem:[%s415 + $0x4] sm:$0xf] %vm2329, %v2397
        %2492 = vst.msk [vmem:[%s415 + $0x8] sm:$0xf] %vm2329, %v2399
        %2493 = vst.msk [vmem:[%s415 + $0xc] sm:$0xf] %vm2329, %v2401
        %2494 = vst.msk [vmem:[%s415 + $0x10] sm:$0xf] %vm2329, %v2403
        %2495 = vst.msk [vmem:[%s415 + $0x14] sm:$0xf] %vm2329, %v2405
        %2496 = vst.msk [vmem:[%s415 + $0x18] sm:$0xf] %vm2329, %v2407
        %2497 = vst.msk [vmem:[%s415 + $0x1c] sm:$0xf] %vm2329, %v2409
        %2498 = vst.msk [vmem:[%s415 + $0x20] sm:$0xf] %vm2329, %v2411
        %2499 = vst.msk [vmem:[%s415 + $0x24] sm:$0xf] %vm2329, %v2413
        %2500 = vst.msk [vmem:[%s415 + $0x28] sm:$0xf] %vm2329, %v2415
        %2501 = vst.msk [vmem:[%s415 + $0x2c] sm:$0xf] %vm2329, %v2417
        %2502 = vst.msk [vmem:[%s415 + $0x30] sm:$0xf] %vm2329, %v2419
        %2503 = vst.msk [vmem:[%s415 + $0x34] sm:$0xf] %vm2329, %v2421
        %2504 = vst.msk [vmem:[%s415 + $0x38] sm:$0xf] %vm2329, %v2423
        %2505 = vst.msk [vmem:[%s415 + $0x3c] sm:$0xf] %vm2329, %v2425
        %2506 = vst.msk [vmem:[%s415 + $0x40] sm:$0xf] %vm2329, %v2427
        %2507 = vst.msk [vmem:[%s415 + $0x44] sm:$0xf] %vm2329, %v2429
        %2508 = vst.msk [vmem:[%s415 + $0x48] sm:$0xf] %vm2329, %v2431
        %2509 = vst.msk [vmem:[%s415 + $0x4c] sm:$0xf] %vm2329, %v2433
        %2510 = vst.msk [vmem:[%s415 + $0x50] sm:$0xf] %vm2329, %v2435
        %2511 = vst.msk [vmem:[%s415 + $0x54] sm:$0xf] %vm2329, %v2437
        %2512 = vst.msk [vmem:[%s415 + $0x58] sm:$0xf] %vm2329, %v2439
        %2513 = vst.msk [vmem:[%s415 + $0x5c] sm:$0xf] %vm2329, %v2441
        %2514 = vst.msk [vmem:[%s415 + $0x60] sm:$0xf] %vm2329, %v2443
        %2515 = vst.msk [vmem:[%s415 + $0x64] sm:$0xf] %vm2329, %v2445
        %2516 = vst.msk [vmem:[%s415 + $0x68] sm:$0xf] %vm2329, %v2447
        %2517 = vst.msk [vmem:[%s415 + $0x6c] sm:$0xf] %vm2329, %v2449
        %2518 = vst.msk [vmem:[%s415 + $0x70] sm:$0xf] %vm2329, %v2451
        %2519 = vst.msk [vmem:[%s415 + $0x74] sm:$0xf] %vm2329, %v2453
        %2520 = vst.msk [vmem:[%s415 + $0x78] sm:$0xf] %vm2329, %v2455
        %2521 = vst.msk [vmem:[%s415 + $0x7c] sm:$0xf] %vm2329, %v2457
        %v2522 = vpack.c.bf16 %v2001, %v2001
        %v2523 = vpack.c.bf16 %v2003, %v2003
        %v2524 = vpack.c.bf16 %v2006, %v2006
        %v2525 = vpack.c.bf16 %v2008, %v2008
        %v2526 = vpack.c.bf16 %v2011, %v2011
        %v2527 = vpack.c.bf16 %v2013, %v2013
        %v2528 = vpack.c.bf16 %v2016, %v2016
        %v2529 = vpack.c.bf16 %v2018, %v2018
        %v2530 = vpack.c.bf16 %v2021, %v2021
        %v2531 = vpack.c.bf16 %v2023, %v2023
        %v2532 = vpack.c.bf16 %v2026, %v2026
        %v2533 = vpack.c.bf16 %v2028, %v2028
        %v2534 = vpack.c.bf16 %v2031, %v2031
        %v2535 = vpack.c.bf16 %v2033, %v2033
        %v2536 = vpack.c.bf16 %v2036, %v2036
        %v2537 = vpack.c.bf16 %v2038, %v2038
        %v2538 = vpack.c.bf16 %v2041, %v2041
        %v2539 = vpack.c.bf16 %v2043, %v2043
        %v2540 = vpack.c.bf16 %v2046, %v2046
        %v2541 = vpack.c.bf16 %v2048, %v2048
        %v2542 = vpack.c.bf16 %v2051, %v2051
        %v2543 = vpack.c.bf16 %v2053, %v2053
        %v2544 = vpack.c.bf16 %v2056, %v2056
        %v2545 = vpack.c.bf16 %v2058, %v2058
        %v2546 = vpack.c.bf16 %v2061, %v2061
        %v2547 = vpack.c.bf16 %v2063, %v2063
        %v2548 = vpack.c.bf16 %v2066, %v2066
        %v2549 = vpack.c.bf16 %v2068, %v2068
        %v2550 = vpack.c.bf16 %v2071, %v2071
        %v2551 = vpack.c.bf16 %v2073, %v2073
        %v2552 = vpack.c.bf16 %v2076, %v2076
        %v2553 = vpack.c.bf16 %v2078, %v2078
        %s2554 = scalar_lea.vmem %s403, 128 [#allocation2]
        %2555 = vst [vmem:[%s2554] sm:$0xf] %v2522
        %2556 = vst [vmem:[%s2554 + $0x4] sm:$0xf] %v2523
        %2557 = vst [vmem:[%s2554 + $0x8] sm:$0xf] %v2524
        %2558 = vst [vmem:[%s2554 + $0xc] sm:$0xf] %v2525
        %2559 = vst [vmem:[%s2554 + $0x10] sm:$0xf] %v2526
        %2560 = vst [vmem:[%s2554 + $0x14] sm:$0xf] %v2527
        %2561 = vst [vmem:[%s2554 + $0x18] sm:$0xf] %v2528
        %2562 = vst [vmem:[%s2554 + $0x1c] sm:$0xf] %v2529
        %2563 = vst [vmem:[%s2554 + $0x20] sm:$0xf] %v2530
        %2564 = vst [vmem:[%s2554 + $0x24] sm:$0xf] %v2531
        %2565 = vst [vmem:[%s2554 + $0x28] sm:$0xf] %v2532
        %2566 = vst [vmem:[%s2554 + $0x2c] sm:$0xf] %v2533
        %2567 = vst [vmem:[%s2554 + $0x30] sm:$0xf] %v2534
        %2568 = vst [vmem:[%s2554 + $0x34] sm:$0xf] %v2535
        %2569 = vst [vmem:[%s2554 + $0x38] sm:$0xf] %v2536
        %2570 = vst [vmem:[%s2554 + $0x3c] sm:$0xf] %v2537
        %2571 = vst [vmem:[%s2554 + $0x40] sm:$0xf] %v2538
        %2572 = vst [vmem:[%s2554 + $0x44] sm:$0xf] %v2539
        %2573 = vst [vmem:[%s2554 + $0x48] sm:$0xf] %v2540
        %2574 = vst [vmem:[%s2554 + $0x4c] sm:$0xf] %v2541
        %2575 = vst [vmem:[%s2554 + $0x50] sm:$0xf] %v2542
        %2576 = vst [vmem:[%s2554 + $0x54] sm:$0xf] %v2543
        %2577 = vst [vmem:[%s2554 + $0x58] sm:$0xf] %v2544
        %2578 = vst [vmem:[%s2554 + $0x5c] sm:$0xf] %v2545
        %2579 = vst [vmem:[%s2554 + $0x60] sm:$0xf] %v2546
        %2580 = vst [vmem:[%s2554 + $0x64] sm:$0xf] %v2547
        %2581 = vst [vmem:[%s2554 + $0x68] sm:$0xf] %v2548
        %2582 = vst [vmem:[%s2554 + $0x6c] sm:$0xf] %v2549
        %2583 = vst [vmem:[%s2554 + $0x70] sm:$0xf] %v2550
        %2584 = vst [vmem:[%s2554 + $0x74] sm:$0xf] %v2551
        %2585 = vst [vmem:[%s2554 + $0x78] sm:$0xf] %v2552
        %2586 = vst [vmem:[%s2554 + $0x7c] sm:$0xf] %v2553
        %2587 = vrot.lane.b32.xlu0 %v2297, 96
        %v2588 = vpop.permute.xlu0 %2587
        %2589 = vrot.lane.b32.xlu0 %v2298, 96
        %v2590 = vpop.permute.xlu0 %2589
        %2591 = vrot.lane.b32.xlu0 %v2299, 96
        %v2592 = vpop.permute.xlu0 %2591
        %2593 = vrot.lane.b32.xlu0 %v2300, 96
        %v2594 = vpop.permute.xlu0 %2593
        %2595 = vrot.lane.b32.xlu0 %v2301, 96
        %v2596 = vpop.permute.xlu0 %2595
        %2597 = vrot.lane.b32.xlu0 %v2302, 96
        %v2598 = vpop.permute.xlu0 %2597
        %2599 = vrot.lane.b32.xlu0 %v2303, 96
        %v2600 = vpop.permute.xlu0 %2599
        %2601 = vrot.lane.b32.xlu0 %v2304, 96
        %v2602 = vpop.permute.xlu0 %2601
        %2603 = vrot.lane.b32.xlu0 %v2305, 96
        %v2604 = vpop.permute.xlu0 %2603
        %2605 = vrot.lane.b32.xlu0 %v2306, 96
        %v2606 = vpop.permute.xlu0 %2605
        %2607 = vrot.lane.b32.xlu0 %v2307, 96
        %v2608 = vpop.permute.xlu0 %2607
        %2609 = vrot.lane.b32.xlu0 %v2308, 96
        %v2610 = vpop.permute.xlu0 %2609
        %2611 = vrot.lane.b32.xlu0 %v2309, 96
        %v2612 = vpop.permute.xlu0 %2611
        %2613 = vrot.lane.b32.xlu0 %v2310, 96
        %v2614 = vpop.permute.xlu0 %2613
        %2615 = vrot.lane.b32.xlu0 %v2311, 96
        %v2616 = vpop.permute.xlu0 %2615
        %2617 = vrot.lane.b32.xlu0 %v2312, 96
        %v2618 = vpop.permute.xlu0 %2617
        %2619 = vrot.lane.b32.xlu0 %v2313, 96
        %v2620 = vpop.permute.xlu0 %2619
        %2621 = vrot.lane.b32.xlu0 %v2314, 96
        %v2622 = vpop.permute.xlu0 %2621
        %2623 = vrot.lane.b32.xlu0 %v2315, 96
        %v2624 = vpop.permute.xlu0 %2623
        %2625 = vrot.lane.b32.xlu0 %v2316, 96
        %v2626 = vpop.permute.xlu0 %2625
        %2627 = vrot.lane.b32.xlu0 %v2317, 96
        %v2628 = vpop.permute.xlu0 %2627
        %2629 = vrot.lane.b32.xlu0 %v2318, 96
        %v2630 = vpop.permute.xlu0 %2629
        %2631 = vrot.lane.b32.xlu0 %v2319, 96
        %v2632 = vpop.permute.xlu0 %2631
        %2633 = vrot.lane.b32.xlu0 %v2320, 96
        %v2634 = vpop.permute.xlu0 %2633
        %2635 = vrot.lane.b32.xlu0 %v2321, 96
        %v2636 = vpop.permute.xlu0 %2635
        %2637 = vrot.lane.b32.xlu0 %v2322, 96
        %v2638 = vpop.permute.xlu0 %2637
        %2639 = vrot.lane.b32.xlu0 %v2323, 96
        %v2640 = vpop.permute.xlu0 %2639
        %2641 = vrot.lane.b32.xlu0 %v2324, 96
        %v2642 = vpop.permute.xlu0 %2641
        %2643 = vrot.lane.b32.xlu0 %v2325, 96
        %v2644 = vpop.permute.xlu0 %2643
        %2645 = vrot.lane.b32.xlu0 %v2326, 96
        %v2646 = vpop.permute.xlu0 %2645
        %2647 = vrot.lane.b32.xlu0 %v2327, 96
        %v2648 = vpop.permute.xlu0 %2647
        %2649 = vrot.lane.b32.xlu0 %v2328, 96
        %v2650 = vpop.permute.xlu0 %2649
        %s2683 = scalar_lea.vmem %s409, 128 [#allocation3]
        %2684 = vst.msk [vmem:[%s2683] sm:$0xf] %vm2329, %v2588
        %2685 = vst.msk [vmem:[%s2683 + $0x4] sm:$0xf] %vm2329, %v2590
        %2686 = vst.msk [vmem:[%s2683 + $0x8] sm:$0xf] %vm2329, %v2592
        %2687 = vst.msk [vmem:[%s2683 + $0xc] sm:$0xf] %vm2329, %v2594
        %2688 = vst.msk [vmem:[%s2683 + $0x10] sm:$0xf] %vm2329, %v2596
        %2689 = vst.msk [vmem:[%s2683 + $0x14] sm:$0xf] %vm2329, %v2598
        %2690 = vst.msk [vmem:[%s2683 + $0x18] sm:$0xf] %vm2329, %v2600
        %2691 = vst.msk [vmem:[%s2683 + $0x1c] sm:$0xf] %vm2329, %v2602
        %2692 = vst.msk [vmem:[%s2683 + $0x20] sm:$0xf] %vm2329, %v2604
        %2693 = vst.msk [vmem:[%s2683 + $0x24] sm:$0xf] %vm2329, %v2606
        %2694 = vst.msk [vmem:[%s2683 + $0x28] sm:$0xf] %vm2329, %v2608
        %2695 = vst.msk [vmem:[%s2683 + $0x2c] sm:$0xf] %vm2329, %v2610
        %2696 = vst.msk [vmem:[%s2683 + $0x30] sm:$0xf] %vm2329, %v2612
        %2697 = vst.msk [vmem:[%s2683 + $0x34] sm:$0xf] %vm2329, %v2614
        %2698 = vst.msk [vmem:[%s2683 + $0x38] sm:$0xf] %vm2329, %v2616
        %2699 = vst.msk [vmem:[%s2683 + $0x3c] sm:$0xf] %vm2329, %v2618
        %2700 = vst.msk [vmem:[%s2683 + $0x40] sm:$0xf] %vm2329, %v2620
        %2701 = vst.msk [vmem:[%s2683 + $0x44] sm:$0xf] %vm2329, %v2622
        %2702 = vst.msk [vmem:[%s2683 + $0x48] sm:$0xf] %vm2329, %v2624
        %2703 = vst.msk [vmem:[%s2683 + $0x4c] sm:$0xf] %vm2329, %v2626
        %2704 = vst.msk [vmem:[%s2683 + $0x50] sm:$0xf] %vm2329, %v2628
        %2705 = vst.msk [vmem:[%s2683 + $0x54] sm:$0xf] %vm2329, %v2630
        %2706 = vst.msk [vmem:[%s2683 + $0x58] sm:$0xf] %vm2329, %v2632
        %2707 = vst.msk [vmem:[%s2683 + $0x5c] sm:$0xf] %vm2329, %v2634
        %2708 = vst.msk [vmem:[%s2683 + $0x60] sm:$0xf] %vm2329, %v2636
        %2709 = vst.msk [vmem:[%s2683 + $0x64] sm:$0xf] %vm2329, %v2638
        %2710 = vst.msk [vmem:[%s2683 + $0x68] sm:$0xf] %vm2329, %v2640
        %2711 = vst.msk [vmem:[%s2683 + $0x6c] sm:$0xf] %vm2329, %v2642
        %2712 = vst.msk [vmem:[%s2683 + $0x70] sm:$0xf] %vm2329, %v2644
        %2713 = vst.msk [vmem:[%s2683 + $0x74] sm:$0xf] %vm2329, %v2646
        %2714 = vst.msk [vmem:[%s2683 + $0x78] sm:$0xf] %vm2329, %v2648
        %2715 = vst.msk [vmem:[%s2683 + $0x7c] sm:$0xf] %vm2329, %v2650
        %2716 = vrot.lane.b32.xlu0 %v2297, 32
        %v2717 = vpop.permute.xlu0 %2716
        %2718 = vrot.lane.b32.xlu0 %v2298, 32
        %v2719 = vpop.permute.xlu0 %2718
        %2720 = vrot.lane.b32.xlu0 %v2299, 32
        %v2721 = vpop.permute.xlu0 %2720
        %2722 = vrot.lane.b32.xlu0 %v2300, 32
        %v2723 = vpop.permute.xlu0 %2722
        %2724 = vrot.lane.b32.xlu0 %v2301, 32
        %v2725 = vpop.permute.xlu0 %2724
        %2726 = vrot.lane.b32.xlu0 %v2302, 32
        %v2727 = vpop.permute.xlu0 %2726
        %2728 = vrot.lane.b32.xlu0 %v2303, 32
        %v2729 = vpop.permute.xlu0 %2728
        %2730 = vrot.lane.b32.xlu0 %v2304, 32
        %v2731 = vpop.permute.xlu0 %2730
        %2732 = vrot.lane.b32.xlu0 %v2305, 32
        %v2733 = vpop.permute.xlu0 %2732
        %2734 = vrot.lane.b32.xlu0 %v2306, 32
        %v2735 = vpop.permute.xlu0 %2734
        %2736 = vrot.lane.b32.xlu0 %v2307, 32
        %v2737 = vpop.permute.xlu0 %2736
        %2738 = vrot.lane.b32.xlu0 %v2308, 32
        %v2739 = vpop.permute.xlu0 %2738
        %2740 = vrot.lane.b32.xlu0 %v2309, 32
        %v2741 = vpop.permute.xlu0 %2740
        %2742 = vrot.lane.b32.xlu0 %v2310, 32
        %v2743 = vpop.permute.xlu0 %2742
        %2744 = vrot.lane.b32.xlu0 %v2311, 32
        %v2745 = vpop.permute.xlu0 %2744
        %2746 = vrot.lane.b32.xlu0 %v2312, 32
        %v2747 = vpop.permute.xlu0 %2746
        %2748 = vrot.lane.b32.xlu0 %v2313, 32
        %v2749 = vpop.permute.xlu0 %2748
        %2750 = vrot.lane.b32.xlu0 %v2314, 32
        %v2751 = vpop.permute.xlu0 %2750
        %2752 = vrot.lane.b32.xlu0 %v2315, 32
        %v2753 = vpop.permute.xlu0 %2752
        %2754 = vrot.lane.b32.xlu0 %v2316, 32
        %v2755 = vpop.permute.xlu0 %2754
        %2756 = vrot.lane.b32.xlu0 %v2317, 32
        %v2757 = vpop.permute.xlu0 %2756
        %2758 = vrot.lane.b32.xlu0 %v2318, 32
        %v2759 = vpop.permute.xlu0 %2758
        %2760 = vrot.lane.b32.xlu0 %v2319, 32
        %v2761 = vpop.permute.xlu0 %2760
        %2762 = vrot.lane.b32.xlu0 %v2320, 32
        %v2763 = vpop.permute.xlu0 %2762
        %2764 = vrot.lane.b32.xlu0 %v2321, 32
        %v2765 = vpop.permute.xlu0 %2764
        %2766 = vrot.lane.b32.xlu0 %v2322, 32
        %v2767 = vpop.permute.xlu0 %2766
        %2768 = vrot.lane.b32.xlu0 %v2323, 32
        %v2769 = vpop.permute.xlu0 %2768
        %2770 = vrot.lane.b32.xlu0 %v2324, 32
        %v2771 = vpop.permute.xlu0 %2770
        %2772 = vrot.lane.b32.xlu0 %v2325, 32
        %v2773 = vpop.permute.xlu0 %2772
        %2774 = vrot.lane.b32.xlu0 %v2326, 32
        %v2775 = vpop.permute.xlu0 %2774
        %2776 = vrot.lane.b32.xlu0 %v2327, 32
        %v2777 = vpop.permute.xlu0 %2776
        %2778 = vrot.lane.b32.xlu0 %v2328, 32
        %v2779 = vpop.permute.xlu0 %2778
        %s2812 = scalar_lea.vmem %s415, 128 [#allocation4]
        %2813 = vst.msk [vmem:[%s2812] sm:$0xf] %vm2329, %v2717
        %2814 = vst.msk [vmem:[%s2812 + $0x4] sm:$0xf] %vm2329, %v2719
        %2815 = vst.msk [vmem:[%s2812 + $0x8] sm:$0xf] %vm2329, %v2721
        %2816 = vst.msk [vmem:[%s2812 + $0xc] sm:$0xf] %vm2329, %v2723
        %2817 = vst.msk [vmem:[%s2812 + $0x10] sm:$0xf] %vm2329, %v2725
        %2818 = vst.msk [vmem:[%s2812 + $0x14] sm:$0xf] %vm2329, %v2727
        %2819 = vst.msk [vmem:[%s2812 + $0x18] sm:$0xf] %vm2329, %v2729
        %2820 = vst.msk [vmem:[%s2812 + $0x1c] sm:$0xf] %vm2329, %v2731
        %2821 = vst.msk [vmem:[%s2812 + $0x20] sm:$0xf] %vm2329, %v2733
        %2822 = vst.msk [vmem:[%s2812 + $0x24] sm:$0xf] %vm2329, %v2735
        %2823 = vst.msk [vmem:[%s2812 + $0x28] sm:$0xf] %vm2329, %v2737
        %2824 = vst.msk [vmem:[%s2812 + $0x2c] sm:$0xf] %vm2329, %v2739
        %2825 = vst.msk [vmem:[%s2812 + $0x30] sm:$0xf] %vm2329, %v2741
        %2826 = vst.msk [vmem:[%s2812 + $0x34] sm:$0xf] %vm2329, %v2743
        %2827 = vst.msk [vmem:[%s2812 + $0x38] sm:$0xf] %vm2329, %v2745
        %2828 = vst.msk [vmem:[%s2812 + $0x3c] sm:$0xf] %vm2329, %v2747
        %2829 = vst.msk [vmem:[%s2812 + $0x40] sm:$0xf] %vm2329, %v2749
        %2830 = vst.msk [vmem:[%s2812 + $0x44] sm:$0xf] %vm2329, %v2751
        %2831 = vst.msk [vmem:[%s2812 + $0x48] sm:$0xf] %vm2329, %v2753
        %2832 = vst.msk [vmem:[%s2812 + $0x4c] sm:$0xf] %vm2329, %v2755
        %2833 = vst.msk [vmem:[%s2812 + $0x50] sm:$0xf] %vm2329, %v2757
        %2834 = vst.msk [vmem:[%s2812 + $0x54] sm:$0xf] %vm2329, %v2759
        %2835 = vst.msk [vmem:[%s2812 + $0x58] sm:$0xf] %vm2329, %v2761
        %2836 = vst.msk [vmem:[%s2812 + $0x5c] sm:$0xf] %vm2329, %v2763
        %2837 = vst.msk [vmem:[%s2812 + $0x60] sm:$0xf] %vm2329, %v2765
        %2838 = vst.msk [vmem:[%s2812 + $0x64] sm:$0xf] %vm2329, %v2767
        %2839 = vst.msk [vmem:[%s2812 + $0x68] sm:$0xf] %vm2329, %v2769
        %2840 = vst.msk [vmem:[%s2812 + $0x6c] sm:$0xf] %vm2329, %v2771
        %2841 = vst.msk [vmem:[%s2812 + $0x70] sm:$0xf] %vm2329, %v2773
        %2842 = vst.msk [vmem:[%s2812 + $0x74] sm:$0xf] %vm2329, %v2775
        %2843 = vst.msk [vmem:[%s2812 + $0x78] sm:$0xf] %vm2329, %v2777
        %2844 = vst.msk [vmem:[%s2812 + $0x7c] sm:$0xf] %vm2329, %v2779
        %s2845 = sadd.s32 %s25, %s26
        %s2846 = smul.u32 32, %s2845
        %p2847 = scmp.lt.s32.totalorder %s2846, 63
        %s2848 = scalar_select %p2847, %s2846, 63
        %s2849 = smul.addr %s2848, 2
        %s2850 = smul.addr %s2849, 4
        %s2851 = scalar_lea.vmem %s6, %s2850
        %s2852 = sand.u32 %s221, 1
        %s2853 = sand.u32 %s221, 1
        %s2854 = smul.addr %s2853, 256
        %s2855 = scalar_lea.vmem [#allocation2], %s2854
        %s2856 = sand.u32 %s249, 1
        %s2857 = sand.u32 %s249, 1
        %s2858 = smul.addr %s2857, 256
        %s2859 = scalar_lea.vmem [#allocation3], %s2858
        %s2860 = sand.u32 %s277, 1
        %s2861 = sand.u32 %s277, 1
        %s2862 = smul.addr %s2861, 256
        %s2863 = scalar_lea.vmem [#allocation4], %s2862
        // Predicated region
        $region45: #{upgto_v1_forward.2} parent=43 // pred_check
          %p2864 = pneg %p203
        $region46: #{upgto_v1_forward.2} parent=43 // pred_check_branch
          %2866 = sbr.rel (%p2864) target = $region48
        $region47: #{upgto_v1_forward.2} parent=43 // pred_region
          %s2867 = sadd.s32 %s25, %s26
          %s2868 = smul.u32 32, %s2867
        $region48: #{upgto_v1_forward.2} parent=43 // pred_fallthru
          _
        // Predicated region
        $region49: #{upgto_v1_forward.2} parent=43 // pred_check
          %p2869 = pneg %p231
        $region50: #{upgto_v1_forward.2} parent=43 // pred_check_branch
          %2871 = sbr.rel (%p2869) target = $region52
        $region51: #{upgto_v1_forward.2} parent=43 // pred_region
          %s2872 = sadd.s32 %s25, %s26
          %s2873 = smul.u32 32, %s2872
          %s2874 = smul.addr %s2873, 4
          %s2875 = scalar_lea.vmem %s7, %s2874
          // Predicated region
          $region53: #{upgto_v1_forward.2} parent=51 // pred_check
            _
          $region54: #{upgto_v1_forward.2} parent=51 // pred_check_branch
            %2877 = sbr.rel (0) target = $region56
          $region55: #{upgto_v1_forward.2} parent=51 // pred_region
            // Predicated region
            $region57: #{upgto_v1_forward.2} parent=55 // pred_check
              _
            $region58: #{upgto_v1_forward.2} parent=55 // pred_check_branch
              %2879 = sbr.rel target = $region60
            $region59: #{upgto_v1_forward.2} parent=55 // pred_region
              // Predicated region
              $region72: #{upgto_v1_forward.2} parent=59 // pred_check
                _
              $region73: #{upgto_v1_forward.2} parent=59 // pred_check_branch
                %3021 = sbr.rel (0) target = $region75
              $region74: #{upgto_v1_forward.2} parent=59 // pred_region
                loop: start=0, step=1, limit=1
                $region76: #{upgto_v1_forward.2} parent=74 // loop_pre_header
                  _
                $region77: #{upgto_v1_forward.2} parent=74 // loop_header
                  %s3023 = sphi 0, %s3027
                  %p3024 = scmp.ge.s32.totalorder %s3023, 1
                  %s3028 = sphi %s2855, %s2855
                  %s3029 = sphi %s2875, %s2875
                $region78: #{upgto_v1_forward.2} parent=74 // loop_header_branch
                  %3026 = sbr.rel (%p3024) target = $region82
                $region79: #{upgto_v1_forward.2} parent=74 // loop_body
                  _
                $region80: #{upgto_v1_forward.2} parent=74 // loop_footer
                  %s3027 = sadd.s32 1, %s3023
                $region81: #{upgto_v1_forward.2} parent=74 // loop_footer_branch
                  %3022 = sbr.rel target = $region77
                $region82: #{upgto_v1_forward.2} parent=74 // loop_exit
                  _
                %s3031 = ssub.s32 16, 1
                loop: start=0, step=1, limit=1
                $region83: #{upgto_v1_forward.2} parent=74 // loop_pre_header
                  _
                $region84: #{upgto_v1_forward.2} parent=74 // loop_header
                  %s3033 = sphi 0, %s3037
                  %p3034 = scmp.ge.s32.totalorder %s3033, 1
                  %s3038 = sphi %s2855, %s2855
                  %s3039 = sphi %s2875, %s2875
                $region85: #{upgto_v1_forward.2} parent=74 // loop_header_branch
                  %3036 = sbr.rel (%p3034) target = $region89
                $region86: #{upgto_v1_forward.2} parent=74 // loop_body
                  %v3040 = vld [vmem:[%s3038] sm:%s3031]
                  %3041 = vst [vmem:[%s3039] sm:%s3031] %v3040
                  %v3042 = vld [vmem:[%s3038 + $0x4] sm:%s3031]
                  %3043 = vst [vmem:[%s3039 + $0x4] sm:%s3031] %v3042
                  %v3044 = vld [vmem:[%s3038 + $0x8] sm:%s3031]
                  %3045 = vst [vmem:[%s3039 + $0x8] sm:%s3031] %v3044
                  %v3046 = vld [vmem:[%s3038 + $0xc] sm:%s3031]
                  %3047 = vst [vmem:[%s3039 + $0xc] sm:%s3031] %v3046
                  %v3048 = vld [vmem:[%s3038 + $0x10] sm:%s3031]
                  %3049 = vst [vmem:[%s3039 + $0x10] sm:%s3031] %v3048
                  %v3050 = vld [vmem:[%s3038 + $0x14] sm:%s3031]
                  %3051 = vst [vmem:[%s3039 + $0x14] sm:%s3031] %v3050
                  %v3052 = vld [vmem:[%s3038 + $0x18] sm:%s3031]
                  %3053 = vst [vmem:[%s3039 + $0x18] sm:%s3031] %v3052
                  %v3054 = vld [vmem:[%s3038 + $0x1c] sm:%s3031]
                  %3055 = vst [vmem:[%s3039 + $0x1c] sm:%s3031] %v3054
                  %v3056 = vld [vmem:[%s3038 + $0x20] sm:%s3031]
                  %3057 = vst [vmem:[%s3039 + $0x20] sm:%s3031] %v3056
                  %v3058 = vld [vmem:[%s3038 + $0x24] sm:%s3031]
                  %3059 = vst [vmem:[%s3039 + $0x24] sm:%s3031] %v3058
                  %v3060 = vld [vmem:[%s3038 + $0x28] sm:%s3031]
                  %3061 = vst [vmem:[%s3039 + $0x28] sm:%s3031] %v3060
                  %v3062 = vld [vmem:[%s3038 + $0x2c] sm:%s3031]
                  %3063 = vst [vmem:[%s3039 + $0x2c] sm:%s3031] %v3062
                  %v3064 = vld [vmem:[%s3038 + $0x30] sm:%s3031]
                  %3065 = vst [vmem:[%s3039 + $0x30] sm:%s3031] %v3064
                  %v3066 = vld [vmem:[%s3038 + $0x34] sm:%s3031]
                  %3067 = vst [vmem:[%s3039 + $0x34] sm:%s3031] %v3066
                  %v3068 = vld [vmem:[%s3038 + $0x38] sm:%s3031]
                  %3069 = vst [vmem:[%s3039 + $0x38] sm:%s3031] %v3068
                  %v3070 = vld [vmem:[%s3038 + $0x3c] sm:%s3031]
                  %3071 = vst [vmem:[%s3039 + $0x3c] sm:%s3031] %v3070
                  %v3072 = vld [vmem:[%s3038 + $0x40] sm:%s3031]
                  %3073 = vst [vmem:[%s3039 + $0x40] sm:%s3031] %v3072
                  %v3074 = vld [vmem:[%s3038 + $0x44] sm:%s3031]
                  %3075 = vst [vmem:[%s3039 + $0x44] sm:%s3031] %v3074
                  %v3076 = vld [vmem:[%s3038 + $0x48] sm:%s3031]
                  %3077 = vst [vmem:[%s3039 + $0x48] sm:%s3031] %v3076
                  %v3078 = vld [vmem:[%s3038 + $0x4c] sm:%s3031]
                  %3079 = vst [vmem:[%s3039 + $0x4c] sm:%s3031] %v3078
                  %v3080 = vld [vmem:[%s3038 + $0x50] sm:%s3031]
                  %3081 = vst [vmem:[%s3039 + $0x50] sm:%s3031] %v3080
                  %v3082 = vld [vmem:[%s3038 + $0x54] sm:%s3031]
                  %3083 = vst [vmem:[%s3039 + $0x54] sm:%s3031] %v3082
                  %v3084 = vld [vmem:[%s3038 + $0x58] sm:%s3031]
                  %3085 = vst [vmem:[%s3039 + $0x58] sm:%s3031] %v3084
                  %v3086 = vld [vmem:[%s3038 + $0x5c] sm:%s3031]
                  %3087 = vst [vmem:[%s3039 + $0x5c] sm:%s3031] %v3086
                  %v3088 = vld [vmem:[%s3038 + $0x60] sm:%s3031]
                  %3089 = vst [vmem:[%s3039 + $0x60] sm:%s3031] %v3088
                  %v3090 = vld [vmem:[%s3038 + $0x64] sm:%s3031]
                  %3091 = vst [vmem:[%s3039 + $0x64] sm:%s3031] %v3090
                  %v3092 = vld [vmem:[%s3038 + $0x68] sm:%s3031]
                  %3093 = vst [vmem:[%s3039 + $0x68] sm:%s3031] %v3092
                  %v3094 = vld [vmem:[%s3038 + $0x6c] sm:%s3031]
                  %3095 = vst [vmem:[%s3039 + $0x6c] sm:%s3031] %v3094
                  %v3096 = vld [vmem:[%s3038 + $0x70] sm:%s3031]
                  %3097 = vst [vmem:[%s3039 + $0x70] sm:%s3031] %v3096
                  %v3098 = vld [vmem:[%s3038 + $0x74] sm:%s3031]
                  %3099 = vst [vmem:[%s3039 + $0x74] sm:%s3031] %v3098
                  %v3100 = vld [vmem:[%s3038 + $0x78] sm:%s3031]
                  %3101 = vst [vmem:[%s3039 + $0x78] sm:%s3031] %v3100
                  %v3102 = vld [vmem:[%s3038 + $0x7c] sm:%s3031]
                  %3103 = vst [vmem:[%s3039 + $0x7c] sm:%s3031] %v3102
                  %v3104 = vld [vmem:[%s3038 + $0x80] sm:%s3031]
                  %3105 = vst [vmem:[%s3039 + $0x100] sm:%s3031] %v3104
                  %v3106 = vld [vmem:[%s3038 + $0x84] sm:%s3031]
                  %3107 = vst [vmem:[%s3039 + $0x104] sm:%s3031] %v3106
                  %v3108 = vld [vmem:[%s3038 + $0x88] sm:%s3031]
                  %3109 = vst [vmem:[%s3039 + $0x108] sm:%s3031] %v3108
                  %v3110 = vld [vmem:[%s3038 + $0x8c] sm:%s3031]
                  %3111 = vst [vmem:[%s3039 + $0x10c] sm:%s3031] %v3110
                  %v3112 = vld [vmem:[%s3038 + $0x90] sm:%s3031]
                  %3113 = vst [vmem:[%s3039 + $0x110] sm:%s3031] %v3112
                  %v3114 = vld [vmem:[%s3038 + $0x94] sm:%s3031]
                  %3115 = vst [vmem:[%s3039 + $0x114] sm:%s3031] %v3114
                  %v3116 = vld [vmem:[%s3038 + $0x98] sm:%s3031]
                  %3117 = vst [vmem:[%s3039 + $0x118] sm:%s3031] %v3116
                  %v3118 = vld [vmem:[%s3038 + $0x9c] sm:%s3031]
                  %3119 = vst [vmem:[%s3039 + $0x11c] sm:%s3031] %v3118
                  %v3120 = vld [vmem:[%s3038 + $0xa0] sm:%s3031]
                  %3121 = vst [vmem:[%s3039 + $0x120] sm:%s3031] %v3120
                  %v3122 = vld [vmem:[%s3038 + $0xa4] sm:%s3031]
                  %3123 = vst [vmem:[%s3039 + $0x124] sm:%s3031] %v3122
                  %v3124 = vld [vmem:[%s3038 + $0xa8] sm:%s3031]
                  %3125 = vst [vmem:[%s3039 + $0x128] sm:%s3031] %v3124
                  %v3126 = vld [vmem:[%s3038 + $0xac] sm:%s3031]
                  %3127 = vst [vmem:[%s3039 + $0x12c] sm:%s3031] %v3126
                  %v3128 = vld [vmem:[%s3038 + $0xb0] sm:%s3031]
                  %3129 = vst [vmem:[%s3039 + $0x130] sm:%s3031] %v3128
                  %v3130 = vld [vmem:[%s3038 + $0xb4] sm:%s3031]
                  %3131 = vst [vmem:[%s3039 + $0x134] sm:%s3031] %v3130
                  %v3132 = vld [vmem:[%s3038 + $0xb8] sm:%s3031]
                  %3133 = vst [vmem:[%s3039 + $0x138] sm:%s3031] %v3132
                  %v3134 = vld [vmem:[%s3038 + $0xbc] sm:%s3031]
                  %3135 = vst [vmem:[%s3039 + $0x13c] sm:%s3031] %v3134
                  %v3136 = vld [vmem:[%s3038 + $0xc0] sm:%s3031]
                  %3137 = vst [vmem:[%s3039 + $0x140] sm:%s3031] %v3136
                  %v3138 = vld [vmem:[%s3038 + $0xc4] sm:%s3031]
                  %3139 = vst [vmem:[%s3039 + $0x144] sm:%s3031] %v3138
                  %v3140 = vld [vmem:[%s3038 + $0xc8] sm:%s3031]
                  %3141 = vst [vmem:[%s3039 + $0x148] sm:%s3031] %v3140
                  %v3142 = vld [vmem:[%s3038 + $0xcc] sm:%s3031]
                  %3143 = vst [vmem:[%s3039 + $0x14c] sm:%s3031] %v3142
                  %v3144 = vld [vmem:[%s3038 + $0xd0] sm:%s3031]
                  %3145 = vst [vmem:[%s3039 + $0x150] sm:%s3031] %v3144
                  %v3146 = vld [vmem:[%s3038 + $0xd4] sm:%s3031]
                  %3147 = vst [vmem:[%s3039 + $0x154] sm:%s3031] %v3146
                  %v3148 = vld [vmem:[%s3038 + $0xd8] sm:%s3031]
                  %3149 = vst [vmem:[%s3039 + $0x158] sm:%s3031] %v3148
                  %v3150 = vld [vmem:[%s3038 + $0xdc] sm:%s3031]
                  %3151 = vst [vmem:[%s3039 + $0x15c] sm:%s3031] %v3150
                  %v3152 = vld [vmem:[%s3038 + $0xe0] sm:%s3031]
                  %3153 = vst [vmem:[%s3039 + $0x160] sm:%s3031] %v3152
                  %v3154 = vld [vmem:[%s3038 + $0xe4] sm:%s3031]
                  %3155 = vst [vmem:[%s3039 + $0x164] sm:%s3031] %v3154
                  %v3156 = vld [vmem:[%s3038 + $0xe8] sm:%s3031]
                  %3157 = vst [vmem:[%s3039 + $0x168] sm:%s3031] %v3156
                  %v3158 = vld [vmem:[%s3038 + $0xec] sm:%s3031]
                  %3159 = vst [vmem:[%s3039 + $0x16c] sm:%s3031] %v3158
                  %v3160 = vld [vmem:[%s3038 + $0xf0] sm:%s3031]
                  %3161 = vst [vmem:[%s3039 + $0x170] sm:%s3031] %v3160
                  %v3162 = vld [vmem:[%s3038 + $0xf4] sm:%s3031]
                  %3163 = vst [vmem:[%s3039 + $0x174] sm:%s3031] %v3162
                  %v3164 = vld [vmem:[%s3038 + $0xf8] sm:%s3031]
                  %3165 = vst [vmem:[%s3039 + $0x178] sm:%s3031] %v3164
                  %v3166 = vld [vmem:[%s3038 + $0xfc] sm:%s3031]
                  %3167 = vst [vmem:[%s3039 + $0x17c] sm:%s3031] %v3166
                $region87: #{upgto_v1_forward.2} parent=74 // loop_footer
                  %s3037 = sadd.s32 1, %s3033
                $region88: #{upgto_v1_forward.2} parent=74 // loop_footer_branch
                  %3032 = sbr.rel target = $region84
                $region89: #{upgto_v1_forward.2} parent=74 // loop_exit
                  _
              $region75: #{upgto_v1_forward.2} parent=59 // pred_fallthru
                _
            $region60: #{upgto_v1_forward.2} parent=55 // pred_fallthru
              _
            // Predicated region
            $region61: #{upgto_v1_forward.2} parent=55 // pred_check
              _
            $region62: #{upgto_v1_forward.2} parent=55 // pred_check_branch
              %2881 = sbr.rel (0) target = $region64
            $region63: #{upgto_v1_forward.2} parent=55 // pred_region
              %s2883 = ssub.s32 16, 1
              loop: start=0, step=1, limit=1
              $region65: #{upgto_v1_forward.2} parent=63 // loop_pre_header
                _
              $region66: #{upgto_v1_forward.2} parent=63 // loop_header
                %s2885 = sphi 0, %s2889
                %p2886 = scmp.ge.s32.totalorder %s2885, 1
                %s2890 = sphi %s2855, %s2855
                %s2891 = sphi %s2875, %s2875
              $region67: #{upgto_v1_forward.2} parent=63 // loop_header_branch
                %2888 = sbr.rel (%p2886) target = $region71
              $region68: #{upgto_v1_forward.2} parent=63 // loop_body
                %v2892 = vld [vmem:[%s2890] sm:%s2883]
                %2893 = vst [vmem:[%s2891] sm:%s2883] %v2892
                %v2894 = vld [vmem:[%s2890 + $0x4] sm:%s2883]
                %2895 = vst [vmem:[%s2891 + $0x4] sm:%s2883] %v2894
                %v2896 = vld [vmem:[%s2890 + $0x8] sm:%s2883]
                %2897 = vst [vmem:[%s2891 + $0x8] sm:%s2883] %v2896
                %v2898 = vld [vmem:[%s2890 + $0xc] sm:%s2883]
                %2899 = vst [vmem:[%s2891 + $0xc] sm:%s2883] %v2898
                %v2900 = vld [vmem:[%s2890 + $0x10] sm:%s2883]
                %2901 = vst [vmem:[%s2891 + $0x10] sm:%s2883] %v2900
                %v2902 = vld [vmem:[%s2890 + $0x14] sm:%s2883]
                %2903 = vst [vmem:[%s2891 + $0x14] sm:%s2883] %v2902
                %v2904 = vld [vmem:[%s2890 + $0x18] sm:%s2883]
                %2905 = vst [vmem:[%s2891 + $0x18] sm:%s2883] %v2904
                %v2906 = vld [vmem:[%s2890 + $0x1c] sm:%s2883]
                %2907 = vst [vmem:[%s2891 + $0x1c] sm:%s2883] %v2906
                %v2908 = vld [vmem:[%s2890 + $0x20] sm:%s2883]
                %2909 = vst [vmem:[%s2891 + $0x20] sm:%s2883] %v2908
                %v2910 = vld [vmem:[%s2890 + $0x24] sm:%s2883]
                %2911 = vst [vmem:[%s2891 + $0x24] sm:%s2883] %v2910
                %v2912 = vld [vmem:[%s2890 + $0x28] sm:%s2883]
                %2913 = vst [vmem:[%s2891 + $0x28] sm:%s2883] %v2912
                %v2914 = vld [vmem:[%s2890 + $0x2c] sm:%s2883]
                %2915 = vst [vmem:[%s2891 + $0x2c] sm:%s2883] %v2914
                %v2916 = vld [vmem:[%s2890 + $0x30] sm:%s2883]
                %2917 = vst [vmem:[%s2891 + $0x30] sm:%s2883] %v2916
                %v2918 = vld [vmem:[%s2890 + $0x34] sm:%s2883]
                %2919 = vst [vmem:[%s2891 + $0x34] sm:%s2883] %v2918
                %v2920 = vld [vmem:[%s2890 + $0x38] sm:%s2883]
                %2921 = vst [vmem:[%s2891 + $0x38] sm:%s2883] %v2920
                %v2922 = vld [vmem:[%s2890 + $0x3c] sm:%s2883]
                %2923 = vst [vmem:[%s2891 + $0x3c] sm:%s2883] %v2922
                %v2924 = vld [vmem:[%s2890 + $0x40] sm:%s2883]
                %2925 = vst [vmem:[%s2891 + $0x40] sm:%s2883] %v2924
                %v2926 = vld [vmem:[%s2890 + $0x44] sm:%s2883]
                %2927 = vst [vmem:[%s2891 + $0x44] sm:%s2883] %v2926
                %v2928 = vld [vmem:[%s2890 + $0x48] sm:%s2883]
                %2929 = vst [vmem:[%s2891 + $0x48] sm:%s2883] %v2928
                %v2930 = vld [vmem:[%s2890 + $0x4c] sm:%s2883]
                %2931 = vst [vmem:[%s2891 + $0x4c] sm:%s2883] %v2930
                %v2932 = vld [vmem:[%s2890 + $0x50] sm:%s2883]
                %2933 = vst [vmem:[%s2891 + $0x50] sm:%s2883] %v2932
                %v2934 = vld [vmem:[%s2890 + $0x54] sm:%s2883]
                %2935 = vst [vmem:[%s2891 + $0x54] sm:%s2883] %v2934
                %v2936 = vld [vmem:[%s2890 + $0x58] sm:%s2883]
                %2937 = vst [vmem:[%s2891 + $0x58] sm:%s2883] %v2936
                %v2938 = vld [vmem:[%s2890 + $0x5c] sm:%s2883]
                %2939 = vst [vmem:[%s2891 + $0x5c] sm:%s2883] %v2938
                %v2940 = vld [vmem:[%s2890 + $0x60] sm:%s2883]
                %2941 = vst [vmem:[%s2891 + $0x60] sm:%s2883] %v2940
                %v2942 = vld [vmem:[%s2890 + $0x64] sm:%s2883]
                %2943 = vst [vmem:[%s2891 + $0x64] sm:%s2883] %v2942
                %v2944 = vld [vmem:[%s2890 + $0x68] sm:%s2883]
                %2945 = vst [vmem:[%s2891 + $0x68] sm:%s2883] %v2944
                %v2946 = vld [vmem:[%s2890 + $0x6c] sm:%s2883]
                %2947 = vst [vmem:[%s2891 + $0x6c] sm:%s2883] %v2946
                %v2948 = vld [vmem:[%s2890 + $0x70] sm:%s2883]
                %2949 = vst [vmem:[%s2891 + $0x70] sm:%s2883] %v2948
                %v2950 = vld [vmem:[%s2890 + $0x74] sm:%s2883]
                %2951 = vst [vmem:[%s2891 + $0x74] sm:%s2883] %v2950
                %v2952 = vld [vmem:[%s2890 + $0x78] sm:%s2883]
                %2953 = vst [vmem:[%s2891 + $0x78] sm:%s2883] %v2952
                %v2954 = vld [vmem:[%s2890 + $0x7c] sm:%s2883]
                %2955 = vst [vmem:[%s2891 + $0x7c] sm:%s2883] %v2954
                %v2956 = vld [vmem:[%s2890 + $0x80] sm:%s2883]
                %2957 = vst [vmem:[%s2891 + $0x100] sm:%s2883] %v2956
                %v2958 = vld [vmem:[%s2890 + $0x84] sm:%s2883]
                %2959 = vst [vmem:[%s2891 + $0x104] sm:%s2883] %v2958
                %v2960 = vld [vmem:[%s2890 + $0x88] sm:%s2883]
                %2961 = vst [vmem:[%s2891 + $0x108] sm:%s2883] %v2960
                %v2962 = vld [vmem:[%s2890 + $0x8c] sm:%s2883]
                %2963 = vst [vmem:[%s2891 + $0x10c] sm:%s2883] %v2962
                %v2964 = vld [vmem:[%s2890 + $0x90] sm:%s2883]
                %2965 = vst [vmem:[%s2891 + $0x110] sm:%s2883] %v2964
                %v2966 = vld [vmem:[%s2890 + $0x94] sm:%s2883]
                %2967 = vst [vmem:[%s2891 + $0x114] sm:%s2883] %v2966
                %v2968 = vld [vmem:[%s2890 + $0x98] sm:%s2883]
                %2969 = vst [vmem:[%s2891 + $0x118] sm:%s2883] %v2968
                %v2970 = vld [vmem:[%s2890 + $0x9c] sm:%s2883]
                %2971 = vst [vmem:[%s2891 + $0x11c] sm:%s2883] %v2970
                %v2972 = vld [vmem:[%s2890 + $0xa0] sm:%s2883]
                %2973 = vst [vmem:[%s2891 + $0x120] sm:%s2883] %v2972
                %v2974 = vld [vmem:[%s2890 + $0xa4] sm:%s2883]
                %2975 = vst [vmem:[%s2891 + $0x124] sm:%s2883] %v2974
                %v2976 = vld [vmem:[%s2890 + $0xa8] sm:%s2883]
                %2977 = vst [vmem:[%s2891 + $0x128] sm:%s2883] %v2976
                %v2978 = vld [vmem:[%s2890 + $0xac] sm:%s2883]
                %2979 = vst [vmem:[%s2891 + $0x12c] sm:%s2883] %v2978
                %v2980 = vld [vmem:[%s2890 + $0xb0] sm:%s2883]
                %2981 = vst [vmem:[%s2891 + $0x130] sm:%s2883] %v2980
                %v2982 = vld [vmem:[%s2890 + $0xb4] sm:%s2883]
                %2983 = vst [vmem:[%s2891 + $0x134] sm:%s2883] %v2982
                %v2984 = vld [vmem:[%s2890 + $0xb8] sm:%s2883]
                %2985 = vst [vmem:[%s2891 + $0x138] sm:%s2883] %v2984
                %v2986 = vld [vmem:[%s2890 + $0xbc] sm:%s2883]
                %2987 = vst [vmem:[%s2891 + $0x13c] sm:%s2883] %v2986
                %v2988 = vld [vmem:[%s2890 + $0xc0] sm:%s2883]
                %2989 = vst [vmem:[%s2891 + $0x140] sm:%s2883] %v2988
                %v2990 = vld [vmem:[%s2890 + $0xc4] sm:%s2883]
                %2991 = vst [vmem:[%s2891 + $0x144] sm:%s2883] %v2990
                %v2992 = vld [vmem:[%s2890 + $0xc8] sm:%s2883]
                %2993 = vst [vmem:[%s2891 + $0x148] sm:%s2883] %v2992
                %v2994 = vld [vmem:[%s2890 + $0xcc] sm:%s2883]
                %2995 = vst [vmem:[%s2891 + $0x14c] sm:%s2883] %v2994
                %v2996 = vld [vmem:[%s2890 + $0xd0] sm:%s2883]
                %2997 = vst [vmem:[%s2891 + $0x150] sm:%s2883] %v2996
                %v2998 = vld [vmem:[%s2890 + $0xd4] sm:%s2883]
                %2999 = vst [vmem:[%s2891 + $0x154] sm:%s2883] %v2998
                %v3000 = vld [vmem:[%s2890 + $0xd8] sm:%s2883]
                %3001 = vst [vmem:[%s2891 + $0x158] sm:%s2883] %v3000
                %v3002 = vld [vmem:[%s2890 + $0xdc] sm:%s2883]
                %3003 = vst [vmem:[%s2891 + $0x15c] sm:%s2883] %v3002
                %v3004 = vld [vmem:[%s2890 + $0xe0] sm:%s2883]
                %3005 = vst [vmem:[%s2891 + $0x160] sm:%s2883] %v3004
                %v3006 = vld [vmem:[%s2890 + $0xe4] sm:%s2883]
                %3007 = vst [vmem:[%s2891 + $0x164] sm:%s2883] %v3006
                %v3008 = vld [vmem:[%s2890 + $0xe8] sm:%s2883]
                %3009 = vst [vmem:[%s2891 + $0x168] sm:%s2883] %v3008
                %v3010 = vld [vmem:[%s2890 + $0xec] sm:%s2883]
                %3011 = vst [vmem:[%s2891 + $0x16c] sm:%s2883] %v3010
                %v3012 = vld [vmem:[%s2890 + $0xf0] sm:%s2883]
                %3013 = vst [vmem:[%s2891 + $0x170] sm:%s2883] %v3012
                %v3014 = vld [vmem:[%s2890 + $0xf4] sm:%s2883]
                %3015 = vst [vmem:[%s2891 + $0x174] sm:%s2883] %v3014
                %v3016 = vld [vmem:[%s2890 + $0xf8] sm:%s2883]
                %3017 = vst [vmem:[%s2891 + $0x178] sm:%s2883] %v3016
                %v3018 = vld [vmem:[%s2890 + $0xfc] sm:%s2883]
                %3019 = vst [vmem:[%s2891 + $0x17c] sm:%s2883] %v3018
              $region69: #{upgto_v1_forward.2} parent=63 // loop_footer
                %s2889 = sadd.s32 1, %s2885
              $region70: #{upgto_v1_forward.2} parent=63 // loop_footer_branch
                %2884 = sbr.rel target = $region66
              $region71: #{upgto_v1_forward.2} parent=63 // loop_exit
                _
            $region64: #{upgto_v1_forward.2} parent=55 // pred_fallthru
              _
          $region56: #{upgto_v1_forward.2} parent=51 // pred_fallthru
            _
          %3168 = vnop
        $region52: #{upgto_v1_forward.2} parent=43 // pred_fallthru
          _
        // Predicated region
        $region90: #{upgto_v1_forward.2} parent=43 // pred_check
          %p3169 = pneg %p259
        $region91: #{upgto_v1_forward.2} parent=43 // pred_check_branch
          %3171 = sbr.rel (%p3169) target = $region93
        $region92: #{upgto_v1_forward.2} parent=43 // pred_region
          %s3172 = sadd.s32 %s25, %s26
          %s3173 = smul.u32 32, %s3172
          %s3174 = smul.addr %s3173, 4
          %s3175 = scalar_lea.vmem %s8, %s3174
          // Predicated region
          $region94: #{upgto_v1_forward.2} parent=92 // pred_check
            _
          $region95: #{upgto_v1_forward.2} parent=92 // pred_check_branch
            %3177 = sbr.rel (0) target = $region97
          $region96: #{upgto_v1_forward.2} parent=92 // pred_region
            // Predicated region
            $region98: #{upgto_v1_forward.2} parent=96 // pred_check
              _
            $region99: #{upgto_v1_forward.2} parent=96 // pred_check_branch
              %3179 = sbr.rel target = $region101
            $region100: #{upgto_v1_forward.2} parent=96 // pred_region
              // Predicated region
              $region113: #{upgto_v1_forward.2} parent=100 // pred_check
                _
              $region114: #{upgto_v1_forward.2} parent=100 // pred_check_branch
                %3321 = sbr.rel (0) target = $region116
              $region115: #{upgto_v1_forward.2} parent=100 // pred_region
                loop: start=0, step=1, limit=1
                $region117: #{upgto_v1_forward.2} parent=115 // loop_pre_header
                  _
                $region118: #{upgto_v1_forward.2} parent=115 // loop_header
                  %s3323 = sphi 0, %s3327
                  %p3324 = scmp.ge.s32.totalorder %s3323, 1
                  %s3328 = sphi %s2859, %s2859
                  %s3329 = sphi %s3175, %s3175
                $region119: #{upgto_v1_forward.2} parent=115 // loop_header_branch
                  %3326 = sbr.rel (%p3324) target = $region123
                $region120: #{upgto_v1_forward.2} parent=115 // loop_body
                  _
                $region121: #{upgto_v1_forward.2} parent=115 // loop_footer
                  %s3327 = sadd.s32 1, %s3323
                $region122: #{upgto_v1_forward.2} parent=115 // loop_footer_branch
                  %3322 = sbr.rel target = $region118
                $region123: #{upgto_v1_forward.2} parent=115 // loop_exit
                  _
                %s3331 = ssub.s32 16, 1
                loop: start=0, step=1, limit=1
                $region124: #{upgto_v1_forward.2} parent=115 // loop_pre_header
                  _
                $region125: #{upgto_v1_forward.2} parent=115 // loop_header
                  %s3333 = sphi 0, %s3337
                  %p3334 = scmp.ge.s32.totalorder %s3333, 1
                  %s3338 = sphi %s2859, %s2859
                  %s3339 = sphi %s3175, %s3175
                $region126: #{upgto_v1_forward.2} parent=115 // loop_header_branch
                  %3336 = sbr.rel (%p3334) target = $region130
                $region127: #{upgto_v1_forward.2} parent=115 // loop_body
                  %v3340 = vld [vmem:[%s3338] sm:%s3331]
                  %3341 = vst [vmem:[%s3339] sm:%s3331] %v3340
                  %v3342 = vld [vmem:[%s3338 + $0x4] sm:%s3331]
                  %3343 = vst [vmem:[%s3339 + $0x4] sm:%s3331] %v3342
                  %v3344 = vld [vmem:[%s3338 + $0x8] sm:%s3331]
                  %3345 = vst [vmem:[%s3339 + $0x8] sm:%s3331] %v3344
                  %v3346 = vld [vmem:[%s3338 + $0xc] sm:%s3331]
                  %3347 = vst [vmem:[%s3339 + $0xc] sm:%s3331] %v3346
                  %v3348 = vld [vmem:[%s3338 + $0x10] sm:%s3331]
                  %3349 = vst [vmem:[%s3339 + $0x10] sm:%s3331] %v3348
                  %v3350 = vld [vmem:[%s3338 + $0x14] sm:%s3331]
                  %3351 = vst [vmem:[%s3339 + $0x14] sm:%s3331] %v3350
                  %v3352 = vld [vmem:[%s3338 + $0x18] sm:%s3331]
                  %3353 = vst [vmem:[%s3339 + $0x18] sm:%s3331] %v3352
                  %v3354 = vld [vmem:[%s3338 + $0x1c] sm:%s3331]
                  %3355 = vst [vmem:[%s3339 + $0x1c] sm:%s3331] %v3354
                  %v3356 = vld [vmem:[%s3338 + $0x20] sm:%s3331]
                  %3357 = vst [vmem:[%s3339 + $0x20] sm:%s3331] %v3356
                  %v3358 = vld [vmem:[%s3338 + $0x24] sm:%s3331]
                  %3359 = vst [vmem:[%s3339 + $0x24] sm:%s3331] %v3358
                  %v3360 = vld [vmem:[%s3338 + $0x28] sm:%s3331]
                  %3361 = vst [vmem:[%s3339 + $0x28] sm:%s3331] %v3360
                  %v3362 = vld [vmem:[%s3338 + $0x2c] sm:%s3331]
                  %3363 = vst [vmem:[%s3339 + $0x2c] sm:%s3331] %v3362
                  %v3364 = vld [vmem:[%s3338 + $0x30] sm:%s3331]
                  %3365 = vst [vmem:[%s3339 + $0x30] sm:%s3331] %v3364
                  %v3366 = vld [vmem:[%s3338 + $0x34] sm:%s3331]
                  %3367 = vst [vmem:[%s3339 + $0x34] sm:%s3331] %v3366
                  %v3368 = vld [vmem:[%s3338 + $0x38] sm:%s3331]
                  %3369 = vst [vmem:[%s3339 + $0x38] sm:%s3331] %v3368
                  %v3370 = vld [vmem:[%s3338 + $0x3c] sm:%s3331]
                  %3371 = vst [vmem:[%s3339 + $0x3c] sm:%s3331] %v3370
                  %v3372 = vld [vmem:[%s3338 + $0x40] sm:%s3331]
                  %3373 = vst [vmem:[%s3339 + $0x40] sm:%s3331] %v3372
                  %v3374 = vld [vmem:[%s3338 + $0x44] sm:%s3331]
                  %3375 = vst [vmem:[%s3339 + $0x44] sm:%s3331] %v3374
                  %v3376 = vld [vmem:[%s3338 + $0x48] sm:%s3331]
                  %3377 = vst [vmem:[%s3339 + $0x48] sm:%s3331] %v3376
                  %v3378 = vld [vmem:[%s3338 + $0x4c] sm:%s3331]
                  %3379 = vst [vmem:[%s3339 + $0x4c] sm:%s3331] %v3378
                  %v3380 = vld [vmem:[%s3338 + $0x50] sm:%s3331]
                  %3381 = vst [vmem:[%s3339 + $0x50] sm:%s3331] %v3380
                  %v3382 = vld [vmem:[%s3338 + $0x54] sm:%s3331]
                  %3383 = vst [vmem:[%s3339 + $0x54] sm:%s3331] %v3382
                  %v3384 = vld [vmem:[%s3338 + $0x58] sm:%s3331]
                  %3385 = vst [vmem:[%s3339 + $0x58] sm:%s3331] %v3384
                  %v3386 = vld [vmem:[%s3338 + $0x5c] sm:%s3331]
                  %3387 = vst [vmem:[%s3339 + $0x5c] sm:%s3331] %v3386
                  %v3388 = vld [vmem:[%s3338 + $0x60] sm:%s3331]
                  %3389 = vst [vmem:[%s3339 + $0x60] sm:%s3331] %v3388
                  %v3390 = vld [vmem:[%s3338 + $0x64] sm:%s3331]
                  %3391 = vst [vmem:[%s3339 + $0x64] sm:%s3331] %v3390
                  %v3392 = vld [vmem:[%s3338 + $0x68] sm:%s3331]
                  %3393 = vst [vmem:[%s3339 + $0x68] sm:%s3331] %v3392
                  %v3394 = vld [vmem:[%s3338 + $0x6c] sm:%s3331]
                  %3395 = vst [vmem:[%s3339 + $0x6c] sm:%s3331] %v3394
                  %v3396 = vld [vmem:[%s3338 + $0x70] sm:%s3331]
                  %3397 = vst [vmem:[%s3339 + $0x70] sm:%s3331] %v3396
                  %v3398 = vld [vmem:[%s3338 + $0x74] sm:%s3331]
                  %3399 = vst [vmem:[%s3339 + $0x74] sm:%s3331] %v3398
                  %v3400 = vld [vmem:[%s3338 + $0x78] sm:%s3331]
                  %3401 = vst [vmem:[%s3339 + $0x78] sm:%s3331] %v3400
                  %v3402 = vld [vmem:[%s3338 + $0x7c] sm:%s3331]
                  %3403 = vst [vmem:[%s3339 + $0x7c] sm:%s3331] %v3402
                  %v3404 = vld [vmem:[%s3338 + $0x80] sm:%s3331]
                  %3405 = vst [vmem:[%s3339 + $0x100] sm:%s3331] %v3404
                  %v3406 = vld [vmem:[%s3338 + $0x84] sm:%s3331]
                  %3407 = vst [vmem:[%s3339 + $0x104] sm:%s3331] %v3406
                  %v3408 = vld [vmem:[%s3338 + $0x88] sm:%s3331]
                  %3409 = vst [vmem:[%s3339 + $0x108] sm:%s3331] %v3408
                  %v3410 = vld [vmem:[%s3338 + $0x8c] sm:%s3331]
                  %3411 = vst [vmem:[%s3339 + $0x10c] sm:%s3331] %v3410
                  %v3412 = vld [vmem:[%s3338 + $0x90] sm:%s3331]
                  %3413 = vst [vmem:[%s3339 + $0x110] sm:%s3331] %v3412
                  %v3414 = vld [vmem:[%s3338 + $0x94] sm:%s3331]
                  %3415 = vst [vmem:[%s3339 + $0x114] sm:%s3331] %v3414
                  %v3416 = vld [vmem:[%s3338 + $0x98] sm:%s3331]
                  %3417 = vst [vmem:[%s3339 + $0x118] sm:%s3331] %v3416
                  %v3418 = vld [vmem:[%s3338 + $0x9c] sm:%s3331]
                  %3419 = vst [vmem:[%s3339 + $0x11c] sm:%s3331] %v3418
                  %v3420 = vld [vmem:[%s3338 + $0xa0] sm:%s3331]
                  %3421 = vst [vmem:[%s3339 + $0x120] sm:%s3331] %v3420
                  %v3422 = vld [vmem:[%s3338 + $0xa4] sm:%s3331]
                  %3423 = vst [vmem:[%s3339 + $0x124] sm:%s3331] %v3422
                  %v3424 = vld [vmem:[%s3338 + $0xa8] sm:%s3331]
                  %3425 = vst [vmem:[%s3339 + $0x128] sm:%s3331] %v3424
                  %v3426 = vld [vmem:[%s3338 + $0xac] sm:%s3331]
                  %3427 = vst [vmem:[%s3339 + $0x12c] sm:%s3331] %v3426
                  %v3428 = vld [vmem:[%s3338 + $0xb0] sm:%s3331]
                  %3429 = vst [vmem:[%s3339 + $0x130] sm:%s3331] %v3428
                  %v3430 = vld [vmem:[%s3338 + $0xb4] sm:%s3331]
                  %3431 = vst [vmem:[%s3339 + $0x134] sm:%s3331] %v3430
                  %v3432 = vld [vmem:[%s3338 + $0xb8] sm:%s3331]
                  %3433 = vst [vmem:[%s3339 + $0x138] sm:%s3331] %v3432
                  %v3434 = vld [vmem:[%s3338 + $0xbc] sm:%s3331]
                  %3435 = vst [vmem:[%s3339 + $0x13c] sm:%s3331] %v3434
                  %v3436 = vld [vmem:[%s3338 + $0xc0] sm:%s3331]
                  %3437 = vst [vmem:[%s3339 + $0x140] sm:%s3331] %v3436
                  %v3438 = vld [vmem:[%s3338 + $0xc4] sm:%s3331]
                  %3439 = vst [vmem:[%s3339 + $0x144] sm:%s3331] %v3438
                  %v3440 = vld [vmem:[%s3338 + $0xc8] sm:%s3331]
                  %3441 = vst [vmem:[%s3339 + $0x148] sm:%s3331] %v3440
                  %v3442 = vld [vmem:[%s3338 + $0xcc] sm:%s3331]
                  %3443 = vst [vmem:[%s3339 + $0x14c] sm:%s3331] %v3442
                  %v3444 = vld [vmem:[%s3338 + $0xd0] sm:%s3331]
                  %3445 = vst [vmem:[%s3339 + $0x150] sm:%s3331] %v3444
                  %v3446 = vld [vmem:[%s3338 + $0xd4] sm:%s3331]
                  %3447 = vst [vmem:[%s3339 + $0x154] sm:%s3331] %v3446
                  %v3448 = vld [vmem:[%s3338 + $0xd8] sm:%s3331]
                  %3449 = vst [vmem:[%s3339 + $0x158] sm:%s3331] %v3448
                  %v3450 = vld [vmem:[%s3338 + $0xdc] sm:%s3331]
                  %3451 = vst [vmem:[%s3339 + $0x15c] sm:%s3331] %v3450
                  %v3452 = vld [vmem:[%s3338 + $0xe0] sm:%s3331]
                  %3453 = vst [vmem:[%s3339 + $0x160] sm:%s3331] %v3452
                  %v3454 = vld [vmem:[%s3338 + $0xe4] sm:%s3331]
                  %3455 = vst [vmem:[%s3339 + $0x164] sm:%s3331] %v3454
                  %v3456 = vld [vmem:[%s3338 + $0xe8] sm:%s3331]
                  %3457 = vst [vmem:[%s3339 + $0x168] sm:%s3331] %v3456
                  %v3458 = vld [vmem:[%s3338 + $0xec] sm:%s3331]
                  %3459 = vst [vmem:[%s3339 + $0x16c] sm:%s3331] %v3458
                  %v3460 = vld [vmem:[%s3338 + $0xf0] sm:%s3331]
                  %3461 = vst [vmem:[%s3339 + $0x170] sm:%s3331] %v3460
                  %v3462 = vld [vmem:[%s3338 + $0xf4] sm:%s3331]
                  %3463 = vst [vmem:[%s3339 + $0x174] sm:%s3331] %v3462
                  %v3464 = vld [vmem:[%s3338 + $0xf8] sm:%s3331]
                  %3465 = vst [vmem:[%s3339 + $0x178] sm:%s3331] %v3464
                  %v3466 = vld [vmem:[%s3338 + $0xfc] sm:%s3331]
                  %3467 = vst [vmem:[%s3339 + $0x17c] sm:%s3331] %v3466
                $region128: #{upgto_v1_forward.2} parent=115 // loop_footer
                  %s3337 = sadd.s32 1, %s3333
                $region129: #{upgto_v1_forward.2} parent=115 // loop_footer_branch
                  %3332 = sbr.rel target = $region125
                $region130: #{upgto_v1_forward.2} parent=115 // loop_exit
                  _
              $region116: #{upgto_v1_forward.2} parent=100 // pred_fallthru
                _
            $region101: #{upgto_v1_forward.2} parent=96 // pred_fallthru
              _
            // Predicated region
            $region102: #{upgto_v1_forward.2} parent=96 // pred_check
              _
            $region103: #{upgto_v1_forward.2} parent=96 // pred_check_branch
              %3181 = sbr.rel (0) target = $region105
            $region104: #{upgto_v1_forward.2} parent=96 // pred_region
              %s3183 = ssub.s32 16, 1
              loop: start=0, step=1, limit=1
              $region106: #{upgto_v1_forward.2} parent=104 // loop_pre_header
                _
              $region107: #{upgto_v1_forward.2} parent=104 // loop_header
                %s3185 = sphi 0, %s3189
                %p3186 = scmp.ge.s32.totalorder %s3185, 1
                %s3190 = sphi %s2859, %s2859
                %s3191 = sphi %s3175, %s3175
              $region108: #{upgto_v1_forward.2} parent=104 // loop_header_branch
                %3188 = sbr.rel (%p3186) target = $region112
              $region109: #{upgto_v1_forward.2} parent=104 // loop_body
                %v3192 = vld [vmem:[%s3190] sm:%s3183]
                %3193 = vst [vmem:[%s3191] sm:%s3183] %v3192
                %v3194 = vld [vmem:[%s3190 + $0x4] sm:%s3183]
                %3195 = vst [vmem:[%s3191 + $0x4] sm:%s3183] %v3194
                %v3196 = vld [vmem:[%s3190 + $0x8] sm:%s3183]
                %3197 = vst [vmem:[%s3191 + $0x8] sm:%s3183] %v3196
                %v3198 = vld [vmem:[%s3190 + $0xc] sm:%s3183]
                %3199 = vst [vmem:[%s3191 + $0xc] sm:%s3183] %v3198
                %v3200 = vld [vmem:[%s3190 + $0x10] sm:%s3183]
                %3201 = vst [vmem:[%s3191 + $0x10] sm:%s3183] %v3200
                %v3202 = vld [vmem:[%s3190 + $0x14] sm:%s3183]
                %3203 = vst [vmem:[%s3191 + $0x14] sm:%s3183] %v3202
                %v3204 = vld [vmem:[%s3190 + $0x18] sm:%s3183]
                %3205 = vst [vmem:[%s3191 + $0x18] sm:%s3183] %v3204
                %v3206 = vld [vmem:[%s3190 + $0x1c] sm:%s3183]
                %3207 = vst [vmem:[%s3191 + $0x1c] sm:%s3183] %v3206
                %v3208 = vld [vmem:[%s3190 + $0x20] sm:%s3183]
                %3209 = vst [vmem:[%s3191 + $0x20] sm:%s3183] %v3208
                %v3210 = vld [vmem:[%s3190 + $0x24] sm:%s3183]
                %3211 = vst [vmem:[%s3191 + $0x24] sm:%s3183] %v3210
                %v3212 = vld [vmem:[%s3190 + $0x28] sm:%s3183]
                %3213 = vst [vmem:[%s3191 + $0x28] sm:%s3183] %v3212
                %v3214 = vld [vmem:[%s3190 + $0x2c] sm:%s3183]
                %3215 = vst [vmem:[%s3191 + $0x2c] sm:%s3183] %v3214
                %v3216 = vld [vmem:[%s3190 + $0x30] sm:%s3183]
                %3217 = vst [vmem:[%s3191 + $0x30] sm:%s3183] %v3216
                %v3218 = vld [vmem:[%s3190 + $0x34] sm:%s3183]
                %3219 = vst [vmem:[%s3191 + $0x34] sm:%s3183] %v3218
                %v3220 = vld [vmem:[%s3190 + $0x38] sm:%s3183]
                %3221 = vst [vmem:[%s3191 + $0x38] sm:%s3183] %v3220
                %v3222 = vld [vmem:[%s3190 + $0x3c] sm:%s3183]
                %3223 = vst [vmem:[%s3191 + $0x3c] sm:%s3183] %v3222
                %v3224 = vld [vmem:[%s3190 + $0x40] sm:%s3183]
                %3225 = vst [vmem:[%s3191 + $0x40] sm:%s3183] %v3224
                %v3226 = vld [vmem:[%s3190 + $0x44] sm:%s3183]
                %3227 = vst [vmem:[%s3191 + $0x44] sm:%s3183] %v3226
                %v3228 = vld [vmem:[%s3190 + $0x48] sm:%s3183]
                %3229 = vst [vmem:[%s3191 + $0x48] sm:%s3183] %v3228
                %v3230 = vld [vmem:[%s3190 + $0x4c] sm:%s3183]
                %3231 = vst [vmem:[%s3191 + $0x4c] sm:%s3183] %v3230
                %v3232 = vld [vmem:[%s3190 + $0x50] sm:%s3183]
                %3233 = vst [vmem:[%s3191 + $0x50] sm:%s3183] %v3232
                %v3234 = vld [vmem:[%s3190 + $0x54] sm:%s3183]
                %3235 = vst [vmem:[%s3191 + $0x54] sm:%s3183] %v3234
                %v3236 = vld [vmem:[%s3190 + $0x58] sm:%s3183]
                %3237 = vst [vmem:[%s3191 + $0x58] sm:%s3183] %v3236
                %v3238 = vld [vmem:[%s3190 + $0x5c] sm:%s3183]
                %3239 = vst [vmem:[%s3191 + $0x5c] sm:%s3183] %v3238
                %v3240 = vld [vmem:[%s3190 + $0x60] sm:%s3183]
                %3241 = vst [vmem:[%s3191 + $0x60] sm:%s3183] %v3240
                %v3242 = vld [vmem:[%s3190 + $0x64] sm:%s3183]
                %3243 = vst [vmem:[%s3191 + $0x64] sm:%s3183] %v3242
                %v3244 = vld [vmem:[%s3190 + $0x68] sm:%s3183]
                %3245 = vst [vmem:[%s3191 + $0x68] sm:%s3183] %v3244
                %v3246 = vld [vmem:[%s3190 + $0x6c] sm:%s3183]
                %3247 = vst [vmem:[%s3191 + $0x6c] sm:%s3183] %v3246
                %v3248 = vld [vmem:[%s3190 + $0x70] sm:%s3183]
                %3249 = vst [vmem:[%s3191 + $0x70] sm:%s3183] %v3248
                %v3250 = vld [vmem:[%s3190 + $0x74] sm:%s3183]
                %3251 = vst [vmem:[%s3191 + $0x74] sm:%s3183] %v3250
                %v3252 = vld [vmem:[%s3190 + $0x78] sm:%s3183]
                %3253 = vst [vmem:[%s3191 + $0x78] sm:%s3183] %v3252
                %v3254 = vld [vmem:[%s3190 + $0x7c] sm:%s3183]
                %3255 = vst [vmem:[%s3191 + $0x7c] sm:%s3183] %v3254
                %v3256 = vld [vmem:[%s3190 + $0x80] sm:%s3183]
                %3257 = vst [vmem:[%s3191 + $0x100] sm:%s3183] %v3256
                %v3258 = vld [vmem:[%s3190 + $0x84] sm:%s3183]
                %3259 = vst [vmem:[%s3191 + $0x104] sm:%s3183] %v3258
                %v3260 = vld [vmem:[%s3190 + $0x88] sm:%s3183]
                %3261 = vst [vmem:[%s3191 + $0x108] sm:%s3183] %v3260
                %v3262 = vld [vmem:[%s3190 + $0x8c] sm:%s3183]
                %3263 = vst [vmem:[%s3191 + $0x10c] sm:%s3183] %v3262
                %v3264 = vld [vmem:[%s3190 + $0x90] sm:%s3183]
                %3265 = vst [vmem:[%s3191 + $0x110] sm:%s3183] %v3264
                %v3266 = vld [vmem:[%s3190 + $0x94] sm:%s3183]
                %3267 = vst [vmem:[%s3191 + $0x114] sm:%s3183] %v3266
                %v3268 = vld [vmem:[%s3190 + $0x98] sm:%s3183]
                %3269 = vst [vmem:[%s3191 + $0x118] sm:%s3183] %v3268
                %v3270 = vld [vmem:[%s3190 + $0x9c] sm:%s3183]
                %3271 = vst [vmem:[%s3191 + $0x11c] sm:%s3183] %v3270
                %v3272 = vld [vmem:[%s3190 + $0xa0] sm:%s3183]
                %3273 = vst [vmem:[%s3191 + $0x120] sm:%s3183] %v3272
                %v3274 = vld [vmem:[%s3190 + $0xa4] sm:%s3183]
                %3275 = vst [vmem:[%s3191 + $0x124] sm:%s3183] %v3274
                %v3276 = vld [vmem:[%s3190 + $0xa8] sm:%s3183]
                %3277 = vst [vmem:[%s3191 + $0x128] sm:%s3183] %v3276
                %v3278 = vld [vmem:[%s3190 + $0xac] sm:%s3183]
                %3279 = vst [vmem:[%s3191 + $0x12c] sm:%s3183] %v3278
                %v3280 = vld [vmem:[%s3190 + $0xb0] sm:%s3183]
                %3281 = vst [vmem:[%s3191 + $0x130] sm:%s3183] %v3280
                %v3282 = vld [vmem:[%s3190 + $0xb4] sm:%s3183]
                %3283 = vst [vmem:[%s3191 + $0x134] sm:%s3183] %v3282
                %v3284 = vld [vmem:[%s3190 + $0xb8] sm:%s3183]
                %3285 = vst [vmem:[%s3191 + $0x138] sm:%s3183] %v3284
                %v3286 = vld [vmem:[%s3190 + $0xbc] sm:%s3183]
                %3287 = vst [vmem:[%s3191 + $0x13c] sm:%s3183] %v3286
                %v3288 = vld [vmem:[%s3190 + $0xc0] sm:%s3183]
                %3289 = vst [vmem:[%s3191 + $0x140] sm:%s3183] %v3288
                %v3290 = vld [vmem:[%s3190 + $0xc4] sm:%s3183]
                %3291 = vst [vmem:[%s3191 + $0x144] sm:%s3183] %v3290
                %v3292 = vld [vmem:[%s3190 + $0xc8] sm:%s3183]
                %3293 = vst [vmem:[%s3191 + $0x148] sm:%s3183] %v3292
                %v3294 = vld [vmem:[%s3190 + $0xcc] sm:%s3183]
                %3295 = vst [vmem:[%s3191 + $0x14c] sm:%s3183] %v3294
                %v3296 = vld [vmem:[%s3190 + $0xd0] sm:%s3183]
                %3297 = vst [vmem:[%s3191 + $0x150] sm:%s3183] %v3296
                %v3298 = vld [vmem:[%s3190 + $0xd4] sm:%s3183]
                %3299 = vst [vmem:[%s3191 + $0x154] sm:%s3183] %v3298
                %v3300 = vld [vmem:[%s3190 + $0xd8] sm:%s3183]
                %3301 = vst [vmem:[%s3191 + $0x158] sm:%s3183] %v3300
                %v3302 = vld [vmem:[%s3190 + $0xdc] sm:%s3183]
                %3303 = vst [vmem:[%s3191 + $0x15c] sm:%s3183] %v3302
                %v3304 = vld [vmem:[%s3190 + $0xe0] sm:%s3183]
                %3305 = vst [vmem:[%s3191 + $0x160] sm:%s3183] %v3304
                %v3306 = vld [vmem:[%s3190 + $0xe4] sm:%s3183]
                %3307 = vst [vmem:[%s3191 + $0x164] sm:%s3183] %v3306
                %v3308 = vld [vmem:[%s3190 + $0xe8] sm:%s3183]
                %3309 = vst [vmem:[%s3191 + $0x168] sm:%s3183] %v3308
                %v3310 = vld [vmem:[%s3190 + $0xec] sm:%s3183]
                %3311 = vst [vmem:[%s3191 + $0x16c] sm:%s3183] %v3310
                %v3312 = vld [vmem:[%s3190 + $0xf0] sm:%s3183]
                %3313 = vst [vmem:[%s3191 + $0x170] sm:%s3183] %v3312
                %v3314 = vld [vmem:[%s3190 + $0xf4] sm:%s3183]
                %3315 = vst [vmem:[%s3191 + $0x174] sm:%s3183] %v3314
                %v3316 = vld [vmem:[%s3190 + $0xf8] sm:%s3183]
                %3317 = vst [vmem:[%s3191 + $0x178] sm:%s3183] %v3316
                %v3318 = vld [vmem:[%s3190 + $0xfc] sm:%s3183]
                %3319 = vst [vmem:[%s3191 + $0x17c] sm:%s3183] %v3318
              $region110: #{upgto_v1_forward.2} parent=104 // loop_footer
                %s3189 = sadd.s32 1, %s3185
              $region111: #{upgto_v1_forward.2} parent=104 // loop_footer_branch
                %3184 = sbr.rel target = $region107
              $region112: #{upgto_v1_forward.2} parent=104 // loop_exit
                _
            $region105: #{upgto_v1_forward.2} parent=96 // pred_fallthru
              _
          $region97: #{upgto_v1_forward.2} parent=92 // pred_fallthru
            _
          %3468 = vnop
        $region93: #{upgto_v1_forward.2} parent=43 // pred_fallthru
          _
        // Predicated region
        $region131: #{upgto_v1_forward.2} parent=43 // pred_check
          %p3469 = pneg %p287
        $region132: #{upgto_v1_forward.2} parent=43 // pred_check_branch
          %3471 = sbr.rel (%p3469) target = $region134
        $region133: #{upgto_v1_forward.2} parent=43 // pred_region
          %s3472 = sadd.s32 %s25, %s26
          %s3473 = smul.u32 32, %s3472
          %s3474 = smul.addr %s3473, 4
          %s3475 = scalar_lea.vmem %s9, %s3474
          // Predicated region
          $region135: #{upgto_v1_forward.2} parent=133 // pred_check
            _
          $region136: #{upgto_v1_forward.2} parent=133 // pred_check_branch
            %3477 = sbr.rel (0) target = $region138
          $region137: #{upgto_v1_forward.2} parent=133 // pred_region
            // Predicated region
            $region139: #{upgto_v1_forward.2} parent=137 // pred_check
              _
            $region140: #{upgto_v1_forward.2} parent=137 // pred_check_branch
              %3479 = sbr.rel target = $region142
            $region141: #{upgto_v1_forward.2} parent=137 // pred_region
              // Predicated region
              $region154: #{upgto_v1_forward.2} parent=141 // pred_check
                _
              $region155: #{upgto_v1_forward.2} parent=141 // pred_check_branch
                %3621 = sbr.rel (0) target = $region157
              $region156: #{upgto_v1_forward.2} parent=141 // pred_region
                loop: start=0, step=1, limit=1
                $region158: #{upgto_v1_forward.2} parent=156 // loop_pre_header
                  _
                $region159: #{upgto_v1_forward.2} parent=156 // loop_header
                  %s3623 = sphi 0, %s3627
                  %p3624 = scmp.ge.s32.totalorder %s3623, 1
                  %s3628 = sphi %s2863, %s2863
                  %s3629 = sphi %s3475, %s3475
                $region160: #{upgto_v1_forward.2} parent=156 // loop_header_branch
                  %3626 = sbr.rel (%p3624) target = $region164
                $region161: #{upgto_v1_forward.2} parent=156 // loop_body
                  _
                $region162: #{upgto_v1_forward.2} parent=156 // loop_footer
                  %s3627 = sadd.s32 1, %s3623
                $region163: #{upgto_v1_forward.2} parent=156 // loop_footer_branch
                  %3622 = sbr.rel target = $region159
                $region164: #{upgto_v1_forward.2} parent=156 // loop_exit
                  _
                %s3631 = ssub.s32 16, 1
                loop: start=0, step=1, limit=1
                $region165: #{upgto_v1_forward.2} parent=156 // loop_pre_header
                  _
                $region166: #{upgto_v1_forward.2} parent=156 // loop_header
                  %s3633 = sphi 0, %s3637
                  %p3634 = scmp.ge.s32.totalorder %s3633, 1
                  %s3638 = sphi %s2863, %s2863
                  %s3639 = sphi %s3475, %s3475
                $region167: #{upgto_v1_forward.2} parent=156 // loop_header_branch
                  %3636 = sbr.rel (%p3634) target = $region171
                $region168: #{upgto_v1_forward.2} parent=156 // loop_body
                  %v3640 = vld [vmem:[%s3638] sm:%s3631]
                  %3641 = vst [vmem:[%s3639] sm:%s3631] %v3640
                  %v3642 = vld [vmem:[%s3638 + $0x4] sm:%s3631]
                  %3643 = vst [vmem:[%s3639 + $0x4] sm:%s3631] %v3642
                  %v3644 = vld [vmem:[%s3638 + $0x8] sm:%s3631]
                  %3645 = vst [vmem:[%s3639 + $0x8] sm:%s3631] %v3644
                  %v3646 = vld [vmem:[%s3638 + $0xc] sm:%s3631]
                  %3647 = vst [vmem:[%s3639 + $0xc] sm:%s3631] %v3646
                  %v3648 = vld [vmem:[%s3638 + $0x10] sm:%s3631]
                  %3649 = vst [vmem:[%s3639 + $0x10] sm:%s3631] %v3648
                  %v3650 = vld [vmem:[%s3638 + $0x14] sm:%s3631]
                  %3651 = vst [vmem:[%s3639 + $0x14] sm:%s3631] %v3650
                  %v3652 = vld [vmem:[%s3638 + $0x18] sm:%s3631]
                  %3653 = vst [vmem:[%s3639 + $0x18] sm:%s3631] %v3652
                  %v3654 = vld [vmem:[%s3638 + $0x1c] sm:%s3631]
                  %3655 = vst [vmem:[%s3639 + $0x1c] sm:%s3631] %v3654
                  %v3656 = vld [vmem:[%s3638 + $0x20] sm:%s3631]
                  %3657 = vst [vmem:[%s3639 + $0x20] sm:%s3631] %v3656
                  %v3658 = vld [vmem:[%s3638 + $0x24] sm:%s3631]
                  %3659 = vst [vmem:[%s3639 + $0x24] sm:%s3631] %v3658
                  %v3660 = vld [vmem:[%s3638 + $0x28] sm:%s3631]
                  %3661 = vst [vmem:[%s3639 + $0x28] sm:%s3631] %v3660
                  %v3662 = vld [vmem:[%s3638 + $0x2c] sm:%s3631]
                  %3663 = vst [vmem:[%s3639 + $0x2c] sm:%s3631] %v3662
                  %v3664 = vld [vmem:[%s3638 + $0x30] sm:%s3631]
                  %3665 = vst [vmem:[%s3639 + $0x30] sm:%s3631] %v3664
                  %v3666 = vld [vmem:[%s3638 + $0x34] sm:%s3631]
                  %3667 = vst [vmem:[%s3639 + $0x34] sm:%s3631] %v3666
                  %v3668 = vld [vmem:[%s3638 + $0x38] sm:%s3631]
                  %3669 = vst [vmem:[%s3639 + $0x38] sm:%s3631] %v3668
                  %v3670 = vld [vmem:[%s3638 + $0x3c] sm:%s3631]
                  %3671 = vst [vmem:[%s3639 + $0x3c] sm:%s3631] %v3670
                  %v3672 = vld [vmem:[%s3638 + $0x40] sm:%s3631]
                  %3673 = vst [vmem:[%s3639 + $0x40] sm:%s3631] %v3672
                  %v3674 = vld [vmem:[%s3638 + $0x44] sm:%s3631]
                  %3675 = vst [vmem:[%s3639 + $0x44] sm:%s3631] %v3674
                  %v3676 = vld [vmem:[%s3638 + $0x48] sm:%s3631]
                  %3677 = vst [vmem:[%s3639 + $0x48] sm:%s3631] %v3676
                  %v3678 = vld [vmem:[%s3638 + $0x4c] sm:%s3631]
                  %3679 = vst [vmem:[%s3639 + $0x4c] sm:%s3631] %v3678
                  %v3680 = vld [vmem:[%s3638 + $0x50] sm:%s3631]
                  %3681 = vst [vmem:[%s3639 + $0x50] sm:%s3631] %v3680
                  %v3682 = vld [vmem:[%s3638 + $0x54] sm:%s3631]
                  %3683 = vst [vmem:[%s3639 + $0x54] sm:%s3631] %v3682
                  %v3684 = vld [vmem:[%s3638 + $0x58] sm:%s3631]
                  %3685 = vst [vmem:[%s3639 + $0x58] sm:%s3631] %v3684
                  %v3686 = vld [vmem:[%s3638 + $0x5c] sm:%s3631]
                  %3687 = vst [vmem:[%s3639 + $0x5c] sm:%s3631] %v3686
                  %v3688 = vld [vmem:[%s3638 + $0x60] sm:%s3631]
                  %3689 = vst [vmem:[%s3639 + $0x60] sm:%s3631] %v3688
                  %v3690 = vld [vmem:[%s3638 + $0x64] sm:%s3631]
                  %3691 = vst [vmem:[%s3639 + $0x64] sm:%s3631] %v3690
                  %v3692 = vld [vmem:[%s3638 + $0x68] sm:%s3631]
                  %3693 = vst [vmem:[%s3639 + $0x68] sm:%s3631] %v3692
                  %v3694 = vld [vmem:[%s3638 + $0x6c] sm:%s3631]
                  %3695 = vst [vmem:[%s3639 + $0x6c] sm:%s3631] %v3694
                  %v3696 = vld [vmem:[%s3638 + $0x70] sm:%s3631]
                  %3697 = vst [vmem:[%s3639 + $0x70] sm:%s3631] %v3696
                  %v3698 = vld [vmem:[%s3638 + $0x74] sm:%s3631]
                  %3699 = vst [vmem:[%s3639 + $0x74] sm:%s3631] %v3698
                  %v3700 = vld [vmem:[%s3638 + $0x78] sm:%s3631]
                  %3701 = vst [vmem:[%s3639 + $0x78] sm:%s3631] %v3700
                  %v3702 = vld [vmem:[%s3638 + $0x7c] sm:%s3631]
                  %3703 = vst [vmem:[%s3639 + $0x7c] sm:%s3631] %v3702
                  %v3704 = vld [vmem:[%s3638 + $0x80] sm:%s3631]
                  %3705 = vst [vmem:[%s3639 + $0x100] sm:%s3631] %v3704
                  %v3706 = vld [vmem:[%s3638 + $0x84] sm:%s3631]
                  %3707 = vst [vmem:[%s3639 + $0x104] sm:%s3631] %v3706
                  %v3708 = vld [vmem:[%s3638 + $0x88] sm:%s3631]
                  %3709 = vst [vmem:[%s3639 + $0x108] sm:%s3631] %v3708
                  %v3710 = vld [vmem:[%s3638 + $0x8c] sm:%s3631]
                  %3711 = vst [vmem:[%s3639 + $0x10c] sm:%s3631] %v3710
                  %v3712 = vld [vmem:[%s3638 + $0x90] sm:%s3631]
                  %3713 = vst [vmem:[%s3639 + $0x110] sm:%s3631] %v3712
                  %v3714 = vld [vmem:[%s3638 + $0x94] sm:%s3631]
                  %3715 = vst [vmem:[%s3639 + $0x114] sm:%s3631] %v3714
                  %v3716 = vld [vmem:[%s3638 + $0x98] sm:%s3631]
                  %3717 = vst [vmem:[%s3639 + $0x118] sm:%s3631] %v3716
                  %v3718 = vld [vmem:[%s3638 + $0x9c] sm:%s3631]
                  %3719 = vst [vmem:[%s3639 + $0x11c] sm:%s3631] %v3718
                  %v3720 = vld [vmem:[%s3638 + $0xa0] sm:%s3631]
                  %3721 = vst [vmem:[%s3639 + $0x120] sm:%s3631] %v3720
                  %v3722 = vld [vmem:[%s3638 + $0xa4] sm:%s3631]
                  %3723 = vst [vmem:[%s3639 + $0x124] sm:%s3631] %v3722
                  %v3724 = vld [vmem:[%s3638 + $0xa8] sm:%s3631]
                  %3725 = vst [vmem:[%s3639 + $0x128] sm:%s3631] %v3724
                  %v3726 = vld [vmem:[%s3638 + $0xac] sm:%s3631]
                  %3727 = vst [vmem:[%s3639 + $0x12c] sm:%s3631] %v3726
                  %v3728 = vld [vmem:[%s3638 + $0xb0] sm:%s3631]
                  %3729 = vst [vmem:[%s3639 + $0x130] sm:%s3631] %v3728
                  %v3730 = vld [vmem:[%s3638 + $0xb4] sm:%s3631]
                  %3731 = vst [vmem:[%s3639 + $0x134] sm:%s3631] %v3730
                  %v3732 = vld [vmem:[%s3638 + $0xb8] sm:%s3631]
                  %3733 = vst [vmem:[%s3639 + $0x138] sm:%s3631] %v3732
                  %v3734 = vld [vmem:[%s3638 + $0xbc] sm:%s3631]
                  %3735 = vst [vmem:[%s3639 + $0x13c] sm:%s3631] %v3734
                  %v3736 = vld [vmem:[%s3638 + $0xc0] sm:%s3631]
                  %3737 = vst [vmem:[%s3639 + $0x140] sm:%s3631] %v3736
                  %v3738 = vld [vmem:[%s3638 + $0xc4] sm:%s3631]
                  %3739 = vst [vmem:[%s3639 + $0x144] sm:%s3631] %v3738
                  %v3740 = vld [vmem:[%s3638 + $0xc8] sm:%s3631]
                  %3741 = vst [vmem:[%s3639 + $0x148] sm:%s3631] %v3740
                  %v3742 = vld [vmem:[%s3638 + $0xcc] sm:%s3631]
                  %3743 = vst [vmem:[%s3639 + $0x14c] sm:%s3631] %v3742
                  %v3744 = vld [vmem:[%s3638 + $0xd0] sm:%s3631]
                  %3745 = vst [vmem:[%s3639 + $0x150] sm:%s3631] %v3744
                  %v3746 = vld [vmem:[%s3638 + $0xd4] sm:%s3631]
                  %3747 = vst [vmem:[%s3639 + $0x154] sm:%s3631] %v3746
                  %v3748 = vld [vmem:[%s3638 + $0xd8] sm:%s3631]
                  %3749 = vst [vmem:[%s3639 + $0x158] sm:%s3631] %v3748
                  %v3750 = vld [vmem:[%s3638 + $0xdc] sm:%s3631]
                  %3751 = vst [vmem:[%s3639 + $0x15c] sm:%s3631] %v3750
                  %v3752 = vld [vmem:[%s3638 + $0xe0] sm:%s3631]
                  %3753 = vst [vmem:[%s3639 + $0x160] sm:%s3631] %v3752
                  %v3754 = vld [vmem:[%s3638 + $0xe4] sm:%s3631]
                  %3755 = vst [vmem:[%s3639 + $0x164] sm:%s3631] %v3754
                  %v3756 = vld [vmem:[%s3638 + $0xe8] sm:%s3631]
                  %3757 = vst [vmem:[%s3639 + $0x168] sm:%s3631] %v3756
                  %v3758 = vld [vmem:[%s3638 + $0xec] sm:%s3631]
                  %3759 = vst [vmem:[%s3639 + $0x16c] sm:%s3631] %v3758
                  %v3760 = vld [vmem:[%s3638 + $0xf0] sm:%s3631]
                  %3761 = vst [vmem:[%s3639 + $0x170] sm:%s3631] %v3760
                  %v3762 = vld [vmem:[%s3638 + $0xf4] sm:%s3631]
                  %3763 = vst [vmem:[%s3639 + $0x174] sm:%s3631] %v3762
                  %v3764 = vld [vmem:[%s3638 + $0xf8] sm:%s3631]
                  %3765 = vst [vmem:[%s3639 + $0x178] sm:%s3631] %v3764
                  %v3766 = vld [vmem:[%s3638 + $0xfc] sm:%s3631]
                  %3767 = vst [vmem:[%s3639 + $0x17c] sm:%s3631] %v3766
                $region169: #{upgto_v1_forward.2} parent=156 // loop_footer
                  %s3637 = sadd.s32 1, %s3633
                $region170: #{upgto_v1_forward.2} parent=156 // loop_footer_branch
                  %3632 = sbr.rel target = $region166
                $region171: #{upgto_v1_forward.2} parent=156 // loop_exit
                  _
              $region157: #{upgto_v1_forward.2} parent=141 // pred_fallthru
                _
            $region142: #{upgto_v1_forward.2} parent=137 // pred_fallthru
              _
            // Predicated region
            $region143: #{upgto_v1_forward.2} parent=137 // pred_check
              _
            $region144: #{upgto_v1_forward.2} parent=137 // pred_check_branch
              %3481 = sbr.rel (0) target = $region146
            $region145: #{upgto_v1_forward.2} parent=137 // pred_region
              %s3483 = ssub.s32 16, 1
              loop: start=0, step=1, limit=1
              $region147: #{upgto_v1_forward.2} parent=145 // loop_pre_header
                _
              $region148: #{upgto_v1_forward.2} parent=145 // loop_header
                %s3485 = sphi 0, %s3489
                %p3486 = scmp.ge.s32.totalorder %s3485, 1
                %s3490 = sphi %s2863, %s2863
                %s3491 = sphi %s3475, %s3475
              $region149: #{upgto_v1_forward.2} parent=145 // loop_header_branch
                %3488 = sbr.rel (%p3486) target = $region153
              $region150: #{upgto_v1_forward.2} parent=145 // loop_body
                %v3492 = vld [vmem:[%s3490] sm:%s3483]
                %3493 = vst [vmem:[%s3491] sm:%s3483] %v3492
                %v3494 = vld [vmem:[%s3490 + $0x4] sm:%s3483]
                %3495 = vst [vmem:[%s3491 + $0x4] sm:%s3483] %v3494
                %v3496 = vld [vmem:[%s3490 + $0x8] sm:%s3483]
                %3497 = vst [vmem:[%s3491 + $0x8] sm:%s3483] %v3496
                %v3498 = vld [vmem:[%s3490 + $0xc] sm:%s3483]
                %3499 = vst [vmem:[%s3491 + $0xc] sm:%s3483] %v3498
                %v3500 = vld [vmem:[%s3490 + $0x10] sm:%s3483]
                %3501 = vst [vmem:[%s3491 + $0x10] sm:%s3483] %v3500
                %v3502 = vld [vmem:[%s3490 + $0x14] sm:%s3483]
                %3503 = vst [vmem:[%s3491 + $0x14] sm:%s3483] %v3502
                %v3504 = vld [vmem:[%s3490 + $0x18] sm:%s3483]
                %3505 = vst [vmem:[%s3491 + $0x18] sm:%s3483] %v3504
                %v3506 = vld [vmem:[%s3490 + $0x1c] sm:%s3483]
                %3507 = vst [vmem:[%s3491 + $0x1c] sm:%s3483] %v3506
                %v3508 = vld [vmem:[%s3490 + $0x20] sm:%s3483]
                %3509 = vst [vmem:[%s3491 + $0x20] sm:%s3483] %v3508
                %v3510 = vld [vmem:[%s3490 + $0x24] sm:%s3483]
                %3511 = vst [vmem:[%s3491 + $0x24] sm:%s3483] %v3510
                %v3512 = vld [vmem:[%s3490 + $0x28] sm:%s3483]
                %3513 = vst [vmem:[%s3491 + $0x28] sm:%s3483] %v3512
                %v3514 = vld [vmem:[%s3490 + $0x2c] sm:%s3483]
                %3515 = vst [vmem:[%s3491 + $0x2c] sm:%s3483] %v3514
                %v3516 = vld [vmem:[%s3490 + $0x30] sm:%s3483]
                %3517 = vst [vmem:[%s3491 + $0x30] sm:%s3483] %v3516
                %v3518 = vld [vmem:[%s3490 + $0x34] sm:%s3483]
                %3519 = vst [vmem:[%s3491 + $0x34] sm:%s3483] %v3518
                %v3520 = vld [vmem:[%s3490 + $0x38] sm:%s3483]
                %3521 = vst [vmem:[%s3491 + $0x38] sm:%s3483] %v3520
                %v3522 = vld [vmem:[%s3490 + $0x3c] sm:%s3483]
                %3523 = vst [vmem:[%s3491 + $0x3c] sm:%s3483] %v3522
                %v3524 = vld [vmem:[%s3490 + $0x40] sm:%s3483]
                %3525 = vst [vmem:[%s3491 + $0x40] sm:%s3483] %v3524
                %v3526 = vld [vmem:[%s3490 + $0x44] sm:%s3483]
                %3527 = vst [vmem:[%s3491 + $0x44] sm:%s3483] %v3526
                %v3528 = vld [vmem:[%s3490 + $0x48] sm:%s3483]
                %3529 = vst [vmem:[%s3491 + $0x48] sm:%s3483] %v3528
                %v3530 = vld [vmem:[%s3490 + $0x4c] sm:%s3483]
                %3531 = vst [vmem:[%s3491 + $0x4c] sm:%s3483] %v3530
                %v3532 = vld [vmem:[%s3490 + $0x50] sm:%s3483]
                %3533 = vst [vmem:[%s3491 + $0x50] sm:%s3483] %v3532
                %v3534 = vld [vmem:[%s3490 + $0x54] sm:%s3483]
                %3535 = vst [vmem:[%s3491 + $0x54] sm:%s3483] %v3534
                %v3536 = vld [vmem:[%s3490 + $0x58] sm:%s3483]
                %3537 = vst [vmem:[%s3491 + $0x58] sm:%s3483] %v3536
                %v3538 = vld [vmem:[%s3490 + $0x5c] sm:%s3483]
                %3539 = vst [vmem:[%s3491 + $0x5c] sm:%s3483] %v3538
                %v3540 = vld [vmem:[%s3490 + $0x60] sm:%s3483]
                %3541 = vst [vmem:[%s3491 + $0x60] sm:%s3483] %v3540
                %v3542 = vld [vmem:[%s3490 + $0x64] sm:%s3483]
                %3543 = vst [vmem:[%s3491 + $0x64] sm:%s3483] %v3542
                %v3544 = vld [vmem:[%s3490 + $0x68] sm:%s3483]
                %3545 = vst [vmem:[%s3491 + $0x68] sm:%s3483] %v3544
                %v3546 = vld [vmem:[%s3490 + $0x6c] sm:%s3483]
                %3547 = vst [vmem:[%s3491 + $0x6c] sm:%s3483] %v3546
                %v3548 = vld [vmem:[%s3490 + $0x70] sm:%s3483]
                %3549 = vst [vmem:[%s3491 + $0x70] sm:%s3483] %v3548
                %v3550 = vld [vmem:[%s3490 + $0x74] sm:%s3483]
                %3551 = vst [vmem:[%s3491 + $0x74] sm:%s3483] %v3550
                %v3552 = vld [vmem:[%s3490 + $0x78] sm:%s3483]
                %3553 = vst [vmem:[%s3491 + $0x78] sm:%s3483] %v3552
                %v3554 = vld [vmem:[%s3490 + $0x7c] sm:%s3483]
                %3555 = vst [vmem:[%s3491 + $0x7c] sm:%s3483] %v3554
                %v3556 = vld [vmem:[%s3490 + $0x80] sm:%s3483]
                %3557 = vst [vmem:[%s3491 + $0x100] sm:%s3483] %v3556
                %v3558 = vld [vmem:[%s3490 + $0x84] sm:%s3483]
                %3559 = vst [vmem:[%s3491 + $0x104] sm:%s3483] %v3558
                %v3560 = vld [vmem:[%s3490 + $0x88] sm:%s3483]
                %3561 = vst [vmem:[%s3491 + $0x108] sm:%s3483] %v3560
                %v3562 = vld [vmem:[%s3490 + $0x8c] sm:%s3483]
                %3563 = vst [vmem:[%s3491 + $0x10c] sm:%s3483] %v3562
                %v3564 = vld [vmem:[%s3490 + $0x90] sm:%s3483]
                %3565 = vst [vmem:[%s3491 + $0x110] sm:%s3483] %v3564
                %v3566 = vld [vmem:[%s3490 + $0x94] sm:%s3483]
                %3567 = vst [vmem:[%s3491 + $0x114] sm:%s3483] %v3566
                %v3568 = vld [vmem:[%s3490 + $0x98] sm:%s3483]
                %3569 = vst [vmem:[%s3491 + $0x118] sm:%s3483] %v3568
                %v3570 = vld [vmem:[%s3490 + $0x9c] sm:%s3483]
                %3571 = vst [vmem:[%s3491 + $0x11c] sm:%s3483] %v3570
                %v3572 = vld [vmem:[%s3490 + $0xa0] sm:%s3483]
                %3573 = vst [vmem:[%s3491 + $0x120] sm:%s3483] %v3572
                %v3574 = vld [vmem:[%s3490 + $0xa4] sm:%s3483]
                %3575 = vst [vmem:[%s3491 + $0x124] sm:%s3483] %v3574
                %v3576 = vld [vmem:[%s3490 + $0xa8] sm:%s3483]
                %3577 = vst [vmem:[%s3491 + $0x128] sm:%s3483] %v3576
                %v3578 = vld [vmem:[%s3490 + $0xac] sm:%s3483]
                %3579 = vst [vmem:[%s3491 + $0x12c] sm:%s3483] %v3578
                %v3580 = vld [vmem:[%s3490 + $0xb0] sm:%s3483]
                %3581 = vst [vmem:[%s3491 + $0x130] sm:%s3483] %v3580
                %v3582 = vld [vmem:[%s3490 + $0xb4] sm:%s3483]
                %3583 = vst [vmem:[%s3491 + $0x134] sm:%s3483] %v3582
                %v3584 = vld [vmem:[%s3490 + $0xb8] sm:%s3483]
                %3585 = vst [vmem:[%s3491 + $0x138] sm:%s3483] %v3584
                %v3586 = vld [vmem:[%s3490 + $0xbc] sm:%s3483]
                %3587 = vst [vmem:[%s3491 + $0x13c] sm:%s3483] %v3586
                %v3588 = vld [vmem:[%s3490 + $0xc0] sm:%s3483]
                %3589 = vst [vmem:[%s3491 + $0x140] sm:%s3483] %v3588
                %v3590 = vld [vmem:[%s3490 + $0xc4] sm:%s3483]
                %3591 = vst [vmem:[%s3491 + $0x144] sm:%s3483] %v3590
                %v3592 = vld [vmem:[%s3490 + $0xc8] sm:%s3483]
                %3593 = vst [vmem:[%s3491 + $0x148] sm:%s3483] %v3592
                %v3594 = vld [vmem:[%s3490 + $0xcc] sm:%s3483]
                %3595 = vst [vmem:[%s3491 + $0x14c] sm:%s3483] %v3594
                %v3596 = vld [vmem:[%s3490 + $0xd0] sm:%s3483]
                %3597 = vst [vmem:[%s3491 + $0x150] sm:%s3483] %v3596
                %v3598 = vld [vmem:[%s3490 + $0xd4] sm:%s3483]
                %3599 = vst [vmem:[%s3491 + $0x154] sm:%s3483] %v3598
                %v3600 = vld [vmem:[%s3490 + $0xd8] sm:%s3483]
                %3601 = vst [vmem:[%s3491 + $0x158] sm:%s3483] %v3600
                %v3602 = vld [vmem:[%s3490 + $0xdc] sm:%s3483]
                %3603 = vst [vmem:[%s3491 + $0x15c] sm:%s3483] %v3602
                %v3604 = vld [vmem:[%s3490 + $0xe0] sm:%s3483]
                %3605 = vst [vmem:[%s3491 + $0x160] sm:%s3483] %v3604
                %v3606 = vld [vmem:[%s3490 + $0xe4] sm:%s3483]
                %3607 = vst [vmem:[%s3491 + $0x164] sm:%s3483] %v3606
                %v3608 = vld [vmem:[%s3490 + $0xe8] sm:%s3483]
                %3609 = vst [vmem:[%s3491 + $0x168] sm:%s3483] %v3608
                %v3610 = vld [vmem:[%s3490 + $0xec] sm:%s3483]
                %3611 = vst [vmem:[%s3491 + $0x16c] sm:%s3483] %v3610
                %v3612 = vld [vmem:[%s3490 + $0xf0] sm:%s3483]
                %3613 = vst [vmem:[%s3491 + $0x170] sm:%s3483] %v3612
                %v3614 = vld [vmem:[%s3490 + $0xf4] sm:%s3483]
                %3615 = vst [vmem:[%s3491 + $0x174] sm:%s3483] %v3614
                %v3616 = vld [vmem:[%s3490 + $0xf8] sm:%s3483]
                %3617 = vst [vmem:[%s3491 + $0x178] sm:%s3483] %v3616
                %v3618 = vld [vmem:[%s3490 + $0xfc] sm:%s3483]
                %3619 = vst [vmem:[%s3491 + $0x17c] sm:%s3483] %v3618
              $region151: #{upgto_v1_forward.2} parent=145 // loop_footer
                %s3489 = sadd.s32 1, %s3485
              $region152: #{upgto_v1_forward.2} parent=145 // loop_footer_branch
                %3484 = sbr.rel target = $region148
              $region153: #{upgto_v1_forward.2} parent=145 // loop_exit
                _
            $region146: #{upgto_v1_forward.2} parent=137 // pred_fallthru
              _
          $region138: #{upgto_v1_forward.2} parent=133 // pred_fallthru
            _
          %3768 = vnop
        $region134: #{upgto_v1_forward.2} parent=43 // pred_fallthru
          _
      $region44: #{upgto_v1_forward.2} parent=5 // pred_fallthru
        _
      %p3769 = scmp.le.s32.totalorder 2, %s16
      // Predicated region
      $region172: #{upgto_v1_forward.2} parent=5 // pred_check
        %p3770 = pneg %p3769
      $region173: #{upgto_v1_forward.2} parent=5 // pred_check_branch
        %3772 = sbr.rel (%p3770) target = $region175
      $region174: #{upgto_v1_forward.2} parent=5 // pred_region
        %s3773 = ssub.s32 %s16, 2
        // Predicated region
        $region176: #{upgto_v1_forward.2} parent=174 // pred_check
          %p3774 = pneg %p209
        $region177: #{upgto_v1_forward.2} parent=174 // pred_check_branch
          %3776 = sbr.rel (%p3774) target = $region179
        $region178: #{upgto_v1_forward.2} parent=174 // pred_region
          %s3777 = sadd.s32 %s27, %s28
          %s3778 = smul.u32 32, %s3777
          %p3779 = scmp.lt.s32.totalorder %s3778, 63
          %s3780 = scalar_select %p3779, %s3778, 63
          %s3781 = smul.addr %s3780, 2
          %s3782 = smul.addr %s3781, 4
          %s3783 = scalar_lea.vmem %s6, %s3782
        $region179: #{upgto_v1_forward.2} parent=174 // pred_fallthru
          _
        // Predicated region
        $region180: #{upgto_v1_forward.2} parent=174 // pred_check
          %p3784 = pneg %p237
        $region181: #{upgto_v1_forward.2} parent=174 // pred_check_branch
          %3786 = sbr.rel (%p3784) target = $region183
        $region182: #{upgto_v1_forward.2} parent=174 // pred_region
          %s3787 = sand.u32 %s222, 1
          %s3788 = sand.u32 %s222, 1
          %s3789 = smul.addr %s3788, 256
          %s3790 = scalar_lea.vmem [#allocation2], %s3789
        $region183: #{upgto_v1_forward.2} parent=174 // pred_fallthru
          _
        // Predicated region
        $region184: #{upgto_v1_forward.2} parent=174 // pred_check
          %p3791 = pneg %p265
        $region185: #{upgto_v1_forward.2} parent=174 // pred_check_branch
          %3793 = sbr.rel (%p3791) target = $region187
        $region186: #{upgto_v1_forward.2} parent=174 // pred_region
          %s3794 = sand.u32 %s250, 1
          %s3795 = sand.u32 %s250, 1
          %s3796 = smul.addr %s3795, 256
          %s3797 = scalar_lea.vmem [#allocation3], %s3796
        $region187: #{upgto_v1_forward.2} parent=174 // pred_fallthru
          _
        // Predicated region
        $region188: #{upgto_v1_forward.2} parent=174 // pred_check
          %p3798 = pneg %p293
        $region189: #{upgto_v1_forward.2} parent=174 // pred_check_branch
          %3800 = sbr.rel (%p3798) target = $region191
        $region190: #{upgto_v1_forward.2} parent=174 // pred_region
          %s3801 = sand.u32 %s278, 1
          %s3802 = sand.u32 %s278, 1
          %s3803 = smul.addr %s3802, 256
          %s3804 = scalar_lea.vmem [#allocation4], %s3803
        $region191: #{upgto_v1_forward.2} parent=174 // pred_fallthru
          _
      $region175: #{upgto_v1_forward.2} parent=5 // pred_fallthru
        _
    $region6: #{upgto_v1_forward.2} parent=1 // loop_footer
      %s20 = sadd.s32 1, %s16
    $region7: #{upgto_v1_forward.2} parent=1 // loop_footer_branch
      %15 = sbr.rel target = $region3
    $region8: #{upgto_v1_forward.2} parent=1 // loop_exit
      _

// kernel: upgto_v1_forward.3
$region0: #{upgto_v1_forward.3}
  #allocation0 [shape = 'u32[]', space=smem, size = 0x4, offset = 0x4, fixed_abs, tag = 'smem constant byte address 0x4 - core index']
  #allocation1 [shape = 'u32[72,128]{1,0:T(1,128)}', space=vmem, size = 0x9000, scoped, tag = 'internal scratch']
  #allocation2 [shape = 'f32[512,1]{1,0:T(8,128)}', space=vmem, size = 0x40000, scoped, tag = 'scratch operand']
  #allocation3 [shape = 'f32[512,1]{1,0:T(8,128)}', space=vmem, size = 0x40000, scoped, tag = 'scratch operand']
  #allocation4 [shape = 'f32[512,32]{1,0:T(8,128)}', space=vmem, size = 0x40000, scoped, tag = 'scratch operand']
  %s0 = inlined_call_operand.vmem [shape: bf16[2,2,1024,32], index: 0, kind: input, shape index: {}]
  %s1 = inlined_call_operand.vmem [shape: bf16[2,2,256,32], index: 1, kind: input, shape index: {}]
  %s2 = inlined_call_operand.vmem [shape: bf16[2,2,256,32], index: 2, kind: input, shape index: {}]
  %s3 = inlined_call_operand.vmem [shape: bf16[2,32,64], index: 3, kind: input, shape index: {}]
  %s4 = inlined_call_operand.vmem [shape: bf16[2,1024,64], index: 4, kind: input, shape index: {}]
  %s5 = inlined_call_operand.vmem [shape: f32[2,1024,64], index: 5, kind: output, shape index: {}]
  %s6 = sld [smem:[#allocation0]]
  $region69: #{upgto_v1_forward.3} parent=0
    _
  %s8 = ssub.s32 1, %s6
  %s9 = scalar_select 0, %s8, %s6
  loop: start=0, step=1, limit=10
  $region2: #{upgto_v1_forward.3} parent=0 // loop_pre_header
    _
  $region3: #{upgto_v1_forward.3} parent=0 // loop_header
    %s11 = sphi 0, %s15
    %p12 = scmp.ge.s32.totalorder %s11, 10
    %s18 = sphi 0, %s44
    %s19 = sphi 0, %s40
    %s20 = sphi 0, %s36
    %s21 = sphi 0, %s32
    %s22 = sphi 0, %s18
    %s23 = sphi 0, %s19
    %s24 = sphi 0, %s20
    %s25 = sphi 0, %s21
    %s26 = sphi 0, %s22
    %s27 = sphi 0, %s23
    %s28 = sphi 0, %s24
    %s29 = sphi 0, %s25
    %s51 = sphi 0, %s53
    %s54 = sphi 0, %s51
    %s55 = sphi 0, %s54
    %s71 = sphi 0, %s55
    %s81 = sphi 0, %s83
    %s84 = sphi 0, %s81
    %s85 = sphi 0, %s84
    %s101 = sphi 0, %s85
    %s111 = sphi 0, %s113
    %s114 = sphi 0, %s111
    %s115 = sphi 0, %s114
    %s131 = sphi 0, %s115
    %s137 = sphi 0, %s139
    %s140 = sphi 0, %s137
    %s141 = sphi 0, %s140
    %s157 = sphi 0, %s141
    %s165 = sphi 0, %s167
    %s168 = sphi 0, %s165
    %s169 = sphi 0, %s168
    %s185 = sphi 0, %s169
    %s193 = sphi 0, %s195
    %s196 = sphi 0, %s193
    %s197 = sphi 0, %s196
    %s213 = sphi 0, %s197
  $region4: #{upgto_v1_forward.3} parent=0 // loop_header_branch
    %14 = sbr.rel (%p12) target = $region8
  $region5: #{upgto_v1_forward.3} parent=0 // loop_body
    %s16 = ssub.s32 %s11, 1
    %s17 = ssub.s32 %s11, 2
    %s30 = sadd.s32 1, %s21
    %p31 = scmp.ge.s32.totalorder %s30, 1
    %s32 = scalar_select %p31, 0, %s30
    %s33 = sadd.s32 1, %s20
    %s34 = scalar_select %p31, %s33, %s20
    %p35 = scmp.ge.s32.totalorder %s34, 2
    %s36 = scalar_select %p35, 0, %s34
    %s37 = sadd.s32 1, %s19
    %s38 = scalar_select %p35, %s37, %s19
    %p39 = scmp.ge.s32.totalorder %s38, 2
    %s40 = scalar_select %p39, 0, %s38
    %s41 = sadd.s32 1, %s18
    %s42 = scalar_select %p39, %s41, %s18
    %p43 = scmp.ge.s32.totalorder %s42, 2
    %s44 = scalar_select %p43, 0, %s42
    %s45 = ssub.s32 %s20, %s36
    %s46 = ssub.s32 %s18, %s44
    %s47 = sor.u32 %s45, %s46
    %s48 = ssub.s32 %s19, %s40
    %s49 = sor.u32 %s47, %s48
    %p50 = scmp.eq.s32.totalorder %s49, 0
    %s52 = sadd.s32 %s51, 1
    %s53 = scalar_select %p50, %s51, %s52
    %p56 = pneg %p50
    %p57 = scmp.eq.s32.totalorder %s11, 7
    %p58 = por %p56, %p57
    %p59 = scmp.ne.s32.totalorder %s51, %s54
    %p60 = scmp.eq.s32.totalorder %s11, 0
    %p61 = por %p59, %p60
    %p62 = scmp.ne.s32.totalorder %s51, %s54
    %p63 = scmp.eq.s32.totalorder %s16, 7
    %p64 = por %p62, %p63
    %p65 = scmp.ne.s32.totalorder %s54, %s55
    %p66 = scmp.eq.s32.totalorder %s16, 0
    %p67 = por %p65, %p66
    %p68 = scmp.ne.s32.totalorder %s54, %s55
    %p69 = scmp.eq.s32.totalorder %s17, 7
    %p70 = por %p68, %p69
    %p72 = scmp.ne.s32.totalorder %s55, %s71
    %p73 = scmp.eq.s32.totalorder %s17, 0
    %p74 = por %p72, %p73
    %s75 = ssub.s32 %s20, %s36
    %s76 = ssub.s32 %s18, %s44
    %s77 = sor.u32 %s75, %s76
    %s78 = ssub.s32 %s21, %s32
    %s79 = sor.u32 %s77, %s78
    %p80 = scmp.eq.s32.totalorder %s79, 0
    %s82 = sadd.s32 %s81, 1
    %s83 = scalar_select %p80, %s81, %s82
    %p86 = pneg %p80
    %p87 = scmp.eq.s32.totalorder %s11, 7
    %p88 = por %p86, %p87
    %p89 = scmp.ne.s32.totalorder %s81, %s84
    %p90 = scmp.eq.s32.totalorder %s11, 0
    %p91 = por %p89, %p90
    %p92 = scmp.ne.s32.totalorder %s81, %s84
    %p93 = scmp.eq.s32.totalorder %s16, 7
    %p94 = por %p92, %p93
    %p95 = scmp.ne.s32.totalorder %s84, %s85
    %p96 = scmp.eq.s32.totalorder %s16, 0
    %p97 = por %p95, %p96
    %p98 = scmp.ne.s32.totalorder %s84, %s85
    %p99 = scmp.eq.s32.totalorder %s17, 7
    %p100 = por %p98, %p99
    %p102 = scmp.ne.s32.totalorder %s85, %s101
    %p103 = scmp.eq.s32.totalorder %s17, 0
    %p104 = por %p102, %p103
    %s105 = ssub.s32 %s20, %s36
    %s106 = ssub.s32 %s18, %s44
    %s107 = sor.u32 %s105, %s106
    %s108 = ssub.s32 %s21, %s32
    %s109 = sor.u32 %s107, %s108
    %p110 = scmp.eq.s32.totalorder %s109, 0
    %s112 = sadd.s32 %s111, 1
    %s113 = scalar_select %p110, %s111, %s112
    %p116 = pneg %p110
    %p117 = scmp.eq.s32.totalorder %s11, 7
    %p118 = por %p116, %p117
    %p119 = scmp.ne.s32.totalorder %s111, %s114
    %p120 = scmp.eq.s32.totalorder %s11, 0
    %p121 = por %p119, %p120
    %p122 = scmp.ne.s32.totalorder %s111, %s114
    %p123 = scmp.eq.s32.totalorder %s16, 7
    %p124 = por %p122, %p123
    %p125 = scmp.ne.s32.totalorder %s114, %s115
    %p126 = scmp.eq.s32.totalorder %s16, 0
    %p127 = por %p125, %p126
    %p128 = scmp.ne.s32.totalorder %s114, %s115
    %p129 = scmp.eq.s32.totalorder %s17, 7
    %p130 = por %p128, %p129
    %p132 = scmp.ne.s32.totalorder %s115, %s131
    %p133 = scmp.eq.s32.totalorder %s17, 0
    %p134 = por %p132, %p133
    %s135 = ssub.s32 %s20, %s36
    %p136 = scmp.eq.s32.totalorder %s135, 0
    %s138 = sadd.s32 %s137, 1
    %s139 = scalar_select %p136, %s137, %s138
    %p142 = pneg %p136
    %p143 = scmp.eq.s32.totalorder %s11, 7
    %p144 = por %p142, %p143
    %p145 = scmp.ne.s32.totalorder %s137, %s140
    %p146 = scmp.eq.s32.totalorder %s11, 0
    %p147 = por %p145, %p146
    %p148 = scmp.ne.s32.totalorder %s137, %s140
    %p149 = scmp.eq.s32.totalorder %s16, 7
    %p150 = por %p148, %p149
    %p151 = scmp.ne.s32.totalorder %s140, %s141
    %p152 = scmp.eq.s32.totalorder %s16, 0
    %p153 = por %p151, %p152
    %p154 = scmp.ne.s32.totalorder %s140, %s141
    %p155 = scmp.eq.s32.totalorder %s17, 7
    %p156 = por %p154, %p155
    %p158 = scmp.ne.s32.totalorder %s141, %s157
    %p159 = scmp.eq.s32.totalorder %s17, 0
    %p160 = por %p158, %p159
    %s161 = ssub.s32 %s18, %s44
    %s162 = ssub.s32 %s19, %s40
    %s163 = sor.u32 %s161, %s162
    %p164 = scmp.eq.s32.totalorder %s163, 0
    %s166 = sadd.s32 %s165, 1
    %s167 = scalar_select %p164, %s165, %s166
    %p170 = pneg %p164
    %p171 = scmp.eq.s32.totalorder %s11, 7
    %p172 = por %p170, %p171
    %p173 = scmp.ne.s32.totalorder %s165, %s168
    %p174 = scmp.eq.s32.totalorder %s11, 0
    %p175 = por %p173, %p174
    %p176 = scmp.ne.s32.totalorder %s165, %s168
    %p177 = scmp.eq.s32.totalorder %s16, 7
    %p178 = por %p176, %p177
    %p179 = scmp.ne.s32.totalorder %s168, %s169
    %p180 = scmp.eq.s32.totalorder %s16, 0
    %p181 = por %p179, %p180
    %p182 = scmp.ne.s32.totalorder %s168, %s169
    %p183 = scmp.eq.s32.totalorder %s17, 7
    %p184 = por %p182, %p183
    %p186 = scmp.ne.s32.totalorder %s169, %s185
    %p187 = scmp.eq.s32.totalorder %s17, 0
    %p188 = por %p186, %p187
    %s189 = ssub.s32 %s18, %s44
    %s190 = ssub.s32 %s19, %s40
    %s191 = sor.u32 %s189, %s190
    %p192 = scmp.eq.s32.totalorder %s191, 0
    %s194 = sadd.s32 %s193, 1
    %s195 = scalar_select %p192, %s193, %s194
    %p198 = pneg %p192
    %p199 = scmp.eq.s32.totalorder %s11, 7
    %p200 = por %p198, %p199
    %p201 = scmp.ne.s32.totalorder %s193, %s196
    %p202 = scmp.eq.s32.totalorder %s11, 0
    %p203 = por %p201, %p202
    %p204 = scmp.ne.s32.totalorder %s193, %s196
    %p205 = scmp.eq.s32.totalorder %s16, 7
    %p206 = por %p204, %p205
    %p207 = scmp.ne.s32.totalorder %s196, %s197
    %p208 = scmp.eq.s32.totalorder %s16, 0
    %p209 = por %p207, %p208
    %p210 = scmp.ne.s32.totalorder %s196, %s197
    %p211 = scmp.eq.s32.totalorder %s17, 7
    %p212 = por %p210, %p211
    %p214 = scmp.ne.s32.totalorder %s197, %s213
    %p215 = scmp.eq.s32.totalorder %s17, 0
    %p216 = por %p214, %p215
    %p217 = scmp.le.s32.totalorder 1, %s11
    %p218 = scmp.lt.s32.totalorder %s11, 9
    %p219 = pnand %p217, %p218
    %p220 = pneg %p219
    // Predicated region
    $region9: #{upgto_v1_forward.3} parent=5 // pred_check
      _
    $region10: #{upgto_v1_forward.3} parent=5 // pred_check_branch
      %222 = sbr.rel (%p219) target = $region12
    $region11: #{upgto_v1_forward.3} parent=5 // pred_region
      %s223 = ssub.s32 %s11, 1
    $region12: #{upgto_v1_forward.3} parent=5 // pred_fallthru
      _
    %p224 = scmp.lt.s32.totalorder %s11, 8
    // Predicated region
    $region13: #{upgto_v1_forward.3} parent=5 // pred_check
      %p225 = pneg %p224
    $region14: #{upgto_v1_forward.3} parent=5 // pred_check_branch
      %227 = sbr.rel (%p225) target = $region16
    $region15: #{upgto_v1_forward.3} parent=5 // pred_region
      // Predicated region
      $region17: #{upgto_v1_forward.3} parent=15 // pred_check
        %p228 = pneg %p61
      $region18: #{upgto_v1_forward.3} parent=15 // pred_check_branch
        %230 = sbr.rel (%p228) target = $region20
      $region19: #{upgto_v1_forward.3} parent=15 // pred_region
        %s231 = smul.u32 64, %s19
        %p232 = scmp.lt.s32.totalorder %s20, 1
        %s233 = scalar_select %p232, %s20, 1
        %p234 = scmp.lt.s32.totalorder %s18, 1
        %s235 = scalar_select %p234, %s18, 1
        %p236 = scmp.lt.s32.totalorder %s231, 127
        %s237 = scalar_select %p236, %s231, 127
        %s238 = smul.addr %s235, 128
        %s239 = sadd.s32 %s237, %s238
        %s240 = smul.addr %s233, 256
        %s241 = sadd.s32 %s239, %s240
        %s242 = smul.addr %s241, 4
        %s243 = scalar_lea.vmem %s0, %s242
        %s244 = smul.u32 64, %s19
      $region20: #{upgto_v1_forward.3} parent=15 // pred_fallthru
        _
      // Predicated region
      $region21: #{upgto_v1_forward.3} parent=15 // pred_check
        %p245 = pneg %p91
      $region22: #{upgto_v1_forward.3} parent=15 // pred_check_branch
        %247 = sbr.rel (%p245) target = $region24
      $region23: #{upgto_v1_forward.3} parent=15 // pred_region
        %s248 = smul.u32 32, %s21
        %p249 = scmp.lt.s32.totalorder %s20, 1
        %s250 = scalar_select %p249, %s20, 1
        %p251 = scmp.lt.s32.totalorder %s18, 1
        %s252 = scalar_select %p251, %s18, 1
        %p253 = scmp.lt.s32.totalorder %s248, 31
        %s254 = scalar_select %p253, %s248, 31
        %s255 = smul.addr %s252, 32
        %s256 = sadd.s32 %s254, %s255
        %s257 = smul.addr %s250, 64
        %s258 = sadd.s32 %s256, %s257
        %s259 = smul.addr %s258, 4
        %s260 = scalar_lea.vmem %s1, %s259
        %s261 = smul.u32 32, %s21
      $region24: #{upgto_v1_forward.3} parent=15 // pred_fallthru
        _
      // Predicated region
      $region25: #{upgto_v1_forward.3} parent=15 // pred_check
        %p262 = pneg %p121
      $region26: #{upgto_v1_forward.3} parent=15 // pred_check_branch
        %264 = sbr.rel (%p262) target = $region28
      $region27: #{upgto_v1_forward.3} parent=15 // pred_region
        %s265 = smul.u32 32, %s21
        %p266 = scmp.lt.s32.totalorder %s20, 1
        %s267 = scalar_select %p266, %s20, 1
        %p268 = scmp.lt.s32.totalorder %s18, 1
        %s269 = scalar_select %p268, %s18, 1
        %p270 = scmp.lt.s32.totalorder %s265, 31
        %s271 = scalar_select %p270, %s265, 31
        %s272 = smul.addr %s269, 32
        %s273 = sadd.s32 %s271, %s272
        %s274 = smul.addr %s267, 64
        %s275 = sadd.s32 %s273, %s274
        %s276 = smul.addr %s275, 4
        %s277 = scalar_lea.vmem %s2, %s276
        %s278 = smul.u32 32, %s21
      $region28: #{upgto_v1_forward.3} parent=15 // pred_fallthru
        _
      // Predicated region
      $region29: #{upgto_v1_forward.3} parent=15 // pred_check
        %p279 = pneg %p147
      $region30: #{upgto_v1_forward.3} parent=15 // pred_check_branch
        %281 = sbr.rel (%p279) target = $region32
      $region31: #{upgto_v1_forward.3} parent=15 // pred_region
        %p282 = scmp.lt.s32.totalorder %s20, 1
        %s283 = scalar_select %p282, %s20, 1
        %s284 = smul.addr %s283, 4
        %s285 = smul.addr %s284, 4
        %s286 = scalar_lea.vmem %s3, %s285
      $region32: #{upgto_v1_forward.3} parent=15 // pred_fallthru
        _
      // Predicated region
      $region33: #{upgto_v1_forward.3} parent=15 // pred_check
        %p287 = pneg %p175
      $region34: #{upgto_v1_forward.3} parent=15 // pred_check_branch
        %289 = sbr.rel (%p287) target = $region36
      $region35: #{upgto_v1_forward.3} parent=15 // pred_region
        %s290 = smul.u32 64, %s19
        %p291 = scmp.lt.s32.totalorder %s18, 1
        %s292 = scalar_select %p291, %s18, 1
        %p293 = scmp.lt.s32.totalorder %s290, 127
        %s294 = scalar_select %p293, %s290, 127
        %s295 = smul.addr %s292, 128
        %s296 = sadd.s32 %s294, %s295
        %s297 = smul.addr %s296, 4
        %s298 = scalar_lea.vmem %s4, %s297
        %s299 = smul.u32 64, %s19
      $region36: #{upgto_v1_forward.3} parent=15 // pred_fallthru
        _
    $region16: #{upgto_v1_forward.3} parent=5 // pred_fallthru
      _
    %p300 = scmp.le.s32.totalorder 1, %s11
    %p301 = scmp.lt.s32.totalorder %s11, 9
    %p302 = pnand %p300, %p301
    %p303 = pneg %p302
    // Predicated region
    $region37: #{upgto_v1_forward.3} parent=5 // pred_check
      _
    $region38: #{upgto_v1_forward.3} parent=5 // pred_check_branch
      %305 = sbr.rel (%p302) target = $region40
    $region39: #{upgto_v1_forward.3} parent=5 // pred_region
      %s306 = ssub.s32 %s11, 1
      %s307 = smul.u32 64, %s23
      %p308 = scmp.lt.s32.totalorder %s24, 1
      %s309 = scalar_select %p308, %s24, 1
      %p310 = scmp.lt.s32.totalorder %s22, 1
      %s311 = scalar_select %p310, %s22, 1
      %p312 = scmp.lt.s32.totalorder %s307, 127
      %s313 = scalar_select %p312, %s307, 127
      %s314 = smul.addr %s311, 128
      %s315 = sadd.s32 %s313, %s314
      %s316 = smul.addr %s309, 256
      %s317 = sadd.s32 %s315, %s316
      %s318 = smul.addr %s317, 4
      %s319 = scalar_lea.vmem %s0, %s318
      %p320 = pneg %p67
      %p321 = pneg %p64
      %s322 = smul.u32 32, %s25
      %p323 = scmp.lt.s32.totalorder %s24, 1
      %s324 = scalar_select %p323, %s24, 1
      %p325 = scmp.lt.s32.totalorder %s22, 1
      %s326 = scalar_select %p325, %s22, 1
      %p327 = scmp.lt.s32.totalorder %s322, 31
      %s328 = scalar_select %p327, %s322, 31
      %s329 = smul.addr %s326, 32
      %s330 = sadd.s32 %s328, %s329
      %s331 = smul.addr %s324, 64
      %s332 = sadd.s32 %s330, %s331
      %s333 = smul.addr %s332, 4
      %s334 = scalar_lea.vmem %s1, %s333
      %p335 = pneg %p97
      %p336 = pneg %p94
      %s337 = smul.u32 32, %s25
      %p338 = scmp.lt.s32.totalorder %s24, 1
      %s339 = scalar_select %p338, %s24, 1
      %p340 = scmp.lt.s32.totalorder %s22, 1
      %s341 = scalar_select %p340, %s22, 1
      %p342 = scmp.lt.s32.totalorder %s337, 31
      %s343 = scalar_select %p342, %s337, 31
      %s344 = smul.addr %s341, 32
      %s345 = sadd.s32 %s343, %s344
      %s346 = smul.addr %s339, 64
      %s347 = sadd.s32 %s345, %s346
      %s348 = smul.addr %s347, 4
      %s349 = scalar_lea.vmem %s2, %s348
      %p350 = pneg %p127
      %p351 = pneg %p124
      %p352 = scmp.lt.s32.totalorder %s24, 1
      %s353 = scalar_select %p352, %s24, 1
      %s354 = smul.addr %s353, 4
      %s355 = smul.addr %s354, 4
      %s356 = scalar_lea.vmem %s3, %s355
      %p357 = pneg %p153
      %p358 = pneg %p150
      %s359 = smul.u32 64, %s23
      %p360 = scmp.lt.s32.totalorder %s22, 1
      %s361 = scalar_select %p360, %s22, 1
      %p362 = scmp.lt.s32.totalorder %s359, 127
      %s363 = scalar_select %p362, %s359, 127
      %s364 = smul.addr %s361, 128
      %s365 = sadd.s32 %s363, %s364
      %s366 = smul.addr %s365, 4
      %s367 = scalar_lea.vmem %s4, %s366
      %p368 = pneg %p181
      %p369 = pneg %p178
      %p370 = pneg %p209
      %p371 = pneg %p206
      %s372 = smul.u32 64, %s23
      %p373 = scmp.lt.s32.totalorder %s22, 1
      %s374 = scalar_select %p373, %s22, 1
      %p375 = scmp.lt.s32.totalorder %s372, 127
      %s376 = scalar_select %p375, %s372, 127
      %s377 = smul.addr %s374, 128
      %s378 = sadd.s32 %s376, %s377
      %s379 = smul.addr %s378, 8
      %s380 = scalar_lea.vmem %s5, %s379
      %s381 = smul.u32 64, %s23
      %p382 = scmp.lt.s32.totalorder %s24, 1
      %s383 = scalar_select %p382, %s24, 1
      %p384 = scmp.lt.s32.totalorder %s22, 1
      %s385 = scalar_select %p384, %s22, 1
      %p386 = scmp.lt.s32.totalorder %s381, 127
      %s387 = scalar_select %p386, %s381, 127
      %s388 = smul.addr %s385, 128
      %s389 = sadd.s32 %s387, %s388
      %s390 = smul.addr %s383, 256
      %s391 = sadd.s32 %s389, %s390
      %s392 = smul.addr %s391, 4
      %s393 = scalar_lea.vmem %s0, %s392
      %s394 = smul.u32 64, %s23
      %s395 = smul.u32 32, %s25
      %p396 = scmp.lt.s32.totalorder %s24, 1
      %s397 = scalar_select %p396, %s24, 1
      %p398 = scmp.lt.s32.totalorder %s22, 1
      %s399 = scalar_select %p398, %s22, 1
      %p400 = scmp.lt.s32.totalorder %s395, 31
      %s401 = scalar_select %p400, %s395, 31
      %s402 = smul.addr %s399, 32
      %s403 = sadd.s32 %s401, %s402
      %s404 = smul.addr %s397, 64
      %s405 = sadd.s32 %s403, %s404
      %s406 = smul.addr %s405, 4
      %s407 = scalar_lea.vmem %s1, %s406
      %s408 = smul.u32 32, %s25
      %s409 = smul.u32 32, %s25
      %p410 = scmp.lt.s32.totalorder %s24, 1
      %s411 = scalar_select %p410, %s24, 1
      %p412 = scmp.lt.s32.totalorder %s22, 1
      %s413 = scalar_select %p412, %s22, 1
      %p414 = scmp.lt.s32.totalorder %s409, 31
      %s415 = scalar_select %p414, %s409, 31
      %s416 = smul.addr %s413, 32
      %s417 = sadd.s32 %s415, %s416
      %s418 = smul.addr %s411, 64
      %s419 = sadd.s32 %s417, %s418
      %s420 = smul.addr %s419, 4
      %s421 = scalar_lea.vmem %s2, %s420
      %s422 = smul.u32 32, %s25
      %p423 = scmp.lt.s32.totalorder %s24, 1
      %s424 = scalar_select %p423, %s24, 1
      %s425 = smul.addr %s424, 4
      %s426 = smul.addr %s425, 4
      %s427 = scalar_lea.vmem %s3, %s426
      %s428 = smul.u32 64, %s23
      %p429 = scmp.lt.s32.totalorder %s22, 1
      %s430 = scalar_select %p429, %s22, 1
      %p431 = scmp.lt.s32.totalorder %s428, 127
      %s432 = scalar_select %p431, %s428, 127
      %s433 = smul.addr %s430, 128
      %s434 = sadd.s32 %s432, %s433
      %s435 = smul.addr %s434, 4
      %s436 = scalar_lea.vmem %s4, %s435
      %s437 = smul.u32 64, %s23
      %s438 = smul.u32 64, %s23
      %p439 = scmp.lt.s32.totalorder %s22, 1
      %s440 = scalar_select %p439, %s22, 1
      %p441 = scmp.lt.s32.totalorder %s438, 127
      %s442 = scalar_select %p441, %s438, 127
      %s443 = smul.addr %s440, 128
      %s444 = sadd.s32 %s442, %s443
      %s445 = smul.addr %s444, 8
      %s446 = scalar_lea.vmem %s5, %s445
      %s447 = smul.u32 64, %s23
      %p449 = scmp.eq.s32.totalorder %s25, 0
      // Predicated region
      $region41: #{upgto_v1_forward.3} parent=39 // pred_check
        %p450 = pneg %p449
      $region42: #{upgto_v1_forward.3} parent=39 // pred_check_branch
        %452 = sbr.rel (%p450) target = $region44
      $region43: #{upgto_v1_forward.3} parent=39 // pred_region
        %vm453 = vcmask 7168
        %454 = vst.msk [vmem:[#allocation2] sm:$0xff] %vm453, -inf
        %455 = vst.msk [vmem:[#allocation2 + $0x8] sm:$0xff] %vm453, -inf
        %456 = vst.msk [vmem:[#allocation2 + $0x10] sm:$0xff] %vm453, -inf
        %457 = vst.msk [vmem:[#allocation2 + $0x18] sm:$0xff] %vm453, -inf
        %458 = vst.msk [vmem:[#allocation2 + $0x20] sm:$0xff] %vm453, -inf
        %459 = vst.msk [vmem:[#allocation2 + $0x28] sm:$0xff] %vm453, -inf
        %460 = vst.msk [vmem:[#allocation2 + $0x30] sm:$0xff] %vm453, -inf
        %461 = vst.msk [vmem:[#allocation2 + $0x38] sm:$0xff] %vm453, -inf
        %462 = vst.msk [vmem:[#allocation2 + $0x40] sm:$0xff] %vm453, -inf
        %463 = vst.msk [vmem:[#allocation2 + $0x48] sm:$0xff] %vm453, -inf
        %464 = vst.msk [vmem:[#allocation2 + $0x50] sm:$0xff] %vm453, -inf
        %465 = vst.msk [vmem:[#allocation2 + $0x58] sm:$0xff] %vm453, -inf
        %466 = vst.msk [vmem:[#allocation2 + $0x60] sm:$0xff] %vm453, -inf
        %467 = vst.msk [vmem:[#allocation2 + $0x68] sm:$0xff] %vm453, -inf
        %468 = vst.msk [vmem:[#allocation2 + $0x70] sm:$0xff] %vm453, -inf
        %469 = vst.msk [vmem:[#allocation2 + $0x78] sm:$0xff] %vm453, -inf
        %470 = vst.msk [vmem:[#allocation2 + $0x80] sm:$0xff] %vm453, -inf
        %471 = vst.msk [vmem:[#allocation2 + $0x88] sm:$0xff] %vm453, -inf
        %472 = vst.msk [vmem:[#allocation2 + $0x90] sm:$0xff] %vm453, -inf
        %473 = vst.msk [vmem:[#allocation2 + $0x98] sm:$0xff] %vm453, -inf
        %474 = vst.msk [vmem:[#allocation2 + $0xa0] sm:$0xff] %vm453, -inf
        %475 = vst.msk [vmem:[#allocation2 + $0xa8] sm:$0xff] %vm453, -inf
        %476 = vst.msk [vmem:[#allocation2 + $0xb0] sm:$0xff] %vm453, -inf
        %477 = vst.msk [vmem:[#allocation2 + $0xb8] sm:$0xff] %vm453, -inf
        %478 = vst.msk [vmem:[#allocation2 + $0xc0] sm:$0xff] %vm453, -inf
        %479 = vst.msk [vmem:[#allocation2 + $0xc8] sm:$0xff] %vm453, -inf
        %480 = vst.msk [vmem:[#allocation2 + $0xd0] sm:$0xff] %vm453, -inf
        %481 = vst.msk [vmem:[#allocation2 + $0xd8] sm:$0xff] %vm453, -inf
        %482 = vst.msk [vmem:[#allocation2 + $0xe0] sm:$0xff] %vm453, -inf
        %483 = vst.msk [vmem:[#allocation2 + $0xe8] sm:$0xff] %vm453, -inf
        %484 = vst.msk [vmem:[#allocation2 + $0xf0] sm:$0xff] %vm453, -inf
        %485 = vst.msk [vmem:[#allocation2 + $0xf8] sm:$0xff] %vm453, -inf
        %486 = vst.msk [vmem:[#allocation2 + $0x100] sm:$0xff] %vm453, -inf
        %487 = vst.msk [vmem:[#allocation2 + $0x108] sm:$0xff] %vm453, -inf
        %488 = vst.msk [vmem:[#allocation2 + $0x110] sm:$0xff] %vm453, -inf
        %489 = vst.msk [vmem:[#allocation2 + $0x118] sm:$0xff] %vm453, -inf
        %490 = vst.msk [vmem:[#allocation2 + $0x120] sm:$0xff] %vm453, -inf
        %491 = vst.msk [vmem:[#allocation2 + $0x128] sm:$0xff] %vm453, -inf
        %492 = vst.msk [vmem:[#allocation2 + $0x130] sm:$0xff] %vm453, -inf
        %493 = vst.msk [vmem:[#allocation2 + $0x138] sm:$0xff] %vm453, -inf
        %494 = vst.msk [vmem:[#allocation2 + $0x140] sm:$0xff] %vm453, -inf
        %495 = vst.msk [vmem:[#allocation2 + $0x148] sm:$0xff] %vm453, -inf
        %496 = vst.msk [vmem:[#allocation2 + $0x150] sm:$0xff] %vm453, -inf
        %497 = vst.msk [vmem:[#allocation2 + $0x158] sm:$0xff] %vm453, -inf
        %498 = vst.msk [vmem:[#allocation2 + $0x160] sm:$0xff] %vm453, -inf
        %499 = vst.msk [vmem:[#allocation2 + $0x168] sm:$0xff] %vm453, -inf
        %500 = vst.msk [vmem:[#allocation2 + $0x170] sm:$0xff] %vm453, -inf
        %501 = vst.msk [vmem:[#allocation2 + $0x178] sm:$0xff] %vm453, -inf
        %502 = vst.msk [vmem:[#allocation2 + $0x180] sm:$0xff] %vm453, -inf
        %503 = vst.msk [vmem:[#allocation2 + $0x188] sm:$0xff] %vm453, -inf
        %504 = vst.msk [vmem:[#allocation2 + $0x190] sm:$0xff] %vm453, -inf
        %505 = vst.msk [vmem:[#allocation2 + $0x198] sm:$0xff] %vm453, -inf
        %506 = vst.msk [vmem:[#allocation2 + $0x1a0] sm:$0xff] %vm453, -inf
        %507 = vst.msk [vmem:[#allocation2 + $0x1a8] sm:$0xff] %vm453, -inf
        %508 = vst.msk [vmem:[#allocation2 + $0x1b0] sm:$0xff] %vm453, -inf
        %509 = vst.msk [vmem:[#allocation2 + $0x1b8] sm:$0xff] %vm453, -inf
        %510 = vst.msk [vmem:[#allocation2 + $0x1c0] sm:$0xff] %vm453, -inf
        %511 = vst.msk [vmem:[#allocation2 + $0x1c8] sm:$0xff] %vm453, -inf
        %512 = vst.msk [vmem:[#allocation2 + $0x1d0] sm:$0xff] %vm453, -inf
        %513 = vst.msk [vmem:[#allocation2 + $0x1d8] sm:$0xff] %vm453, -inf
        %514 = vst.msk [vmem:[#allocation2 + $0x1e0] sm:$0xff] %vm453, -inf
        %515 = vst.msk [vmem:[#allocation2 + $0x1e8] sm:$0xff] %vm453, -inf
        %516 = vst.msk [vmem:[#allocation2 + $0x1f0] sm:$0xff] %vm453, -inf
        %517 = vst.msk [vmem:[#allocation2 + $0x1f8] sm:$0xff] %vm453, -inf
        %518 = vst.msk [vmem:[#allocation3] sm:$0xff] %vm453, 0.0
        %519 = vst.msk [vmem:[#allocation3 + $0x8] sm:$0xff] %vm453, 0.0
        %520 = vst.msk [vmem:[#allocation3 + $0x10] sm:$0xff] %vm453, 0.0
        %521 = vst.msk [vmem:[#allocation3 + $0x18] sm:$0xff] %vm453, 0.0
        %522 = vst.msk [vmem:[#allocation3 + $0x20] sm:$0xff] %vm453, 0.0
        %523 = vst.msk [vmem:[#allocation3 + $0x28] sm:$0xff] %vm453, 0.0
        %524 = vst.msk [vmem:[#allocation3 + $0x30] sm:$0xff] %vm453, 0.0
        %525 = vst.msk [vmem:[#allocation3 + $0x38] sm:$0xff] %vm453, 0.0
        %526 = vst.msk [vmem:[#allocation3 + $0x40] sm:$0xff] %vm453, 0.0
        %527 = vst.msk [vmem:[#allocation3 + $0x48] sm:$0xff] %vm453, 0.0
        %528 = vst.msk [vmem:[#allocation3 + $0x50] sm:$0xff] %vm453, 0.0
        %529 = vst.msk [vmem:[#allocation3 + $0x58] sm:$0xff] %vm453, 0.0
        %530 = vst.msk [vmem:[#allocation3 + $0x60] sm:$0xff] %vm453, 0.0
        %531 = vst.msk [vmem:[#allocation3 + $0x68] sm:$0xff] %vm453, 0.0
        %532 = vst.msk [vmem:[#allocation3 + $0x70] sm:$0xff] %vm453, 0.0
        %533 = vst.msk [vmem:[#allocation3 + $0x78] sm:$0xff] %vm453, 0.0
        %534 = vst.msk [vmem:[#allocation3 + $0x80] sm:$0xff] %vm453, 0.0
        %535 = vst.msk [vmem:[#allocation3 + $0x88] sm:$0xff] %vm453, 0.0
        %536 = vst.msk [vmem:[#allocation3 + $0x90] sm:$0xff] %vm453, 0.0
        %537 = vst.msk [vmem:[#allocation3 + $0x98] sm:$0xff] %vm453, 0.0
        %538 = vst.msk [vmem:[#allocation3 + $0xa0] sm:$0xff] %vm453, 0.0
        %539 = vst.msk [vmem:[#allocation3 + $0xa8] sm:$0xff] %vm453, 0.0
        %540 = vst.msk [vmem:[#allocation3 + $0xb0] sm:$0xff] %vm453, 0.0
        %541 = vst.msk [vmem:[#allocation3 + $0xb8] sm:$0xff] %vm453, 0.0
        %542 = vst.msk [vmem:[#allocation3 + $0xc0] sm:$0xff] %vm453, 0.0
        %543 = vst.msk [vmem:[#allocation3 + $0xc8] sm:$0xff] %vm453, 0.0
        %544 = vst.msk [vmem:[#allocation3 + $0xd0] sm:$0xff] %vm453, 0.0
        %545 = vst.msk [vmem:[#allocation3 + $0xd8] sm:$0xff] %vm453, 0.0
        %546 = vst.msk [vmem:[#allocation3 + $0xe0] sm:$0xff] %vm453, 0.0
        %547 = vst.msk [vmem:[#allocation3 + $0xe8] sm:$0xff] %vm453, 0.0
        %548 = vst.msk [vmem:[#allocation3 + $0xf0] sm:$0xff] %vm453, 0.0
        %549 = vst.msk [vmem:[#allocation3 + $0xf8] sm:$0xff] %vm453, 0.0
        %550 = vst.msk [vmem:[#allocation3 + $0x100] sm:$0xff] %vm453, 0.0
        %551 = vst.msk [vmem:[#allocation3 + $0x108] sm:$0xff] %vm453, 0.0
        %552 = vst.msk [vmem:[#allocation3 + $0x110] sm:$0xff] %vm453, 0.0
        %553 = vst.msk [vmem:[#allocation3 + $0x118] sm:$0xff] %vm453, 0.0
        %554 = vst.msk [vmem:[#allocation3 + $0x120] sm:$0xff] %vm453, 0.0
        %555 = vst.msk [vmem:[#allocation3 + $0x128] sm:$0xff] %vm453, 0.0
        %556 = vst.msk [vmem:[#allocation3 + $0x130] sm:$0xff] %vm453, 0.0
        %557 = vst.msk [vmem:[#allocation3 + $0x138] sm:$0xff] %vm453, 0.0
        %558 = vst.msk [vmem:[#allocation3 + $0x140] sm:$0xff] %vm453, 0.0
        %559 = vst.msk [vmem:[#allocation3 + $0x148] sm:$0xff] %vm453, 0.0
        %560 = vst.msk [vmem:[#allocation3 + $0x150] sm:$0xff] %vm453, 0.0
        %561 = vst.msk [vmem:[#allocation3 + $0x158] sm:$0xff] %vm453, 0.0
        %562 = vst.msk [vmem:[#allocation3 + $0x160] sm:$0xff] %vm453, 0.0
        %563 = vst.msk [vmem:[#allocation3 + $0x168] sm:$0xff] %vm453, 0.0
        %564 = vst.msk [vmem:[#allocation3 + $0x170] sm:$0xff] %vm453, 0.0
        %565 = vst.msk [vmem:[#allocation3 + $0x178] sm:$0xff] %vm453, 0.0
        %566 = vst.msk [vmem:[#allocation3 + $0x180] sm:$0xff] %vm453, 0.0
        %567 = vst.msk [vmem:[#allocation3 + $0x188] sm:$0xff] %vm453, 0.0
        %568 = vst.msk [vmem:[#allocation3 + $0x190] sm:$0xff] %vm453, 0.0
        %569 = vst.msk [vmem:[#allocation3 + $0x198] sm:$0xff] %vm453, 0.0
        %570 = vst.msk [vmem:[#allocation3 + $0x1a0] sm:$0xff] %vm453, 0.0
        %571 = vst.msk [vmem:[#allocation3 + $0x1a8] sm:$0xff] %vm453, 0.0
        %572 = vst.msk [vmem:[#allocation3 + $0x1b0] sm:$0xff] %vm453, 0.0
        %573 = vst.msk [vmem:[#allocation3 + $0x1b8] sm:$0xff] %vm453, 0.0
        %574 = vst.msk [vmem:[#allocation3 + $0x1c0] sm:$0xff] %vm453, 0.0
        %575 = vst.msk [vmem:[#allocation3 + $0x1c8] sm:$0xff] %vm453, 0.0
        %576 = vst.msk [vmem:[#allocation3 + $0x1d0] sm:$0xff] %vm453, 0.0
        %577 = vst.msk [vmem:[#allocation3 + $0x1d8] sm:$0xff] %vm453, 0.0
        %578 = vst.msk [vmem:[#allocation3 + $0x1e0] sm:$0xff] %vm453, 0.0
        %579 = vst.msk [vmem:[#allocation3 + $0x1e8] sm:$0xff] %vm453, 0.0
        %580 = vst.msk [vmem:[#allocation3 + $0x1f0] sm:$0xff] %vm453, 0.0
        %581 = vst.msk [vmem:[#allocation3 + $0x1f8] sm:$0xff] %vm453, 0.0
        %vm582 = vcmask 261120
        %583 = vst.msk [vmem:[#allocation4] sm:$0xff] %vm582, 0.0
        %584 = vst.msk [vmem:[#allocation4 + $0x8] sm:$0xff] %vm582, 0.0
        %585 = vst.msk [vmem:[#allocation4 + $0x10] sm:$0xff] %vm582, 0.0
        %586 = vst.msk [vmem:[#allocation4 + $0x18] sm:$0xff] %vm582, 0.0
        %587 = vst.msk [vmem:[#allocation4 + $0x20] sm:$0xff] %vm582, 0.0
        %588 = vst.msk [vmem:[#allocation4 + $0x28] sm:$0xff] %vm582, 0.0
        %589 = vst.msk [vmem:[#allocation4 + $0x30] sm:$0xff] %vm582, 0.0
        %590 = vst.msk [vmem:[#allocation4 + $0x38] sm:$0xff] %vm582, 0.0
        %591 = vst.msk [vmem:[#allocation4 + $0x40] sm:$0xff] %vm582, 0.0
        %592 = vst.msk [vmem:[#allocation4 + $0x48] sm:$0xff] %vm582, 0.0
        %593 = vst.msk [vmem:[#allocation4 + $0x50] sm:$0xff] %vm582, 0.0
        %594 = vst.msk [vmem:[#allocation4 + $0x58] sm:$0xff] %vm582, 0.0
        %595 = vst.msk [vmem:[#allocation4 + $0x60] sm:$0xff] %vm582, 0.0
        %596 = vst.msk [vmem:[#allocation4 + $0x68] sm:$0xff] %vm582, 0.0
        %597 = vst.msk [vmem:[#allocation4 + $0x70] sm:$0xff] %vm582, 0.0
        %598 = vst.msk [vmem:[#allocation4 + $0x78] sm:$0xff] %vm582, 0.0
        %599 = vst.msk [vmem:[#allocation4 + $0x80] sm:$0xff] %vm582, 0.0
        %600 = vst.msk [vmem:[#allocation4 + $0x88] sm:$0xff] %vm582, 0.0
        %601 = vst.msk [vmem:[#allocation4 + $0x90] sm:$0xff] %vm582, 0.0
        %602 = vst.msk [vmem:[#allocation4 + $0x98] sm:$0xff] %vm582, 0.0
        %603 = vst.msk [vmem:[#allocation4 + $0xa0] sm:$0xff] %vm582, 0.0
        %604 = vst.msk [vmem:[#allocation4 + $0xa8] sm:$0xff] %vm582, 0.0
        %605 = vst.msk [vmem:[#allocation4 + $0xb0] sm:$0xff] %vm582, 0.0
        %606 = vst.msk [vmem:[#allocation4 + $0xb8] sm:$0xff] %vm582, 0.0
        %607 = vst.msk [vmem:[#allocation4 + $0xc0] sm:$0xff] %vm582, 0.0
        %608 = vst.msk [vmem:[#allocation4 + $0xc8] sm:$0xff] %vm582, 0.0
        %609 = vst.msk [vmem:[#allocation4 + $0xd0] sm:$0xff] %vm582, 0.0
        %610 = vst.msk [vmem:[#allocation4 + $0xd8] sm:$0xff] %vm582, 0.0
        %611 = vst.msk [vmem:[#allocation4 + $0xe0] sm:$0xff] %vm582, 0.0
        %612 = vst.msk [vmem:[#allocation4 + $0xe8] sm:$0xff] %vm582, 0.0
        %613 = vst.msk [vmem:[#allocation4 + $0xf0] sm:$0xff] %vm582, 0.0
        %614 = vst.msk [vmem:[#allocation4 + $0xf8] sm:$0xff] %vm582, 0.0
        %615 = vst.msk [vmem:[#allocation4 + $0x100] sm:$0xff] %vm582, 0.0
        %616 = vst.msk [vmem:[#allocation4 + $0x108] sm:$0xff] %vm582, 0.0
        %617 = vst.msk [vmem:[#allocation4 + $0x110] sm:$0xff] %vm582, 0.0
        %618 = vst.msk [vmem:[#allocation4 + $0x118] sm:$0xff] %vm582, 0.0
        %619 = vst.msk [vmem:[#allocation4 + $0x120] sm:$0xff] %vm582, 0.0
        %620 = vst.msk [vmem:[#allocation4 + $0x128] sm:$0xff] %vm582, 0.0
        %621 = vst.msk [vmem:[#allocation4 + $0x130] sm:$0xff] %vm582, 0.0
        %622 = vst.msk [vmem:[#allocation4 + $0x138] sm:$0xff] %vm582, 0.0
        %623 = vst.msk [vmem:[#allocation4 + $0x140] sm:$0xff] %vm582, 0.0
        %624 = vst.msk [vmem:[#allocation4 + $0x148] sm:$0xff] %vm582, 0.0
        %625 = vst.msk [vmem:[#allocation4 + $0x150] sm:$0xff] %vm582, 0.0
        %626 = vst.msk [vmem:[#allocation4 + $0x158] sm:$0xff] %vm582, 0.0
        %627 = vst.msk [vmem:[#allocation4 + $0x160] sm:$0xff] %vm582, 0.0
        %628 = vst.msk [vmem:[#allocation4 + $0x168] sm:$0xff] %vm582, 0.0
        %629 = vst.msk [vmem:[#allocation4 + $0x170] sm:$0xff] %vm582, 0.0
        %630 = vst.msk [vmem:[#allocation4 + $0x178] sm:$0xff] %vm582, 0.0
        %631 = vst.msk [vmem:[#allocation4 + $0x180] sm:$0xff] %vm582, 0.0
        %632 = vst.msk [vmem:[#allocation4 + $0x188] sm:$0xff] %vm582, 0.0
        %633 = vst.msk [vmem:[#allocation4 + $0x190] sm:$0xff] %vm582, 0.0
        %634 = vst.msk [vmem:[#allocation4 + $0x198] sm:$0xff] %vm582, 0.0
        %635 = vst.msk [vmem:[#allocation4 + $0x1a0] sm:$0xff] %vm582, 0.0
        %636 = vst.msk [vmem:[#allocation4 + $0x1a8] sm:$0xff] %vm582, 0.0
        %637 = vst.msk [vmem:[#allocation4 + $0x1b0] sm:$0xff] %vm582, 0.0
        %638 = vst.msk [vmem:[#allocation4 + $0x1b8] sm:$0xff] %vm582, 0.0
        %639 = vst.msk [vmem:[#allocation4 + $0x1c0] sm:$0xff] %vm582, 0.0
        %640 = vst.msk [vmem:[#allocation4 + $0x1c8] sm:$0xff] %vm582, 0.0
        %641 = vst.msk [vmem:[#allocation4 + $0x1d0] sm:$0xff] %vm582, 0.0
        %642 = vst.msk [vmem:[#allocation4 + $0x1d8] sm:$0xff] %vm582, 0.0
        %643 = vst.msk [vmem:[#allocation4 + $0x1e0] sm:$0xff] %vm582, 0.0
        %644 = vst.msk [vmem:[#allocation4 + $0x1e8] sm:$0xff] %vm582, 0.0
        %645 = vst.msk [vmem:[#allocation4 + $0x1f0] sm:$0xff] %vm582, 0.0
        %646 = vst.msk [vmem:[#allocation4 + $0x1f8] sm:$0xff] %vm582, 0.0
      $region44: #{upgto_v1_forward.3} parent=39 // pred_fallthru
        _
      %v647 = vld [vmem:[%s393] sm:$0xf]
      %v648 = vld [vmem:[%s393 + $0x4] sm:$0xf]
      %v649 = vld [vmem:[%s393 + $0x8] sm:$0xf]
      %v650 = vld [vmem:[%s393 + $0xc] sm:$0xf]
      %v651 = vld [vmem:[%s393 + $0x10] sm:$0xf]
      %v652 = vld [vmem:[%s393 + $0x14] sm:$0xf]
      %v653 = vld [vmem:[%s393 + $0x18] sm:$0xf]
      %v654 = vld [vmem:[%s393 + $0x1c] sm:$0xf]
      %v655 = vld [vmem:[%s393 + $0x20] sm:$0xf]
      %v656 = vld [vmem:[%s393 + $0x24] sm:$0xf]
      %v657 = vld [vmem:[%s393 + $0x28] sm:$0xf]
      %v658 = vld [vmem:[%s393 + $0x2c] sm:$0xf]
      %v659 = vld [vmem:[%s393 + $0x30] sm:$0xf]
      %v660 = vld [vmem:[%s393 + $0x34] sm:$0xf]
      %v661 = vld [vmem:[%s393 + $0x38] sm:$0xf]
      %v662 = vld [vmem:[%s393 + $0x3c] sm:$0xf]
      %v663 = vld [vmem:[%s393 + $0x40] sm:$0xf]
      %v664 = vld [vmem:[%s393 + $0x44] sm:$0xf]
      %v665 = vld [vmem:[%s393 + $0x48] sm:$0xf]
      %v666 = vld [vmem:[%s393 + $0x4c] sm:$0xf]
      %v667 = vld [vmem:[%s393 + $0x50] sm:$0xf]
      %v668 = vld [vmem:[%s393 + $0x54] sm:$0xf]
      %v669 = vld [vmem:[%s393 + $0x58] sm:$0xf]
      %v670 = vld [vmem:[%s393 + $0x5c] sm:$0xf]
      %v671 = vld [vmem:[%s393 + $0x60] sm:$0xf]
      %v672 = vld [vmem:[%s393 + $0x64] sm:$0xf]
      %v673 = vld [vmem:[%s393 + $0x68] sm:$0xf]
      %v674 = vld [vmem:[%s393 + $0x6c] sm:$0xf]
      %v675 = vld [vmem:[%s393 + $0x70] sm:$0xf]
      %v676 = vld [vmem:[%s393 + $0x74] sm:$0xf]
      %v677 = vld [vmem:[%s393 + $0x78] sm:$0xf]
      %v678 = vld [vmem:[%s393 + $0x7c] sm:$0xf]
      %v679 = vld [vmem:[%s393 + $0x80] sm:$0xf]
      %v680 = vld [vmem:[%s393 + $0x84] sm:$0xf]
      %v681 = vld [vmem:[%s393 + $0x88] sm:$0xf]
      %v682 = vld [vmem:[%s393 + $0x8c] sm:$0xf]
      %v683 = vld [vmem:[%s393 + $0x90] sm:$0xf]
      %v684 = vld [vmem:[%s393 + $0x94] sm:$0xf]
      %v685 = vld [vmem:[%s393 + $0x98] sm:$0xf]
      %v686 = vld [vmem:[%s393 + $0x9c] sm:$0xf]
      %v687 = vld [vmem:[%s393 + $0xa0] sm:$0xf]
      %v688 = vld [vmem:[%s393 + $0xa4] sm:$0xf]
      %v689 = vld [vmem:[%s393 + $0xa8] sm:$0xf]
      %v690 = vld [vmem:[%s393 + $0xac] sm:$0xf]
      %v691 = vld [vmem:[%s393 + $0xb0] sm:$0xf]
      %v692 = vld [vmem:[%s393 + $0xb4] sm:$0xf]
      %v693 = vld [vmem:[%s393 + $0xb8] sm:$0xf]
      %v694 = vld [vmem:[%s393 + $0xbc] sm:$0xf]
      %v695 = vld [vmem:[%s393 + $0xc0] sm:$0xf]
      %v696 = vld [vmem:[%s393 + $0xc4] sm:$0xf]
      %v697 = vld [vmem:[%s393 + $0xc8] sm:$0xf]
      %v698 = vld [vmem:[%s393 + $0xcc] sm:$0xf]
      %v699 = vld [vmem:[%s393 + $0xd0] sm:$0xf]
      %v700 = vld [vmem:[%s393 + $0xd4] sm:$0xf]
      %v701 = vld [vmem:[%s393 + $0xd8] sm:$0xf]
      %v702 = vld [vmem:[%s393 + $0xdc] sm:$0xf]
      %v703 = vld [vmem:[%s393 + $0xe0] sm:$0xf]
      %v704 = vld [vmem:[%s393 + $0xe4] sm:$0xf]
      %v705 = vld [vmem:[%s393 + $0xe8] sm:$0xf]
      %v706 = vld [vmem:[%s393 + $0xec] sm:$0xf]
      %v707 = vld [vmem:[%s393 + $0xf0] sm:$0xf]
      %v708 = vld [vmem:[%s393 + $0xf4] sm:$0xf]
      %v709 = vld [vmem:[%s393 + $0xf8] sm:$0xf]
      %v710 = vld [vmem:[%s393 + $0xfc] sm:$0xf]
      %v711 = vld [vmem:[%s407] sm:$0xf]
      %v712 = vld [vmem:[%s407 + $0x4] sm:$0xf]
      %v713 = vld [vmem:[%s407 + $0x8] sm:$0xf]
      %v714 = vld [vmem:[%s407 + $0xc] sm:$0xf]
      %v715 = vld [vmem:[%s407 + $0x10] sm:$0xf]
      %v716 = vld [vmem:[%s407 + $0x14] sm:$0xf]
      %v717 = vld [vmem:[%s407 + $0x18] sm:$0xf]
      %v718 = vld [vmem:[%s407 + $0x1c] sm:$0xf]
      %v719 = vld [vmem:[%s407 + $0x20] sm:$0xf]
      %v720 = vld [vmem:[%s407 + $0x24] sm:$0xf]
      %v721 = vld [vmem:[%s407 + $0x28] sm:$0xf]
      %v722 = vld [vmem:[%s407 + $0x2c] sm:$0xf]
      %v723 = vld [vmem:[%s407 + $0x30] sm:$0xf]
      %v724 = vld [vmem:[%s407 + $0x34] sm:$0xf]
      %v725 = vld [vmem:[%s407 + $0x38] sm:$0xf]
      %v726 = vld [vmem:[%s407 + $0x3c] sm:$0xf]
      %v727 = vld [vmem:[%s407 + $0x40] sm:$0xf]
      %v728 = vld [vmem:[%s407 + $0x44] sm:$0xf]
      %v729 = vld [vmem:[%s407 + $0x48] sm:$0xf]
      %v730 = vld [vmem:[%s407 + $0x4c] sm:$0xf]
      %v731 = vld [vmem:[%s407 + $0x50] sm:$0xf]
      %v732 = vld [vmem:[%s407 + $0x54] sm:$0xf]
      %v733 = vld [vmem:[%s407 + $0x58] sm:$0xf]
      %v734 = vld [vmem:[%s407 + $0x5c] sm:$0xf]
      %v735 = vld [vmem:[%s407 + $0x60] sm:$0xf]
      %v736 = vld [vmem:[%s407 + $0x64] sm:$0xf]
      %v737 = vld [vmem:[%s407 + $0x68] sm:$0xf]
      %v738 = vld [vmem:[%s407 + $0x6c] sm:$0xf]
      %v739 = vld [vmem:[%s407 + $0x70] sm:$0xf]
      %v740 = vld [vmem:[%s407 + $0x74] sm:$0xf]
      %v741 = vld [vmem:[%s407 + $0x78] sm:$0xf]
      %v742 = vld [vmem:[%s407 + $0x7c] sm:$0xf]
      %v743 = vld [vmem:[%s421] sm:$0xf]
      %v744 = vld [vmem:[%s421 + $0x4] sm:$0xf]
      %v745 = vld [vmem:[%s421 + $0x8] sm:$0xf]
      %v746 = vld [vmem:[%s421 + $0xc] sm:$0xf]
      %v747 = vld [vmem:[%s421 + $0x10] sm:$0xf]
      %v748 = vld [vmem:[%s421 + $0x14] sm:$0xf]
      %v749 = vld [vmem:[%s421 + $0x18] sm:$0xf]
      %v750 = vld [vmem:[%s421 + $0x1c] sm:$0xf]
      %v751 = vld [vmem:[%s421 + $0x20] sm:$0xf]
      %v752 = vld [vmem:[%s421 + $0x24] sm:$0xf]
      %v753 = vld [vmem:[%s421 + $0x28] sm:$0xf]
      %v754 = vld [vmem:[%s421 + $0x2c] sm:$0xf]
      %v755 = vld [vmem:[%s421 + $0x30] sm:$0xf]
      %v756 = vld [vmem:[%s421 + $0x34] sm:$0xf]
      %v757 = vld [vmem:[%s421 + $0x38] sm:$0xf]
      %v758 = vld [vmem:[%s421 + $0x3c] sm:$0xf]
      %v759 = vld [vmem:[%s421 + $0x40] sm:$0xf]
      %v760 = vld [vmem:[%s421 + $0x44] sm:$0xf]
      %v761 = vld [vmem:[%s421 + $0x48] sm:$0xf]
      %v762 = vld [vmem:[%s421 + $0x4c] sm:$0xf]
      %v763 = vld [vmem:[%s421 + $0x50] sm:$0xf]
      %v764 = vld [vmem:[%s421 + $0x54] sm:$0xf]
      %v765 = vld [vmem:[%s421 + $0x58] sm:$0xf]
      %v766 = vld [vmem:[%s421 + $0x5c] sm:$0xf]
      %v767 = vld [vmem:[%s421 + $0x60] sm:$0xf]
      %v768 = vld [vmem:[%s421 + $0x64] sm:$0xf]
      %v769 = vld [vmem:[%s421 + $0x68] sm:$0xf]
      %v770 = vld [vmem:[%s421 + $0x6c] sm:$0xf]
      %v771 = vld [vmem:[%s421 + $0x70] sm:$0xf]
      %v772 = vld [vmem:[%s421 + $0x74] sm:$0xf]
      %v773 = vld [vmem:[%s421 + $0x78] sm:$0xf]
      %v774 = vld [vmem:[%s421 + $0x7c] sm:$0xf]
      %v839 = vunpack.c.l.b16 %v647
      %v840 = vunpack.c.l.b16 %v648
      %v841 = vunpack.c.l.b16 %v649
      %v842 = vunpack.c.l.b16 %v650
      %v843 = vunpack.c.l.b16 %v651
      %v844 = vunpack.c.l.b16 %v652
      %v845 = vunpack.c.l.b16 %v653
      %v846 = vunpack.c.l.b16 %v654
      %v847 = vunpack.c.l.b16 %v655
      %v848 = vunpack.c.l.b16 %v656
      %v849 = vunpack.c.l.b16 %v657
      %v850 = vunpack.c.l.b16 %v658
      %v851 = vunpack.c.l.b16 %v659
      %v852 = vunpack.c.l.b16 %v660
      %v853 = vunpack.c.l.b16 %v661
      %v854 = vunpack.c.l.b16 %v662
      %v855 = vunpack.c.l.b16 %v663
      %v856 = vunpack.c.l.b16 %v664
      %v857 = vunpack.c.l.b16 %v665
      %v858 = vunpack.c.l.b16 %v666
      %v859 = vunpack.c.l.b16 %v667
      %v860 = vunpack.c.l.b16 %v668
      %v861 = vunpack.c.l.b16 %v669
      %v862 = vunpack.c.l.b16 %v670
      %v863 = vunpack.c.l.b16 %v671
      %v864 = vunpack.c.l.b16 %v672
      %v865 = vunpack.c.l.b16 %v673
      %v866 = vunpack.c.l.b16 %v674
      %v867 = vunpack.c.l.b16 %v675
      %v868 = vunpack.c.l.b16 %v676
      %v869 = vunpack.c.l.b16 %v677
      %v870 = vunpack.c.l.b16 %v678
      %v871 = vunpack.c.l.b16 %v679
      %v872 = vunpack.c.l.b16 %v680
      %v873 = vunpack.c.l.b16 %v681
      %v874 = vunpack.c.l.b16 %v682
      %v875 = vunpack.c.l.b16 %v683
      %v876 = vunpack.c.l.b16 %v684
      %v877 = vunpack.c.l.b16 %v685
      %v878 = vunpack.c.l.b16 %v686
      %v879 = vunpack.c.l.b16 %v687
      %v880 = vunpack.c.l.b16 %v688
      %v881 = vunpack.c.l.b16 %v689
      %v882 = vunpack.c.l.b16 %v690
      %v883 = vunpack.c.l.b16 %v691
      %v884 = vunpack.c.l.b16 %v692
      %v885 = vunpack.c.l.b16 %v693
      %v886 = vunpack.c.l.b16 %v694
      %v887 = vunpack.c.l.b16 %v695
      %v888 = vunpack.c.l.b16 %v696
      %v889 = vunpack.c.l.b16 %v697
      %v890 = vunpack.c.l.b16 %v698
      %v891 = vunpack.c.l.b16 %v699
      %v892 = vunpack.c.l.b16 %v700
      %v893 = vunpack.c.l.b16 %v701
      %v894 = vunpack.c.l.b16 %v702
      %v895 = vunpack.c.l.b16 %v703
      %v896 = vunpack.c.l.b16 %v704
      %v897 = vunpack.c.l.b16 %v705
      %v898 = vunpack.c.l.b16 %v706
      %v899 = vunpack.c.l.b16 %v707
      %v900 = vunpack.c.l.b16 %v708
      %v901 = vunpack.c.l.b16 %v709
      %v902 = vunpack.c.l.b16 %v710
      %v903 = vpack.c.b16 %v840, %v839
      %v904 = vpack.c.b16 %v842, %v841
      %v905 = vpack.c.b16 %v844, %v843
      %v906 = vpack.c.b16 %v846, %v845
      %v907 = vpack.c.b16 %v848, %v847
      %v908 = vpack.c.b16 %v850, %v849
      %v909 = vpack.c.b16 %v852, %v851
      %v910 = vpack.c.b16 %v854, %v853
      %v911 = vpack.c.b16 %v856, %v855
      %v912 = vpack.c.b16 %v858, %v857
      %v913 = vpack.c.b16 %v860, %v859
      %v914 = vpack.c.b16 %v862, %v861
      %v915 = vpack.c.b16 %v864, %v863
      %v916 = vpack.c.b16 %v866, %v865
      %v917 = vpack.c.b16 %v868, %v867
      %v918 = vpack.c.b16 %v870, %v869
      %v919 = vpack.c.b16 %v872, %v871
      %v920 = vpack.c.b16 %v874, %v873
      %v921 = vpack.c.b16 %v876, %v875
      %v922 = vpack.c.b16 %v878, %v877
      %v923 = vpack.c.b16 %v880, %v879
      %v924 = vpack.c.b16 %v882, %v881
      %v925 = vpack.c.b16 %v884, %v883
      %v926 = vpack.c.b16 %v886, %v885
      %v927 = vpack.c.b16 %v888, %v887
      %v928 = vpack.c.b16 %v890, %v889
      %v929 = vpack.c.b16 %v892, %v891
      %v930 = vpack.c.b16 %v894, %v893
      %v931 = vpack.c.b16 %v896, %v895
      %v932 = vpack.c.b16 %v898, %v897
      %v933 = vpack.c.b16 %v900, %v899
      %v934 = vpack.c.b16 %v902, %v901
      %v967 = vunpack.c.l.b16 %v711
      %v968 = vunpack.c.l.b16 %v712
      %v969 = vunpack.c.l.b16 %v713
      %v970 = vunpack.c.l.b16 %v714
      %v971 = vunpack.c.l.b16 %v715
      %v972 = vunpack.c.l.b16 %v716
      %v973 = vunpack.c.l.b16 %v717
      %v974 = vunpack.c.l.b16 %v718
      %v975 = vunpack.c.l.b16 %v719
      %v976 = vunpack.c.l.b16 %v720
      %v977 = vunpack.c.l.b16 %v721
      %v978 = vunpack.c.l.b16 %v722
      %v979 = vunpack.c.l.b16 %v723
      %v980 = vunpack.c.l.b16 %v724
      %v981 = vunpack.c.l.b16 %v725
      %v982 = vunpack.c.l.b16 %v726
      %v983 = vunpack.c.l.b16 %v727
      %v984 = vunpack.c.l.b16 %v728
      %v985 = vunpack.c.l.b16 %v729
      %v986 = vunpack.c.l.b16 %v730
      %v987 = vunpack.c.l.b16 %v731
      %v988 = vunpack.c.l.b16 %v732
      %v989 = vunpack.c.l.b16 %v733
      %v990 = vunpack.c.l.b16 %v734
      %v991 = vunpack.c.l.b16 %v735
      %v992 = vunpack.c.l.b16 %v736
      %v993 = vunpack.c.l.b16 %v737
      %v994 = vunpack.c.l.b16 %v738
      %v995 = vunpack.c.l.b16 %v739
      %v996 = vunpack.c.l.b16 %v740
      %v997 = vunpack.c.l.b16 %v741
      %v998 = vunpack.c.l.b16 %v742
      %v999 = vpack.c.b16 %v968, %v967
      %v1000 = vpack.c.b16 %v970, %v969
      %v1001 = vpack.c.b16 %v972, %v971
      %v1002 = vpack.c.b16 %v974, %v973
      %v1003 = vpack.c.b16 %v976, %v975
      %v1004 = vpack.c.b16 %v978, %v977
      %v1005 = vpack.c.b16 %v980, %v979
      %v1006 = vpack.c.b16 %v982, %v981
      %v1007 = vpack.c.b16 %v984, %v983
      %v1008 = vpack.c.b16 %v986, %v985
      %v1009 = vpack.c.b16 %v988, %v987
      %v1010 = vpack.c.b16 %v990, %v989
      %v1011 = vpack.c.b16 %v992, %v991
      %v1012 = vpack.c.b16 %v994, %v993
      %v1013 = vpack.c.b16 %v996, %v995
      %v1014 = vpack.c.b16 %v998, %v997
      %vm1015 = vcmask 261120
      %v1017 = vsel %vm1015, %v903, 0
      %v1020 = vsel %vm1015, %v904, 0
      %v1023 = vsel %vm1015, %v905, 0
      %v1026 = vsel %vm1015, %v906, 0
      %v1029 = vsel %vm1015, %v907, 0
      %v1032 = vsel %vm1015, %v908, 0
      %v1035 = vsel %vm1015, %v909, 0
      %v1038 = vsel %vm1015, %v910, 0
      %v1041 = vsel %vm1015, %v911, 0
      %v1044 = vsel %vm1015, %v912, 0
      %v1047 = vsel %vm1015, %v913, 0
      %v1050 = vsel %vm1015, %v914, 0
      %v1053 = vsel %vm1015, %v915, 0
      %v1056 = vsel %vm1015, %v916, 0
      %v1059 = vsel %vm1015, %v917, 0
      %v1062 = vsel %vm1015, %v918, 0
      %v1065 = vsel %vm1015, %v919, 0
      %v1068 = vsel %vm1015, %v920, 0
      %v1071 = vsel %vm1015, %v921, 0
      %v1074 = vsel %vm1015, %v922, 0
      %v1077 = vsel %vm1015, %v923, 0
      %v1080 = vsel %vm1015, %v924, 0
      %v1083 = vsel %vm1015, %v925, 0
      %v1086 = vsel %vm1015, %v926, 0
      %v1089 = vsel %vm1015, %v927, 0
      %v1092 = vsel %vm1015, %v928, 0
      %v1095 = vsel %vm1015, %v929, 0
      %v1098 = vsel %vm1015, %v930, 0
      %v1101 = vsel %vm1015, %v931, 0
      %v1104 = vsel %vm1015, %v932, 0
      %v1107 = vsel %vm1015, %v933, 0
      %v1110 = vsel %vm1015, %v934, 0
      %v1113 = vsel %vm1015, %v999, 0
      %v1116 = vsel %vm1015, %v1000, 0
      %v1119 = vsel %vm1015, %v1001, 0
      %v1122 = vsel %vm1015, %v1002, 0
      %v1125 = vsel %vm1015, %v1003, 0
      %v1128 = vsel %vm1015, %v1004, 0
      %v1131 = vsel %vm1015, %v1005, 0
      %v1134 = vsel %vm1015, %v1006, 0
      %v1137 = vsel %vm1015, %v1007, 0
      %v1140 = vsel %vm1015, %v1008, 0
      %v1143 = vsel %vm1015, %v1009, 0
      %v1146 = vsel %vm1015, %v1010, 0
      %v1149 = vsel %vm1015, %v1011, 0
      %v1152 = vsel %vm1015, %v1012, 0
      %v1155 = vsel %vm1015, %v1013, 0
      %v1158 = vsel %vm1015, %v1014, 0
      %1160 = vmatpush.bf16.xpose.msra.mxu0 %v1134
      %1161 = vmatpush.bf16.xpose.msra.mxu0 %v1131
      %1162 = vmatpush.bf16.xpose.msra.mxu0 %v1128
      %1163 = vmatpush.bf16.xpose.msra.mxu0 %v1125
      %1164 = vmatpush.bf16.xpose.msra.mxu0 %v1122
      %1165 = vmatpush.bf16.xpose.msra.mxu0 %v1119
      %1166 = vmatpush.bf16.xpose.msra.mxu0 %v1116
      %1167 = vmatpush.bf16.xpose.msra.mxu0 %v1113
      %1168 = vmatmul.bf16.gmra.mxu0 %v1017
      %v1169 = vpop.f32.mrf.mxu0
      %v1170 = vadd.f32 0.0, %v1169
      %v1171 = vpop.f32.mrf.mxu0
      %v1172 = vadd.f32 0.0, %v1171
      %1173 = vmatmul.bf16.gmra.mxu0 %v1020
      %v1174 = vpop.f32.mrf.mxu0
      %v1175 = vadd.f32 0.0, %v1174
      %v1176 = vpop.f32.mrf.mxu0
      %v1177 = vadd.f32 0.0, %v1176
      %1178 = vmatmul.bf16.gmra.mxu0 %v1023
      %v1179 = vpop.f32.mrf.mxu0
      %v1180 = vadd.f32 0.0, %v1179
      %v1181 = vpop.f32.mrf.mxu0
      %v1182 = vadd.f32 0.0, %v1181
      %1183 = vmatmul.bf16.gmra.mxu0 %v1026
      %v1184 = vpop.f32.mrf.mxu0
      %v1185 = vadd.f32 0.0, %v1184
      %v1186 = vpop.f32.mrf.mxu0
      %v1187 = vadd.f32 0.0, %v1186
      %1188 = vmatmul.bf16.gmra.mxu0 %v1029
      %v1189 = vpop.f32.mrf.mxu0
      %v1190 = vadd.f32 0.0, %v1189
      %v1191 = vpop.f32.mrf.mxu0
      %v1192 = vadd.f32 0.0, %v1191
      %1193 = vmatmul.bf16.gmra.mxu0 %v1032
      %v1194 = vpop.f32.mrf.mxu0
      %v1195 = vadd.f32 0.0, %v1194
      %v1196 = vpop.f32.mrf.mxu0
      %v1197 = vadd.f32 0.0, %v1196
      %1198 = vmatmul.bf16.gmra.mxu0 %v1035
      %v1199 = vpop.f32.mrf.mxu0
      %v1200 = vadd.f32 0.0, %v1199
      %v1201 = vpop.f32.mrf.mxu0
      %v1202 = vadd.f32 0.0, %v1201
      %1203 = vmatmul.bf16.gmra.mxu0 %v1038
      %v1204 = vpop.f32.mrf.mxu0
      %v1205 = vadd.f32 0.0, %v1204
      %v1206 = vpop.f32.mrf.mxu0
      %v1207 = vadd.f32 0.0, %v1206
      %1208 = vmatmul.bf16.gmra.mxu0 %v1041
      %v1209 = vpop.f32.mrf.mxu0
      %v1210 = vadd.f32 0.0, %v1209
      %v1211 = vpop.f32.mrf.mxu0
      %v1212 = vadd.f32 0.0, %v1211
      %1213 = vmatmul.bf16.gmra.mxu0 %v1044
      %v1214 = vpop.f32.mrf.mxu0
      %v1215 = vadd.f32 0.0, %v1214
      %v1216 = vpop.f32.mrf.mxu0
      %v1217 = vadd.f32 0.0, %v1216
      %1218 = vmatmul.bf16.gmra.mxu0 %v1047
      %v1219 = vpop.f32.mrf.mxu0
      %v1220 = vadd.f32 0.0, %v1219
      %v1221 = vpop.f32.mrf.mxu0
      %v1222 = vadd.f32 0.0, %v1221
      %1223 = vmatmul.bf16.gmra.mxu0 %v1050
      %v1224 = vpop.f32.mrf.mxu0
      %v1225 = vadd.f32 0.0, %v1224
      %v1226 = vpop.f32.mrf.mxu0
      %v1227 = vadd.f32 0.0, %v1226
      %1228 = vmatmul.bf16.gmra.mxu0 %v1053
      %v1229 = vpop.f32.mrf.mxu0
      %v1230 = vadd.f32 0.0, %v1229
      %v1231 = vpop.f32.mrf.mxu0
      %v1232 = vadd.f32 0.0, %v1231
      %1233 = vmatmul.bf16.gmra.mxu0 %v1056
      %v1234 = vpop.f32.mrf.mxu0
      %v1235 = vadd.f32 0.0, %v1234
      %v1236 = vpop.f32.mrf.mxu0
      %v1237 = vadd.f32 0.0, %v1236
      %1238 = vmatmul.bf16.gmra.mxu0 %v1059
      %v1239 = vpop.f32.mrf.mxu0
      %v1240 = vadd.f32 0.0, %v1239
      %v1241 = vpop.f32.mrf.mxu0
      %v1242 = vadd.f32 0.0, %v1241
      %1243 = vmatmul.bf16.gmra.mxu0 %v1062
      %v1244 = vpop.f32.mrf.mxu0
      %v1245 = vadd.f32 0.0, %v1244
      %v1246 = vpop.f32.mrf.mxu0
      %v1247 = vadd.f32 0.0, %v1246
      %1248 = vmatmul.bf16.gmra.mxu0 %v1065
      %v1249 = vpop.f32.mrf.mxu0
      %v1250 = vadd.f32 0.0, %v1249
      %v1251 = vpop.f32.mrf.mxu0
      %v1252 = vadd.f32 0.0, %v1251
      %1253 = vmatmul.bf16.gmra.mxu0 %v1068
      %v1254 = vpop.f32.mrf.mxu0
      %v1255 = vadd.f32 0.0, %v1254
      %v1256 = vpop.f32.mrf.mxu0
      %v1257 = vadd.f32 0.0, %v1256
      %1258 = vmatmul.bf16.gmra.mxu0 %v1071
      %v1259 = vpop.f32.mrf.mxu0
      %v1260 = vadd.f32 0.0, %v1259
      %v1261 = vpop.f32.mrf.mxu0
      %v1262 = vadd.f32 0.0, %v1261
      %1263 = vmatmul.bf16.gmra.mxu0 %v1074
      %v1264 = vpop.f32.mrf.mxu0
      %v1265 = vadd.f32 0.0, %v1264
      %v1266 = vpop.f32.mrf.mxu0
      %v1267 = vadd.f32 0.0, %v1266
      %1268 = vmatmul.bf16.gmra.mxu0 %v1077
      %v1269 = vpop.f32.mrf.mxu0
      %v1270 = vadd.f32 0.0, %v1269
      %v1271 = vpop.f32.mrf.mxu0
      %v1272 = vadd.f32 0.0, %v1271
      %1273 = vmatmul.bf16.gmra.mxu0 %v1080
      %v1274 = vpop.f32.mrf.mxu0
      %v1275 = vadd.f32 0.0, %v1274
      %v1276 = vpop.f32.mrf.mxu0
      %v1277 = vadd.f32 0.0, %v1276
      %1278 = vmatmul.bf16.gmra.mxu0 %v1083
      %v1279 = vpop.f32.mrf.mxu0
      %v1280 = vadd.f32 0.0, %v1279
      %v1281 = vpop.f32.mrf.mxu0
      %v1282 = vadd.f32 0.0, %v1281
      %1283 = vmatmul.bf16.gmra.mxu0 %v1086
      %v1284 = vpop.f32.mrf.mxu0
      %v1285 = vadd.f32 0.0, %v1284
      %v1286 = vpop.f32.mrf.mxu0
      %v1287 = vadd.f32 0.0, %v1286
      %1288 = vmatmul.bf16.gmra.mxu0 %v1089
      %v1289 = vpop.f32.mrf.mxu0
      %v1290 = vadd.f32 0.0, %v1289
      %v1291 = vpop.f32.mrf.mxu0
      %v1292 = vadd.f32 0.0, %v1291
      %1293 = vmatmul.bf16.gmra.mxu0 %v1092
      %v1294 = vpop.f32.mrf.mxu0
      %v1295 = vadd.f32 0.0, %v1294
      %v1296 = vpop.f32.mrf.mxu0
      %v1297 = vadd.f32 0.0, %v1296
      %1298 = vmatmul.bf16.gmra.mxu0 %v1095
      %v1299 = vpop.f32.mrf.mxu0
      %v1300 = vadd.f32 0.0, %v1299
      %v1301 = vpop.f32.mrf.mxu0
      %v1302 = vadd.f32 0.0, %v1301
      %1303 = vmatmul.bf16.gmra.mxu0 %v1098
      %v1304 = vpop.f32.mrf.mxu0
      %v1305 = vadd.f32 0.0, %v1304
      %v1306 = vpop.f32.mrf.mxu0
      %v1307 = vadd.f32 0.0, %v1306
      %1308 = vmatmul.bf16.gmra.mxu0 %v1101
      %v1309 = vpop.f32.mrf.mxu0
      %v1310 = vadd.f32 0.0, %v1309
      %v1311 = vpop.f32.mrf.mxu0
      %v1312 = vadd.f32 0.0, %v1311
      %1313 = vmatmul.bf16.gmra.mxu0 %v1104
      %v1314 = vpop.f32.mrf.mxu0
      %v1315 = vadd.f32 0.0, %v1314
      %v1316 = vpop.f32.mrf.mxu0
      %v1317 = vadd.f32 0.0, %v1316
      %1318 = vmatmul.bf16.gmra.mxu0 %v1107
      %v1319 = vpop.f32.mrf.mxu0
      %v1320 = vadd.f32 0.0, %v1319
      %v1321 = vpop.f32.mrf.mxu0
      %v1322 = vadd.f32 0.0, %v1321
      %1323 = vmatmul.bf16.gmra.mxu0 %v1110
      %v1324 = vpop.f32.mrf.mxu0
      %v1325 = vadd.f32 0.0, %v1324
      %v1326 = vpop.f32.mrf.mxu0
      %v1327 = vadd.f32 0.0, %v1326
      %1328 = vdwg.mxu0
      %1329 = vmatpush.bf16.xpose.msra.mxu0 %v1158
      %1330 = vmatpush.bf16.xpose.msra.mxu0 %v1155
      %1331 = vmatpush.bf16.xpose.msra.mxu0 %v1152
      %1332 = vmatpush.bf16.xpose.msra.mxu0 %v1149
      %1333 = vmatpush.bf16.xpose.msra.mxu0 %v1146
      %1334 = vmatpush.bf16.xpose.msra.mxu0 %v1143
      %1335 = vmatpush.bf16.xpose.msra.mxu0 %v1140
      %1336 = vmatpush.bf16.xpose.msra.mxu0 %v1137
      %1337 = vmatmul.bf16.gmra.mxu0 %v1017
      %v1338 = vpop.f32.mrf.mxu0
      %v1339 = vadd.f32 0.0, %v1338
      %v1340 = vpop.f32.mrf.mxu0
      %v1341 = vadd.f32 0.0, %v1340
      %1342 = vmatmul.bf16.gmra.mxu0 %v1020
      %v1343 = vpop.f32.mrf.mxu0
      %v1344 = vadd.f32 0.0, %v1343
      %v1345 = vpop.f32.mrf.mxu0
      %v1346 = vadd.f32 0.0, %v1345
      %1347 = vmatmul.bf16.gmra.mxu0 %v1023
      %v1348 = vpop.f32.mrf.mxu0
      %v1349 = vadd.f32 0.0, %v1348
      %v1350 = vpop.f32.mrf.mxu0
      %v1351 = vadd.f32 0.0, %v1350
      %1352 = vmatmul.bf16.gmra.mxu0 %v1026
      %v1353 = vpop.f32.mrf.mxu0
      %v1354 = vadd.f32 0.0, %v1353
      %v1355 = vpop.f32.mrf.mxu0
      %v1356 = vadd.f32 0.0, %v1355
      %1357 = vmatmul.bf16.gmra.mxu0 %v1029
      %v1358 = vpop.f32.mrf.mxu0
      %v1359 = vadd.f32 0.0, %v1358
      %v1360 = vpop.f32.mrf.mxu0
      %v1361 = vadd.f32 0.0, %v1360
      %1362 = vmatmul.bf16.gmra.mxu0 %v1032
      %v1363 = vpop.f32.mrf.mxu0
      %v1364 = vadd.f32 0.0, %v1363
      %v1365 = vpop.f32.mrf.mxu0
      %v1366 = vadd.f32 0.0, %v1365
      %1367 = vmatmul.bf16.gmra.mxu0 %v1035
      %v1368 = vpop.f32.mrf.mxu0
      %v1369 = vadd.f32 0.0, %v1368
      %v1370 = vpop.f32.mrf.mxu0
      %v1371 = vadd.f32 0.0, %v1370
      %1372 = vmatmul.bf16.gmra.mxu0 %v1038
      %v1373 = vpop.f32.mrf.mxu0
      %v1374 = vadd.f32 0.0, %v1373
      %v1375 = vpop.f32.mrf.mxu0
      %v1376 = vadd.f32 0.0, %v1375
      %1377 = vmatmul.bf16.gmra.mxu0 %v1041
      %v1378 = vpop.f32.mrf.mxu0
      %v1379 = vadd.f32 0.0, %v1378
      %v1380 = vpop.f32.mrf.mxu0
      %v1381 = vadd.f32 0.0, %v1380
      %1382 = vmatmul.bf16.gmra.mxu0 %v1044
      %v1383 = vpop.f32.mrf.mxu0
      %v1384 = vadd.f32 0.0, %v1383
      %v1385 = vpop.f32.mrf.mxu0
      %v1386 = vadd.f32 0.0, %v1385
      %1387 = vmatmul.bf16.gmra.mxu0 %v1047
      %v1388 = vpop.f32.mrf.mxu0
      %v1389 = vadd.f32 0.0, %v1388
      %v1390 = vpop.f32.mrf.mxu0
      %v1391 = vadd.f32 0.0, %v1390
      %1392 = vmatmul.bf16.gmra.mxu0 %v1050
      %v1393 = vpop.f32.mrf.mxu0
      %v1394 = vadd.f32 0.0, %v1393
      %v1395 = vpop.f32.mrf.mxu0
      %v1396 = vadd.f32 0.0, %v1395
      %1397 = vmatmul.bf16.gmra.mxu0 %v1053
      %v1398 = vpop.f32.mrf.mxu0
      %v1399 = vadd.f32 0.0, %v1398
      %v1400 = vpop.f32.mrf.mxu0
      %v1401 = vadd.f32 0.0, %v1400
      %1402 = vmatmul.bf16.gmra.mxu0 %v1056
      %v1403 = vpop.f32.mrf.mxu0
      %v1404 = vadd.f32 0.0, %v1403
      %v1405 = vpop.f32.mrf.mxu0
      %v1406 = vadd.f32 0.0, %v1405
      %1407 = vmatmul.bf16.gmra.mxu0 %v1059
      %v1408 = vpop.f32.mrf.mxu0
      %v1409 = vadd.f32 0.0, %v1408
      %v1410 = vpop.f32.mrf.mxu0
      %v1411 = vadd.f32 0.0, %v1410
      %1412 = vmatmul.bf16.gmra.mxu0 %v1062
      %v1413 = vpop.f32.mrf.mxu0
      %v1414 = vadd.f32 0.0, %v1413
      %v1415 = vpop.f32.mrf.mxu0
      %v1416 = vadd.f32 0.0, %v1415
      %1417 = vmatmul.bf16.gmra.mxu0 %v1065
      %v1418 = vpop.f32.mrf.mxu0
      %v1419 = vadd.f32 0.0, %v1418
      %v1420 = vpop.f32.mrf.mxu0
      %v1421 = vadd.f32 0.0, %v1420
      %1422 = vmatmul.bf16.gmra.mxu0 %v1068
      %v1423 = vpop.f32.mrf.mxu0
      %v1424 = vadd.f32 0.0, %v1423
      %v1425 = vpop.f32.mrf.mxu0
      %v1426 = vadd.f32 0.0, %v1425
      %1427 = vmatmul.bf16.gmra.mxu0 %v1071
      %v1428 = vpop.f32.mrf.mxu0
      %v1429 = vadd.f32 0.0, %v1428
      %v1430 = vpop.f32.mrf.mxu0
      %v1431 = vadd.f32 0.0, %v1430
      %1432 = vmatmul.bf16.gmra.mxu0 %v1074
      %v1433 = vpop.f32.mrf.mxu0
      %v1434 = vadd.f32 0.0, %v1433
      %v1435 = vpop.f32.mrf.mxu0
      %v1436 = vadd.f32 0.0, %v1435
      %1437 = vmatmul.bf16.gmra.mxu0 %v1077
      %v1438 = vpop.f32.mrf.mxu0
      %v1439 = vadd.f32 0.0, %v1438
      %v1440 = vpop.f32.mrf.mxu0
      %v1441 = vadd.f32 0.0, %v1440
      %1442 = vmatmul.bf16.gmra.mxu0 %v1080
      %v1443 = vpop.f32.mrf.mxu0
      %v1444 = vadd.f32 0.0, %v1443
      %v1445 = vpop.f32.mrf.mxu0
      %v1446 = vadd.f32 0.0, %v1445
      %1447 = vmatmul.bf16.gmra.mxu0 %v1083
      %v1448 = vpop.f32.mrf.mxu0
      %v1449 = vadd.f32 0.0, %v1448
      %v1450 = vpop.f32.mrf.mxu0
      %v1451 = vadd.f32 0.0, %v1450
      %1452 = vmatmul.bf16.gmra.mxu0 %v1086
      %v1453 = vpop.f32.mrf.mxu0
      %v1454 = vadd.f32 0.0, %v1453
      %v1455 = vpop.f32.mrf.mxu0
      %v1456 = vadd.f32 0.0, %v1455
      %1457 = vmatmul.bf16.gmra.mxu0 %v1089
      %v1458 = vpop.f32.mrf.mxu0
      %v1459 = vadd.f32 0.0, %v1458
      %v1460 = vpop.f32.mrf.mxu0
      %v1461 = vadd.f32 0.0, %v1460
      %1462 = vmatmul.bf16.gmra.mxu0 %v1092
      %v1463 = vpop.f32.mrf.mxu0
      %v1464 = vadd.f32 0.0, %v1463
      %v1465 = vpop.f32.mrf.mxu0
      %v1466 = vadd.f32 0.0, %v1465
      %1467 = vmatmul.bf16.gmra.mxu0 %v1095
      %v1468 = vpop.f32.mrf.mxu0
      %v1469 = vadd.f32 0.0, %v1468
      %v1470 = vpop.f32.mrf.mxu0
      %v1471 = vadd.f32 0.0, %v1470
      %1472 = vmatmul.bf16.gmra.mxu0 %v1098
      %v1473 = vpop.f32.mrf.mxu0
      %v1474 = vadd.f32 0.0, %v1473
      %v1475 = vpop.f32.mrf.mxu0
      %v1476 = vadd.f32 0.0, %v1475
      %1477 = vmatmul.bf16.gmra.mxu0 %v1101
      %v1478 = vpop.f32.mrf.mxu0
      %v1479 = vadd.f32 0.0, %v1478
      %v1480 = vpop.f32.mrf.mxu0
      %v1481 = vadd.f32 0.0, %v1480
      %1482 = vmatmul.bf16.gmra.mxu0 %v1104
      %v1483 = vpop.f32.mrf.mxu0
      %v1484 = vadd.f32 0.0, %v1483
      %v1485 = vpop.f32.mrf.mxu0
      %v1486 = vadd.f32 0.0, %v1485
      %1487 = vmatmul.bf16.gmra.mxu0 %v1107
      %v1488 = vpop.f32.mrf.mxu0
      %v1489 = vadd.f32 0.0, %v1488
      %v1490 = vpop.f32.mrf.mxu0
      %v1491 = vadd.f32 0.0, %v1490
      %1492 = vmatmul.bf16.gmra.mxu0 %v1110
      %v1493 = vpop.f32.mrf.mxu0
      %v1494 = vadd.f32 0.0, %v1493
      %v1495 = vpop.f32.mrf.mxu0
      %v1496 = vadd.f32 0.0, %v1495
      %1497 = vdwg.mxu0
      %v1498 = vld [vmem:[#allocation2] sm:$0xff]
      %v1499 = vld [vmem:[#allocation2 + $0x8] sm:$0xff]
      %v1500 = vld [vmem:[#allocation2 + $0x10] sm:$0xff]
      %v1501 = vld [vmem:[#allocation2 + $0x18] sm:$0xff]
      %v1502 = vld [vmem:[#allocation2 + $0x20] sm:$0xff]
      %v1503 = vld [vmem:[#allocation2 + $0x28] sm:$0xff]
      %v1504 = vld [vmem:[#allocation2 + $0x30] sm:$0xff]
      %v1505 = vld [vmem:[#allocation2 + $0x38] sm:$0xff]
      %v1506 = vld [vmem:[#allocation2 + $0x40] sm:$0xff]
      %v1507 = vld [vmem:[#allocation2 + $0x48] sm:$0xff]
      %v1508 = vld [vmem:[#allocation2 + $0x50] sm:$0xff]
      %v1509 = vld [vmem:[#allocation2 + $0x58] sm:$0xff]
      %v1510 = vld [vmem:[#allocation2 + $0x60] sm:$0xff]
      %v1511 = vld [vmem:[#allocation2 + $0x68] sm:$0xff]
      %v1512 = vld [vmem:[#allocation2 + $0x70] sm:$0xff]
      %v1513 = vld [vmem:[#allocation2 + $0x78] sm:$0xff]
      %v1514 = vld [vmem:[#allocation2 + $0x80] sm:$0xff]
      %v1515 = vld [vmem:[#allocation2 + $0x88] sm:$0xff]
      %v1516 = vld [vmem:[#allocation2 + $0x90] sm:$0xff]
      %v1517 = vld [vmem:[#allocation2 + $0x98] sm:$0xff]
      %v1518 = vld [vmem:[#allocation2 + $0xa0] sm:$0xff]
      %v1519 = vld [vmem:[#allocation2 + $0xa8] sm:$0xff]
      %v1520 = vld [vmem:[#allocation2 + $0xb0] sm:$0xff]
      %v1521 = vld [vmem:[#allocation2 + $0xb8] sm:$0xff]
      %v1522 = vld [vmem:[#allocation2 + $0xc0] sm:$0xff]
      %v1523 = vld [vmem:[#allocation2 + $0xc8] sm:$0xff]
      %v1524 = vld [vmem:[#allocation2 + $0xd0] sm:$0xff]
      %v1525 = vld [vmem:[#allocation2 + $0xd8] sm:$0xff]
      %v1526 = vld [vmem:[#allocation2 + $0xe0] sm:$0xff]
      %v1527 = vld [vmem:[#allocation2 + $0xe8] sm:$0xff]
      %v1528 = vld [vmem:[#allocation2 + $0xf0] sm:$0xff]
      %v1529 = vld [vmem:[#allocation2 + $0xf8] sm:$0xff]
      %v1530 = vld [vmem:[#allocation2 + $0x100] sm:$0xff]
      %v1531 = vld [vmem:[#allocation2 + $0x108] sm:$0xff]
      %v1532 = vld [vmem:[#allocation2 + $0x110] sm:$0xff]
      %v1533 = vld [vmem:[#allocation2 + $0x118] sm:$0xff]
      %v1534 = vld [vmem:[#allocation2 + $0x120] sm:$0xff]
      %v1535 = vld [vmem:[#allocation2 + $0x128] sm:$0xff]
      %v1536 = vld [vmem:[#allocation2 + $0x130] sm:$0xff]
      %v1537 = vld [vmem:[#allocation2 + $0x138] sm:$0xff]
      %v1538 = vld [vmem:[#allocation2 + $0x140] sm:$0xff]
      %v1539 = vld [vmem:[#allocation2 + $0x148] sm:$0xff]
      %v1540 = vld [vmem:[#allocation2 + $0x150] sm:$0xff]
      %v1541 = vld [vmem:[#allocation2 + $0x158] sm:$0xff]
      %v1542 = vld [vmem:[#allocation2 + $0x160] sm:$0xff]
      %v1543 = vld [vmem:[#allocation2 + $0x168] sm:$0xff]
      %v1544 = vld [vmem:[#allocation2 + $0x170] sm:$0xff]
      %v1545 = vld [vmem:[#allocation2 + $0x178] sm:$0xff]
      %v1546 = vld [vmem:[#allocation2 + $0x180] sm:$0xff]
      %v1547 = vld [vmem:[#allocation2 + $0x188] sm:$0xff]
      %v1548 = vld [vmem:[#allocation2 + $0x190] sm:$0xff]
      %v1549 = vld [vmem:[#allocation2 + $0x198] sm:$0xff]
      %v1550 = vld [vmem:[#allocation2 + $0x1a0] sm:$0xff]
      %v1551 = vld [vmem:[#allocation2 + $0x1a8] sm:$0xff]
      %v1552 = vld [vmem:[#allocation2 + $0x1b0] sm:$0xff]
      %v1553 = vld [vmem:[#allocation2 + $0x1b8] sm:$0xff]
      %v1554 = vld [vmem:[#allocation2 + $0x1c0] sm:$0xff]
      %v1555 = vld [vmem:[#allocation2 + $0x1c8] sm:$0xff]
      %v1556 = vld [vmem:[#allocation2 + $0x1d0] sm:$0xff]
      %v1557 = vld [vmem:[#allocation2 + $0x1d8] sm:$0xff]
      %v1558 = vld [vmem:[#allocation2 + $0x1e0] sm:$0xff]
      %v1559 = vld [vmem:[#allocation2 + $0x1e8] sm:$0xff]
      %v1560 = vld [vmem:[#allocation2 + $0x1f0] sm:$0xff]
      %v1561 = vld [vmem:[#allocation2 + $0x1f8] sm:$0xff]
      %v1562 = vmax.f32 %v1170, %v1339
      %1563 = vmax.xlane.f32.xlu0 %v1562
      %v1564 = vpop.xlane.xlu0 %1563
      %v1565 = vmax.f32 %v1172, %v1341
      %1566 = vmax.xlane.f32.xlu0 %v1565
      %v1567 = vpop.xlane.xlu0 %1566
      %v1568 = vmax.f32 %v1175, %v1344
      %1569 = vmax.xlane.f32.xlu0 %v1568
      %v1570 = vpop.xlane.xlu0 %1569
      %v1571 = vmax.f32 %v1177, %v1346
      %1572 = vmax.xlane.f32.xlu0 %v1571
      %v1573 = vpop.xlane.xlu0 %1572
      %v1574 = vmax.f32 %v1180, %v1349
      %1575 = vmax.xlane.f32.xlu0 %v1574
      %v1576 = vpop.xlane.xlu0 %1575
      %v1577 = vmax.f32 %v1182, %v1351
      %1578 = vmax.xlane.f32.xlu0 %v1577
      %v1579 = vpop.xlane.xlu0 %1578
      %v1580 = vmax.f32 %v1185, %v1354
      %1581 = vmax.xlane.f32.xlu0 %v1580
      %v1582 = vpop.xlane.xlu0 %1581
      %v1583 = vmax.f32 %v1187, %v1356
      %1584 = vmax.xlane.f32.xlu0 %v1583
      %v1585 = vpop.xlane.xlu0 %1584
      %v1586 = vmax.f32 %v1190, %v1359
      %1587 = vmax.xlane.f32.xlu0 %v1586
      %v1588 = vpop.xlane.xlu0 %1587
      %v1589 = vmax.f32 %v1192, %v1361
      %1590 = vmax.xlane.f32.xlu0 %v1589
      %v1591 = vpop.xlane.xlu0 %1590
      %v1592 = vmax.f32 %v1195, %v1364
      %1593 = vmax.xlane.f32.xlu0 %v1592
      %v1594 = vpop.xlane.xlu0 %1593
      %v1595 = vmax.f32 %v1197, %v1366
      %1596 = vmax.xlane.f32.xlu0 %v1595
      %v1597 = vpop.xlane.xlu0 %1596
      %v1598 = vmax.f32 %v1200, %v1369
      %1599 = vmax.xlane.f32.xlu0 %v1598
      %v1600 = vpop.xlane.xlu0 %1599
      %v1601 = vmax.f32 %v1202, %v1371
      %1602 = vmax.xlane.f32.xlu0 %v1601
      %v1603 = vpop.xlane.xlu0 %1602
      %v1604 = vmax.f32 %v1205, %v1374
      %1605 = vmax.xlane.f32.xlu0 %v1604
      %v1606 = vpop.xlane.xlu0 %1605
      %v1607 = vmax.f32 %v1207, %v1376
      %1608 = vmax.xlane.f32.xlu0 %v1607
      %v1609 = vpop.xlane.xlu0 %1608
      %v1610 = vmax.f32 %v1210, %v1379
      %1611 = vmax.xlane.f32.xlu0 %v1610
      %v1612 = vpop.xlane.xlu0 %1611
      %v1613 = vmax.f32 %v1212, %v1381
      %1614 = vmax.xlane.f32.xlu0 %v1613
      %v1615 = vpop.xlane.xlu0 %1614
      %v1616 = vmax.f32 %v1215, %v1384
      %1617 = vmax.xlane.f32.xlu0 %v1616
      %v1618 = vpop.xlane.xlu0 %1617
      %v1619 = vmax.f32 %v1217, %v1386
      %1620 = vmax.xlane.f32.xlu0 %v1619
      %v1621 = vpop.xlane.xlu0 %1620
      %v1622 = vmax.f32 %v1220, %v1389
      %1623 = vmax.xlane.f32.xlu0 %v1622
      %v1624 = vpop.xlane.xlu0 %1623
      %v1625 = vmax.f32 %v1222, %v1391
      %1626 = vmax.xlane.f32.xlu0 %v1625
      %v1627 = vpop.xlane.xlu0 %1626
      %v1628 = vmax.f32 %v1225, %v1394
      %1629 = vmax.xlane.f32.xlu0 %v1628
      %v1630 = vpop.xlane.xlu0 %1629
      %v1631 = vmax.f32 %v1227, %v1396
      %1632 = vmax.xlane.f32.xlu0 %v1631
      %v1633 = vpop.xlane.xlu0 %1632
      %v1634 = vmax.f32 %v1230, %v1399
      %1635 = vmax.xlane.f32.xlu0 %v1634
      %v1636 = vpop.xlane.xlu0 %1635
      %v1637 = vmax.f32 %v1232, %v1401
      %1638 = vmax.xlane.f32.xlu0 %v1637
      %v1639 = vpop.xlane.xlu0 %1638
      %v1640 = vmax.f32 %v1235, %v1404
      %1641 = vmax.xlane.f32.xlu0 %v1640
      %v1642 = vpop.xlane.xlu0 %1641
      %v1643 = vmax.f32 %v1237, %v1406
      %1644 = vmax.xlane.f32.xlu0 %v1643
      %v1645 = vpop.xlane.xlu0 %1644
      %v1646 = vmax.f32 %v1240, %v1409
      %1647 = vmax.xlane.f32.xlu0 %v1646
      %v1648 = vpop.xlane.xlu0 %1647
      %v1649 = vmax.f32 %v1242, %v1411
      %1650 = vmax.xlane.f32.xlu0 %v1649
      %v1651 = vpop.xlane.xlu0 %1650
      %v1652 = vmax.f32 %v1245, %v1414
      %1653 = vmax.xlane.f32.xlu0 %v1652
      %v1654 = vpop.xlane.xlu0 %1653
      %v1655 = vmax.f32 %v1247, %v1416
      %1656 = vmax.xlane.f32.xlu0 %v1655
      %v1657 = vpop.xlane.xlu0 %1656
      %v1658 = vmax.f32 %v1250, %v1419
      %1659 = vmax.xlane.f32.xlu0 %v1658
      %v1660 = vpop.xlane.xlu0 %1659
      %v1661 = vmax.f32 %v1252, %v1421
      %1662 = vmax.xlane.f32.xlu0 %v1661
      %v1663 = vpop.xlane.xlu0 %1662
      %v1664 = vmax.f32 %v1255, %v1424
      %1665 = vmax.xlane.f32.xlu0 %v1664
      %v1666 = vpop.xlane.xlu0 %1665
      %v1667 = vmax.f32 %v1257, %v1426
      %1668 = vmax.xlane.f32.xlu0 %v1667
      %v1669 = vpop.xlane.xlu0 %1668
      %v1670 = vmax.f32 %v1260, %v1429
      %1671 = vmax.xlane.f32.xlu0 %v1670
      %v1672 = vpop.xlane.xlu0 %1671
      %v1673 = vmax.f32 %v1262, %v1431
      %1674 = vmax.xlane.f32.xlu0 %v1673
      %v1675 = vpop.xlane.xlu0 %1674
      %v1676 = vmax.f32 %v1265, %v1434
      %1677 = vmax.xlane.f32.xlu0 %v1676
      %v1678 = vpop.xlane.xlu0 %1677
      %v1679 = vmax.f32 %v1267, %v1436
      %1680 = vmax.xlane.f32.xlu0 %v1679
      %v1681 = vpop.xlane.xlu0 %1680
      %v1682 = vmax.f32 %v1270, %v1439
      %1683 = vmax.xlane.f32.xlu0 %v1682
      %v1684 = vpop.xlane.xlu0 %1683
      %v1685 = vmax.f32 %v1272, %v1441
      %1686 = vmax.xlane.f32.xlu0 %v1685
      %v1687 = vpop.xlane.xlu0 %1686
      %v1688 = vmax.f32 %v1275, %v1444
      %1689 = vmax.xlane.f32.xlu0 %v1688
      %v1690 = vpop.xlane.xlu0 %1689
      %v1691 = vmax.f32 %v1277, %v1446
      %1692 = vmax.xlane.f32.xlu0 %v1691
      %v1693 = vpop.xlane.xlu0 %1692
      %v1694 = vmax.f32 %v1280, %v1449
      %1695 = vmax.xlane.f32.xlu0 %v1694
      %v1696 = vpop.xlane.xlu0 %1695
      %v1697 = vmax.f32 %v1282, %v1451
      %1698 = vmax.xlane.f32.xlu0 %v1697
      %v1699 = vpop.xlane.xlu0 %1698
      %v1700 = vmax.f32 %v1285, %v1454
      %1701 = vmax.xlane.f32.xlu0 %v1700
      %v1702 = vpop.xlane.xlu0 %1701
      %v1703 = vmax.f32 %v1287, %v1456
      %1704 = vmax.xlane.f32.xlu0 %v1703
      %v1705 = vpop.xlane.xlu0 %1704
      %v1706 = vmax.f32 %v1290, %v1459
      %1707 = vmax.xlane.f32.xlu0 %v1706
      %v1708 = vpop.xlane.xlu0 %1707
      %v1709 = vmax.f32 %v1292, %v1461
      %1710 = vmax.xlane.f32.xlu0 %v1709
      %v1711 = vpop.xlane.xlu0 %1710
      %v1712 = vmax.f32 %v1295, %v1464
      %1713 = vmax.xlane.f32.xlu0 %v1712
      %v1714 = vpop.xlane.xlu0 %1713
      %v1715 = vmax.f32 %v1297, %v1466
      %1716 = vmax.xlane.f32.xlu0 %v1715
      %v1717 = vpop.xlane.xlu0 %1716
      %v1718 = vmax.f32 %v1300, %v1469
      %1719 = vmax.xlane.f32.xlu0 %v1718
      %v1720 = vpop.xlane.xlu0 %1719
      %v1721 = vmax.f32 %v1302, %v1471
      %1722 = vmax.xlane.f32.xlu0 %v1721
      %v1723 = vpop.xlane.xlu0 %1722
      %v1724 = vmax.f32 %v1305, %v1474
      %1725 = vmax.xlane.f32.xlu0 %v1724
      %v1726 = vpop.xlane.xlu0 %1725
      %v1727 = vmax.f32 %v1307, %v1476
      %1728 = vmax.xlane.f32.xlu0 %v1727
      %v1729 = vpop.xlane.xlu0 %1728
      %v1730 = vmax.f32 %v1310, %v1479
      %1731 = vmax.xlane.f32.xlu0 %v1730
      %v1732 = vpop.xlane.xlu0 %1731
      %v1733 = vmax.f32 %v1312, %v1481
      %1734 = vmax.xlane.f32.xlu0 %v1733
      %v1735 = vpop.xlane.xlu0 %1734
      %v1736 = vmax.f32 %v1315, %v1484
      %1737 = vmax.xlane.f32.xlu0 %v1736
      %v1738 = vpop.xlane.xlu0 %1737
      %v1739 = vmax.f32 %v1317, %v1486
      %1740 = vmax.xlane.f32.xlu0 %v1739
      %v1741 = vpop.xlane.xlu0 %1740
      %v1742 = vmax.f32 %v1320, %v1489
      %1743 = vmax.xlane.f32.xlu0 %v1742
      %v1744 = vpop.xlane.xlu0 %1743
      %v1745 = vmax.f32 %v1322, %v1491
      %1746 = vmax.xlane.f32.xlu0 %v1745
      %v1747 = vpop.xlane.xlu0 %1746
      %v1748 = vmax.f32 %v1325, %v1494
      %1749 = vmax.xlane.f32.xlu0 %v1748
      %v1750 = vpop.xlane.xlu0 %1749
      %v1751 = vmax.f32 %v1327, %v1496
      %1752 = vmax.xlane.f32.xlu0 %v1751
      %v1753 = vpop.xlane.xlu0 %1752
      %v1754 = vmax.f32 %v1498, %v1564
      %v1755 = vmax.f32 %v1499, %v1567
      %v1756 = vmax.f32 %v1500, %v1570
      %v1757 = vmax.f32 %v1501, %v1573
      %v1758 = vmax.f32 %v1502, %v1576
      %v1759 = vmax.f32 %v1503, %v1579
      %v1760 = vmax.f32 %v1504, %v1582
      %v1761 = vmax.f32 %v1505, %v1585
      %v1762 = vmax.f32 %v1506, %v1588
      %v1763 = vmax.f32 %v1507, %v1591
      %v1764 = vmax.f32 %v1508, %v1594
      %v1765 = vmax.f32 %v1509, %v1597
      %v1766 = vmax.f32 %v1510, %v1600
      %v1767 = vmax.f32 %v1511, %v1603
      %v1768 = vmax.f32 %v1512, %v1606
      %v1769 = vmax.f32 %v1513, %v1609
      %v1770 = vmax.f32 %v1514, %v1612
      %v1771 = vmax.f32 %v1515, %v1615
      %v1772 = vmax.f32 %v1516, %v1618
      %v1773 = vmax.f32 %v1517, %v1621
      %v1774 = vmax.f32 %v1518, %v1624
      %v1775 = vmax.f32 %v1519, %v1627
      %v1776 = vmax.f32 %v1520, %v1630
      %v1777 = vmax.f32 %v1521, %v1633
      %v1778 = vmax.f32 %v1522, %v1636
      %v1779 = vmax.f32 %v1523, %v1639
      %v1780 = vmax.f32 %v1524, %v1642
      %v1781 = vmax.f32 %v1525, %v1645
      %v1782 = vmax.f32 %v1526, %v1648
      %v1783 = vmax.f32 %v1527, %v1651
      %v1784 = vmax.f32 %v1528, %v1654
      %v1785 = vmax.f32 %v1529, %v1657
      %v1786 = vmax.f32 %v1530, %v1660
      %v1787 = vmax.f32 %v1531, %v1663
      %v1788 = vmax.f32 %v1532, %v1666
      %v1789 = vmax.f32 %v1533, %v1669
      %v1790 = vmax.f32 %v1534, %v1672
      %v1791 = vmax.f32 %v1535, %v1675
      %v1792 = vmax.f32 %v1536, %v1678
      %v1793 = vmax.f32 %v1537, %v1681
      %v1794 = vmax.f32 %v1538, %v1684
      %v1795 = vmax.f32 %v1539, %v1687
      %v1796 = vmax.f32 %v1540, %v1690
      %v1797 = vmax.f32 %v1541, %v1693
      %v1798 = vmax.f32 %v1542, %v1696
      %v1799 = vmax.f32 %v1543, %v1699
      %v1800 = vmax.f32 %v1544, %v1702
      %v1801 = vmax.f32 %v1545, %v1705
      %v1802 = vmax.f32 %v1546, %v1708
      %v1803 = vmax.f32 %v1547, %v1711
      %v1804 = vmax.f32 %v1548, %v1714
      %v1805 = vmax.f32 %v1549, %v1717
      %v1806 = vmax.f32 %v1550, %v1720
      %v1807 = vmax.f32 %v1551, %v1723
      %v1808 = vmax.f32 %v1552, %v1726
      %v1809 = vmax.f32 %v1553, %v1729
      %v1810 = vmax.f32 %v1554, %v1732
      %v1811 = vmax.f32 %v1555, %v1735
      %v1812 = vmax.f32 %v1556, %v1738
      %v1813 = vmax.f32 %v1557, %v1741
      %v1814 = vmax.f32 %v1558, %v1744
      %v1815 = vmax.f32 %v1559, %v1747
      %v1816 = vmax.f32 %v1560, %v1750
      %v1817 = vmax.f32 %v1561, %v1753
      %v1818 = vsub.f32 %v1498, %v1754
      %v1819 = vsub.f32 %v1499, %v1755
      %v1820 = vsub.f32 %v1500, %v1756
      %v1821 = vsub.f32 %v1501, %v1757
      %v1822 = vsub.f32 %v1502, %v1758
      %v1823 = vsub.f32 %v1503, %v1759
      %v1824 = vsub.f32 %v1504, %v1760
      %v1825 = vsub.f32 %v1505, %v1761
      %v1826 = vsub.f32 %v1506, %v1762
      %v1827 = vsub.f32 %v1507, %v1763
      %v1828 = vsub.f32 %v1508, %v1764
      %v1829 = vsub.f32 %v1509, %v1765
      %v1830 = vsub.f32 %v1510, %v1766
      %v1831 = vsub.f32 %v1511, %v1767
      %v1832 = vsub.f32 %v1512, %v1768
      %v1833 = vsub.f32 %v1513, %v1769
      %v1834 = vsub.f32 %v1514, %v1770
      %v1835 = vsub.f32 %v1515, %v1771
      %v1836 = vsub.f32 %v1516, %v1772
      %v1837 = vsub.f32 %v1517, %v1773
      %v1838 = vsub.f32 %v1518, %v1774
      %v1839 = vsub.f32 %v1519, %v1775
      %v1840 = vsub.f32 %v1520, %v1776
      %v1841 = vsub.f32 %v1521, %v1777
      %v1842 = vsub.f32 %v1522, %v1778
      %v1843 = vsub.f32 %v1523, %v1779
      %v1844 = vsub.f32 %v1524, %v1780
      %v1845 = vsub.f32 %v1525, %v1781
      %v1846 = vsub.f32 %v1526, %v1782
      %v1847 = vsub.f32 %v1527, %v1783
      %v1848 = vsub.f32 %v1528, %v1784
      %v1849 = vsub.f32 %v1529, %v1785
      %v1850 = vsub.f32 %v1530, %v1786
      %v1851 = vsub.f32 %v1531, %v1787
      %v1852 = vsub.f32 %v1532, %v1788
      %v1853 = vsub.f32 %v1533, %v1789
      %v1854 = vsub.f32 %v1534, %v1790
      %v1855 = vsub.f32 %v1535, %v1791
      %v1856 = vsub.f32 %v1536, %v1792
      %v1857 = vsub.f32 %v1537, %v1793
      %v1858 = vsub.f32 %v1538, %v1794
      %v1859 = vsub.f32 %v1539, %v1795
      %v1860 = vsub.f32 %v1540, %v1796
      %v1861 = vsub.f32 %v1541, %v1797
      %v1862 = vsub.f32 %v1542, %v1798
      %v1863 = vsub.f32 %v1543, %v1799
      %v1864 = vsub.f32 %v1544, %v1800
      %v1865 = vsub.f32 %v1545, %v1801
      %v1866 = vsub.f32 %v1546, %v1802
      %v1867 = vsub.f32 %v1547, %v1803
      %v1868 = vsub.f32 %v1548, %v1804
      %v1869 = vsub.f32 %v1549, %v1805
      %v1870 = vsub.f32 %v1550, %v1806
      %v1871 = vsub.f32 %v1551, %v1807
      %v1872 = vsub.f32 %v1552, %v1808
      %v1873 = vsub.f32 %v1553, %v1809
      %v1874 = vsub.f32 %v1554, %v1810
      %v1875 = vsub.f32 %v1555, %v1811
      %v1876 = vsub.f32 %v1556, %v1812
      %v1877 = vsub.f32 %v1557, %v1813
      %v1878 = vsub.f32 %v1558, %v1814
      %v1879 = vsub.f32 %v1559, %v1815
      %v1880 = vsub.f32 %v1560, %v1816
      %v1881 = vsub.f32 %v1561, %v1817
      %v1882 = vmul.f32 %v1818, 1.442695
      %v1883 = vpow.pop %v1882
      %v1884 = vmul.f32 %v1819, 1.442695
      %v1885 = vpow.pop %v1884
      %v1886 = vmul.f32 %v1820, 1.442695
      %v1887 = vpow.pop %v1886
      %v1888 = vmul.f32 %v1821, 1.442695
      %v1889 = vpow.pop %v1888
      %v1890 = vmul.f32 %v1822, 1.442695
      %v1891 = vpow.pop %v1890
      %v1892 = vmul.f32 %v1823, 1.442695
      %v1893 = vpow.pop %v1892
      %v1894 = vmul.f32 %v1824, 1.442695
      %v1895 = vpow.pop %v1894
      %v1896 = vmul.f32 %v1825, 1.442695
      %v1897 = vpow.pop %v1896
      %v1898 = vmul.f32 %v1826, 1.442695
      %v1899 = vpow.pop %v1898
      %v1900 = vmul.f32 %v1827, 1.442695
      %v1901 = vpow.pop %v1900
      %v1902 = vmul.f32 %v1828, 1.442695
      %v1903 = vpow.pop %v1902
      %v1904 = vmul.f32 %v1829, 1.442695
      %v1905 = vpow.pop %v1904
      %v1906 = vmul.f32 %v1830, 1.442695
      %v1907 = vpow.pop %v1906
      %v1908 = vmul.f32 %v1831, 1.442695
      %v1909 = vpow.pop %v1908
      %v1910 = vmul.f32 %v1832, 1.442695
      %v1911 = vpow.pop %v1910
      %v1912 = vmul.f32 %v1833, 1.442695
      %v1913 = vpow.pop %v1912
      %v1914 = vmul.f32 %v1834, 1.442695
      %v1915 = vpow.pop %v1914
      %v1916 = vmul.f32 %v1835, 1.442695
      %v1917 = vpow.pop %v1916
      %v1918 = vmul.f32 %v1836, 1.442695
      %v1919 = vpow.pop %v1918
      %v1920 = vmul.f32 %v1837, 1.442695
      %v1921 = vpow.pop %v1920
      %v1922 = vmul.f32 %v1838, 1.442695
      %v1923 = vpow.pop %v1922
      %v1924 = vmul.f32 %v1839, 1.442695
      %v1925 = vpow.pop %v1924
      %v1926 = vmul.f32 %v1840, 1.442695
      %v1927 = vpow.pop %v1926
      %v1928 = vmul.f32 %v1841, 1.442695
      %v1929 = vpow.pop %v1928
      %v1930 = vmul.f32 %v1842, 1.442695
      %v1931 = vpow.pop %v1930
      %v1932 = vmul.f32 %v1843, 1.442695
      %v1933 = vpow.pop %v1932
      %v1934 = vmul.f32 %v1844, 1.442695
      %v1935 = vpow.pop %v1934
      %v1936 = vmul.f32 %v1845, 1.442695
      %v1937 = vpow.pop %v1936
      %v1938 = vmul.f32 %v1846, 1.442695
      %v1939 = vpow.pop %v1938
      %v1940 = vmul.f32 %v1847, 1.442695
      %v1941 = vpow.pop %v1940
      %v1942 = vmul.f32 %v1848, 1.442695
      %v1943 = vpow.pop %v1942
      %v1944 = vmul.f32 %v1849, 1.442695
      %v1945 = vpow.pop %v1944
      %v1946 = vmul.f32 %v1850, 1.442695
      %v1947 = vpow.pop %v1946
      %v1948 = vmul.f32 %v1851, 1.442695
      %v1949 = vpow.pop %v1948
      %v1950 = vmul.f32 %v1852, 1.442695
      %v1951 = vpow.pop %v1950
      %v1952 = vmul.f32 %v1853, 1.442695
      %v1953 = vpow.pop %v1952
      %v1954 = vmul.f32 %v1854, 1.442695
      %v1955 = vpow.pop %v1954
      %v1956 = vmul.f32 %v1855, 1.442695
      %v1957 = vpow.pop %v1956
      %v1958 = vmul.f32 %v1856, 1.442695
      %v1959 = vpow.pop %v1958
      %v1960 = vmul.f32 %v1857, 1.442695
      %v1961 = vpow.pop %v1960
      %v1962 = vmul.f32 %v1858, 1.442695
      %v1963 = vpow.pop %v1962
      %v1964 = vmul.f32 %v1859, 1.442695
      %v1965 = vpow.pop %v1964
      %v1966 = vmul.f32 %v1860, 1.442695
      %v1967 = vpow.pop %v1966
      %v1968 = vmul.f32 %v1861, 1.442695
      %v1969 = vpow.pop %v1968
      %v1970 = vmul.f32 %v1862, 1.442695
      %v1971 = vpow.pop %v1970
      %v1972 = vmul.f32 %v1863, 1.442695
      %v1973 = vpow.pop %v1972
      %v1974 = vmul.f32 %v1864, 1.442695
      %v1975 = vpow.pop %v1974
      %v1976 = vmul.f32 %v1865, 1.442695
      %v1977 = vpow.pop %v1976
      %v1978 = vmul.f32 %v1866, 1.442695
      %v1979 = vpow.pop %v1978
      %v1980 = vmul.f32 %v1867, 1.442695
      %v1981 = vpow.pop %v1980
      %v1982 = vmul.f32 %v1868, 1.442695
      %v1983 = vpow.pop %v1982
      %v1984 = vmul.f32 %v1869, 1.442695
      %v1985 = vpow.pop %v1984
      %v1986 = vmul.f32 %v1870, 1.442695
      %v1987 = vpow.pop %v1986
      %v1988 = vmul.f32 %v1871, 1.442695
      %v1989 = vpow.pop %v1988
      %v1990 = vmul.f32 %v1872, 1.442695
      %v1991 = vpow.pop %v1990
      %v1992 = vmul.f32 %v1873, 1.442695
      %v1993 = vpow.pop %v1992
      %v1994 = vmul.f32 %v1874, 1.442695
      %v1995 = vpow.pop %v1994
      %v1996 = vmul.f32 %v1875, 1.442695
      %v1997 = vpow.pop %v1996
      %v1998 = vmul.f32 %v1876, 1.442695
      %v1999 = vpow.pop %v1998
      %v2000 = vmul.f32 %v1877, 1.442695
      %v2001 = vpow.pop %v2000
      %v2002 = vmul.f32 %v1878, 1.442695
      %v2003 = vpow.pop %v2002
      %v2004 = vmul.f32 %v1879, 1.442695
      %v2005 = vpow.pop %v2004
      %v2006 = vmul.f32 %v1880, 1.442695
      %v2007 = vpow.pop %v2006
      %v2008 = vmul.f32 %v1881, 1.442695
      %v2009 = vpow.pop %v2008
      %2011 = vset.pattern.permute.xlu0 0
      %2012 = vperm.xlu0 %2011, %v1754
      %v2013 = vpop.permute.xlu0 %2012
      %2016 = vset.pattern.permute.xlu0 0
      %2017 = vperm.xlu0 %2016, %v1755
      %v2018 = vpop.permute.xlu0 %2017
      %2021 = vset.pattern.permute.xlu0 0
      %2022 = vperm.xlu0 %2021, %v1756
      %v2023 = vpop.permute.xlu0 %2022
      %2026 = vset.pattern.permute.xlu0 0
      %2027 = vperm.xlu0 %2026, %v1757
      %v2028 = vpop.permute.xlu0 %2027
      %2031 = vset.pattern.permute.xlu0 0
      %2032 = vperm.xlu0 %2031, %v1758
      %v2033 = vpop.permute.xlu0 %2032
      %2036 = vset.pattern.permute.xlu0 0
      %2037 = vperm.xlu0 %2036, %v1759
      %v2038 = vpop.permute.xlu0 %2037
      %2041 = vset.pattern.permute.xlu0 0
      %2042 = vperm.xlu0 %2041, %v1760
      %v2043 = vpop.permute.xlu0 %2042
      %2046 = vset.pattern.permute.xlu0 0
      %2047 = vperm.xlu0 %2046, %v1761
      %v2048 = vpop.permute.xlu0 %2047
      %2051 = vset.pattern.permute.xlu0 0
      %2052 = vperm.xlu0 %2051, %v1762
      %v2053 = vpop.permute.xlu0 %2052
      %2056 = vset.pattern.permute.xlu0 0
      %2057 = vperm.xlu0 %2056, %v1763
      %v2058 = vpop.permute.xlu0 %2057
      %2061 = vset.pattern.permute.xlu0 0
      %2062 = vperm.xlu0 %2061, %v1764
      %v2063 = vpop.permute.xlu0 %2062
      %2066 = vset.pattern.permute.xlu0 0
      %2067 = vperm.xlu0 %2066, %v1765
      %v2068 = vpop.permute.xlu0 %2067
      %2071 = vset.pattern.permute.xlu0 0
      %2072 = vperm.xlu0 %2071, %v1766
      %v2073 = vpop.permute.xlu0 %2072
      %2076 = vset.pattern.permute.xlu0 0
      %2077 = vperm.xlu0 %2076, %v1767
      %v2078 = vpop.permute.xlu0 %2077
      %2081 = vset.pattern.permute.xlu0 0
      %2082 = vperm.xlu0 %2081, %v1768
      %v2083 = vpop.permute.xlu0 %2082
      %2086 = vset.pattern.permute.xlu0 0
      %2087 = vperm.xlu0 %2086, %v1769
      %v2088 = vpop.permute.xlu0 %2087
      %2091 = vset.pattern.permute.xlu0 0
      %2092 = vperm.xlu0 %2091, %v1770
      %v2093 = vpop.permute.xlu0 %2092
      %2096 = vset.pattern.permute.xlu0 0
      %2097 = vperm.xlu0 %2096, %v1771
      %v2098 = vpop.permute.xlu0 %2097
      %2101 = vset.pattern.permute.xlu0 0
      %2102 = vperm.xlu0 %2101, %v1772
      %v2103 = vpop.permute.xlu0 %2102
      %2106 = vset.pattern.permute.xlu0 0
      %2107 = vperm.xlu0 %2106, %v1773
      %v2108 = vpop.permute.xlu0 %2107
      %2111 = vset.pattern.permute.xlu0 0
      %2112 = vperm.xlu0 %2111, %v1774
      %v2113 = vpop.permute.xlu0 %2112
      %2116 = vset.pattern.permute.xlu0 0
      %2117 = vperm.xlu0 %2116, %v1775
      %v2118 = vpop.permute.xlu0 %2117
      %2121 = vset.pattern.permute.xlu0 0
      %2122 = vperm.xlu0 %2121, %v1776
      %v2123 = vpop.permute.xlu0 %2122
      %2126 = vset.pattern.permute.xlu0 0
      %2127 = vperm.xlu0 %2126, %v1777
      %v2128 = vpop.permute.xlu0 %2127
      %2131 = vset.pattern.permute.xlu0 0
      %2132 = vperm.xlu0 %2131, %v1778
      %v2133 = vpop.permute.xlu0 %2132
      %2136 = vset.pattern.permute.xlu0 0
      %2137 = vperm.xlu0 %2136, %v1779
      %v2138 = vpop.permute.xlu0 %2137
      %2141 = vset.pattern.permute.xlu0 0
      %2142 = vperm.xlu0 %2141, %v1780
      %v2143 = vpop.permute.xlu0 %2142
      %2146 = vset.pattern.permute.xlu0 0
      %2147 = vperm.xlu0 %2146, %v1781
      %v2148 = vpop.permute.xlu0 %2147
      %2151 = vset.pattern.permute.xlu0 0
      %2152 = vperm.xlu0 %2151, %v1782
      %v2153 = vpop.permute.xlu0 %2152
      %2156 = vset.pattern.permute.xlu0 0
      %2157 = vperm.xlu0 %2156, %v1783
      %v2158 = vpop.permute.xlu0 %2157
      %2161 = vset.pattern.permute.xlu0 0
      %2162 = vperm.xlu0 %2161, %v1784
      %v2163 = vpop.permute.xlu0 %2162
      %2166 = vset.pattern.permute.xlu0 0
      %2167 = vperm.xlu0 %2166, %v1785
      %v2168 = vpop.permute.xlu0 %2167
      %2171 = vset.pattern.permute.xlu0 0
      %2172 = vperm.xlu0 %2171, %v1786
      %v2173 = vpop.permute.xlu0 %2172
      %2176 = vset.pattern.permute.xlu0 0
      %2177 = vperm.xlu0 %2176, %v1787
      %v2178 = vpop.permute.xlu0 %2177
      %2181 = vset.pattern.permute.xlu0 0
      %2182 = vperm.xlu0 %2181, %v1788
      %v2183 = vpop.permute.xlu0 %2182
      %2186 = vset.pattern.permute.xlu0 0
      %2187 = vperm.xlu0 %2186, %v1789
      %v2188 = vpop.permute.xlu0 %2187
      %2191 = vset.pattern.permute.xlu0 0
      %2192 = vperm.xlu0 %2191, %v1790
      %v2193 = vpop.permute.xlu0 %2192
      %2196 = vset.pattern.permute.xlu0 0
      %2197 = vperm.xlu0 %2196, %v1791
      %v2198 = vpop.permute.xlu0 %2197
      %2201 = vset.pattern.permute.xlu0 0
      %2202 = vperm.xlu0 %2201, %v1792
      %v2203 = vpop.permute.xlu0 %2202
      %2206 = vset.pattern.permute.xlu0 0
      %2207 = vperm.xlu0 %2206, %v1793
      %v2208 = vpop.permute.xlu0 %2207
      %2211 = vset.pattern.permute.xlu0 0
      %2212 = vperm.xlu0 %2211, %v1794
      %v2213 = vpop.permute.xlu0 %2212
      %2216 = vset.pattern.permute.xlu0 0
      %2217 = vperm.xlu0 %2216, %v1795
      %v2218 = vpop.permute.xlu0 %2217
      %2221 = vset.pattern.permute.xlu0 0
      %2222 = vperm.xlu0 %2221, %v1796
      %v2223 = vpop.permute.xlu0 %2222
      %2226 = vset.pattern.permute.xlu0 0
      %2227 = vperm.xlu0 %2226, %v1797
      %v2228 = vpop.permute.xlu0 %2227
      %2231 = vset.pattern.permute.xlu0 0
      %2232 = vperm.xlu0 %2231, %v1798
      %v2233 = vpop.permute.xlu0 %2232
      %2236 = vset.pattern.permute.xlu0 0
      %2237 = vperm.xlu0 %2236, %v1799
      %v2238 = vpop.permute.xlu0 %2237
      %2241 = vset.pattern.permute.xlu0 0
      %2242 = vperm.xlu0 %2241, %v1800
      %v2243 = vpop.permute.xlu0 %2242
      %2246 = vset.pattern.permute.xlu0 0
      %2247 = vperm.xlu0 %2246, %v1801
      %v2248 = vpop.permute.xlu0 %2247
      %2251 = vset.pattern.permute.xlu0 0
      %2252 = vperm.xlu0 %2251, %v1802
      %v2253 = vpop.permute.xlu0 %2252
      %2256 = vset.pattern.permute.xlu0 0
      %2257 = vperm.xlu0 %2256, %v1803
      %v2258 = vpop.permute.xlu0 %2257
      %2261 = vset.pattern.permute.xlu0 0
      %2262 = vperm.xlu0 %2261, %v1804
      %v2263 = vpop.permute.xlu0 %2262
      %2266 = vset.pattern.permute.xlu0 0
      %2267 = vperm.xlu0 %2266, %v1805
      %v2268 = vpop.permute.xlu0 %2267
      %2271 = vset.pattern.permute.xlu0 0
      %2272 = vperm.xlu0 %2271, %v1806
      %v2273 = vpop.permute.xlu0 %2272
      %2276 = vset.pattern.permute.xlu0 0
      %2277 = vperm.xlu0 %2276, %v1807
      %v2278 = vpop.permute.xlu0 %2277
      %2281 = vset.pattern.permute.xlu0 0
      %2282 = vperm.xlu0 %2281, %v1808
      %v2283 = vpop.permute.xlu0 %2282
      %2286 = vset.pattern.permute.xlu0 0
      %2287 = vperm.xlu0 %2286, %v1809
      %v2288 = vpop.permute.xlu0 %2287
      %2291 = vset.pattern.permute.xlu0 0
      %2292 = vperm.xlu0 %2291, %v1810
      %v2293 = vpop.permute.xlu0 %2292
      %2296 = vset.pattern.permute.xlu0 0
      %2297 = vperm.xlu0 %2296, %v1811
      %v2298 = vpop.permute.xlu0 %2297
      %2301 = vset.pattern.permute.xlu0 0
      %2302 = vperm.xlu0 %2301, %v1812
      %v2303 = vpop.permute.xlu0 %2302
      %2306 = vset.pattern.permute.xlu0 0
      %2307 = vperm.xlu0 %2306, %v1813
      %v2308 = vpop.permute.xlu0 %2307
      %2311 = vset.pattern.permute.xlu0 0
      %2312 = vperm.xlu0 %2311, %v1814
      %v2313 = vpop.permute.xlu0 %2312
      %2316 = vset.pattern.permute.xlu0 0
      %2317 = vperm.xlu0 %2316, %v1815
      %v2318 = vpop.permute.xlu0 %2317
      %2321 = vset.pattern.permute.xlu0 0
      %2322 = vperm.xlu0 %2321, %v1816
      %v2323 = vpop.permute.xlu0 %2322
      %2326 = vset.pattern.permute.xlu0 0
      %2327 = vperm.xlu0 %2326, %v1817
      %v2328 = vpop.permute.xlu0 %2327
      %v2330 = vsub.f32 %v1170, %v2013
      %v2331 = vsub.f32 %v1339, %v2013
      %v2332 = vsub.f32 %v1172, %v2018
      %v2333 = vsub.f32 %v1341, %v2018
      %v2334 = vsub.f32 %v1175, %v2023
      %v2335 = vsub.f32 %v1344, %v2023
      %v2336 = vsub.f32 %v1177, %v2028
      %v2337 = vsub.f32 %v1346, %v2028
      %v2338 = vsub.f32 %v1180, %v2033
      %v2339 = vsub.f32 %v1349, %v2033
      %v2340 = vsub.f32 %v1182, %v2038
      %v2341 = vsub.f32 %v1351, %v2038
      %v2342 = vsub.f32 %v1185, %v2043
      %v2343 = vsub.f32 %v1354, %v2043
      %v2344 = vsub.f32 %v1187, %v2048
      %v2345 = vsub.f32 %v1356, %v2048
      %v2346 = vsub.f32 %v1190, %v2053
      %v2347 = vsub.f32 %v1359, %v2053
      %v2348 = vsub.f32 %v1192, %v2058
      %v2349 = vsub.f32 %v1361, %v2058
      %v2350 = vsub.f32 %v1195, %v2063
      %v2351 = vsub.f32 %v1364, %v2063
      %v2352 = vsub.f32 %v1197, %v2068
      %v2353 = vsub.f32 %v1366, %v2068
      %v2354 = vsub.f32 %v1200, %v2073
      %v2355 = vsub.f32 %v1369, %v2073
      %v2356 = vsub.f32 %v1202, %v2078
      %v2357 = vsub.f32 %v1371, %v2078
      %v2358 = vsub.f32 %v1205, %v2083
      %v2359 = vsub.f32 %v1374, %v2083
      %v2360 = vsub.f32 %v1207, %v2088
      %v2361 = vsub.f32 %v1376, %v2088
      %v2362 = vsub.f32 %v1210, %v2093
      %v2363 = vsub.f32 %v1379, %v2093
      %v2364 = vsub.f32 %v1212, %v2098
      %v2365 = vsub.f32 %v1381, %v2098
      %v2366 = vsub.f32 %v1215, %v2103
      %v2367 = vsub.f32 %v1384, %v2103
      %v2368 = vsub.f32 %v1217, %v2108
      %v2369 = vsub.f32 %v1386, %v2108
      %v2370 = vsub.f32 %v1220, %v2113
      %v2371 = vsub.f32 %v1389, %v2113
      %v2372 = vsub.f32 %v1222, %v2118
      %v2373 = vsub.f32 %v1391, %v2118
      %v2374 = vsub.f32 %v1225, %v2123
      %v2375 = vsub.f32 %v1394, %v2123
      %v2376 = vsub.f32 %v1227, %v2128
      %v2377 = vsub.f32 %v1396, %v2128
      %v2378 = vsub.f32 %v1230, %v2133
      %v2379 = vsub.f32 %v1399, %v2133
      %v2380 = vsub.f32 %v1232, %v2138
      %v2381 = vsub.f32 %v1401, %v2138
      %v2382 = vsub.f32 %v1235, %v2143
      %v2383 = vsub.f32 %v1404, %v2143
      %v2384 = vsub.f32 %v1237, %v2148
      %v2385 = vsub.f32 %v1406, %v2148
      %v2386 = vsub.f32 %v1240, %v2153
      %v2387 = vsub.f32 %v1409, %v2153
      %v2388 = vsub.f32 %v1242, %v2158
      %v2389 = vsub.f32 %v1411, %v2158
      %v2390 = vsub.f32 %v1245, %v2163
      %v2391 = vsub.f32 %v1414, %v2163
      %v2392 = vsub.f32 %v1247, %v2168
      %v2393 = vsub.f32 %v1416, %v2168
      %v2394 = vsub.f32 %v1250, %v2173
      %v2395 = vsub.f32 %v1419, %v2173
      %v2396 = vsub.f32 %v1252, %v2178
      %v2397 = vsub.f32 %v1421, %v2178
      %v2398 = vsub.f32 %v1255, %v2183
      %v2399 = vsub.f32 %v1424, %v2183
      %v2400 = vsub.f32 %v1257, %v2188
      %v2401 = vsub.f32 %v1426, %v2188
      %v2402 = vsub.f32 %v1260, %v2193
      %v2403 = vsub.f32 %v1429, %v2193
      %v2404 = vsub.f32 %v1262, %v2198
      %v2405 = vsub.f32 %v1431, %v2198
      %v2406 = vsub.f32 %v1265, %v2203
      %v2407 = vsub.f32 %v1434, %v2203
      %v2408 = vsub.f32 %v1267, %v2208
      %v2409 = vsub.f32 %v1436, %v2208
      %v2410 = vsub.f32 %v1270, %v2213
      %v2411 = vsub.f32 %v1439, %v2213
      %v2412 = vsub.f32 %v1272, %v2218
      %v2413 = vsub.f32 %v1441, %v2218
      %v2414 = vsub.f32 %v1275, %v2223
      %v2415 = vsub.f32 %v1444, %v2223
      %v2416 = vsub.f32 %v1277, %v2228
      %v2417 = vsub.f32 %v1446, %v2228
      %v2418 = vsub.f32 %v1280, %v2233
      %v2419 = vsub.f32 %v1449, %v2233
      %v2420 = vsub.f32 %v1282, %v2238
      %v2421 = vsub.f32 %v1451, %v2238
      %v2422 = vsub.f32 %v1285, %v2243
      %v2423 = vsub.f32 %v1454, %v2243
      %v2424 = vsub.f32 %v1287, %v2248
      %v2425 = vsub.f32 %v1456, %v2248
      %v2426 = vsub.f32 %v1290, %v2253
      %v2427 = vsub.f32 %v1459, %v2253
      %v2428 = vsub.f32 %v1292, %v2258
      %v2429 = vsub.f32 %v1461, %v2258
      %v2430 = vsub.f32 %v1295, %v2263
      %v2431 = vsub.f32 %v1464, %v2263
      %v2432 = vsub.f32 %v1297, %v2268
      %v2433 = vsub.f32 %v1466, %v2268
      %v2434 = vsub.f32 %v1300, %v2273
      %v2435 = vsub.f32 %v1469, %v2273
      %v2436 = vsub.f32 %v1302, %v2278
      %v2437 = vsub.f32 %v1471, %v2278
      %v2438 = vsub.f32 %v1305, %v2283
      %v2439 = vsub.f32 %v1474, %v2283
      %v2440 = vsub.f32 %v1307, %v2288
      %v2441 = vsub.f32 %v1476, %v2288
      %v2442 = vsub.f32 %v1310, %v2293
      %v2443 = vsub.f32 %v1479, %v2293
      %v2444 = vsub.f32 %v1312, %v2298
      %v2445 = vsub.f32 %v1481, %v2298
      %v2446 = vsub.f32 %v1315, %v2303
      %v2447 = vsub.f32 %v1484, %v2303
      %v2448 = vsub.f32 %v1317, %v2308
      %v2449 = vsub.f32 %v1486, %v2308
      %v2450 = vsub.f32 %v1320, %v2313
      %v2451 = vsub.f32 %v1489, %v2313
      %v2452 = vsub.f32 %v1322, %v2318
      %v2453 = vsub.f32 %v1491, %v2318
      %v2454 = vsub.f32 %v1325, %v2323
      %v2455 = vsub.f32 %v1494, %v2323
      %v2456 = vsub.f32 %v1327, %v2328
      %v2457 = vsub.f32 %v1496, %v2328
      %v2458 = vmul.f32 %v2330, 1.442695
      %v2459 = vpow.pop %v2458
      %v2460 = vmul.f32 %v2331, 1.442695
      %v2461 = vpow.pop %v2460
      %v2462 = vmul.f32 %v2332, 1.442695
      %v2463 = vpow.pop %v2462
      %v2464 = vmul.f32 %v2333, 1.442695
      %v2465 = vpow.pop %v2464
      %v2466 = vmul.f32 %v2334, 1.442695
      %v2467 = vpow.pop %v2466
      %v2468 = vmul.f32 %v2335, 1.442695
      %v2469 = vpow.pop %v2468
      %v2470 = vmul.f32 %v2336, 1.442695
      %v2471 = vpow.pop %v2470
      %v2472 = vmul.f32 %v2337, 1.442695
      %v2473 = vpow.pop %v2472
      %v2474 = vmul.f32 %v2338, 1.442695
      %v2475 = vpow.pop %v2474
      %v2476 = vmul.f32 %v2339, 1.442695
      %v2477 = vpow.pop %v2476
      %v2478 = vmul.f32 %v2340, 1.442695
      %v2479 = vpow.pop %v2478
      %v2480 = vmul.f32 %v2341, 1.442695
      %v2481 = vpow.pop %v2480
      %v2482 = vmul.f32 %v2342, 1.442695
      %v2483 = vpow.pop %v2482
      %v2484 = vmul.f32 %v2343, 1.442695
      %v2485 = vpow.pop %v2484
      %v2486 = vmul.f32 %v2344, 1.442695
      %v2487 = vpow.pop %v2486
      %v2488 = vmul.f32 %v2345, 1.442695
      %v2489 = vpow.pop %v2488
      %v2490 = vmul.f32 %v2346, 1.442695
      %v2491 = vpow.pop %v2490
      %v2492 = vmul.f32 %v2347, 1.442695
      %v2493 = vpow.pop %v2492
      %v2494 = vmul.f32 %v2348, 1.442695
      %v2495 = vpow.pop %v2494
      %v2496 = vmul.f32 %v2349, 1.442695
      %v2497 = vpow.pop %v2496
      %v2498 = vmul.f32 %v2350, 1.442695
      %v2499 = vpow.pop %v2498
      %v2500 = vmul.f32 %v2351, 1.442695
      %v2501 = vpow.pop %v2500
      %v2502 = vmul.f32 %v2352, 1.442695
      %v2503 = vpow.pop %v2502
      %v2504 = vmul.f32 %v2353, 1.442695
      %v2505 = vpow.pop %v2504
      %v2506 = vmul.f32 %v2354, 1.442695
      %v2507 = vpow.pop %v2506
      %v2508 = vmul.f32 %v2355, 1.442695
      %v2509 = vpow.pop %v2508
      %v2510 = vmul.f32 %v2356, 1.442695
      %v2511 = vpow.pop %v2510
      %v2512 = vmul.f32 %v2357, 1.442695
      %v2513 = vpow.pop %v2512
      %v2514 = vmul.f32 %v2358, 1.442695
      %v2515 = vpow.pop %v2514
      %v2516 = vmul.f32 %v2359, 1.442695
      %v2517 = vpow.pop %v2516
      %v2518 = vmul.f32 %v2360, 1.442695
      %v2519 = vpow.pop %v2518
      %v2520 = vmul.f32 %v2361, 1.442695
      %v2521 = vpow.pop %v2520
      %v2522 = vmul.f32 %v2362, 1.442695
      %v2523 = vpow.pop %v2522
      %v2524 = vmul.f32 %v2363, 1.442695
      %v2525 = vpow.pop %v2524
      %v2526 = vmul.f32 %v2364, 1.442695
      %v2527 = vpow.pop %v2526
      %v2528 = vmul.f32 %v2365, 1.442695
      %v2529 = vpow.pop %v2528
      %v2530 = vmul.f32 %v2366, 1.442695
      %v2531 = vpow.pop %v2530
      %v2532 = vmul.f32 %v2367, 1.442695
      %v2533 = vpow.pop %v2532
      %v2534 = vmul.f32 %v2368, 1.442695
      %v2535 = vpow.pop %v2534
      %v2536 = vmul.f32 %v2369, 1.442695
      %v2537 = vpow.pop %v2536
      %v2538 = vmul.f32 %v2370, 1.442695
      %v2539 = vpow.pop %v2538
      %v2540 = vmul.f32 %v2371, 1.442695
      %v2541 = vpow.pop %v2540
      %v2542 = vmul.f32 %v2372, 1.442695
      %v2543 = vpow.pop %v2542
      %v2544 = vmul.f32 %v2373, 1.442695
      %v2545 = vpow.pop %v2544
      %v2546 = vmul.f32 %v2374, 1.442695
      %v2547 = vpow.pop %v2546
      %v2548 = vmul.f32 %v2375, 1.442695
      %v2549 = vpow.pop %v2548
      %v2550 = vmul.f32 %v2376, 1.442695
      %v2551 = vpow.pop %v2550
      %v2552 = vmul.f32 %v2377, 1.442695
      %v2553 = vpow.pop %v2552
      %v2554 = vmul.f32 %v2378, 1.442695
      %v2555 = vpow.pop %v2554
      %v2556 = vmul.f32 %v2379, 1.442695
      %v2557 = vpow.pop %v2556
      %v2558 = vmul.f32 %v2380, 1.442695
      %v2559 = vpow.pop %v2558
      %v2560 = vmul.f32 %v2381, 1.442695
      %v2561 = vpow.pop %v2560
      %v2562 = vmul.f32 %v2382, 1.442695
      %v2563 = vpow.pop %v2562
      %v2564 = vmul.f32 %v2383, 1.442695
      %v2565 = vpow.pop %v2564
      %v2566 = vmul.f32 %v2384, 1.442695
      %v2567 = vpow.pop %v2566
      %v2568 = vmul.f32 %v2385, 1.442695
      %v2569 = vpow.pop %v2568
      %v2570 = vmul.f32 %v2386, 1.442695
      %v2571 = vpow.pop %v2570
      %v2572 = vmul.f32 %v2387, 1.442695
      %v2573 = vpow.pop %v2572
      %v2574 = vmul.f32 %v2388, 1.442695
      %v2575 = vpow.pop %v2574
      %v2576 = vmul.f32 %v2389, 1.442695
      %v2577 = vpow.pop %v2576
      %v2578 = vmul.f32 %v2390, 1.442695
      %v2579 = vpow.pop %v2578
      %v2580 = vmul.f32 %v2391, 1.442695
      %v2581 = vpow.pop %v2580
      %v2582 = vmul.f32 %v2392, 1.442695
      %v2583 = vpow.pop %v2582
      %v2584 = vmul.f32 %v2393, 1.442695
      %v2585 = vpow.pop %v2584
      %v2586 = vmul.f32 %v2394, 1.442695
      %v2587 = vpow.pop %v2586
      %v2588 = vmul.f32 %v2395, 1.442695
      %v2589 = vpow.pop %v2588
      %v2590 = vmul.f32 %v2396, 1.442695
      %v2591 = vpow.pop %v2590
      %v2592 = vmul.f32 %v2397, 1.442695
      %v2593 = vpow.pop %v2592
      %v2594 = vmul.f32 %v2398, 1.442695
      %v2595 = vpow.pop %v2594
      %v2596 = vmul.f32 %v2399, 1.442695
      %v2597 = vpow.pop %v2596
      %v2598 = vmul.f32 %v2400, 1.442695
      %v2599 = vpow.pop %v2598
      %v2600 = vmul.f32 %v2401, 1.442695
      %v2601 = vpow.pop %v2600
      %v2602 = vmul.f32 %v2402, 1.442695
      %v2603 = vpow.pop %v2602
      %v2604 = vmul.f32 %v2403, 1.442695
      %v2605 = vpow.pop %v2604
      %v2606 = vmul.f32 %v2404, 1.442695
      %v2607 = vpow.pop %v2606
      %v2608 = vmul.f32 %v2405, 1.442695
      %v2609 = vpow.pop %v2608
      %v2610 = vmul.f32 %v2406, 1.442695
      %v2611 = vpow.pop %v2610
      %v2612 = vmul.f32 %v2407, 1.442695
      %v2613 = vpow.pop %v2612
      %v2614 = vmul.f32 %v2408, 1.442695
      %v2615 = vpow.pop %v2614
      %v2616 = vmul.f32 %v2409, 1.442695
      %v2617 = vpow.pop %v2616
      %v2618 = vmul.f32 %v2410, 1.442695
      %v2619 = vpow.pop %v2618
      %v2620 = vmul.f32 %v2411, 1.442695
      %v2621 = vpow.pop %v2620
      %v2622 = vmul.f32 %v2412, 1.442695
      %v2623 = vpow.pop %v2622
      %v2624 = vmul.f32 %v2413, 1.442695
      %v2625 = vpow.pop %v2624
      %v2626 = vmul.f32 %v2414, 1.442695
      %v2627 = vpow.pop %v2626
      %v2628 = vmul.f32 %v2415, 1.442695
      %v2629 = vpow.pop %v2628
      %v2630 = vmul.f32 %v2416, 1.442695
      %v2631 = vpow.pop %v2630
      %v2632 = vmul.f32 %v2417, 1.442695
      %v2633 = vpow.pop %v2632
      %v2634 = vmul.f32 %v2418, 1.442695
      %v2635 = vpow.pop %v2634
      %v2636 = vmul.f32 %v2419, 1.442695
      %v2637 = vpow.pop %v2636
      %v2638 = vmul.f32 %v2420, 1.442695
      %v2639 = vpow.pop %v2638
      %v2640 = vmul.f32 %v2421, 1.442695
      %v2641 = vpow.pop %v2640
      %v2642 = vmul.f32 %v2422, 1.442695
      %v2643 = vpow.pop %v2642
      %v2644 = vmul.f32 %v2423, 1.442695
      %v2645 = vpow.pop %v2644
      %v2646 = vmul.f32 %v2424, 1.442695
      %v2647 = vpow.pop %v2646
      %v2648 = vmul.f32 %v2425, 1.442695
      %v2649 = vpow.pop %v2648
      %v2650 = vmul.f32 %v2426, 1.442695
      %v2651 = vpow.pop %v2650
      %v2652 = vmul.f32 %v2427, 1.442695
      %v2653 = vpow.pop %v2652
      %v2654 = vmul.f32 %v2428, 1.442695
      %v2655 = vpow.pop %v2654
      %v2656 = vmul.f32 %v2429, 1.442695
      %v2657 = vpow.pop %v2656
      %v2658 = vmul.f32 %v2430, 1.442695
      %v2659 = vpow.pop %v2658
      %v2660 = vmul.f32 %v2431, 1.442695
      %v2661 = vpow.pop %v2660
      %v2662 = vmul.f32 %v2432, 1.442695
      %v2663 = vpow.pop %v2662
      %v2664 = vmul.f32 %v2433, 1.442695
      %v2665 = vpow.pop %v2664
      %v2666 = vmul.f32 %v2434, 1.442695
      %v2667 = vpow.pop %v2666
      %v2668 = vmul.f32 %v2435, 1.442695
      %v2669 = vpow.pop %v2668
      %v2670 = vmul.f32 %v2436, 1.442695
      %v2671 = vpow.pop %v2670
      %v2672 = vmul.f32 %v2437, 1.442695
      %v2673 = vpow.pop %v2672
      %v2674 = vmul.f32 %v2438, 1.442695
      %v2675 = vpow.pop %v2674
      %v2676 = vmul.f32 %v2439, 1.442695
      %v2677 = vpow.pop %v2676
      %v2678 = vmul.f32 %v2440, 1.442695
      %v2679 = vpow.pop %v2678
      %v2680 = vmul.f32 %v2441, 1.442695
      %v2681 = vpow.pop %v2680
      %v2682 = vmul.f32 %v2442, 1.442695
      %v2683 = vpow.pop %v2682
      %v2684 = vmul.f32 %v2443, 1.442695
      %v2685 = vpow.pop %v2684
      %v2686 = vmul.f32 %v2444, 1.442695
      %v2687 = vpow.pop %v2686
      %v2688 = vmul.f32 %v2445, 1.442695
      %v2689 = vpow.pop %v2688
      %v2690 = vmul.f32 %v2446, 1.442695
      %v2691 = vpow.pop %v2690
      %v2692 = vmul.f32 %v2447, 1.442695
      %v2693 = vpow.pop %v2692
      %v2694 = vmul.f32 %v2448, 1.442695
      %v2695 = vpow.pop %v2694
      %v2696 = vmul.f32 %v2449, 1.442695
      %v2697 = vpow.pop %v2696
      %v2698 = vmul.f32 %v2450, 1.442695
      %v2699 = vpow.pop %v2698
      %v2700 = vmul.f32 %v2451, 1.442695
      %v2701 = vpow.pop %v2700
      %v2702 = vmul.f32 %v2452, 1.442695
      %v2703 = vpow.pop %v2702
      %v2704 = vmul.f32 %v2453, 1.442695
      %v2705 = vpow.pop %v2704
      %v2706 = vmul.f32 %v2454, 1.442695
      %v2707 = vpow.pop %v2706
      %v2708 = vmul.f32 %v2455, 1.442695
      %v2709 = vpow.pop %v2708
      %v2710 = vmul.f32 %v2456, 1.442695
      %v2711 = vpow.pop %v2710
      %v2712 = vmul.f32 %v2457, 1.442695
      %v2713 = vpow.pop %v2712
      %v2714 = vld [vmem:[#allocation3] sm:$0xff]
      %v2715 = vld [vmem:[#allocation3 + $0x8] sm:$0xff]
      %v2716 = vld [vmem:[#allocation3 + $0x10] sm:$0xff]
      %v2717 = vld [vmem:[#allocation3 + $0x18] sm:$0xff]
      %v2718 = vld [vmem:[#allocation3 + $0x20] sm:$0xff]
      %v2719 = vld [vmem:[#allocation3 + $0x28] sm:$0xff]
      %v2720 = vld [vmem:[#allocation3 + $0x30] sm:$0xff]
      %v2721 = vld [vmem:[#allocation3 + $0x38] sm:$0xff]
      %v2722 = vld [vmem:[#allocation3 + $0x40] sm:$0xff]
      %v2723 = vld [vmem:[#allocation3 + $0x48] sm:$0xff]
      %v2724 = vld [vmem:[#allocation3 + $0x50] sm:$0xff]
      %v2725 = vld [vmem:[#allocation3 + $0x58] sm:$0xff]
      %v2726 = vld [vmem:[#allocation3 + $0x60] sm:$0xff]
      %v2727 = vld [vmem:[#allocation3 + $0x68] sm:$0xff]
      %v2728 = vld [vmem:[#allocation3 + $0x70] sm:$0xff]
      %v2729 = vld [vmem:[#allocation3 + $0x78] sm:$0xff]
      %v2730 = vld [vmem:[#allocation3 + $0x80] sm:$0xff]
      %v2731 = vld [vmem:[#allocation3 + $0x88] sm:$0xff]
      %v2732 = vld [vmem:[#allocation3 + $0x90] sm:$0xff]
      %v2733 = vld [vmem:[#allocation3 + $0x98] sm:$0xff]
      %v2734 = vld [vmem:[#allocation3 + $0xa0] sm:$0xff]
      %v2735 = vld [vmem:[#allocation3 + $0xa8] sm:$0xff]
      %v2736 = vld [vmem:[#allocation3 + $0xb0] sm:$0xff]
      %v2737 = vld [vmem:[#allocation3 + $0xb8] sm:$0xff]
      %v2738 = vld [vmem:[#allocation3 + $0xc0] sm:$0xff]
      %v2739 = vld [vmem:[#allocation3 + $0xc8] sm:$0xff]
      %v2740 = vld [vmem:[#allocation3 + $0xd0] sm:$0xff]
      %v2741 = vld [vmem:[#allocation3 + $0xd8] sm:$0xff]
      %v2742 = vld [vmem:[#allocation3 + $0xe0] sm:$0xff]
      %v2743 = vld [vmem:[#allocation3 + $0xe8] sm:$0xff]
      %v2744 = vld [vmem:[#allocation3 + $0xf0] sm:$0xff]
      %v2745 = vld [vmem:[#allocation3 + $0xf8] sm:$0xff]
      %v2746 = vld [vmem:[#allocation3 + $0x100] sm:$0xff]
      %v2747 = vld [vmem:[#allocation3 + $0x108] sm:$0xff]
      %v2748 = vld [vmem:[#allocation3 + $0x110] sm:$0xff]
      %v2749 = vld [vmem:[#allocation3 + $0x118] sm:$0xff]
      %v2750 = vld [vmem:[#allocation3 + $0x120] sm:$0xff]
      %v2751 = vld [vmem:[#allocation3 + $0x128] sm:$0xff]
      %v2752 = vld [vmem:[#allocation3 + $0x130] sm:$0xff]
      %v2753 = vld [vmem:[#allocation3 + $0x138] sm:$0xff]
      %v2754 = vld [vmem:[#allocation3 + $0x140] sm:$0xff]
      %v2755 = vld [vmem:[#allocation3 + $0x148] sm:$0xff]
      %v2756 = vld [vmem:[#allocation3 + $0x150] sm:$0xff]
      %v2757 = vld [vmem:[#allocation3 + $0x158] sm:$0xff]
      %v2758 = vld [vmem:[#allocation3 + $0x160] sm:$0xff]
      %v2759 = vld [vmem:[#allocation3 + $0x168] sm:$0xff]
      %v2760 = vld [vmem:[#allocation3 + $0x170] sm:$0xff]
      %v2761 = vld [vmem:[#allocation3 + $0x178] sm:$0xff]
      %v2762 = vld [vmem:[#allocation3 + $0x180] sm:$0xff]
      %v2763 = vld [vmem:[#allocation3 + $0x188] sm:$0xff]
      %v2764 = vld [vmem:[#allocation3 + $0x190] sm:$0xff]
      %v2765 = vld [vmem:[#allocation3 + $0x198] sm:$0xff]
      %v2766 = vld [vmem:[#allocation3 + $0x1a0] sm:$0xff]
      %v2767 = vld [vmem:[#allocation3 + $0x1a8] sm:$0xff]
      %v2768 = vld [vmem:[#allocation3 + $0x1b0] sm:$0xff]
      %v2769 = vld [vmem:[#allocation3 + $0x1b8] sm:$0xff]
      %v2770 = vld [vmem:[#allocation3 + $0x1c0] sm:$0xff]
      %v2771 = vld [vmem:[#allocation3 + $0x1c8] sm:$0xff]
      %v2772 = vld [vmem:[#allocation3 + $0x1d0] sm:$0xff]
      %v2773 = vld [vmem:[#allocation3 + $0x1d8] sm:$0xff]
      %v2774 = vld [vmem:[#allocation3 + $0x1e0] sm:$0xff]
      %v2775 = vld [vmem:[#allocation3 + $0x1e8] sm:$0xff]
      %v2776 = vld [vmem:[#allocation3 + $0x1f0] sm:$0xff]
      %v2777 = vld [vmem:[#allocation3 + $0x1f8] sm:$0xff]
      %v2778 = vmul.f32 %v1883, %v2714
      %v2779 = vmul.f32 %v1885, %v2715
      %v2780 = vmul.f32 %v1887, %v2716
      %v2781 = vmul.f32 %v1889, %v2717
      %v2782 = vmul.f32 %v1891, %v2718
      %v2783 = vmul.f32 %v1893, %v2719
      %v2784 = vmul.f32 %v1895, %v2720
      %v2785 = vmul.f32 %v1897, %v2721
      %v2786 = vmul.f32 %v1899, %v2722
      %v2787 = vmul.f32 %v1901, %v2723
      %v2788 = vmul.f32 %v1903, %v2724
      %v2789 = vmul.f32 %v1905, %v2725
      %v2790 = vmul.f32 %v1907, %v2726
      %v2791 = vmul.f32 %v1909, %v2727
      %v2792 = vmul.f32 %v1911, %v2728
      %v2793 = vmul.f32 %v1913, %v2729
      %v2794 = vmul.f32 %v1915, %v2730
      %v2795 = vmul.f32 %v1917, %v2731
      %v2796 = vmul.f32 %v1919, %v2732
      %v2797 = vmul.f32 %v1921, %v2733
      %v2798 = vmul.f32 %v1923, %v2734
      %v2799 = vmul.f32 %v1925, %v2735
      %v2800 = vmul.f32 %v1927, %v2736
      %v2801 = vmul.f32 %v1929, %v2737
      %v2802 = vmul.f32 %v1931, %v2738
      %v2803 = vmul.f32 %v1933, %v2739
      %v2804 = vmul.f32 %v1935, %v2740
      %v2805 = vmul.f32 %v1937, %v2741
      %v2806 = vmul.f32 %v1939, %v2742
      %v2807 = vmul.f32 %v1941, %v2743
      %v2808 = vmul.f32 %v1943, %v2744
      %v2809 = vmul.f32 %v1945, %v2745
      %v2810 = vmul.f32 %v1947, %v2746
      %v2811 = vmul.f32 %v1949, %v2747
      %v2812 = vmul.f32 %v1951, %v2748
      %v2813 = vmul.f32 %v1953, %v2749
      %v2814 = vmul.f32 %v1955, %v2750
      %v2815 = vmul.f32 %v1957, %v2751
      %v2816 = vmul.f32 %v1959, %v2752
      %v2817 = vmul.f32 %v1961, %v2753
      %v2818 = vmul.f32 %v1963, %v2754
      %v2819 = vmul.f32 %v1965, %v2755
      %v2820 = vmul.f32 %v1967, %v2756
      %v2821 = vmul.f32 %v1969, %v2757
      %v2822 = vmul.f32 %v1971, %v2758
      %v2823 = vmul.f32 %v1973, %v2759
      %v2824 = vmul.f32 %v1975, %v2760
      %v2825 = vmul.f32 %v1977, %v2761
      %v2826 = vmul.f32 %v1979, %v2762
      %v2827 = vmul.f32 %v1981, %v2763
      %v2828 = vmul.f32 %v1983, %v2764
      %v2829 = vmul.f32 %v1985, %v2765
      %v2830 = vmul.f32 %v1987, %v2766
      %v2831 = vmul.f32 %v1989, %v2767
      %v2832 = vmul.f32 %v1991, %v2768
      %v2833 = vmul.f32 %v1993, %v2769
      %v2834 = vmul.f32 %v1995, %v2770
      %v2835 = vmul.f32 %v1997, %v2771
      %v2836 = vmul.f32 %v1999, %v2772
      %v2837 = vmul.f32 %v2001, %v2773
      %v2838 = vmul.f32 %v2003, %v2774
      %v2839 = vmul.f32 %v2005, %v2775
      %v2840 = vmul.f32 %v2007, %v2776
      %v2841 = vmul.f32 %v2009, %v2777
      %v2842 = vadd.f32 %v2459, %v2461
      %2843 = vadd.xlane.f32.xlu0 %v2842
      %v2844 = vpop.xlane.xlu0 %2843
      %v2845 = vadd.f32 %v2463, %v2465
      %2846 = vadd.xlane.f32.xlu0 %v2845
      %v2847 = vpop.xlane.xlu0 %2846
      %v2848 = vadd.f32 %v2467, %v2469
      %2849 = vadd.xlane.f32.xlu0 %v2848
      %v2850 = vpop.xlane.xlu0 %2849
      %v2851 = vadd.f32 %v2471, %v2473
      %2852 = vadd.xlane.f32.xlu0 %v2851
      %v2853 = vpop.xlane.xlu0 %2852
      %v2854 = vadd.f32 %v2475, %v2477
      %2855 = vadd.xlane.f32.xlu0 %v2854
      %v2856 = vpop.xlane.xlu0 %2855
      %v2857 = vadd.f32 %v2479, %v2481
      %2858 = vadd.xlane.f32.xlu0 %v2857
      %v2859 = vpop.xlane.xlu0 %2858
      %v2860 = vadd.f32 %v2483, %v2485
      %2861 = vadd.xlane.f32.xlu0 %v2860
      %v2862 = vpop.xlane.xlu0 %2861
      %v2863 = vadd.f32 %v2487, %v2489
      %2864 = vadd.xlane.f32.xlu0 %v2863
      %v2865 = vpop.xlane.xlu0 %2864
      %v2866 = vadd.f32 %v2491, %v2493
      %2867 = vadd.xlane.f32.xlu0 %v2866
      %v2868 = vpop.xlane.xlu0 %2867
      %v2869 = vadd.f32 %v2495, %v2497
      %2870 = vadd.xlane.f32.xlu0 %v2869
      %v2871 = vpop.xlane.xlu0 %2870
      %v2872 = vadd.f32 %v2499, %v2501
      %2873 = vadd.xlane.f32.xlu0 %v2872
      %v2874 = vpop.xlane.xlu0 %2873
      %v2875 = vadd.f32 %v2503, %v2505
      %2876 = vadd.xlane.f32.xlu0 %v2875
      %v2877 = vpop.xlane.xlu0 %2876
      %v2878 = vadd.f32 %v2507, %v2509
      %2879 = vadd.xlane.f32.xlu0 %v2878
      %v2880 = vpop.xlane.xlu0 %2879
      %v2881 = vadd.f32 %v2511, %v2513
      %2882 = vadd.xlane.f32.xlu0 %v2881
      %v2883 = vpop.xlane.xlu0 %2882
      %v2884 = vadd.f32 %v2515, %v2517
      %2885 = vadd.xlane.f32.xlu0 %v2884
      %v2886 = vpop.xlane.xlu0 %2885
      %v2887 = vadd.f32 %v2519, %v2521
      %2888 = vadd.xlane.f32.xlu0 %v2887
      %v2889 = vpop.xlane.xlu0 %2888
      %v2890 = vadd.f32 %v2523, %v2525
      %2891 = vadd.xlane.f32.xlu0 %v2890
      %v2892 = vpop.xlane.xlu0 %2891
      %v2893 = vadd.f32 %v2527, %v2529
      %2894 = vadd.xlane.f32.xlu0 %v2893
      %v2895 = vpop.xlane.xlu0 %2894
      %v2896 = vadd.f32 %v2531, %v2533
      %2897 = vadd.xlane.f32.xlu0 %v2896
      %v2898 = vpop.xlane.xlu0 %2897
      %v2899 = vadd.f32 %v2535, %v2537
      %2900 = vadd.xlane.f32.xlu0 %v2899
      %v2901 = vpop.xlane.xlu0 %2900
      %v2902 = vadd.f32 %v2539, %v2541
      %2903 = vadd.xlane.f32.xlu0 %v2902
      %v2904 = vpop.xlane.xlu0 %2903
      %v2905 = vadd.f32 %v2543, %v2545
      %2906 = vadd.xlane.f32.xlu0 %v2905
      %v2907 = vpop.xlane.xlu0 %2906
      %v2908 = vadd.f32 %v2547, %v2549
      %2909 = vadd.xlane.f32.xlu0 %v2908
      %v2910 = vpop.xlane.xlu0 %2909
      %v2911 = vadd.f32 %v2551, %v2553
      %2912 = vadd.xlane.f32.xlu0 %v2911
      %v2913 = vpop.xlane.xlu0 %2912
      %v2914 = vadd.f32 %v2555, %v2557
      %2915 = vadd.xlane.f32.xlu0 %v2914
      %v2916 = vpop.xlane.xlu0 %2915
      %v2917 = vadd.f32 %v2559, %v2561
      %2918 = vadd.xlane.f32.xlu0 %v2917
      %v2919 = vpop.xlane.xlu0 %2918
      %v2920 = vadd.f32 %v2563, %v2565
      %2921 = vadd.xlane.f32.xlu0 %v2920
      %v2922 = vpop.xlane.xlu0 %2921
      %v2923 = vadd.f32 %v2567, %v2569
      %2924 = vadd.xlane.f32.xlu0 %v2923
      %v2925 = vpop.xlane.xlu0 %2924
      %v2926 = vadd.f32 %v2571, %v2573
      %2927 = vadd.xlane.f32.xlu0 %v2926
      %v2928 = vpop.xlane.xlu0 %2927
      %v2929 = vadd.f32 %v2575, %v2577
      %2930 = vadd.xlane.f32.xlu0 %v2929
      %v2931 = vpop.xlane.xlu0 %2930
      %v2932 = vadd.f32 %v2579, %v2581
      %2933 = vadd.xlane.f32.xlu0 %v2932
      %v2934 = vpop.xlane.xlu0 %2933
      %v2935 = vadd.f32 %v2583, %v2585
      %2936 = vadd.xlane.f32.xlu0 %v2935
      %v2937 = vpop.xlane.xlu0 %2936
      %v2938 = vadd.f32 %v2587, %v2589
      %2939 = vadd.xlane.f32.xlu0 %v2938
      %v2940 = vpop.xlane.xlu0 %2939
      %v2941 = vadd.f32 %v2591, %v2593
      %2942 = vadd.xlane.f32.xlu0 %v2941
      %v2943 = vpop.xlane.xlu0 %2942
      %v2944 = vadd.f32 %v2595, %v2597
      %2945 = vadd.xlane.f32.xlu0 %v2944
      %v2946 = vpop.xlane.xlu0 %2945
      %v2947 = vadd.f32 %v2599, %v2601
      %2948 = vadd.xlane.f32.xlu0 %v2947
      %v2949 = vpop.xlane.xlu0 %2948
      %v2950 = vadd.f32 %v2603, %v2605
      %2951 = vadd.xlane.f32.xlu0 %v2950
      %v2952 = vpop.xlane.xlu0 %2951
      %v2953 = vadd.f32 %v2607, %v2609
      %2954 = vadd.xlane.f32.xlu0 %v2953
      %v2955 = vpop.xlane.xlu0 %2954
      %v2956 = vadd.f32 %v2611, %v2613
      %2957 = vadd.xlane.f32.xlu0 %v2956
      %v2958 = vpop.xlane.xlu0 %2957
      %v2959 = vadd.f32 %v2615, %v2617
      %2960 = vadd.xlane.f32.xlu0 %v2959
      %v2961 = vpop.xlane.xlu0 %2960
      %v2962 = vadd.f32 %v2619, %v2621
      %2963 = vadd.xlane.f32.xlu0 %v2962
      %v2964 = vpop.xlane.xlu0 %2963
      %v2965 = vadd.f32 %v2623, %v2625
      %2966 = vadd.xlane.f32.xlu0 %v2965
      %v2967 = vpop.xlane.xlu0 %2966
      %v2968 = vadd.f32 %v2627, %v2629
      %2969 = vadd.xlane.f32.xlu0 %v2968
      %v2970 = vpop.xlane.xlu0 %2969
      %v2971 = vadd.f32 %v2631, %v2633
      %2972 = vadd.xlane.f32.xlu0 %v2971
      %v2973 = vpop.xlane.xlu0 %2972
      %v2974 = vadd.f32 %v2635, %v2637
      %2975 = vadd.xlane.f32.xlu0 %v2974
      %v2976 = vpop.xlane.xlu0 %2975
      %v2977 = vadd.f32 %v2639, %v2641
      %2978 = vadd.xlane.f32.xlu0 %v2977
      %v2979 = vpop.xlane.xlu0 %2978
      %v2980 = vadd.f32 %v2643, %v2645
      %2981 = vadd.xlane.f32.xlu0 %v2980
      %v2982 = vpop.xlane.xlu0 %2981
      %v2983 = vadd.f32 %v2647, %v2649
      %2984 = vadd.xlane.f32.xlu0 %v2983
      %v2985 = vpop.xlane.xlu0 %2984
      %v2986 = vadd.f32 %v2651, %v2653
      %2987 = vadd.xlane.f32.xlu0 %v2986
      %v2988 = vpop.xlane.xlu0 %2987
      %v2989 = vadd.f32 %v2655, %v2657
      %2990 = vadd.xlane.f32.xlu0 %v2989
      %v2991 = vpop.xlane.xlu0 %2990
      %v2992 = vadd.f32 %v2659, %v2661
      %2993 = vadd.xlane.f32.xlu0 %v2992
      %v2994 = vpop.xlane.xlu0 %2993
      %v2995 = vadd.f32 %v2663, %v2665
      %2996 = vadd.xlane.f32.xlu0 %v2995
      %v2997 = vpop.xlane.xlu0 %2996
      %v2998 = vadd.f32 %v2667, %v2669
      %2999 = vadd.xlane.f32.xlu0 %v2998
      %v3000 = vpop.xlane.xlu0 %2999
      %v3001 = vadd.f32 %v2671, %v2673
      %3002 = vadd.xlane.f32.xlu0 %v3001
      %v3003 = vpop.xlane.xlu0 %3002
      %v3004 = vadd.f32 %v2675, %v2677
      %3005 = vadd.xlane.f32.xlu0 %v3004
      %v3006 = vpop.xlane.xlu0 %3005
      %v3007 = vadd.f32 %v2679, %v2681
      %3008 = vadd.xlane.f32.xlu0 %v3007
      %v3009 = vpop.xlane.xlu0 %3008
      %v3010 = vadd.f32 %v2683, %v2685
      %3011 = vadd.xlane.f32.xlu0 %v3010
      %v3012 = vpop.xlane.xlu0 %3011
      %v3013 = vadd.f32 %v2687, %v2689
      %3014 = vadd.xlane.f32.xlu0 %v3013
      %v3015 = vpop.xlane.xlu0 %3014
      %v3016 = vadd.f32 %v2691, %v2693
      %3017 = vadd.xlane.f32.xlu0 %v3016
      %v3018 = vpop.xlane.xlu0 %3017
      %v3019 = vadd.f32 %v2695, %v2697
      %3020 = vadd.xlane.f32.xlu0 %v3019
      %v3021 = vpop.xlane.xlu0 %3020
      %v3022 = vadd.f32 %v2699, %v2701
      %3023 = vadd.xlane.f32.xlu0 %v3022
      %v3024 = vpop.xlane.xlu0 %3023
      %v3025 = vadd.f32 %v2703, %v2705
      %3026 = vadd.xlane.f32.xlu0 %v3025
      %v3027 = vpop.xlane.xlu0 %3026
      %v3028 = vadd.f32 %v2707, %v2709
      %3029 = vadd.xlane.f32.xlu0 %v3028
      %v3030 = vpop.xlane.xlu0 %3029
      %v3031 = vadd.f32 %v2711, %v2713
      %3032 = vadd.xlane.f32.xlu0 %v3031
      %v3033 = vpop.xlane.xlu0 %3032
      %v3034 = vadd.f32 %v2778, %v2844
      %v3035 = vadd.f32 %v2779, %v2847
      %v3036 = vadd.f32 %v2780, %v2850
      %v3037 = vadd.f32 %v2781, %v2853
      %v3038 = vadd.f32 %v2782, %v2856
      %v3039 = vadd.f32 %v2783, %v2859
      %v3040 = vadd.f32 %v2784, %v2862
      %v3041 = vadd.f32 %v2785, %v2865
      %v3042 = vadd.f32 %v2786, %v2868
      %v3043 = vadd.f32 %v2787, %v2871
      %v3044 = vadd.f32 %v2788, %v2874
      %v3045 = vadd.f32 %v2789, %v2877
      %v3046 = vadd.f32 %v2790, %v2880
      %v3047 = vadd.f32 %v2791, %v2883
      %v3048 = vadd.f32 %v2792, %v2886
      %v3049 = vadd.f32 %v2793, %v2889
      %v3050 = vadd.f32 %v2794, %v2892
      %v3051 = vadd.f32 %v2795, %v2895
      %v3052 = vadd.f32 %v2796, %v2898
      %v3053 = vadd.f32 %v2797, %v2901
      %v3054 = vadd.f32 %v2798, %v2904
      %v3055 = vadd.f32 %v2799, %v2907
      %v3056 = vadd.f32 %v2800, %v2910
      %v3057 = vadd.f32 %v2801, %v2913
      %v3058 = vadd.f32 %v2802, %v2916
      %v3059 = vadd.f32 %v2803, %v2919
      %v3060 = vadd.f32 %v2804, %v2922
      %v3061 = vadd.f32 %v2805, %v2925
      %v3062 = vadd.f32 %v2806, %v2928
      %v3063 = vadd.f32 %v2807, %v2931
      %v3064 = vadd.f32 %v2808, %v2934
      %v3065 = vadd.f32 %v2809, %v2937
      %v3066 = vadd.f32 %v2810, %v2940
      %v3067 = vadd.f32 %v2811, %v2943
      %v3068 = vadd.f32 %v2812, %v2946
      %v3069 = vadd.f32 %v2813, %v2949
      %v3070 = vadd.f32 %v2814, %v2952
      %v3071 = vadd.f32 %v2815, %v2955
      %v3072 = vadd.f32 %v2816, %v2958
      %v3073 = vadd.f32 %v2817, %v2961
      %v3074 = vadd.f32 %v2818, %v2964
      %v3075 = vadd.f32 %v2819, %v2967
      %v3076 = vadd.f32 %v2820, %v2970
      %v3077 = vadd.f32 %v2821, %v2973
      %v3078 = vadd.f32 %v2822, %v2976
      %v3079 = vadd.f32 %v2823, %v2979
      %v3080 = vadd.f32 %v2824, %v2982
      %v3081 = vadd.f32 %v2825, %v2985
      %v3082 = vadd.f32 %v2826, %v2988
      %v3083 = vadd.f32 %v2827, %v2991
      %v3084 = vadd.f32 %v2828, %v2994
      %v3085 = vadd.f32 %v2829, %v2997
      %v3086 = vadd.f32 %v2830, %v3000
      %v3087 = vadd.f32 %v2831, %v3003
      %v3088 = vadd.f32 %v2832, %v3006
      %v3089 = vadd.f32 %v2833, %v3009
      %v3090 = vadd.f32 %v2834, %v3012
      %v3091 = vadd.f32 %v2835, %v3015
      %v3092 = vadd.f32 %v2836, %v3018
      %v3093 = vadd.f32 %v2837, %v3021
      %v3094 = vadd.f32 %v2838, %v3024
      %v3095 = vadd.f32 %v2839, %v3027
      %v3096 = vadd.f32 %v2840, %v3030
      %v3097 = vadd.f32 %v2841, %v3033
      %vm3098 = vcmask 7168
      %3099 = vst.msk [vmem:[#allocation3] sm:$0xff] %vm3098, %v3034
      %3100 = vst.msk [vmem:[#allocation3 + $0x8] sm:$0xff] %vm3098, %v3035
      %3101 = vst.msk [vmem:[#allocation3 + $0x10] sm:$0xff] %vm3098, %v3036
      %3102 = vst.msk [vmem:[#allocation3 + $0x18] sm:$0xff] %vm3098, %v3037
      %3103 = vst.msk [vmem:[#allocation3 + $0x20] sm:$0xff] %vm3098, %v3038
      %3104 = vst.msk [vmem:[#allocation3 + $0x28] sm:$0xff] %vm3098, %v3039
      %3105 = vst.msk [vmem:[#allocation3 + $0x30] sm:$0xff] %vm3098, %v3040
      %3106 = vst.msk [vmem:[#allocation3 + $0x38] sm:$0xff] %vm3098, %v3041
      %3107 = vst.msk [vmem:[#allocation3 + $0x40] sm:$0xff] %vm3098, %v3042
      %3108 = vst.msk [vmem:[#allocation3 + $0x48] sm:$0xff] %vm3098, %v3043
      %3109 = vst.msk [vmem:[#allocation3 + $0x50] sm:$0xff] %vm3098, %v3044
      %3110 = vst.msk [vmem:[#allocation3 + $0x58] sm:$0xff] %vm3098, %v3045
      %3111 = vst.msk [vmem:[#allocation3 + $0x60] sm:$0xff] %vm3098, %v3046
      %3112 = vst.msk [vmem:[#allocation3 + $0x68] sm:$0xff] %vm3098, %v3047
      %3113 = vst.msk [vmem:[#allocation3 + $0x70] sm:$0xff] %vm3098, %v3048
      %3114 = vst.msk [vmem:[#allocation3 + $0x78] sm:$0xff] %vm3098, %v3049
      %3115 = vst.msk [vmem:[#allocation3 + $0x80] sm:$0xff] %vm3098, %v3050
      %3116 = vst.msk [vmem:[#allocation3 + $0x88] sm:$0xff] %vm3098, %v3051
      %3117 = vst.msk [vmem:[#allocation3 + $0x90] sm:$0xff] %vm3098, %v3052
      %3118 = vst.msk [vmem:[#allocation3 + $0x98] sm:$0xff] %vm3098, %v3053
      %3119 = vst.msk [vmem:[#allocation3 + $0xa0] sm:$0xff] %vm3098, %v3054
      %3120 = vst.msk [vmem:[#allocation3 + $0xa8] sm:$0xff] %vm3098, %v3055
      %3121 = vst.msk [vmem:[#allocation3 + $0xb0] sm:$0xff] %vm3098, %v3056
      %3122 = vst.msk [vmem:[#allocation3 + $0xb8] sm:$0xff] %vm3098, %v3057
      %3123 = vst.msk [vmem:[#allocation3 + $0xc0] sm:$0xff] %vm3098, %v3058
      %3124 = vst.msk [vmem:[#allocation3 + $0xc8] sm:$0xff] %vm3098, %v3059
      %3125 = vst.msk [vmem:[#allocation3 + $0xd0] sm:$0xff] %vm3098, %v3060
      %3126 = vst.msk [vmem:[#allocation3 + $0xd8] sm:$0xff] %vm3098, %v3061
      %3127 = vst.msk [vmem:[#allocation3 + $0xe0] sm:$0xff] %vm3098, %v3062
      %3128 = vst.msk [vmem:[#allocation3 + $0xe8] sm:$0xff] %vm3098, %v3063
      %3129 = vst.msk [vmem:[#allocation3 + $0xf0] sm:$0xff] %vm3098, %v3064
      %3130 = vst.msk [vmem:[#allocation3 + $0xf8] sm:$0xff] %vm3098, %v3065
      %3131 = vst.msk [vmem:[#allocation3 + $0x100] sm:$0xff] %vm3098, %v3066
      %3132 = vst.msk [vmem:[#allocation3 + $0x108] sm:$0xff] %vm3098, %v3067
      %3133 = vst.msk [vmem:[#allocation3 + $0x110] sm:$0xff] %vm3098, %v3068
      %3134 = vst.msk [vmem:[#allocation3 + $0x118] sm:$0xff] %vm3098, %v3069
      %3135 = vst.msk [vmem:[#allocation3 + $0x120] sm:$0xff] %vm3098, %v3070
      %3136 = vst.msk [vmem:[#allocation3 + $0x128] sm:$0xff] %vm3098, %v3071
      %3137 = vst.msk [vmem:[#allocation3 + $0x130] sm:$0xff] %vm3098, %v3072
      %3138 = vst.msk [vmem:[#allocation3 + $0x138] sm:$0xff] %vm3098, %v3073
      %3139 = vst.msk [vmem:[#allocation3 + $0x140] sm:$0xff] %vm3098, %v3074
      %3140 = vst.msk [vmem:[#allocation3 + $0x148] sm:$0xff] %vm3098, %v3075
      %3141 = vst.msk [vmem:[#allocation3 + $0x150] sm:$0xff] %vm3098, %v3076
      %3142 = vst.msk [vmem:[#allocation3 + $0x158] sm:$0xff] %vm3098, %v3077
      %3143 = vst.msk [vmem:[#allocation3 + $0x160] sm:$0xff] %vm3098, %v3078
      %3144 = vst.msk [vmem:[#allocation3 + $0x168] sm:$0xff] %vm3098, %v3079
      %3145 = vst.msk [vmem:[#allocation3 + $0x170] sm:$0xff] %vm3098, %v3080
      %3146 = vst.msk [vmem:[#allocation3 + $0x178] sm:$0xff] %vm3098, %v3081
      %3147 = vst.msk [vmem:[#allocation3 + $0x180] sm:$0xff] %vm3098, %v3082
      %3148 = vst.msk [vmem:[#allocation3 + $0x188] sm:$0xff] %vm3098, %v3083
      %3149 = vst.msk [vmem:[#allocation3 + $0x190] sm:$0xff] %vm3098, %v3084
      %3150 = vst.msk [vmem:[#allocation3 + $0x198] sm:$0xff] %vm3098, %v3085
      %3151 = vst.msk [vmem:[#allocation3 + $0x1a0] sm:$0xff] %vm3098, %v3086
      %3152 = vst.msk [vmem:[#allocation3 + $0x1a8] sm:$0xff] %vm3098, %v3087
      %3153 = vst.msk [vmem:[#allocation3 + $0x1b0] sm:$0xff] %vm3098, %v3088
      %3154 = vst.msk [vmem:[#allocation3 + $0x1b8] sm:$0xff] %vm3098, %v3089
      %3155 = vst.msk [vmem:[#allocation3 + $0x1c0] sm:$0xff] %vm3098, %v3090
      %3156 = vst.msk [vmem:[#allocation3 + $0x1c8] sm:$0xff] %vm3098, %v3091
      %3157 = vst.msk [vmem:[#allocation3 + $0x1d0] sm:$0xff] %vm3098, %v3092
      %3158 = vst.msk [vmem:[#allocation3 + $0x1d8] sm:$0xff] %vm3098, %v3093
      %3159 = vst.msk [vmem:[#allocation3 + $0x1e0] sm:$0xff] %vm3098, %v3094
      %3160 = vst.msk [vmem:[#allocation3 + $0x1e8] sm:$0xff] %vm3098, %v3095
      %3161 = vst.msk [vmem:[#allocation3 + $0x1f0] sm:$0xff] %vm3098, %v3096
      %3162 = vst.msk [vmem:[#allocation3 + $0x1f8] sm:$0xff] %vm3098, %v3097
      %v3163 = vld [vmem:[#allocation4] sm:$0xff]
      %v3164 = vld [vmem:[#allocation4 + $0x8] sm:$0xff]
      %v3165 = vld [vmem:[#allocation4 + $0x10] sm:$0xff]
      %v3166 = vld [vmem:[#allocation4 + $0x18] sm:$0xff]
      %v3167 = vld [vmem:[#allocation4 + $0x20] sm:$0xff]
      %v3168 = vld [vmem:[#allocation4 + $0x28] sm:$0xff]
      %v3169 = vld [vmem:[#allocation4 + $0x30] sm:$0xff]
      %v3170 = vld [vmem:[#allocation4 + $0x38] sm:$0xff]
      %v3171 = vld [vmem:[#allocation4 + $0x40] sm:$0xff]
      %v3172 = vld [vmem:[#allocation4 + $0x48] sm:$0xff]
      %v3173 = vld [vmem:[#allocation4 + $0x50] sm:$0xff]
      %v3174 = vld [vmem:[#allocation4 + $0x58] sm:$0xff]
      %v3175 = vld [vmem:[#allocation4 + $0x60] sm:$0xff]
      %v3176 = vld [vmem:[#allocation4 + $0x68] sm:$0xff]
      %v3177 = vld [vmem:[#allocation4 + $0x70] sm:$0xff]
      %v3178 = vld [vmem:[#allocation4 + $0x78] sm:$0xff]
      %v3179 = vld [vmem:[#allocation4 + $0x80] sm:$0xff]
      %v3180 = vld [vmem:[#allocation4 + $0x88] sm:$0xff]
      %v3181 = vld [vmem:[#allocation4 + $0x90] sm:$0xff]
      %v3182 = vld [vmem:[#allocation4 + $0x98] sm:$0xff]
      %v3183 = vld [vmem:[#allocation4 + $0xa0] sm:$0xff]
      %v3184 = vld [vmem:[#allocation4 + $0xa8] sm:$0xff]
      %v3185 = vld [vmem:[#allocation4 + $0xb0] sm:$0xff]
      %v3186 = vld [vmem:[#allocation4 + $0xb8] sm:$0xff]
      %v3187 = vld [vmem:[#allocation4 + $0xc0] sm:$0xff]
      %v3188 = vld [vmem:[#allocation4 + $0xc8] sm:$0xff]
      %v3189 = vld [vmem:[#allocation4 + $0xd0] sm:$0xff]
      %v3190 = vld [vmem:[#allocation4 + $0xd8] sm:$0xff]
      %v3191 = vld [vmem:[#allocation4 + $0xe0] sm:$0xff]
      %v3192 = vld [vmem:[#allocation4 + $0xe8] sm:$0xff]
      %v3193 = vld [vmem:[#allocation4 + $0xf0] sm:$0xff]
      %v3194 = vld [vmem:[#allocation4 + $0xf8] sm:$0xff]
      %v3195 = vld [vmem:[#allocation4 + $0x100] sm:$0xff]
      %v3196 = vld [vmem:[#allocation4 + $0x108] sm:$0xff]
      %v3197 = vld [vmem:[#allocation4 + $0x110] sm:$0xff]
      %v3198 = vld [vmem:[#allocation4 + $0x118] sm:$0xff]
      %v3199 = vld [vmem:[#allocation4 + $0x120] sm:$0xff]
      %v3200 = vld [vmem:[#allocation4 + $0x128] sm:$0xff]
      %v3201 = vld [vmem:[#allocation4 + $0x130] sm:$0xff]
      %v3202 = vld [vmem:[#allocation4 + $0x138] sm:$0xff]
      %v3203 = vld [vmem:[#allocation4 + $0x140] sm:$0xff]
      %v3204 = vld [vmem:[#allocation4 + $0x148] sm:$0xff]
      %v3205 = vld [vmem:[#allocation4 + $0x150] sm:$0xff]
      %v3206 = vld [vmem:[#allocation4 + $0x158] sm:$0xff]
      %v3207 = vld [vmem:[#allocation4 + $0x160] sm:$0xff]
      %v3208 = vld [vmem:[#allocation4 + $0x168] sm:$0xff]
      %v3209 = vld [vmem:[#allocation4 + $0x170] sm:$0xff]
      %v3210 = vld [vmem:[#allocation4 + $0x178] sm:$0xff]
      %v3211 = vld [vmem:[#allocation4 + $0x180] sm:$0xff]
      %v3212 = vld [vmem:[#allocation4 + $0x188] sm:$0xff]
      %v3213 = vld [vmem:[#allocation4 + $0x190] sm:$0xff]
      %v3214 = vld [vmem:[#allocation4 + $0x198] sm:$0xff]
      %v3215 = vld [vmem:[#allocation4 + $0x1a0] sm:$0xff]
      %v3216 = vld [vmem:[#allocation4 + $0x1a8] sm:$0xff]
      %v3217 = vld [vmem:[#allocation4 + $0x1b0] sm:$0xff]
      %v3218 = vld [vmem:[#allocation4 + $0x1b8] sm:$0xff]
      %v3219 = vld [vmem:[#allocation4 + $0x1c0] sm:$0xff]
      %v3220 = vld [vmem:[#allocation4 + $0x1c8] sm:$0xff]
      %v3221 = vld [vmem:[#allocation4 + $0x1d0] sm:$0xff]
      %v3222 = vld [vmem:[#allocation4 + $0x1d8] sm:$0xff]
      %v3223 = vld [vmem:[#allocation4 + $0x1e0] sm:$0xff]
      %v3224 = vld [vmem:[#allocation4 + $0x1e8] sm:$0xff]
      %v3225 = vld [vmem:[#allocation4 + $0x1f0] sm:$0xff]
      %v3226 = vld [vmem:[#allocation4 + $0x1f8] sm:$0xff]
      %3228 = vset.pattern.permute.xlu0 0
      %3229 = vperm.xlu0 %3228, %v1883
      %v3230 = vpop.permute.xlu0 %3229
      %3233 = vset.pattern.permute.xlu0 0
      %3234 = vperm.xlu0 %3233, %v1885
      %v3235 = vpop.permute.xlu0 %3234
      %3238 = vset.pattern.permute.xlu0 0
      %3239 = vperm.xlu0 %3238, %v1887
      %v3240 = vpop.permute.xlu0 %3239
      %3243 = vset.pattern.permute.xlu0 0
      %3244 = vperm.xlu0 %3243, %v1889
      %v3245 = vpop.permute.xlu0 %3244
      %3248 = vset.pattern.permute.xlu0 0
      %3249 = vperm.xlu0 %3248, %v1891
      %v3250 = vpop.permute.xlu0 %3249
      %3253 = vset.pattern.permute.xlu0 0
      %3254 = vperm.xlu0 %3253, %v1893
      %v3255 = vpop.permute.xlu0 %3254
      %3258 = vset.pattern.permute.xlu0 0
      %3259 = vperm.xlu0 %3258, %v1895
      %v3260 = vpop.permute.xlu0 %3259
      %3263 = vset.pattern.permute.xlu0 0
      %3264 = vperm.xlu0 %3263, %v1897
      %v3265 = vpop.permute.xlu0 %3264
      %3268 = vset.pattern.permute.xlu0 0
      %3269 = vperm.xlu0 %3268, %v1899
      %v3270 = vpop.permute.xlu0 %3269
      %3273 = vset.pattern.permute.xlu0 0
      %3274 = vperm.xlu0 %3273, %v1901
      %v3275 = vpop.permute.xlu0 %3274
      %3278 = vset.pattern.permute.xlu0 0
      %3279 = vperm.xlu0 %3278, %v1903
      %v3280 = vpop.permute.xlu0 %3279
      %3283 = vset.pattern.permute.xlu0 0
      %3284 = vperm.xlu0 %3283, %v1905
      %v3285 = vpop.permute.xlu0 %3284
      %3288 = vset.pattern.permute.xlu0 0
      %3289 = vperm.xlu0 %3288, %v1907
      %v3290 = vpop.permute.xlu0 %3289
      %3293 = vset.pattern.permute.xlu0 0
      %3294 = vperm.xlu0 %3293, %v1909
      %v3295 = vpop.permute.xlu0 %3294
      %3298 = vset.pattern.permute.xlu0 0
      %3299 = vperm.xlu0 %3298, %v1911
      %v3300 = vpop.permute.xlu0 %3299
      %3303 = vset.pattern.permute.xlu0 0
      %3304 = vperm.xlu0 %3303, %v1913
      %v3305 = vpop.permute.xlu0 %3304
      %3308 = vset.pattern.permute.xlu0 0
      %3309 = vperm.xlu0 %3308, %v1915
      %v3310 = vpop.permute.xlu0 %3309
      %3313 = vset.pattern.permute.xlu0 0
      %3314 = vperm.xlu0 %3313, %v1917
      %v3315 = vpop.permute.xlu0 %3314
      %3318 = vset.pattern.permute.xlu0 0
      %3319 = vperm.xlu0 %3318, %v1919
      %v3320 = vpop.permute.xlu0 %3319
      %3323 = vset.pattern.permute.xlu0 0
      %3324 = vperm.xlu0 %3323, %v1921
      %v3325 = vpop.permute.xlu0 %3324
      %3328 = vset.pattern.permute.xlu0 0
      %3329 = vperm.xlu0 %3328, %v1923
      %v3330 = vpop.permute.xlu0 %3329
      %3333 = vset.pattern.permute.xlu0 0
      %3334 = vperm.xlu0 %3333, %v1925
      %v3335 = vpop.permute.xlu0 %3334
      %3338 = vset.pattern.permute.xlu0 0
      %3339 = vperm.xlu0 %3338, %v1927
      %v3340 = vpop.permute.xlu0 %3339
      %3343 = vset.pattern.permute.xlu0 0
      %3344 = vperm.xlu0 %3343, %v1929
      %v3345 = vpop.permute.xlu0 %3344
      %3348 = vset.pattern.permute.xlu0 0
      %3349 = vperm.xlu0 %3348, %v1931
      %v3350 = vpop.permute.xlu0 %3349
      %3353 = vset.pattern.permute.xlu0 0
      %3354 = vperm.xlu0 %3353, %v1933
      %v3355 = vpop.permute.xlu0 %3354
      %3358 = vset.pattern.permute.xlu0 0
      %3359 = vperm.xlu0 %3358, %v1935
      %v3360 = vpop.permute.xlu0 %3359
      %3363 = vset.pattern.permute.xlu0 0
      %3364 = vperm.xlu0 %3363, %v1937
      %v3365 = vpop.permute.xlu0 %3364
      %3368 = vset.pattern.permute.xlu0 0
      %3369 = vperm.xlu0 %3368, %v1939
      %v3370 = vpop.permute.xlu0 %3369
      %3373 = vset.pattern.permute.xlu0 0
      %3374 = vperm.xlu0 %3373, %v1941
      %v3375 = vpop.permute.xlu0 %3374
      %3378 = vset.pattern.permute.xlu0 0
      %3379 = vperm.xlu0 %3378, %v1943
      %v3380 = vpop.permute.xlu0 %3379
      %3383 = vset.pattern.permute.xlu0 0
      %3384 = vperm.xlu0 %3383, %v1945
      %v3385 = vpop.permute.xlu0 %3384
      %3388 = vset.pattern.permute.xlu0 0
      %3389 = vperm.xlu0 %3388, %v1947
      %v3390 = vpop.permute.xlu0 %3389
      %3393 = vset.pattern.permute.xlu0 0
      %3394 = vperm.xlu0 %3393, %v1949
      %v3395 = vpop.permute.xlu0 %3394
      %3398 = vset.pattern.permute.xlu0 0
      %3399 = vperm.xlu0 %3398, %v1951
      %v3400 = vpop.permute.xlu0 %3399
      %3403 = vset.pattern.permute.xlu0 0
      %3404 = vperm.xlu0 %3403, %v1953
      %v3405 = vpop.permute.xlu0 %3404
      %3408 = vset.pattern.permute.xlu0 0
      %3409 = vperm.xlu0 %3408, %v1955
      %v3410 = vpop.permute.xlu0 %3409
      %3413 = vset.pattern.permute.xlu0 0
      %3414 = vperm.xlu0 %3413, %v1957
      %v3415 = vpop.permute.xlu0 %3414
      %3418 = vset.pattern.permute.xlu0 0
      %3419 = vperm.xlu0 %3418, %v1959
      %v3420 = vpop.permute.xlu0 %3419
      %3423 = vset.pattern.permute.xlu0 0
      %3424 = vperm.xlu0 %3423, %v1961
      %v3425 = vpop.permute.xlu0 %3424
      %3428 = vset.pattern.permute.xlu0 0
      %3429 = vperm.xlu0 %3428, %v1963
      %v3430 = vpop.permute.xlu0 %3429
      %3433 = vset.pattern.permute.xlu0 0
      %3434 = vperm.xlu0 %3433, %v1965
      %v3435 = vpop.permute.xlu0 %3434
      %3438 = vset.pattern.permute.xlu0 0
      %3439 = vperm.xlu0 %3438, %v1967
      %v3440 = vpop.permute.xlu0 %3439
      %3443 = vset.pattern.permute.xlu0 0
      %3444 = vperm.xlu0 %3443, %v1969
      %v3445 = vpop.permute.xlu0 %3444
      %3448 = vset.pattern.permute.xlu0 0
      %3449 = vperm.xlu0 %3448, %v1971
      %v3450 = vpop.permute.xlu0 %3449
      %3453 = vset.pattern.permute.xlu0 0
      %3454 = vperm.xlu0 %3453, %v1973
      %v3455 = vpop.permute.xlu0 %3454
      %3458 = vset.pattern.permute.xlu0 0
      %3459 = vperm.xlu0 %3458, %v1975
      %v3460 = vpop.permute.xlu0 %3459
      %3463 = vset.pattern.permute.xlu0 0
      %3464 = vperm.xlu0 %3463, %v1977
      %v3465 = vpop.permute.xlu0 %3464
      %3468 = vset.pattern.permute.xlu0 0
      %3469 = vperm.xlu0 %3468, %v1979
      %v3470 = vpop.permute.xlu0 %3469
      %3473 = vset.pattern.permute.xlu0 0
      %3474 = vperm.xlu0 %3473, %v1981
      %v3475 = vpop.permute.xlu0 %3474
      %3478 = vset.pattern.permute.xlu0 0
      %3479 = vperm.xlu0 %3478, %v1983
      %v3480 = vpop.permute.xlu0 %3479
      %3483 = vset.pattern.permute.xlu0 0
      %3484 = vperm.xlu0 %3483, %v1985
      %v3485 = vpop.permute.xlu0 %3484
      %3488 = vset.pattern.permute.xlu0 0
      %3489 = vperm.xlu0 %3488, %v1987
      %v3490 = vpop.permute.xlu0 %3489
      %3493 = vset.pattern.permute.xlu0 0
      %3494 = vperm.xlu0 %3493, %v1989
      %v3495 = vpop.permute.xlu0 %3494
      %3498 = vset.pattern.permute.xlu0 0
      %3499 = vperm.xlu0 %3498, %v1991
      %v3500 = vpop.permute.xlu0 %3499
      %3503 = vset.pattern.permute.xlu0 0
      %3504 = vperm.xlu0 %3503, %v1993
      %v3505 = vpop.permute.xlu0 %3504
      %3508 = vset.pattern.permute.xlu0 0
      %3509 = vperm.xlu0 %3508, %v1995
      %v3510 = vpop.permute.xlu0 %3509
      %3513 = vset.pattern.permute.xlu0 0
      %3514 = vperm.xlu0 %3513, %v1997
      %v3515 = vpop.permute.xlu0 %3514
      %3518 = vset.pattern.permute.xlu0 0
      %3519 = vperm.xlu0 %3518, %v1999
      %v3520 = vpop.permute.xlu0 %3519
      %3523 = vset.pattern.permute.xlu0 0
      %3524 = vperm.xlu0 %3523, %v2001
      %v3525 = vpop.permute.xlu0 %3524
      %3528 = vset.pattern.permute.xlu0 0
      %3529 = vperm.xlu0 %3528, %v2003
      %v3530 = vpop.permute.xlu0 %3529
      %3533 = vset.pattern.permute.xlu0 0
      %3534 = vperm.xlu0 %3533, %v2005
      %v3535 = vpop.permute.xlu0 %3534
      %3538 = vset.pattern.permute.xlu0 0
      %3539 = vperm.xlu0 %3538, %v2007
      %v3540 = vpop.permute.xlu0 %3539
      %3543 = vset.pattern.permute.xlu0 0
      %3544 = vperm.xlu0 %3543, %v2009
      %v3545 = vpop.permute.xlu0 %3544
      %v3547 = vmul.f32 %v3230, %v3163
      %v3548 = vmul.f32 %v3235, %v3164
      %v3549 = vmul.f32 %v3240, %v3165
      %v3550 = vmul.f32 %v3245, %v3166
      %v3551 = vmul.f32 %v3250, %v3167
      %v3552 = vmul.f32 %v3255, %v3168
      %v3553 = vmul.f32 %v3260, %v3169
      %v3554 = vmul.f32 %v3265, %v3170
      %v3555 = vmul.f32 %v3270, %v3171
      %v3556 = vmul.f32 %v3275, %v3172
      %v3557 = vmul.f32 %v3280, %v3173
      %v3558 = vmul.f32 %v3285, %v3174
      %v3559 = vmul.f32 %v3290, %v3175
      %v3560 = vmul.f32 %v3295, %v3176
      %v3561 = vmul.f32 %v3300, %v3177
      %v3562 = vmul.f32 %v3305, %v3178
      %v3563 = vmul.f32 %v3310, %v3179
      %v3564 = vmul.f32 %v3315, %v3180
      %v3565 = vmul.f32 %v3320, %v3181
      %v3566 = vmul.f32 %v3325, %v3182
      %v3567 = vmul.f32 %v3330, %v3183
      %v3568 = vmul.f32 %v3335, %v3184
      %v3569 = vmul.f32 %v3340, %v3185
      %v3570 = vmul.f32 %v3345, %v3186
      %v3571 = vmul.f32 %v3350, %v3187
      %v3572 = vmul.f32 %v3355, %v3188
      %v3573 = vmul.f32 %v3360, %v3189
      %v3574 = vmul.f32 %v3365, %v3190
      %v3575 = vmul.f32 %v3370, %v3191
      %v3576 = vmul.f32 %v3375, %v3192
      %v3577 = vmul.f32 %v3380, %v3193
      %v3578 = vmul.f32 %v3385, %v3194
      %v3579 = vmul.f32 %v3390, %v3195
      %v3580 = vmul.f32 %v3395, %v3196
      %v3581 = vmul.f32 %v3400, %v3197
      %v3582 = vmul.f32 %v3405, %v3198
      %v3583 = vmul.f32 %v3410, %v3199
      %v3584 = vmul.f32 %v3415, %v3200
      %v3585 = vmul.f32 %v3420, %v3201
      %v3586 = vmul.f32 %v3425, %v3202
      %v3587 = vmul.f32 %v3430, %v3203
      %v3588 = vmul.f32 %v3435, %v3204
      %v3589 = vmul.f32 %v3440, %v3205
      %v3590 = vmul.f32 %v3445, %v3206
      %v3591 = vmul.f32 %v3450, %v3207
      %v3592 = vmul.f32 %v3455, %v3208
      %v3593 = vmul.f32 %v3460, %v3209
      %v3594 = vmul.f32 %v3465, %v3210
      %v3595 = vmul.f32 %v3470, %v3211
      %v3596 = vmul.f32 %v3475, %v3212
      %v3597 = vmul.f32 %v3480, %v3213
      %v3598 = vmul.f32 %v3485, %v3214
      %v3599 = vmul.f32 %v3490, %v3215
      %v3600 = vmul.f32 %v3495, %v3216
      %v3601 = vmul.f32 %v3500, %v3217
      %v3602 = vmul.f32 %v3505, %v3218
      %v3603 = vmul.f32 %v3510, %v3219
      %v3604 = vmul.f32 %v3515, %v3220
      %v3605 = vmul.f32 %v3520, %v3221
      %v3606 = vmul.f32 %v3525, %v3222
      %v3607 = vmul.f32 %v3530, %v3223
      %v3608 = vmul.f32 %v3535, %v3224
      %v3609 = vmul.f32 %v3540, %v3225
      %v3610 = vmul.f32 %v3545, %v3226
      %v3611 = vpack.c.bf16 %v2463, %v2459
      %v3612 = vpack.c.bf16 %v2465, %v2461
      %v3613 = vpack.c.bf16 %v2471, %v2467
      %v3614 = vpack.c.bf16 %v2473, %v2469
      %v3615 = vpack.c.bf16 %v2479, %v2475
      %v3616 = vpack.c.bf16 %v2481, %v2477
      %v3617 = vpack.c.bf16 %v2487, %v2483
      %v3618 = vpack.c.bf16 %v2489, %v2485
      %v3619 = vpack.c.bf16 %v2495, %v2491
      %v3620 = vpack.c.bf16 %v2497, %v2493
      %v3621 = vpack.c.bf16 %v2503, %v2499
      %v3622 = vpack.c.bf16 %v2505, %v2501
      %v3623 = vpack.c.bf16 %v2511, %v2507
      %v3624 = vpack.c.bf16 %v2513, %v2509
      %v3625 = vpack.c.bf16 %v2519, %v2515
      %v3626 = vpack.c.bf16 %v2521, %v2517
      %v3627 = vpack.c.bf16 %v2527, %v2523
      %v3628 = vpack.c.bf16 %v2529, %v2525
      %v3629 = vpack.c.bf16 %v2535, %v2531
      %v3630 = vpack.c.bf16 %v2537, %v2533
      %v3631 = vpack.c.bf16 %v2543, %v2539
      %v3632 = vpack.c.bf16 %v2545, %v2541
      %v3633 = vpack.c.bf16 %v2551, %v2547
      %v3634 = vpack.c.bf16 %v2553, %v2549
      %v3635 = vpack.c.bf16 %v2559, %v2555
      %v3636 = vpack.c.bf16 %v2561, %v2557
      %v3637 = vpack.c.bf16 %v2567, %v2563
      %v3638 = vpack.c.bf16 %v2569, %v2565
      %v3639 = vpack.c.bf16 %v2575, %v2571
      %v3640 = vpack.c.bf16 %v2577, %v2573
      %v3641 = vpack.c.bf16 %v2583, %v2579
      %v3642 = vpack.c.bf16 %v2585, %v2581
      %v3643 = vpack.c.bf16 %v2591, %v2587
      %v3644 = vpack.c.bf16 %v2593, %v2589
      %v3645 = vpack.c.bf16 %v2599, %v2595
      %v3646 = vpack.c.bf16 %v2601, %v2597
      %v3647 = vpack.c.bf16 %v2607, %v2603
      %v3648 = vpack.c.bf16 %v2609, %v2605
      %v3649 = vpack.c.bf16 %v2615, %v2611
      %v3650 = vpack.c.bf16 %v2617, %v2613
      %v3651 = vpack.c.bf16 %v2623, %v2619
      %v3652 = vpack.c.bf16 %v2625, %v2621
      %v3653 = vpack.c.bf16 %v2631, %v2627
      %v3654 = vpack.c.bf16 %v2633, %v2629
      %v3655 = vpack.c.bf16 %v2639, %v2635
      %v3656 = vpack.c.bf16 %v2641, %v2637
      %v3657 = vpack.c.bf16 %v2647, %v2643
      %v3658 = vpack.c.bf16 %v2649, %v2645
      %v3659 = vpack.c.bf16 %v2655, %v2651
      %v3660 = vpack.c.bf16 %v2657, %v2653
      %v3661 = vpack.c.bf16 %v2663, %v2659
      %v3662 = vpack.c.bf16 %v2665, %v2661
      %v3663 = vpack.c.bf16 %v2671, %v2667
      %v3664 = vpack.c.bf16 %v2673, %v2669
      %v3665 = vpack.c.bf16 %v2679, %v2675
      %v3666 = vpack.c.bf16 %v2681, %v2677
      %v3667 = vpack.c.bf16 %v2687, %v2683
      %v3668 = vpack.c.bf16 %v2689, %v2685
      %v3669 = vpack.c.bf16 %v2695, %v2691
      %v3670 = vpack.c.bf16 %v2697, %v2693
      %v3671 = vpack.c.bf16 %v2703, %v2699
      %v3672 = vpack.c.bf16 %v2705, %v2701
      %v3673 = vpack.c.bf16 %v2711, %v2707
      %v3674 = vpack.c.bf16 %v2713, %v2709
      %v3707 = vunpack.c.l.b16 %v743
      %v3708 = vunpack.c.l.b16 %v744
      %v3709 = vunpack.c.l.b16 %v745
      %v3710 = vunpack.c.l.b16 %v746
      %v3711 = vunpack.c.l.b16 %v747
      %v3712 = vunpack.c.l.b16 %v748
      %v3713 = vunpack.c.l.b16 %v749
      %v3714 = vunpack.c.l.b16 %v750
      %v3715 = vunpack.c.l.b16 %v751
      %v3716 = vunpack.c.l.b16 %v752
      %v3717 = vunpack.c.l.b16 %v753
      %v3718 = vunpack.c.l.b16 %v754
      %v3719 = vunpack.c.l.b16 %v755
      %v3720 = vunpack.c.l.b16 %v756
      %v3721 = vunpack.c.l.b16 %v757
      %v3722 = vunpack.c.l.b16 %v758
      %v3723 = vunpack.c.l.b16 %v759
      %v3724 = vunpack.c.l.b16 %v760
      %v3725 = vunpack.c.l.b16 %v761
      %v3726 = vunpack.c.l.b16 %v762
      %v3727 = vunpack.c.l.b16 %v763
      %v3728 = vunpack.c.l.b16 %v764
      %v3729 = vunpack.c.l.b16 %v765
      %v3730 = vunpack.c.l.b16 %v766
      %v3731 = vunpack.c.l.b16 %v767
      %v3732 = vunpack.c.l.b16 %v768
      %v3733 = vunpack.c.l.b16 %v769
      %v3734 = vunpack.c.l.b16 %v770
      %v3735 = vunpack.c.l.b16 %v771
      %v3736 = vunpack.c.l.b16 %v772
      %v3737 = vunpack.c.l.b16 %v773
      %v3738 = vunpack.c.l.b16 %v774
      %v3739 = vpack.c.b16 %v3708, %v3707
      %v3740 = vpack.c.b16 %v3710, %v3709
      %v3741 = vpack.c.b16 %v3712, %v3711
      %v3742 = vpack.c.b16 %v3714, %v3713
      %v3743 = vpack.c.b16 %v3716, %v3715
      %v3744 = vpack.c.b16 %v3718, %v3717
      %v3745 = vpack.c.b16 %v3720, %v3719
      %v3746 = vpack.c.b16 %v3722, %v3721
      %v3747 = vpack.c.b16 %v3724, %v3723
      %v3748 = vpack.c.b16 %v3726, %v3725
      %v3749 = vpack.c.b16 %v3728, %v3727
      %v3750 = vpack.c.b16 %v3730, %v3729
      %v3751 = vpack.c.b16 %v3732, %v3731
      %v3752 = vpack.c.b16 %v3734, %v3733
      %v3753 = vpack.c.b16 %v3736, %v3735
      %v3754 = vpack.c.b16 %v3738, %v3737
      %3771 = vmatpush.bf16.msra.mxu0 %v3746
      %3772 = vmatpush.bf16.msra.mxu0 %v3745
      %3773 = vmatpush.bf16.msra.mxu0 %v3744
      %3774 = vmatpush.bf16.msra.mxu0 %v3743
      %3775 = vmatpush.bf16.msra.mxu0 %v3742
      %3776 = vmatpush.bf16.msra.mxu0 %v3741
      %3777 = vmatpush.bf16.msra.mxu0 %v3740
      %3778 = vmatpush.bf16.msra.mxu0 %v3739
      %3779 = vmatmul.bf16.gmra.mxu0 %v3611
      %v3780 = vpop.f32.mrf.mxu0
      %v3781 = vadd.f32 0.0, %v3780
      %v3782 = vpop.f32.mrf.mxu0
      %v3783 = vadd.f32 0.0, %v3782
      %3784 = vmatmul.bf16.gmra.mxu0 %v3613
      %v3785 = vpop.f32.mrf.mxu0
      %v3786 = vadd.f32 0.0, %v3785
      %v3787 = vpop.f32.mrf.mxu0
      %v3788 = vadd.f32 0.0, %v3787
      %3789 = vmatmul.bf16.gmra.mxu0 %v3615
      %v3790 = vpop.f32.mrf.mxu0
      %v3791 = vadd.f32 0.0, %v3790
      %v3792 = vpop.f32.mrf.mxu0
      %v3793 = vadd.f32 0.0, %v3792
      %3794 = vmatmul.bf16.gmra.mxu0 %v3617
      %v3795 = vpop.f32.mrf.mxu0
      %v3796 = vadd.f32 0.0, %v3795
      %v3797 = vpop.f32.mrf.mxu0
      %v3798 = vadd.f32 0.0, %v3797
      %3799 = vmatmul.bf16.gmra.mxu0 %v3619
      %v3800 = vpop.f32.mrf.mxu0
      %v3801 = vadd.f32 0.0, %v3800
      %v3802 = vpop.f32.mrf.mxu0
      %v3803 = vadd.f32 0.0, %v3802
      %3804 = vmatmul.bf16.gmra.mxu0 %v3621
      %v3805 = vpop.f32.mrf.mxu0
      %v3806 = vadd.f32 0.0, %v3805
      %v3807 = vpop.f32.mrf.mxu0
      %v3808 = vadd.f32 0.0, %v3807
      %3809 = vmatmul.bf16.gmra.mxu0 %v3623
      %v3810 = vpop.f32.mrf.mxu0
      %v3811 = vadd.f32 0.0, %v3810
      %v3812 = vpop.f32.mrf.mxu0
      %v3813 = vadd.f32 0.0, %v3812
      %3814 = vmatmul.bf16.gmra.mxu0 %v3625
      %v3815 = vpop.f32.mrf.mxu0
      %v3816 = vadd.f32 0.0, %v3815
      %v3817 = vpop.f32.mrf.mxu0
      %v3818 = vadd.f32 0.0, %v3817
      %3819 = vmatmul.bf16.gmra.mxu0 %v3627
      %v3820 = vpop.f32.mrf.mxu0
      %v3821 = vadd.f32 0.0, %v3820
      %v3822 = vpop.f32.mrf.mxu0
      %v3823 = vadd.f32 0.0, %v3822
      %3824 = vmatmul.bf16.gmra.mxu0 %v3629
      %v3825 = vpop.f32.mrf.mxu0
      %v3826 = vadd.f32 0.0, %v3825
      %v3827 = vpop.f32.mrf.mxu0
      %v3828 = vadd.f32 0.0, %v3827
      %3829 = vmatmul.bf16.gmra.mxu0 %v3631
      %v3830 = vpop.f32.mrf.mxu0
      %v3831 = vadd.f32 0.0, %v3830
      %v3832 = vpop.f32.mrf.mxu0
      %v3833 = vadd.f32 0.0, %v3832
      %3834 = vmatmul.bf16.gmra.mxu0 %v3633
      %v3835 = vpop.f32.mrf.mxu0
      %v3836 = vadd.f32 0.0, %v3835
      %v3837 = vpop.f32.mrf.mxu0
      %v3838 = vadd.f32 0.0, %v3837
      %3839 = vmatmul.bf16.gmra.mxu0 %v3635
      %v3840 = vpop.f32.mrf.mxu0
      %v3841 = vadd.f32 0.0, %v3840
      %v3842 = vpop.f32.mrf.mxu0
      %v3843 = vadd.f32 0.0, %v3842
      %3844 = vmatmul.bf16.gmra.mxu0 %v3637
      %v3845 = vpop.f32.mrf.mxu0
      %v3846 = vadd.f32 0.0, %v3845
      %v3847 = vpop.f32.mrf.mxu0
      %v3848 = vadd.f32 0.0, %v3847
      %3849 = vmatmul.bf16.gmra.mxu0 %v3639
      %v3850 = vpop.f32.mrf.mxu0
      %v3851 = vadd.f32 0.0, %v3850
      %v3852 = vpop.f32.mrf.mxu0
      %v3853 = vadd.f32 0.0, %v3852
      %3854 = vmatmul.bf16.gmra.mxu0 %v3641
      %v3855 = vpop.f32.mrf.mxu0
      %v3856 = vadd.f32 0.0, %v3855
      %v3857 = vpop.f32.mrf.mxu0
      %v3858 = vadd.f32 0.0, %v3857
      %3859 = vmatmul.bf16.gmra.mxu0 %v3643
      %v3860 = vpop.f32.mrf.mxu0
      %v3861 = vadd.f32 0.0, %v3860
      %v3862 = vpop.f32.mrf.mxu0
      %v3863 = vadd.f32 0.0, %v3862
      %3864 = vmatmul.bf16.gmra.mxu0 %v3645
      %v3865 = vpop.f32.mrf.mxu0
      %v3866 = vadd.f32 0.0, %v3865
      %v3867 = vpop.f32.mrf.mxu0
      %v3868 = vadd.f32 0.0, %v3867
      %3869 = vmatmul.bf16.gmra.mxu0 %v3647
      %v3870 = vpop.f32.mrf.mxu0
      %v3871 = vadd.f32 0.0, %v3870
      %v3872 = vpop.f32.mrf.mxu0
      %v3873 = vadd.f32 0.0, %v3872
      %3874 = vmatmul.bf16.gmra.mxu0 %v3649
      %v3875 = vpop.f32.mrf.mxu0
      %v3876 = vadd.f32 0.0, %v3875
      %v3877 = vpop.f32.mrf.mxu0
      %v3878 = vadd.f32 0.0, %v3877
      %3879 = vmatmul.bf16.gmra.mxu0 %v3651
      %v3880 = vpop.f32.mrf.mxu0
      %v3881 = vadd.f32 0.0, %v3880
      %v3882 = vpop.f32.mrf.mxu0
      %v3883 = vadd.f32 0.0, %v3882
      %3884 = vmatmul.bf16.gmra.mxu0 %v3653
      %v3885 = vpop.f32.mrf.mxu0
      %v3886 = vadd.f32 0.0, %v3885
      %v3887 = vpop.f32.mrf.mxu0
      %v3888 = vadd.f32 0.0, %v3887
      %3889 = vmatmul.bf16.gmra.mxu0 %v3655
      %v3890 = vpop.f32.mrf.mxu0
      %v3891 = vadd.f32 0.0, %v3890
      %v3892 = vpop.f32.mrf.mxu0
      %v3893 = vadd.f32 0.0, %v3892
      %3894 = vmatmul.bf16.gmra.mxu0 %v3657
      %v3895 = vpop.f32.mrf.mxu0
      %v3896 = vadd.f32 0.0, %v3895
      %v3897 = vpop.f32.mrf.mxu0
      %v3898 = vadd.f32 0.0, %v3897
      %3899 = vmatmul.bf16.gmra.mxu0 %v3659
      %v3900 = vpop.f32.mrf.mxu0
      %v3901 = vadd.f32 0.0, %v3900
      %v3902 = vpop.f32.mrf.mxu0
      %v3903 = vadd.f32 0.0, %v3902
      %3904 = vmatmul.bf16.gmra.mxu0 %v3661
      %v3905 = vpop.f32.mrf.mxu0
      %v3906 = vadd.f32 0.0, %v3905
      %v3907 = vpop.f32.mrf.mxu0
      %v3908 = vadd.f32 0.0, %v3907
      %3909 = vmatmul.bf16.gmra.mxu0 %v3663
      %v3910 = vpop.f32.mrf.mxu0
      %v3911 = vadd.f32 0.0, %v3910
      %v3912 = vpop.f32.mrf.mxu0
      %v3913 = vadd.f32 0.0, %v3912
      %3914 = vmatmul.bf16.gmra.mxu0 %v3665
      %v3915 = vpop.f32.mrf.mxu0
      %v3916 = vadd.f32 0.0, %v3915
      %v3917 = vpop.f32.mrf.mxu0
      %v3918 = vadd.f32 0.0, %v3917
      %3919 = vmatmul.bf16.gmra.mxu0 %v3667
      %v3920 = vpop.f32.mrf.mxu0
      %v3921 = vadd.f32 0.0, %v3920
      %v3922 = vpop.f32.mrf.mxu0
      %v3923 = vadd.f32 0.0, %v3922
      %3924 = vmatmul.bf16.gmra.mxu0 %v3669
      %v3925 = vpop.f32.mrf.mxu0
      %v3926 = vadd.f32 0.0, %v3925
      %v3927 = vpop.f32.mrf.mxu0
      %v3928 = vadd.f32 0.0, %v3927
      %3929 = vmatmul.bf16.gmra.mxu0 %v3671
      %v3930 = vpop.f32.mrf.mxu0
      %v3931 = vadd.f32 0.0, %v3930
      %v3932 = vpop.f32.mrf.mxu0
      %v3933 = vadd.f32 0.0, %v3932
      %3934 = vmatmul.bf16.gmra.mxu0 %v3673
      %v3935 = vpop.f32.mrf.mxu0
      %v3936 = vadd.f32 0.0, %v3935
      %v3937 = vpop.f32.mrf.mxu0
      %v3938 = vadd.f32 0.0, %v3937
      %3939 = vdwg.mxu0
      %3940 = vmatpush.bf16.msra.mxu0 %v3754
      %3941 = vmatpush.bf16.msra.mxu0 %v3753
      %3942 = vmatpush.bf16.msra.mxu0 %v3752
      %3943 = vmatpush.bf16.msra.mxu0 %v3751
      %3944 = vmatpush.bf16.msra.mxu0 %v3750
      %3945 = vmatpush.bf16.msra.mxu0 %v3749
      %3946 = vmatpush.bf16.msra.mxu0 %v3748
      %3947 = vmatpush.bf16.msra.mxu0 %v3747
      %3948 = vmatmul.bf16.gmra.mxu0 %v3612
      %v3949 = vpop.f32.mrf.mxu0
      %v3950 = vadd.f32 %v3781, %v3949
      %v3951 = vpop.f32.mrf.mxu0
      %v3952 = vadd.f32 %v3783, %v3951
      %3953 = vmatmul.bf16.gmra.mxu0 %v3614
      %v3954 = vpop.f32.mrf.mxu0
      %v3955 = vadd.f32 %v3786, %v3954
      %v3956 = vpop.f32.mrf.mxu0
      %v3957 = vadd.f32 %v3788, %v3956
      %3958 = vmatmul.bf16.gmra.mxu0 %v3616
      %v3959 = vpop.f32.mrf.mxu0
      %v3960 = vadd.f32 %v3791, %v3959
      %v3961 = vpop.f32.mrf.mxu0
      %v3962 = vadd.f32 %v3793, %v3961
      %3963 = vmatmul.bf16.gmra.mxu0 %v3618
      %v3964 = vpop.f32.mrf.mxu0
      %v3965 = vadd.f32 %v3796, %v3964
      %v3966 = vpop.f32.mrf.mxu0
      %v3967 = vadd.f32 %v3798, %v3966
      %3968 = vmatmul.bf16.gmra.mxu0 %v3620
      %v3969 = vpop.f32.mrf.mxu0
      %v3970 = vadd.f32 %v3801, %v3969
      %v3971 = vpop.f32.mrf.mxu0
      %v3972 = vadd.f32 %v3803, %v3971
      %3973 = vmatmul.bf16.gmra.mxu0 %v3622
      %v3974 = vpop.f32.mrf.mxu0
      %v3975 = vadd.f32 %v3806, %v3974
      %v3976 = vpop.f32.mrf.mxu0
      %v3977 = vadd.f32 %v3808, %v3976
      %3978 = vmatmul.bf16.gmra.mxu0 %v3624
      %v3979 = vpop.f32.mrf.mxu0
      %v3980 = vadd.f32 %v3811, %v3979
      %v3981 = vpop.f32.mrf.mxu0
      %v3982 = vadd.f32 %v3813, %v3981
      %3983 = vmatmul.bf16.gmra.mxu0 %v3626
      %v3984 = vpop.f32.mrf.mxu0
      %v3985 = vadd.f32 %v3816, %v3984
      %v3986 = vpop.f32.mrf.mxu0
      %v3987 = vadd.f32 %v3818, %v3986
      %3988 = vmatmul.bf16.gmra.mxu0 %v3628
      %v3989 = vpop.f32.mrf.mxu0
      %v3990 = vadd.f32 %v3821, %v3989
      %v3991 = vpop.f32.mrf.mxu0
      %v3992 = vadd.f32 %v3823, %v3991
      %3993 = vmatmul.bf16.gmra.mxu0 %v3630
      %v3994 = vpop.f32.mrf.mxu0
      %v3995 = vadd.f32 %v3826, %v3994
      %v3996 = vpop.f32.mrf.mxu0
      %v3997 = vadd.f32 %v3828, %v3996
      %3998 = vmatmul.bf16.gmra.mxu0 %v3632
      %v3999 = vpop.f32.mrf.mxu0
      %v4000 = vadd.f32 %v3831, %v3999
      %v4001 = vpop.f32.mrf.mxu0
      %v4002 = vadd.f32 %v3833, %v4001
      %4003 = vmatmul.bf16.gmra.mxu0 %v3634
      %v4004 = vpop.f32.mrf.mxu0
      %v4005 = vadd.f32 %v3836, %v4004
      %v4006 = vpop.f32.mrf.mxu0
      %v4007 = vadd.f32 %v3838, %v4006
      %4008 = vmatmul.bf16.gmra.mxu0 %v3636
      %v4009 = vpop.f32.mrf.mxu0
      %v4010 = vadd.f32 %v3841, %v4009
      %v4011 = vpop.f32.mrf.mxu0
      %v4012 = vadd.f32 %v3843, %v4011
      %4013 = vmatmul.bf16.gmra.mxu0 %v3638
      %v4014 = vpop.f32.mrf.mxu0
      %v4015 = vadd.f32 %v3846, %v4014
      %v4016 = vpop.f32.mrf.mxu0
      %v4017 = vadd.f32 %v3848, %v4016
      %4018 = vmatmul.bf16.gmra.mxu0 %v3640
      %v4019 = vpop.f32.mrf.mxu0
      %v4020 = vadd.f32 %v3851, %v4019
      %v4021 = vpop.f32.mrf.mxu0
      %v4022 = vadd.f32 %v3853, %v4021
      %4023 = vmatmul.bf16.gmra.mxu0 %v3642
      %v4024 = vpop.f32.mrf.mxu0
      %v4025 = vadd.f32 %v3856, %v4024
      %v4026 = vpop.f32.mrf.mxu0
      %v4027 = vadd.f32 %v3858, %v4026
      %4028 = vmatmul.bf16.gmra.mxu0 %v3644
      %v4029 = vpop.f32.mrf.mxu0
      %v4030 = vadd.f32 %v3861, %v4029
      %v4031 = vpop.f32.mrf.mxu0
      %v4032 = vadd.f32 %v3863, %v4031
      %4033 = vmatmul.bf16.gmra.mxu0 %v3646
      %v4034 = vpop.f32.mrf.mxu0
      %v4035 = vadd.f32 %v3866, %v4034
      %v4036 = vpop.f32.mrf.mxu0
      %v4037 = vadd.f32 %v3868, %v4036
      %4038 = vmatmul.bf16.gmra.mxu0 %v3648
      %v4039 = vpop.f32.mrf.mxu0
      %v4040 = vadd.f32 %v3871, %v4039
      %v4041 = vpop.f32.mrf.mxu0
      %v4042 = vadd.f32 %v3873, %v4041
      %4043 = vmatmul.bf16.gmra.mxu0 %v3650
      %v4044 = vpop.f32.mrf.mxu0
      %v4045 = vadd.f32 %v3876, %v4044
      %v4046 = vpop.f32.mrf.mxu0
      %v4047 = vadd.f32 %v3878, %v4046
      %4048 = vmatmul.bf16.gmra.mxu0 %v3652
      %v4049 = vpop.f32.mrf.mxu0
      %v4050 = vadd.f32 %v3881, %v4049
      %v4051 = vpop.f32.mrf.mxu0
      %v4052 = vadd.f32 %v3883, %v4051
      %4053 = vmatmul.bf16.gmra.mxu0 %v3654
      %v4054 = vpop.f32.mrf.mxu0
      %v4055 = vadd.f32 %v3886, %v4054
      %v4056 = vpop.f32.mrf.mxu0
      %v4057 = vadd.f32 %v3888, %v4056
      %4058 = vmatmul.bf16.gmra.mxu0 %v3656
      %v4059 = vpop.f32.mrf.mxu0
      %v4060 = vadd.f32 %v3891, %v4059
      %v4061 = vpop.f32.mrf.mxu0
      %v4062 = vadd.f32 %v3893, %v4061
      %4063 = vmatmul.bf16.gmra.mxu0 %v3658
      %v4064 = vpop.f32.mrf.mxu0
      %v4065 = vadd.f32 %v3896, %v4064
      %v4066 = vpop.f32.mrf.mxu0
      %v4067 = vadd.f32 %v3898, %v4066
      %4068 = vmatmul.bf16.gmra.mxu0 %v3660
      %v4069 = vpop.f32.mrf.mxu0
      %v4070 = vadd.f32 %v3901, %v4069
      %v4071 = vpop.f32.mrf.mxu0
      %v4072 = vadd.f32 %v3903, %v4071
      %4073 = vmatmul.bf16.gmra.mxu0 %v3662
      %v4074 = vpop.f32.mrf.mxu0
      %v4075 = vadd.f32 %v3906, %v4074
      %v4076 = vpop.f32.mrf.mxu0
      %v4077 = vadd.f32 %v3908, %v4076
      %4078 = vmatmul.bf16.gmra.mxu0 %v3664
      %v4079 = vpop.f32.mrf.mxu0
      %v4080 = vadd.f32 %v3911, %v4079
      %v4081 = vpop.f32.mrf.mxu0
      %v4082 = vadd.f32 %v3913, %v4081
      %4083 = vmatmul.bf16.gmra.mxu0 %v3666
      %v4084 = vpop.f32.mrf.mxu0
      %v4085 = vadd.f32 %v3916, %v4084
      %v4086 = vpop.f32.mrf.mxu0
      %v4087 = vadd.f32 %v3918, %v4086
      %4088 = vmatmul.bf16.gmra.mxu0 %v3668
      %v4089 = vpop.f32.mrf.mxu0
      %v4090 = vadd.f32 %v3921, %v4089
      %v4091 = vpop.f32.mrf.mxu0
      %v4092 = vadd.f32 %v3923, %v4091
      %4093 = vmatmul.bf16.gmra.mxu0 %v3670
      %v4094 = vpop.f32.mrf.mxu0
      %v4095 = vadd.f32 %v3926, %v4094
      %v4096 = vpop.f32.mrf.mxu0
      %v4097 = vadd.f32 %v3928, %v4096
      %4098 = vmatmul.bf16.gmra.mxu0 %v3672
      %v4099 = vpop.f32.mrf.mxu0
      %v4100 = vadd.f32 %v3931, %v4099
      %v4101 = vpop.f32.mrf.mxu0
      %v4102 = vadd.f32 %v3933, %v4101
      %4103 = vmatmul.bf16.gmra.mxu0 %v3674
      %v4104 = vpop.f32.mrf.mxu0
      %v4105 = vadd.f32 %v3936, %v4104
      %v4106 = vpop.f32.mrf.mxu0
      %v4107 = vadd.f32 %v3938, %v4106
      %4108 = vdwg.mxu0
      %v4109 = vadd.f32 %v3547, %v3950
      %v4110 = vadd.f32 %v3548, %v3952
      %v4111 = vadd.f32 %v3549, %v3955
      %v4112 = vadd.f32 %v3550, %v3957
      %v4113 = vadd.f32 %v3551, %v3960
      %v4114 = vadd.f32 %v3552, %v3962
      %v4115 = vadd.f32 %v3553, %v3965
      %v4116 = vadd.f32 %v3554, %v3967
      %v4117 = vadd.f32 %v3555, %v3970
      %v4118 = vadd.f32 %v3556, %v3972
      %v4119 = vadd.f32 %v3557, %v3975
      %v4120 = vadd.f32 %v3558, %v3977
      %v4121 = vadd.f32 %v3559, %v3980
      %v4122 = vadd.f32 %v3560, %v3982
      %v4123 = vadd.f32 %v3561, %v3985
      %v4124 = vadd.f32 %v3562, %v3987
      %v4125 = vadd.f32 %v3563, %v3990
      %v4126 = vadd.f32 %v3564, %v3992
      %v4127 = vadd.f32 %v3565, %v3995
      %v4128 = vadd.f32 %v3566, %v3997
      %v4129 = vadd.f32 %v3567, %v4000
      %v4130 = vadd.f32 %v3568, %v4002
      %v4131 = vadd.f32 %v3569, %v4005
      %v4132 = vadd.f32 %v3570, %v4007
      %v4133 = vadd.f32 %v3571, %v4010
      %v4134 = vadd.f32 %v3572, %v4012
      %v4135 = vadd.f32 %v3573, %v4015
      %v4136 = vadd.f32 %v3574, %v4017
      %v4137 = vadd.f32 %v3575, %v4020
      %v4138 = vadd.f32 %v3576, %v4022
      %v4139 = vadd.f32 %v3577, %v4025
      %v4140 = vadd.f32 %v3578, %v4027
      %v4141 = vadd.f32 %v3579, %v4030
      %v4142 = vadd.f32 %v3580, %v4032
      %v4143 = vadd.f32 %v3581, %v4035
      %v4144 = vadd.f32 %v3582, %v4037
      %v4145 = vadd.f32 %v3583, %v4040
      %v4146 = vadd.f32 %v3584, %v4042
      %v4147 = vadd.f32 %v3585, %v4045
      %v4148 = vadd.f32 %v3586, %v4047
      %v4149 = vadd.f32 %v3587, %v4050
      %v4150 = vadd.f32 %v3588, %v4052
      %v4151 = vadd.f32 %v3589, %v4055
      %v4152 = vadd.f32 %v3590, %v4057
      %v4153 = vadd.f32 %v3591, %v4060
      %v4154 = vadd.f32 %v3592, %v4062
      %v4155 = vadd.f32 %v3593, %v4065
      %v4156 = vadd.f32 %v3594, %v4067
      %v4157 = vadd.f32 %v3595, %v4070
      %v4158 = vadd.f32 %v3596, %v4072
      %v4159 = vadd.f32 %v3597, %v4075
      %v4160 = vadd.f32 %v3598, %v4077
      %v4161 = vadd.f32 %v3599, %v4080
      %v4162 = vadd.f32 %v3600, %v4082
      %v4163 = vadd.f32 %v3601, %v4085
      %v4164 = vadd.f32 %v3602, %v4087
      %v4165 = vadd.f32 %v3603, %v4090
      %v4166 = vadd.f32 %v3604, %v4092
      %v4167 = vadd.f32 %v3605, %v4095
      %v4168 = vadd.f32 %v3606, %v4097
      %v4169 = vadd.f32 %v3607, %v4100
      %v4170 = vadd.f32 %v3608, %v4102
      %v4171 = vadd.f32 %v3609, %v4105
      %v4172 = vadd.f32 %v3610, %v4107
      %4173 = vst.msk [vmem:[#allocation4] sm:$0xff] %vm1015, %v4109
      %4174 = vst.msk [vmem:[#allocation4 + $0x8] sm:$0xff] %vm1015, %v4110
      %4175 = vst.msk [vmem:[#allocation4 + $0x10] sm:$0xff] %vm1015, %v4111
      %4176 = vst.msk [vmem:[#allocation4 + $0x18] sm:$0xff] %vm1015, %v4112
      %4177 = vst.msk [vmem:[#allocation4 + $0x20] sm:$0xff] %vm1015, %v4113
      %4178 = vst.msk [vmem:[#allocation4 + $0x28] sm:$0xff] %vm1015, %v4114
      %4179 = vst.msk [vmem:[#allocation4 + $0x30] sm:$0xff] %vm1015, %v4115
      %4180 = vst.msk [vmem:[#allocation4 + $0x38] sm:$0xff] %vm1015, %v4116
      %4181 = vst.msk [vmem:[#allocation4 + $0x40] sm:$0xff] %vm1015, %v4117
      %4182 = vst.msk [vmem:[#allocation4 + $0x48] sm:$0xff] %vm1015, %v4118
      %4183 = vst.msk [vmem:[#allocation4 + $0x50] sm:$0xff] %vm1015, %v4119
      %4184 = vst.msk [vmem:[#allocation4 + $0x58] sm:$0xff] %vm1015, %v4120
      %4185 = vst.msk [vmem:[#allocation4 + $0x60] sm:$0xff] %vm1015, %v4121
      %4186 = vst.msk [vmem:[#allocation4 + $0x68] sm:$0xff] %vm1015, %v4122
      %4187 = vst.msk [vmem:[#allocation4 + $0x70] sm:$0xff] %vm1015, %v4123
      %4188 = vst.msk [vmem:[#allocation4 + $0x78] sm:$0xff] %vm1015, %v4124
      %4189 = vst.msk [vmem:[#allocation4 + $0x80] sm:$0xff] %vm1015, %v4125
      %4190 = vst.msk [vmem:[#allocation4 + $0x88] sm:$0xff] %vm1015, %v4126
      %4191 = vst.msk [vmem:[#allocation4 + $0x90] sm:$0xff] %vm1015, %v4127
      %4192 = vst.msk [vmem:[#allocation4 + $0x98] sm:$0xff] %vm1015, %v4128
      %4193 = vst.msk [vmem:[#allocation4 + $0xa0] sm:$0xff] %vm1015, %v4129
      %4194 = vst.msk [vmem:[#allocation4 + $0xa8] sm:$0xff] %vm1015, %v4130
      %4195 = vst.msk [vmem:[#allocation4 + $0xb0] sm:$0xff] %vm1015, %v4131
      %4196 = vst.msk [vmem:[#allocation4 + $0xb8] sm:$0xff] %vm1015, %v4132
      %4197 = vst.msk [vmem:[#allocation4 + $0xc0] sm:$0xff] %vm1015, %v4133
      %4198 = vst.msk [vmem:[#allocation4 + $0xc8] sm:$0xff] %vm1015, %v4134
      %4199 = vst.msk [vmem:[#allocation4 + $0xd0] sm:$0xff] %vm1015, %v4135
      %4200 = vst.msk [vmem:[#allocation4 + $0xd8] sm:$0xff] %vm1015, %v4136
      %4201 = vst.msk [vmem:[#allocation4 + $0xe0] sm:$0xff] %vm1015, %v4137
      %4202 = vst.msk [vmem:[#allocation4 + $0xe8] sm:$0xff] %vm1015, %v4138
      %4203 = vst.msk [vmem:[#allocation4 + $0xf0] sm:$0xff] %vm1015, %v4139
      %4204 = vst.msk [vmem:[#allocation4 + $0xf8] sm:$0xff] %vm1015, %v4140
      %4205 = vst.msk [vmem:[#allocation4 + $0x100] sm:$0xff] %vm1015, %v4141
      %4206 = vst.msk [vmem:[#allocation4 + $0x108] sm:$0xff] %vm1015, %v4142
      %4207 = vst.msk [vmem:[#allocation4 + $0x110] sm:$0xff] %vm1015, %v4143
      %4208 = vst.msk [vmem:[#allocation4 + $0x118] sm:$0xff] %vm1015, %v4144
      %4209 = vst.msk [vmem:[#allocation4 + $0x120] sm:$0xff] %vm1015, %v4145
      %4210 = vst.msk [vmem:[#allocation4 + $0x128] sm:$0xff] %vm1015, %v4146
      %4211 = vst.msk [vmem:[#allocation4 + $0x130] sm:$0xff] %vm1015, %v4147
      %4212 = vst.msk [vmem:[#allocation4 + $0x138] sm:$0xff] %vm1015, %v4148
      %4213 = vst.msk [vmem:[#allocation4 + $0x140] sm:$0xff] %vm1015, %v4149
      %4214 = vst.msk [vmem:[#allocation4 + $0x148] sm:$0xff] %vm1015, %v4150
      %4215 = vst.msk [vmem:[#allocation4 + $0x150] sm:$0xff] %vm1015, %v4151
      %4216 = vst.msk [vmem:[#allocation4 + $0x158] sm:$0xff] %vm1015, %v4152
      %4217 = vst.msk [vmem:[#allocation4 + $0x160] sm:$0xff] %vm1015, %v4153
      %4218 = vst.msk [vmem:[#allocation4 + $0x168] sm:$0xff] %vm1015, %v4154
      %4219 = vst.msk [vmem:[#allocation4 + $0x170] sm:$0xff] %vm1015, %v4155
      %4220 = vst.msk [vmem:[#allocation4 + $0x178] sm:$0xff] %vm1015, %v4156
      %4221 = vst.msk [vmem:[#allocation4 + $0x180] sm:$0xff] %vm1015, %v4157
      %4222 = vst.msk [vmem:[#allocation4 + $0x188] sm:$0xff] %vm1015, %v4158
      %4223 = vst.msk [vmem:[#allocation4 + $0x190] sm:$0xff] %vm1015, %v4159
      %4224 = vst.msk [vmem:[#allocation4 + $0x198] sm:$0xff] %vm1015, %v4160
      %4225 = vst.msk [vmem:[#allocation4 + $0x1a0] sm:$0xff] %vm1015, %v4161
      %4226 = vst.msk [vmem:[#allocation4 + $0x1a8] sm:$0xff] %vm1015, %v4162
      %4227 = vst.msk [vmem:[#allocation4 + $0x1b0] sm:$0xff] %vm1015, %v4163
      %4228 = vst.msk [vmem:[#allocation4 + $0x1b8] sm:$0xff] %vm1015, %v4164
      %4229 = vst.msk [vmem:[#allocation4 + $0x1c0] sm:$0xff] %vm1015, %v4165
      %4230 = vst.msk [vmem:[#allocation4 + $0x1c8] sm:$0xff] %vm1015, %v4166
      %4231 = vst.msk [vmem:[#allocation4 + $0x1d0] sm:$0xff] %vm1015, %v4167
      %4232 = vst.msk [vmem:[#allocation4 + $0x1d8] sm:$0xff] %vm1015, %v4168
      %4233 = vst.msk [vmem:[#allocation4 + $0x1e0] sm:$0xff] %vm1015, %v4169
      %4234 = vst.msk [vmem:[#allocation4 + $0x1e8] sm:$0xff] %vm1015, %v4170
      %4235 = vst.msk [vmem:[#allocation4 + $0x1f0] sm:$0xff] %vm1015, %v4171
      %4236 = vst.msk [vmem:[#allocation4 + $0x1f8] sm:$0xff] %vm1015, %v4172
      %4237 = vst.msk [vmem:[#allocation2] sm:$0xff] %vm3098, %v1754
      %4238 = vst.msk [vmem:[#allocation2 + $0x8] sm:$0xff] %vm3098, %v1755
      %4239 = vst.msk [vmem:[#allocation2 + $0x10] sm:$0xff] %vm3098, %v1756
      %4240 = vst.msk [vmem:[#allocation2 + $0x18] sm:$0xff] %vm3098, %v1757
      %4241 = vst.msk [vmem:[#allocation2 + $0x20] sm:$0xff] %vm3098, %v1758
      %4242 = vst.msk [vmem:[#allocation2 + $0x28] sm:$0xff] %vm3098, %v1759
      %4243 = vst.msk [vmem:[#allocation2 + $0x30] sm:$0xff] %vm3098, %v1760
      %4244 = vst.msk [vmem:[#allocation2 + $0x38] sm:$0xff] %vm3098, %v1761
      %4245 = vst.msk [vmem:[#allocation2 + $0x40] sm:$0xff] %vm3098, %v1762
      %4246 = vst.msk [vmem:[#allocation2 + $0x48] sm:$0xff] %vm3098, %v1763
      %4247 = vst.msk [vmem:[#allocation2 + $0x50] sm:$0xff] %vm3098, %v1764
      %4248 = vst.msk [vmem:[#allocation2 + $0x58] sm:$0xff] %vm3098, %v1765
      %4249 = vst.msk [vmem:[#allocation2 + $0x60] sm:$0xff] %vm3098, %v1766
      %4250 = vst.msk [vmem:[#allocation2 + $0x68] sm:$0xff] %vm3098, %v1767
      %4251 = vst.msk [vmem:[#allocation2 + $0x70] sm:$0xff] %vm3098, %v1768
      %4252 = vst.msk [vmem:[#allocation2 + $0x78] sm:$0xff] %vm3098, %v1769
      %4253 = vst.msk [vmem:[#allocation2 + $0x80] sm:$0xff] %vm3098, %v1770
      %4254 = vst.msk [vmem:[#allocation2 + $0x88] sm:$0xff] %vm3098, %v1771
      %4255 = vst.msk [vmem:[#allocation2 + $0x90] sm:$0xff] %vm3098, %v1772
      %4256 = vst.msk [vmem:[#allocation2 + $0x98] sm:$0xff] %vm3098, %v1773
      %4257 = vst.msk [vmem:[#allocation2 + $0xa0] sm:$0xff] %vm3098, %v1774
      %4258 = vst.msk [vmem:[#allocation2 + $0xa8] sm:$0xff] %vm3098, %v1775
      %4259 = vst.msk [vmem:[#allocation2 + $0xb0] sm:$0xff] %vm3098, %v1776
      %4260 = vst.msk [vmem:[#allocation2 + $0xb8] sm:$0xff] %vm3098, %v1777
      %4261 = vst.msk [vmem:[#allocation2 + $0xc0] sm:$0xff] %vm3098, %v1778
      %4262 = vst.msk [vmem:[#allocation2 + $0xc8] sm:$0xff] %vm3098, %v1779
      %4263 = vst.msk [vmem:[#allocation2 + $0xd0] sm:$0xff] %vm3098, %v1780
      %4264 = vst.msk [vmem:[#allocation2 + $0xd8] sm:$0xff] %vm3098, %v1781
      %4265 = vst.msk [vmem:[#allocation2 + $0xe0] sm:$0xff] %vm3098, %v1782
      %4266 = vst.msk [vmem:[#allocation2 + $0xe8] sm:$0xff] %vm3098, %v1783
      %4267 = vst.msk [vmem:[#allocation2 + $0xf0] sm:$0xff] %vm3098, %v1784
      %4268 = vst.msk [vmem:[#allocation2 + $0xf8] sm:$0xff] %vm3098, %v1785
      %4269 = vst.msk [vmem:[#allocation2 + $0x100] sm:$0xff] %vm3098, %v1786
      %4270 = vst.msk [vmem:[#allocation2 + $0x108] sm:$0xff] %vm3098, %v1787
      %4271 = vst.msk [vmem:[#allocation2 + $0x110] sm:$0xff] %vm3098, %v1788
      %4272 = vst.msk [vmem:[#allocation2 + $0x118] sm:$0xff] %vm3098, %v1789
      %4273 = vst.msk [vmem:[#allocation2 + $0x120] sm:$0xff] %vm3098, %v1790
      %4274 = vst.msk [vmem:[#allocation2 + $0x128] sm:$0xff] %vm3098, %v1791
      %4275 = vst.msk [vmem:[#allocation2 + $0x130] sm:$0xff] %vm3098, %v1792
      %4276 = vst.msk [vmem:[#allocation2 + $0x138] sm:$0xff] %vm3098, %v1793
      %4277 = vst.msk [vmem:[#allocation2 + $0x140] sm:$0xff] %vm3098, %v1794
      %4278 = vst.msk [vmem:[#allocation2 + $0x148] sm:$0xff] %vm3098, %v1795
      %4279 = vst.msk [vmem:[#allocation2 + $0x150] sm:$0xff] %vm3098, %v1796
      %4280 = vst.msk [vmem:[#allocation2 + $0x158] sm:$0xff] %vm3098, %v1797
      %4281 = vst.msk [vmem:[#allocation2 + $0x160] sm:$0xff] %vm3098, %v1798
      %4282 = vst.msk [vmem:[#allocation2 + $0x168] sm:$0xff] %vm3098, %v1799
      %4283 = vst.msk [vmem:[#allocation2 + $0x170] sm:$0xff] %vm3098, %v1800
      %4284 = vst.msk [vmem:[#allocation2 + $0x178] sm:$0xff] %vm3098, %v1801
      %4285 = vst.msk [vmem:[#allocation2 + $0x180] sm:$0xff] %vm3098, %v1802
      %4286 = vst.msk [vmem:[#allocation2 + $0x188] sm:$0xff] %vm3098, %v1803
      %4287 = vst.msk [vmem:[#allocation2 + $0x190] sm:$0xff] %vm3098, %v1804
      %4288 = vst.msk [vmem:[#allocation2 + $0x198] sm:$0xff] %vm3098, %v1805
      %4289 = vst.msk [vmem:[#allocation2 + $0x1a0] sm:$0xff] %vm3098, %v1806
      %4290 = vst.msk [vmem:[#allocation2 + $0x1a8] sm:$0xff] %vm3098, %v1807
      %4291 = vst.msk [vmem:[#allocation2 + $0x1b0] sm:$0xff] %vm3098, %v1808
      %4292 = vst.msk [vmem:[#allocation2 + $0x1b8] sm:$0xff] %vm3098, %v1809
      %4293 = vst.msk [vmem:[#allocation2 + $0x1c0] sm:$0xff] %vm3098, %v1810
      %4294 = vst.msk [vmem:[#allocation2 + $0x1c8] sm:$0xff] %vm3098, %v1811
      %4295 = vst.msk [vmem:[#allocation2 + $0x1d0] sm:$0xff] %vm3098, %v1812
      %4296 = vst.msk [vmem:[#allocation2 + $0x1d8] sm:$0xff] %vm3098, %v1813
      %4297 = vst.msk [vmem:[#allocation2 + $0x1e0] sm:$0xff] %vm3098, %v1814
      %4298 = vst.msk [vmem:[#allocation2 + $0x1e8] sm:$0xff] %vm3098, %v1815
      %4299 = vst.msk [vmem:[#allocation2 + $0x1f0] sm:$0xff] %vm3098, %v1816
      %4300 = vst.msk [vmem:[#allocation2 + $0x1f8] sm:$0xff] %vm3098, %v1817
      // Predicated region
      $region45: #{upgto_v1_forward.3} parent=39 // pred_check
        %p4301 = pneg %p449
      $region46: #{upgto_v1_forward.3} parent=39 // pred_check_branch
        %4303 = sbr.rel (%p4301) target = $region48
      $region47: #{upgto_v1_forward.3} parent=39 // pred_region
        %v4304 = vld [vmem:[#allocation4] sm:$0xff]
        %v4305 = vld [vmem:[#allocation4 + $0x8] sm:$0xff]
        %v4306 = vld [vmem:[#allocation4 + $0x10] sm:$0xff]
        %v4307 = vld [vmem:[#allocation4 + $0x18] sm:$0xff]
        %v4308 = vld [vmem:[#allocation4 + $0x20] sm:$0xff]
        %v4309 = vld [vmem:[#allocation4 + $0x28] sm:$0xff]
        %v4310 = vld [vmem:[#allocation4 + $0x30] sm:$0xff]
        %v4311 = vld [vmem:[#allocation4 + $0x38] sm:$0xff]
        %v4312 = vld [vmem:[#allocation4 + $0x40] sm:$0xff]
        %v4313 = vld [vmem:[#allocation4 + $0x48] sm:$0xff]
        %v4314 = vld [vmem:[#allocation4 + $0x50] sm:$0xff]
        %v4315 = vld [vmem:[#allocation4 + $0x58] sm:$0xff]
        %v4316 = vld [vmem:[#allocation4 + $0x60] sm:$0xff]
        %v4317 = vld [vmem:[#allocation4 + $0x68] sm:$0xff]
        %v4318 = vld [vmem:[#allocation4 + $0x70] sm:$0xff]
        %v4319 = vld [vmem:[#allocation4 + $0x78] sm:$0xff]
        %v4320 = vld [vmem:[#allocation4 + $0x80] sm:$0xff]
        %v4321 = vld [vmem:[#allocation4 + $0x88] sm:$0xff]
        %v4322 = vld [vmem:[#allocation4 + $0x90] sm:$0xff]
        %v4323 = vld [vmem:[#allocation4 + $0x98] sm:$0xff]
        %v4324 = vld [vmem:[#allocation4 + $0xa0] sm:$0xff]
        %v4325 = vld [vmem:[#allocation4 + $0xa8] sm:$0xff]
        %v4326 = vld [vmem:[#allocation4 + $0xb0] sm:$0xff]
        %v4327 = vld [vmem:[#allocation4 + $0xb8] sm:$0xff]
        %v4328 = vld [vmem:[#allocation4 + $0xc0] sm:$0xff]
        %v4329 = vld [vmem:[#allocation4 + $0xc8] sm:$0xff]
        %v4330 = vld [vmem:[#allocation4 + $0xd0] sm:$0xff]
        %v4331 = vld [vmem:[#allocation4 + $0xd8] sm:$0xff]
        %v4332 = vld [vmem:[#allocation4 + $0xe0] sm:$0xff]
        %v4333 = vld [vmem:[#allocation4 + $0xe8] sm:$0xff]
        %v4334 = vld [vmem:[#allocation4 + $0xf0] sm:$0xff]
        %v4335 = vld [vmem:[#allocation4 + $0xf8] sm:$0xff]
        %v4336 = vld [vmem:[#allocation4 + $0x100] sm:$0xff]
        %v4337 = vld [vmem:[#allocation4 + $0x108] sm:$0xff]
        %v4338 = vld [vmem:[#allocation4 + $0x110] sm:$0xff]
        %v4339 = vld [vmem:[#allocation4 + $0x118] sm:$0xff]
        %v4340 = vld [vmem:[#allocation4 + $0x120] sm:$0xff]
        %v4341 = vld [vmem:[#allocation4 + $0x128] sm:$0xff]
        %v4342 = vld [vmem:[#allocation4 + $0x130] sm:$0xff]
        %v4343 = vld [vmem:[#allocation4 + $0x138] sm:$0xff]
        %v4344 = vld [vmem:[#allocation4 + $0x140] sm:$0xff]
        %v4345 = vld [vmem:[#allocation4 + $0x148] sm:$0xff]
        %v4346 = vld [vmem:[#allocation4 + $0x150] sm:$0xff]
        %v4347 = vld [vmem:[#allocation4 + $0x158] sm:$0xff]
        %v4348 = vld [vmem:[#allocation4 + $0x160] sm:$0xff]
        %v4349 = vld [vmem:[#allocation4 + $0x168] sm:$0xff]
        %v4350 = vld [vmem:[#allocation4 + $0x170] sm:$0xff]
        %v4351 = vld [vmem:[#allocation4 + $0x178] sm:$0xff]
        %v4352 = vld [vmem:[#allocation4 + $0x180] sm:$0xff]
        %v4353 = vld [vmem:[#allocation4 + $0x188] sm:$0xff]
        %v4354 = vld [vmem:[#allocation4 + $0x190] sm:$0xff]
        %v4355 = vld [vmem:[#allocation4 + $0x198] sm:$0xff]
        %v4356 = vld [vmem:[#allocation4 + $0x1a0] sm:$0xff]
        %v4357 = vld [vmem:[#allocation4 + $0x1a8] sm:$0xff]
        %v4358 = vld [vmem:[#allocation4 + $0x1b0] sm:$0xff]
        %v4359 = vld [vmem:[#allocation4 + $0x1b8] sm:$0xff]
        %v4360 = vld [vmem:[#allocation4 + $0x1c0] sm:$0xff]
        %v4361 = vld [vmem:[#allocation4 + $0x1c8] sm:$0xff]
        %v4362 = vld [vmem:[#allocation4 + $0x1d0] sm:$0xff]
        %v4363 = vld [vmem:[#allocation4 + $0x1d8] sm:$0xff]
        %v4364 = vld [vmem:[#allocation4 + $0x1e0] sm:$0xff]
        %v4365 = vld [vmem:[#allocation4 + $0x1e8] sm:$0xff]
        %v4366 = vld [vmem:[#allocation4 + $0x1f0] sm:$0xff]
        %v4367 = vld [vmem:[#allocation4 + $0x1f8] sm:$0xff]
        %v4368 = vld [vmem:[#allocation3] sm:$0xff]
        %v4369 = vld [vmem:[#allocation3 + $0x8] sm:$0xff]
        %v4370 = vld [vmem:[#allocation3 + $0x10] sm:$0xff]
        %v4371 = vld [vmem:[#allocation3 + $0x18] sm:$0xff]
        %v4372 = vld [vmem:[#allocation3 + $0x20] sm:$0xff]
        %v4373 = vld [vmem:[#allocation3 + $0x28] sm:$0xff]
        %v4374 = vld [vmem:[#allocation3 + $0x30] sm:$0xff]
        %v4375 = vld [vmem:[#allocation3 + $0x38] sm:$0xff]
        %v4376 = vld [vmem:[#allocation3 + $0x40] sm:$0xff]
        %v4377 = vld [vmem:[#allocation3 + $0x48] sm:$0xff]
        %v4378 = vld [vmem:[#allocation3 + $0x50] sm:$0xff]
        %v4379 = vld [vmem:[#allocation3 + $0x58] sm:$0xff]
        %v4380 = vld [vmem:[#allocation3 + $0x60] sm:$0xff]
        %v4381 = vld [vmem:[#allocation3 + $0x68] sm:$0xff]
        %v4382 = vld [vmem:[#allocation3 + $0x70] sm:$0xff]
        %v4383 = vld [vmem:[#allocation3 + $0x78] sm:$0xff]
        %v4384 = vld [vmem:[#allocation3 + $0x80] sm:$0xff]
        %v4385 = vld [vmem:[#allocation3 + $0x88] sm:$0xff]
        %v4386 = vld [vmem:[#allocation3 + $0x90] sm:$0xff]
        %v4387 = vld [vmem:[#allocation3 + $0x98] sm:$0xff]
        %v4388 = vld [vmem:[#allocation3 + $0xa0] sm:$0xff]
        %v4389 = vld [vmem:[#allocation3 + $0xa8] sm:$0xff]
        %v4390 = vld [vmem:[#allocation3 + $0xb0] sm:$0xff]
        %v4391 = vld [vmem:[#allocation3 + $0xb8] sm:$0xff]
        %v4392 = vld [vmem:[#allocation3 + $0xc0] sm:$0xff]
        %v4393 = vld [vmem:[#allocation3 + $0xc8] sm:$0xff]
        %v4394 = vld [vmem:[#allocation3 + $0xd0] sm:$0xff]
        %v4395 = vld [vmem:[#allocation3 + $0xd8] sm:$0xff]
        %v4396 = vld [vmem:[#allocation3 + $0xe0] sm:$0xff]
        %v4397 = vld [vmem:[#allocation3 + $0xe8] sm:$0xff]
        %v4398 = vld [vmem:[#allocation3 + $0xf0] sm:$0xff]
        %v4399 = vld [vmem:[#allocation3 + $0xf8] sm:$0xff]
        %v4400 = vld [vmem:[#allocation3 + $0x100] sm:$0xff]
        %v4401 = vld [vmem:[#allocation3 + $0x108] sm:$0xff]
        %v4402 = vld [vmem:[#allocation3 + $0x110] sm:$0xff]
        %v4403 = vld [vmem:[#allocation3 + $0x118] sm:$0xff]
        %v4404 = vld [vmem:[#allocation3 + $0x120] sm:$0xff]
        %v4405 = vld [vmem:[#allocation3 + $0x128] sm:$0xff]
        %v4406 = vld [vmem:[#allocation3 + $0x130] sm:$0xff]
        %v4407 = vld [vmem:[#allocation3 + $0x138] sm:$0xff]
        %v4408 = vld [vmem:[#allocation3 + $0x140] sm:$0xff]
        %v4409 = vld [vmem:[#allocation3 + $0x148] sm:$0xff]
        %v4410 = vld [vmem:[#allocation3 + $0x150] sm:$0xff]
        %v4411 = vld [vmem:[#allocation3 + $0x158] sm:$0xff]
        %v4412 = vld [vmem:[#allocation3 + $0x160] sm:$0xff]
        %v4413 = vld [vmem:[#allocation3 + $0x168] sm:$0xff]
        %v4414 = vld [vmem:[#allocation3 + $0x170] sm:$0xff]
        %v4415 = vld [vmem:[#allocation3 + $0x178] sm:$0xff]
        %v4416 = vld [vmem:[#allocation3 + $0x180] sm:$0xff]
        %v4417 = vld [vmem:[#allocation3 + $0x188] sm:$0xff]
        %v4418 = vld [vmem:[#allocation3 + $0x190] sm:$0xff]
        %v4419 = vld [vmem:[#allocation3 + $0x198] sm:$0xff]
        %v4420 = vld [vmem:[#allocation3 + $0x1a0] sm:$0xff]
        %v4421 = vld [vmem:[#allocation3 + $0x1a8] sm:$0xff]
        %v4422 = vld [vmem:[#allocation3 + $0x1b0] sm:$0xff]
        %v4423 = vld [vmem:[#allocation3 + $0x1b8] sm:$0xff]
        %v4424 = vld [vmem:[#allocation3 + $0x1c0] sm:$0xff]
        %v4425 = vld [vmem:[#allocation3 + $0x1c8] sm:$0xff]
        %v4426 = vld [vmem:[#allocation3 + $0x1d0] sm:$0xff]
        %v4427 = vld [vmem:[#allocation3 + $0x1d8] sm:$0xff]
        %v4428 = vld [vmem:[#allocation3 + $0x1e0] sm:$0xff]
        %v4429 = vld [vmem:[#allocation3 + $0x1e8] sm:$0xff]
        %v4430 = vld [vmem:[#allocation3 + $0x1f0] sm:$0xff]
        %v4431 = vld [vmem:[#allocation3 + $0x1f8] sm:$0xff]
        %v4432 = vrcp.pop %v4368
        %v4433 = vrcp.pop %v4369
        %v4434 = vrcp.pop %v4370
        %v4435 = vrcp.pop %v4371
        %v4436 = vrcp.pop %v4372
        %v4437 = vrcp.pop %v4373
        %v4438 = vrcp.pop %v4374
        %v4439 = vrcp.pop %v4375
        %v4440 = vrcp.pop %v4376
        %v4441 = vrcp.pop %v4377
        %v4442 = vrcp.pop %v4378
        %v4443 = vrcp.pop %v4379
        %v4444 = vrcp.pop %v4380
        %v4445 = vrcp.pop %v4381
        %v4446 = vrcp.pop %v4382
        %v4447 = vrcp.pop %v4383
        %v4448 = vrcp.pop %v4384
        %v4449 = vrcp.pop %v4385
        %v4450 = vrcp.pop %v4386
        %v4451 = vrcp.pop %v4387
        %v4452 = vrcp.pop %v4388
        %v4453 = vrcp.pop %v4389
        %v4454 = vrcp.pop %v4390
        %v4455 = vrcp.pop %v4391
        %v4456 = vrcp.pop %v4392
        %v4457 = vrcp.pop %v4393
        %v4458 = vrcp.pop %v4394
        %v4459 = vrcp.pop %v4395
        %v4460 = vrcp.pop %v4396
        %v4461 = vrcp.pop %v4397
        %v4462 = vrcp.pop %v4398
        %v4463 = vrcp.pop %v4399
        %v4464 = vrcp.pop %v4400
        %v4465 = vrcp.pop %v4401
        %v4466 = vrcp.pop %v4402
        %v4467 = vrcp.pop %v4403
        %v4468 = vrcp.pop %v4404
        %v4469 = vrcp.pop %v4405
        %v4470 = vrcp.pop %v4406
        %v4471 = vrcp.pop %v4407
        %v4472 = vrcp.pop %v4408
        %v4473 = vrcp.pop %v4409
        %v4474 = vrcp.pop %v4410
        %v4475 = vrcp.pop %v4411
        %v4476 = vrcp.pop %v4412
        %v4477 = vrcp.pop %v4413
        %v4478 = vrcp.pop %v4414
        %v4479 = vrcp.pop %v4415
        %v4480 = vrcp.pop %v4416
        %v4481 = vrcp.pop %v4417
        %v4482 = vrcp.pop %v4418
        %v4483 = vrcp.pop %v4419
        %v4484 = vrcp.pop %v4420
        %v4485 = vrcp.pop %v4421
        %v4486 = vrcp.pop %v4422
        %v4487 = vrcp.pop %v4423
        %v4488 = vrcp.pop %v4424
        %v4489 = vrcp.pop %v4425
        %v4490 = vrcp.pop %v4426
        %v4491 = vrcp.pop %v4427
        %v4492 = vrcp.pop %v4428
        %v4493 = vrcp.pop %v4429
        %v4494 = vrcp.pop %v4430
        %v4495 = vrcp.pop %v4431
        %4497 = vset.pattern.permute.xlu0 0
        %4498 = vperm.xlu0 %4497, %v4432
        %v4499 = vpop.permute.xlu0 %4498
        %4502 = vset.pattern.permute.xlu0 0
        %4503 = vperm.xlu0 %4502, %v4433
        %v4504 = vpop.permute.xlu0 %4503
        %4507 = vset.pattern.permute.xlu0 0
        %4508 = vperm.xlu0 %4507, %v4434
        %v4509 = vpop.permute.xlu0 %4508
        %4512 = vset.pattern.permute.xlu0 0
        %4513 = vperm.xlu0 %4512, %v4435
        %v4514 = vpop.permute.xlu0 %4513
        %4517 = vset.pattern.permute.xlu0 0
        %4518 = vperm.xlu0 %4517, %v4436
        %v4519 = vpop.permute.xlu0 %4518
        %4522 = vset.pattern.permute.xlu0 0
        %4523 = vperm.xlu0 %4522, %v4437
        %v4524 = vpop.permute.xlu0 %4523
        %4527 = vset.pattern.permute.xlu0 0
        %4528 = vperm.xlu0 %4527, %v4438
        %v4529 = vpop.permute.xlu0 %4528
        %4532 = vset.pattern.permute.xlu0 0
        %4533 = vperm.xlu0 %4532, %v4439
        %v4534 = vpop.permute.xlu0 %4533
        %4537 = vset.pattern.permute.xlu0 0
        %4538 = vperm.xlu0 %4537, %v4440
        %v4539 = vpop.permute.xlu0 %4538
        %4542 = vset.pattern.permute.xlu0 0
        %4543 = vperm.xlu0 %4542, %v4441
        %v4544 = vpop.permute.xlu0 %4543
        %4547 = vset.pattern.permute.xlu0 0
        %4548 = vperm.xlu0 %4547, %v4442
        %v4549 = vpop.permute.xlu0 %4548
        %4552 = vset.pattern.permute.xlu0 0
        %4553 = vperm.xlu0 %4552, %v4443
        %v4554 = vpop.permute.xlu0 %4553
        %4557 = vset.pattern.permute.xlu0 0
        %4558 = vperm.xlu0 %4557, %v4444
        %v4559 = vpop.permute.xlu0 %4558
        %4562 = vset.pattern.permute.xlu0 0
        %4563 = vperm.xlu0 %4562, %v4445
        %v4564 = vpop.permute.xlu0 %4563
        %4567 = vset.pattern.permute.xlu0 0
        %4568 = vperm.xlu0 %4567, %v4446
        %v4569 = vpop.permute.xlu0 %4568
        %4572 = vset.pattern.permute.xlu0 0
        %4573 = vperm.xlu0 %4572, %v4447
        %v4574 = vpop.permute.xlu0 %4573
        %4577 = vset.pattern.permute.xlu0 0
        %4578 = vperm.xlu0 %4577, %v4448
        %v4579 = vpop.permute.xlu0 %4578
        %4582 = vset.pattern.permute.xlu0 0
        %4583 = vperm.xlu0 %4582, %v4449
        %v4584 = vpop.permute.xlu0 %4583
        %4587 = vset.pattern.permute.xlu0 0
        %4588 = vperm.xlu0 %4587, %v4450
        %v4589 = vpop.permute.xlu0 %4588
        %4592 = vset.pattern.permute.xlu0 0
        %4593 = vperm.xlu0 %4592, %v4451
        %v4594 = vpop.permute.xlu0 %4593
        %4597 = vset.pattern.permute.xlu0 0
        %4598 = vperm.xlu0 %4597, %v4452
        %v4599 = vpop.permute.xlu0 %4598
        %4602 = vset.pattern.permute.xlu0 0
        %4603 = vperm.xlu0 %4602, %v4453
        %v4604 = vpop.permute.xlu0 %4603
        %4607 = vset.pattern.permute.xlu0 0
        %4608 = vperm.xlu0 %4607, %v4454
        %v4609 = vpop.permute.xlu0 %4608
        %4612 = vset.pattern.permute.xlu0 0
        %4613 = vperm.xlu0 %4612, %v4455
        %v4614 = vpop.permute.xlu0 %4613
        %4617 = vset.pattern.permute.xlu0 0
        %4618 = vperm.xlu0 %4617, %v4456
        %v4619 = vpop.permute.xlu0 %4618
        %4622 = vset.pattern.permute.xlu0 0
        %4623 = vperm.xlu0 %4622, %v4457
        %v4624 = vpop.permute.xlu0 %4623
        %4627 = vset.pattern.permute.xlu0 0
        %4628 = vperm.xlu0 %4627, %v4458
        %v4629 = vpop.permute.xlu0 %4628
        %4632 = vset.pattern.permute.xlu0 0
        %4633 = vperm.xlu0 %4632, %v4459
        %v4634 = vpop.permute.xlu0 %4633
        %4637 = vset.pattern.permute.xlu0 0
        %4638 = vperm.xlu0 %4637, %v4460
        %v4639 = vpop.permute.xlu0 %4638
        %4642 = vset.pattern.permute.xlu0 0
        %4643 = vperm.xlu0 %4642, %v4461
        %v4644 = vpop.permute.xlu0 %4643
        %4647 = vset.pattern.permute.xlu0 0
        %4648 = vperm.xlu0 %4647, %v4462
        %v4649 = vpop.permute.xlu0 %4648
        %4652 = vset.pattern.permute.xlu0 0
        %4653 = vperm.xlu0 %4652, %v4463
        %v4654 = vpop.permute.xlu0 %4653
        %4657 = vset.pattern.permute.xlu0 0
        %4658 = vperm.xlu0 %4657, %v4464
        %v4659 = vpop.permute.xlu0 %4658
        %4662 = vset.pattern.permute.xlu0 0
        %4663 = vperm.xlu0 %4662, %v4465
        %v4664 = vpop.permute.xlu0 %4663
        %4667 = vset.pattern.permute.xlu0 0
        %4668 = vperm.xlu0 %4667, %v4466
        %v4669 = vpop.permute.xlu0 %4668
        %4672 = vset.pattern.permute.xlu0 0
        %4673 = vperm.xlu0 %4672, %v4467
        %v4674 = vpop.permute.xlu0 %4673
        %4677 = vset.pattern.permute.xlu0 0
        %4678 = vperm.xlu0 %4677, %v4468
        %v4679 = vpop.permute.xlu0 %4678
        %4682 = vset.pattern.permute.xlu0 0
        %4683 = vperm.xlu0 %4682, %v4469
        %v4684 = vpop.permute.xlu0 %4683
        %4687 = vset.pattern.permute.xlu0 0
        %4688 = vperm.xlu0 %4687, %v4470
        %v4689 = vpop.permute.xlu0 %4688
        %4692 = vset.pattern.permute.xlu0 0
        %4693 = vperm.xlu0 %4692, %v4471
        %v4694 = vpop.permute.xlu0 %4693
        %4697 = vset.pattern.permute.xlu0 0
        %4698 = vperm.xlu0 %4697, %v4472
        %v4699 = vpop.permute.xlu0 %4698
        %4702 = vset.pattern.permute.xlu0 0
        %4703 = vperm.xlu0 %4702, %v4473
        %v4704 = vpop.permute.xlu0 %4703
        %4707 = vset.pattern.permute.xlu0 0
        %4708 = vperm.xlu0 %4707, %v4474
        %v4709 = vpop.permute.xlu0 %4708
        %4712 = vset.pattern.permute.xlu0 0
        %4713 = vperm.xlu0 %4712, %v4475
        %v4714 = vpop.permute.xlu0 %4713
        %4717 = vset.pattern.permute.xlu0 0
        %4718 = vperm.xlu0 %4717, %v4476
        %v4719 = vpop.permute.xlu0 %4718
        %4722 = vset.pattern.permute.xlu0 0
        %4723 = vperm.xlu0 %4722, %v4477
        %v4724 = vpop.permute.xlu0 %4723
        %4727 = vset.pattern.permute.xlu0 0
        %4728 = vperm.xlu0 %4727, %v4478
        %v4729 = vpop.permute.xlu0 %4728
        %4732 = vset.pattern.permute.xlu0 0
        %4733 = vperm.xlu0 %4732, %v4479
        %v4734 = vpop.permute.xlu0 %4733
        %4737 = vset.pattern.permute.xlu0 0
        %4738 = vperm.xlu0 %4737, %v4480
        %v4739 = vpop.permute.xlu0 %4738
        %4742 = vset.pattern.permute.xlu0 0
        %4743 = vperm.xlu0 %4742, %v4481
        %v4744 = vpop.permute.xlu0 %4743
        %4747 = vset.pattern.permute.xlu0 0
        %4748 = vperm.xlu0 %4747, %v4482
        %v4749 = vpop.permute.xlu0 %4748
        %4752 = vset.pattern.permute.xlu0 0
        %4753 = vperm.xlu0 %4752, %v4483
        %v4754 = vpop.permute.xlu0 %4753
        %4757 = vset.pattern.permute.xlu0 0
        %4758 = vperm.xlu0 %4757, %v4484
        %v4759 = vpop.permute.xlu0 %4758
        %4762 = vset.pattern.permute.xlu0 0
        %4763 = vperm.xlu0 %4762, %v4485
        %v4764 = vpop.permute.xlu0 %4763
        %4767 = vset.pattern.permute.xlu0 0
        %4768 = vperm.xlu0 %4767, %v4486
        %v4769 = vpop.permute.xlu0 %4768
        %4772 = vset.pattern.permute.xlu0 0
        %4773 = vperm.xlu0 %4772, %v4487
        %v4774 = vpop.permute.xlu0 %4773
        %4777 = vset.pattern.permute.xlu0 0
        %4778 = vperm.xlu0 %4777, %v4488
        %v4779 = vpop.permute.xlu0 %4778
        %4782 = vset.pattern.permute.xlu0 0
        %4783 = vperm.xlu0 %4782, %v4489
        %v4784 = vpop.permute.xlu0 %4783
        %4787 = vset.pattern.permute.xlu0 0
        %4788 = vperm.xlu0 %4787, %v4490
        %v4789 = vpop.permute.xlu0 %4788
        %4792 = vset.pattern.permute.xlu0 0
        %4793 = vperm.xlu0 %4792, %v4491
        %v4794 = vpop.permute.xlu0 %4793
        %4797 = vset.pattern.permute.xlu0 0
        %4798 = vperm.xlu0 %4797, %v4492
        %v4799 = vpop.permute.xlu0 %4798
        %4802 = vset.pattern.permute.xlu0 0
        %4803 = vperm.xlu0 %4802, %v4493
        %v4804 = vpop.permute.xlu0 %4803
        %4807 = vset.pattern.permute.xlu0 0
        %4808 = vperm.xlu0 %4807, %v4494
        %v4809 = vpop.permute.xlu0 %4808
        %4812 = vset.pattern.permute.xlu0 0
        %4813 = vperm.xlu0 %4812, %v4495
        %v4814 = vpop.permute.xlu0 %4813
        %v4816 = vmul.f32 %v4304, %v4499
        %v4817 = vmul.f32 %v4305, %v4504
        %v4818 = vmul.f32 %v4306, %v4509
        %v4819 = vmul.f32 %v4307, %v4514
        %v4820 = vmul.f32 %v4308, %v4519
        %v4821 = vmul.f32 %v4309, %v4524
        %v4822 = vmul.f32 %v4310, %v4529
        %v4823 = vmul.f32 %v4311, %v4534
        %v4824 = vmul.f32 %v4312, %v4539
        %v4825 = vmul.f32 %v4313, %v4544
        %v4826 = vmul.f32 %v4314, %v4549
        %v4827 = vmul.f32 %v4315, %v4554
        %v4828 = vmul.f32 %v4316, %v4559
        %v4829 = vmul.f32 %v4317, %v4564
        %v4830 = vmul.f32 %v4318, %v4569
        %v4831 = vmul.f32 %v4319, %v4574
        %v4832 = vmul.f32 %v4320, %v4579
        %v4833 = vmul.f32 %v4321, %v4584
        %v4834 = vmul.f32 %v4322, %v4589
        %v4835 = vmul.f32 %v4323, %v4594
        %v4836 = vmul.f32 %v4324, %v4599
        %v4837 = vmul.f32 %v4325, %v4604
        %v4838 = vmul.f32 %v4326, %v4609
        %v4839 = vmul.f32 %v4327, %v4614
        %v4840 = vmul.f32 %v4328, %v4619
        %v4841 = vmul.f32 %v4329, %v4624
        %v4842 = vmul.f32 %v4330, %v4629
        %v4843 = vmul.f32 %v4331, %v4634
        %v4844 = vmul.f32 %v4332, %v4639
        %v4845 = vmul.f32 %v4333, %v4644
        %v4846 = vmul.f32 %v4334, %v4649
        %v4847 = vmul.f32 %v4335, %v4654
        %v4848 = vmul.f32 %v4336, %v4659
        %v4849 = vmul.f32 %v4337, %v4664
        %v4850 = vmul.f32 %v4338, %v4669
        %v4851 = vmul.f32 %v4339, %v4674
        %v4852 = vmul.f32 %v4340, %v4679
        %v4853 = vmul.f32 %v4341, %v4684
        %v4854 = vmul.f32 %v4342, %v4689
        %v4855 = vmul.f32 %v4343, %v4694
        %v4856 = vmul.f32 %v4344, %v4699
        %v4857 = vmul.f32 %v4345, %v4704
        %v4858 = vmul.f32 %v4346, %v4709
        %v4859 = vmul.f32 %v4347, %v4714
        %v4860 = vmul.f32 %v4348, %v4719
        %v4861 = vmul.f32 %v4349, %v4724
        %v4862 = vmul.f32 %v4350, %v4729
        %v4863 = vmul.f32 %v4351, %v4734
        %v4864 = vmul.f32 %v4352, %v4739
        %v4865 = vmul.f32 %v4353, %v4744
        %v4866 = vmul.f32 %v4354, %v4749
        %v4867 = vmul.f32 %v4355, %v4754
        %v4868 = vmul.f32 %v4356, %v4759
        %v4869 = vmul.f32 %v4357, %v4764
        %v4870 = vmul.f32 %v4358, %v4769
        %v4871 = vmul.f32 %v4359, %v4774
        %v4872 = vmul.f32 %v4360, %v4779
        %v4873 = vmul.f32 %v4361, %v4784
        %v4874 = vmul.f32 %v4362, %v4789
        %v4875 = vmul.f32 %v4363, %v4794
        %v4876 = vmul.f32 %v4364, %v4799
        %v4877 = vmul.f32 %v4365, %v4804
        %v4878 = vmul.f32 %v4366, %v4809
        %v4879 = vmul.f32 %v4367, %v4814
        %v4880 = vpack.c.bf16 %v4817, %v4816
        %v4881 = vpack.c.bf16 %v4819, %v4818
        %v4882 = vpack.c.bf16 %v4821, %v4820
        %v4883 = vpack.c.bf16 %v4823, %v4822
        %v4884 = vpack.c.bf16 %v4825, %v4824
        %v4885 = vpack.c.bf16 %v4827, %v4826
        %v4886 = vpack.c.bf16 %v4829, %v4828
        %v4887 = vpack.c.bf16 %v4831, %v4830
        %v4888 = vpack.c.bf16 %v4833, %v4832
        %v4889 = vpack.c.bf16 %v4835, %v4834
        %v4890 = vpack.c.bf16 %v4837, %v4836
        %v4891 = vpack.c.bf16 %v4839, %v4838
        %v4892 = vpack.c.bf16 %v4841, %v4840
        %v4893 = vpack.c.bf16 %v4843, %v4842
        %v4894 = vpack.c.bf16 %v4845, %v4844
        %v4895 = vpack.c.bf16 %v4847, %v4846
        %v4896 = vpack.c.bf16 %v4849, %v4848
        %v4897 = vpack.c.bf16 %v4851, %v4850
        %v4898 = vpack.c.bf16 %v4853, %v4852
        %v4899 = vpack.c.bf16 %v4855, %v4854
        %v4900 = vpack.c.bf16 %v4857, %v4856
        %v4901 = vpack.c.bf16 %v4859, %v4858
        %v4902 = vpack.c.bf16 %v4861, %v4860
        %v4903 = vpack.c.bf16 %v4863, %v4862
        %v4904 = vpack.c.bf16 %v4865, %v4864
        %v4905 = vpack.c.bf16 %v4867, %v4866
        %v4906 = vpack.c.bf16 %v4869, %v4868
        %v4907 = vpack.c.bf16 %v4871, %v4870
        %v4908 = vpack.c.bf16 %v4873, %v4872
        %v4909 = vpack.c.bf16 %v4875, %v4874
        %v4910 = vpack.c.bf16 %v4877, %v4876
        %v4911 = vpack.c.bf16 %v4879, %v4878
        %v4912 = vld [vmem:[%s427] sm:$0xf]
        %v4913 = vld [vmem:[%s427 + $0x4] sm:$0xf]
        %v4914 = vld [vmem:[%s427 + $0x8] sm:$0xf]
        %v4915 = vld [vmem:[%s427 + $0xc] sm:$0xf]
        %v4920 = vunpack.c.l.b16 %v4912
        %v4921 = vunpack.c.l.b16 %v4913
        %v4922 = vunpack.c.l.b16 %v4914
        %v4923 = vunpack.c.l.b16 %v4915
        %v4924 = vpack.c.b16 %v4921, %v4920
        %v4925 = vpack.c.b16 %v4923, %v4922
        %v4929 = vsel %vm1015, %v4880, 0
        %v4932 = vsel %vm1015, %v4881, 0
        %v4935 = vsel %vm1015, %v4882, 0
        %v4938 = vsel %vm1015, %v4883, 0
        %v4941 = vsel %vm1015, %v4884, 0
        %v4944 = vsel %vm1015, %v4885, 0
        %v4947 = vsel %vm1015, %v4886, 0
        %v4950 = vsel %vm1015, %v4887, 0
        %v4953 = vsel %vm1015, %v4888, 0
        %v4956 = vsel %vm1015, %v4889, 0
        %v4959 = vsel %vm1015, %v4890, 0
        %v4962 = vsel %vm1015, %v4891, 0
        %v4965 = vsel %vm1015, %v4892, 0
        %v4968 = vsel %vm1015, %v4893, 0
        %v4971 = vsel %vm1015, %v4894, 0
        %v4974 = vsel %vm1015, %v4895, 0
        %v4977 = vsel %vm1015, %v4896, 0
        %v4980 = vsel %vm1015, %v4897, 0
        %v4983 = vsel %vm1015, %v4898, 0
        %v4986 = vsel %vm1015, %v4899, 0
        %v4989 = vsel %vm1015, %v4900, 0
        %v4992 = vsel %vm1015, %v4901, 0
        %v4995 = vsel %vm1015, %v4902, 0
        %v4998 = vsel %vm1015, %v4903, 0
        %v5001 = vsel %vm1015, %v4904, 0
        %v5004 = vsel %vm1015, %v4905, 0
        %v5007 = vsel %vm1015, %v4906, 0
        %v5010 = vsel %vm1015, %v4907, 0
        %v5013 = vsel %vm1015, %v4908, 0
        %v5016 = vsel %vm1015, %v4909, 0
        %v5019 = vsel %vm1015, %v4910, 0
        %v5022 = vsel %vm1015, %v4911, 0
        %5024 = vmatpush.bf16.msra.mxu0 0
        %5025 = vmatpush.bf16.msra.mxu0 0
        %5026 = vmatpush.bf16.msra.mxu0 0
        %5027 = vmatpush.bf16.msra.mxu0 0
        %5028 = vmatpush.bf16.msra.mxu0 0
        %5029 = vmatpush.bf16.msra.mxu0 0
        %5030 = vmatpush.bf16.msra.mxu0 %v4925
        %5031 = vmatpush.bf16.msra.mxu0 %v4924
        %5032 = vmatmul.bf16.gmra.mxu0 %v4929
        %v5033 = vpop.f32.mrf.mxu0
        %v5034 = vadd.f32 0.0, %v5033
        %v5035 = vpop.f32.mrf.mxu0
        %v5036 = vadd.f32 0.0, %v5035
        %5037 = vmatmul.bf16.gmra.mxu0 %v4932
        %v5038 = vpop.f32.mrf.mxu0
        %v5039 = vadd.f32 0.0, %v5038
        %v5040 = vpop.f32.mrf.mxu0
        %v5041 = vadd.f32 0.0, %v5040
        %5042 = vmatmul.bf16.gmra.mxu0 %v4935
        %v5043 = vpop.f32.mrf.mxu0
        %v5044 = vadd.f32 0.0, %v5043
        %v5045 = vpop.f32.mrf.mxu0
        %v5046 = vadd.f32 0.0, %v5045
        %5047 = vmatmul.bf16.gmra.mxu0 %v4938
        %v5048 = vpop.f32.mrf.mxu0
        %v5049 = vadd.f32 0.0, %v5048
        %v5050 = vpop.f32.mrf.mxu0
        %v5051 = vadd.f32 0.0, %v5050
        %5052 = vmatmul.bf16.gmra.mxu0 %v4941
        %v5053 = vpop.f32.mrf.mxu0
        %v5054 = vadd.f32 0.0, %v5053
        %v5055 = vpop.f32.mrf.mxu0
        %v5056 = vadd.f32 0.0, %v5055
        %5057 = vmatmul.bf16.gmra.mxu0 %v4944
        %v5058 = vpop.f32.mrf.mxu0
        %v5059 = vadd.f32 0.0, %v5058
        %v5060 = vpop.f32.mrf.mxu0
        %v5061 = vadd.f32 0.0, %v5060
        %5062 = vmatmul.bf16.gmra.mxu0 %v4947
        %v5063 = vpop.f32.mrf.mxu0
        %v5064 = vadd.f32 0.0, %v5063
        %v5065 = vpop.f32.mrf.mxu0
        %v5066 = vadd.f32 0.0, %v5065
        %5067 = vmatmul.bf16.gmra.mxu0 %v4950
        %v5068 = vpop.f32.mrf.mxu0
        %v5069 = vadd.f32 0.0, %v5068
        %v5070 = vpop.f32.mrf.mxu0
        %v5071 = vadd.f32 0.0, %v5070
        %5072 = vmatmul.bf16.gmra.mxu0 %v4953
        %v5073 = vpop.f32.mrf.mxu0
        %v5074 = vadd.f32 0.0, %v5073
        %v5075 = vpop.f32.mrf.mxu0
        %v5076 = vadd.f32 0.0, %v5075
        %5077 = vmatmul.bf16.gmra.mxu0 %v4956
        %v5078 = vpop.f32.mrf.mxu0
        %v5079 = vadd.f32 0.0, %v5078
        %v5080 = vpop.f32.mrf.mxu0
        %v5081 = vadd.f32 0.0, %v5080
        %5082 = vmatmul.bf16.gmra.mxu0 %v4959
        %v5083 = vpop.f32.mrf.mxu0
        %v5084 = vadd.f32 0.0, %v5083
        %v5085 = vpop.f32.mrf.mxu0
        %v5086 = vadd.f32 0.0, %v5085
        %5087 = vmatmul.bf16.gmra.mxu0 %v4962
        %v5088 = vpop.f32.mrf.mxu0
        %v5089 = vadd.f32 0.0, %v5088
        %v5090 = vpop.f32.mrf.mxu0
        %v5091 = vadd.f32 0.0, %v5090
        %5092 = vmatmul.bf16.gmra.mxu0 %v4965
        %v5093 = vpop.f32.mrf.mxu0
        %v5094 = vadd.f32 0.0, %v5093
        %v5095 = vpop.f32.mrf.mxu0
        %v5096 = vadd.f32 0.0, %v5095
        %5097 = vmatmul.bf16.gmra.mxu0 %v4968
        %v5098 = vpop.f32.mrf.mxu0
        %v5099 = vadd.f32 0.0, %v5098
        %v5100 = vpop.f32.mrf.mxu0
        %v5101 = vadd.f32 0.0, %v5100
        %5102 = vmatmul.bf16.gmra.mxu0 %v4971
        %v5103 = vpop.f32.mrf.mxu0
        %v5104 = vadd.f32 0.0, %v5103
        %v5105 = vpop.f32.mrf.mxu0
        %v5106 = vadd.f32 0.0, %v5105
        %5107 = vmatmul.bf16.gmra.mxu0 %v4974
        %v5108 = vpop.f32.mrf.mxu0
        %v5109 = vadd.f32 0.0, %v5108
        %v5110 = vpop.f32.mrf.mxu0
        %v5111 = vadd.f32 0.0, %v5110
        %5112 = vmatmul.bf16.gmra.mxu0 %v4977
        %v5113 = vpop.f32.mrf.mxu0
        %v5114 = vadd.f32 0.0, %v5113
        %v5115 = vpop.f32.mrf.mxu0
        %v5116 = vadd.f32 0.0, %v5115
        %5117 = vmatmul.bf16.gmra.mxu0 %v4980
        %v5118 = vpop.f32.mrf.mxu0
        %v5119 = vadd.f32 0.0, %v5118
        %v5120 = vpop.f32.mrf.mxu0
        %v5121 = vadd.f32 0.0, %v5120
        %5122 = vmatmul.bf16.gmra.mxu0 %v4983
        %v5123 = vpop.f32.mrf.mxu0
        %v5124 = vadd.f32 0.0, %v5123
        %v5125 = vpop.f32.mrf.mxu0
        %v5126 = vadd.f32 0.0, %v5125
        %5127 = vmatmul.bf16.gmra.mxu0 %v4986
        %v5128 = vpop.f32.mrf.mxu0
        %v5129 = vadd.f32 0.0, %v5128
        %v5130 = vpop.f32.mrf.mxu0
        %v5131 = vadd.f32 0.0, %v5130
        %5132 = vmatmul.bf16.gmra.mxu0 %v4989
        %v5133 = vpop.f32.mrf.mxu0
        %v5134 = vadd.f32 0.0, %v5133
        %v5135 = vpop.f32.mrf.mxu0
        %v5136 = vadd.f32 0.0, %v5135
        %5137 = vmatmul.bf16.gmra.mxu0 %v4992
        %v5138 = vpop.f32.mrf.mxu0
        %v5139 = vadd.f32 0.0, %v5138
        %v5140 = vpop.f32.mrf.mxu0
        %v5141 = vadd.f32 0.0, %v5140
        %5142 = vmatmul.bf16.gmra.mxu0 %v4995
        %v5143 = vpop.f32.mrf.mxu0
        %v5144 = vadd.f32 0.0, %v5143
        %v5145 = vpop.f32.mrf.mxu0
        %v5146 = vadd.f32 0.0, %v5145
        %5147 = vmatmul.bf16.gmra.mxu0 %v4998
        %v5148 = vpop.f32.mrf.mxu0
        %v5149 = vadd.f32 0.0, %v5148
        %v5150 = vpop.f32.mrf.mxu0
        %v5151 = vadd.f32 0.0, %v5150
        %5152 = vmatmul.bf16.gmra.mxu0 %v5001
        %v5153 = vpop.f32.mrf.mxu0
        %v5154 = vadd.f32 0.0, %v5153
        %v5155 = vpop.f32.mrf.mxu0
        %v5156 = vadd.f32 0.0, %v5155
        %5157 = vmatmul.bf16.gmra.mxu0 %v5004
        %v5158 = vpop.f32.mrf.mxu0
        %v5159 = vadd.f32 0.0, %v5158
        %v5160 = vpop.f32.mrf.mxu0
        %v5161 = vadd.f32 0.0, %v5160
        %5162 = vmatmul.bf16.gmra.mxu0 %v5007
        %v5163 = vpop.f32.mrf.mxu0
        %v5164 = vadd.f32 0.0, %v5163
        %v5165 = vpop.f32.mrf.mxu0
        %v5166 = vadd.f32 0.0, %v5165
        %5167 = vmatmul.bf16.gmra.mxu0 %v5010
        %v5168 = vpop.f32.mrf.mxu0
        %v5169 = vadd.f32 0.0, %v5168
        %v5170 = vpop.f32.mrf.mxu0
        %v5171 = vadd.f32 0.0, %v5170
        %5172 = vmatmul.bf16.gmra.mxu0 %v5013
        %v5173 = vpop.f32.mrf.mxu0
        %v5174 = vadd.f32 0.0, %v5173
        %v5175 = vpop.f32.mrf.mxu0
        %v5176 = vadd.f32 0.0, %v5175
        %5177 = vmatmul.bf16.gmra.mxu0 %v5016
        %v5178 = vpop.f32.mrf.mxu0
        %v5179 = vadd.f32 0.0, %v5178
        %v5180 = vpop.f32.mrf.mxu0
        %v5181 = vadd.f32 0.0, %v5180
        %5182 = vmatmul.bf16.gmra.mxu0 %v5019
        %v5183 = vpop.f32.mrf.mxu0
        %v5184 = vadd.f32 0.0, %v5183
        %v5185 = vpop.f32.mrf.mxu0
        %v5186 = vadd.f32 0.0, %v5185
        %5187 = vmatmul.bf16.gmra.mxu0 %v5022
        %v5188 = vpop.f32.mrf.mxu0
        %v5189 = vadd.f32 0.0, %v5188
        %v5190 = vpop.f32.mrf.mxu0
        %v5191 = vadd.f32 0.0, %v5190
        %5192 = vdwg.mxu0
        %p5193 = scmp.eq.s32.totalorder %s24, 0
        // Predicated region
        $region49: #{upgto_v1_forward.3} parent=47 // pred_check
          %p5194 = pneg %p5193
        $region50: #{upgto_v1_forward.3} parent=47 // pred_check_branch
          %5196 = sbr.rel (%p5194) target = $region52
        $region51: #{upgto_v1_forward.3} parent=47 // pred_region
          %v5197 = vld [vmem:[%s436] sm:$0xf]
          %v5198 = vld [vmem:[%s436 + $0x4] sm:$0xf]
          %v5199 = vld [vmem:[%s436 + $0x8] sm:$0xf]
          %v5200 = vld [vmem:[%s436 + $0xc] sm:$0xf]
          %v5201 = vld [vmem:[%s436 + $0x10] sm:$0xf]
          %v5202 = vld [vmem:[%s436 + $0x14] sm:$0xf]
          %v5203 = vld [vmem:[%s436 + $0x18] sm:$0xf]
          %v5204 = vld [vmem:[%s436 + $0x1c] sm:$0xf]
          %v5205 = vld [vmem:[%s436 + $0x20] sm:$0xf]
          %v5206 = vld [vmem:[%s436 + $0x24] sm:$0xf]
          %v5207 = vld [vmem:[%s436 + $0x28] sm:$0xf]
          %v5208 = vld [vmem:[%s436 + $0x2c] sm:$0xf]
          %v5209 = vld [vmem:[%s436 + $0x30] sm:$0xf]
          %v5210 = vld [vmem:[%s436 + $0x34] sm:$0xf]
          %v5211 = vld [vmem:[%s436 + $0x38] sm:$0xf]
          %v5212 = vld [vmem:[%s436 + $0x3c] sm:$0xf]
          %v5213 = vld [vmem:[%s436 + $0x40] sm:$0xf]
          %v5214 = vld [vmem:[%s436 + $0x44] sm:$0xf]
          %v5215 = vld [vmem:[%s436 + $0x48] sm:$0xf]
          %v5216 = vld [vmem:[%s436 + $0x4c] sm:$0xf]
          %v5217 = vld [vmem:[%s436 + $0x50] sm:$0xf]
          %v5218 = vld [vmem:[%s436 + $0x54] sm:$0xf]
          %v5219 = vld [vmem:[%s436 + $0x58] sm:$0xf]
          %v5220 = vld [vmem:[%s436 + $0x5c] sm:$0xf]
          %v5221 = vld [vmem:[%s436 + $0x60] sm:$0xf]
          %v5222 = vld [vmem:[%s436 + $0x64] sm:$0xf]
          %v5223 = vld [vmem:[%s436 + $0x68] sm:$0xf]
          %v5224 = vld [vmem:[%s436 + $0x6c] sm:$0xf]
          %v5225 = vld [vmem:[%s436 + $0x70] sm:$0xf]
          %v5226 = vld [vmem:[%s436 + $0x74] sm:$0xf]
          %v5227 = vld [vmem:[%s436 + $0x78] sm:$0xf]
          %v5228 = vld [vmem:[%s436 + $0x7c] sm:$0xf]
          %v5229 = vld [vmem:[%s436 + $0x80] sm:$0xf]
          %v5230 = vld [vmem:[%s436 + $0x84] sm:$0xf]
          %v5231 = vld [vmem:[%s436 + $0x88] sm:$0xf]
          %v5232 = vld [vmem:[%s436 + $0x8c] sm:$0xf]
          %v5233 = vld [vmem:[%s436 + $0x90] sm:$0xf]
          %v5234 = vld [vmem:[%s436 + $0x94] sm:$0xf]
          %v5235 = vld [vmem:[%s436 + $0x98] sm:$0xf]
          %v5236 = vld [vmem:[%s436 + $0x9c] sm:$0xf]
          %v5237 = vld [vmem:[%s436 + $0xa0] sm:$0xf]
          %v5238 = vld [vmem:[%s436 + $0xa4] sm:$0xf]
          %v5239 = vld [vmem:[%s436 + $0xa8] sm:$0xf]
          %v5240 = vld [vmem:[%s436 + $0xac] sm:$0xf]
          %v5241 = vld [vmem:[%s436 + $0xb0] sm:$0xf]
          %v5242 = vld [vmem:[%s436 + $0xb4] sm:$0xf]
          %v5243 = vld [vmem:[%s436 + $0xb8] sm:$0xf]
          %v5244 = vld [vmem:[%s436 + $0xbc] sm:$0xf]
          %v5245 = vld [vmem:[%s436 + $0xc0] sm:$0xf]
          %v5246 = vld [vmem:[%s436 + $0xc4] sm:$0xf]
          %v5247 = vld [vmem:[%s436 + $0xc8] sm:$0xf]
          %v5248 = vld [vmem:[%s436 + $0xcc] sm:$0xf]
          %v5249 = vld [vmem:[%s436 + $0xd0] sm:$0xf]
          %v5250 = vld [vmem:[%s436 + $0xd4] sm:$0xf]
          %v5251 = vld [vmem:[%s436 + $0xd8] sm:$0xf]
          %v5252 = vld [vmem:[%s436 + $0xdc] sm:$0xf]
          %v5253 = vld [vmem:[%s436 + $0xe0] sm:$0xf]
          %v5254 = vld [vmem:[%s436 + $0xe4] sm:$0xf]
          %v5255 = vld [vmem:[%s436 + $0xe8] sm:$0xf]
          %v5256 = vld [vmem:[%s436 + $0xec] sm:$0xf]
          %v5257 = vld [vmem:[%s436 + $0xf0] sm:$0xf]
          %v5258 = vld [vmem:[%s436 + $0xf4] sm:$0xf]
          %v5259 = vld [vmem:[%s436 + $0xf8] sm:$0xf]
          %v5260 = vld [vmem:[%s436 + $0xfc] sm:$0xf]
          %v5261 = vunpack.c.l.bf16 %v5197
          %v5262 = vunpack.c.l.bf16 %v5198
          %v5263 = vunpack.c.l.bf16 %v5199
          %v5264 = vunpack.c.l.bf16 %v5200
          %v5265 = vunpack.c.l.bf16 %v5201
          %v5266 = vunpack.c.l.bf16 %v5202
          %v5267 = vunpack.c.l.bf16 %v5203
          %v5268 = vunpack.c.l.bf16 %v5204
          %v5269 = vunpack.c.l.bf16 %v5205
          %v5270 = vunpack.c.l.bf16 %v5206
          %v5271 = vunpack.c.l.bf16 %v5207
          %v5272 = vunpack.c.l.bf16 %v5208
          %v5273 = vunpack.c.l.bf16 %v5209
          %v5274 = vunpack.c.l.bf16 %v5210
          %v5275 = vunpack.c.l.bf16 %v5211
          %v5276 = vunpack.c.l.bf16 %v5212
          %v5277 = vunpack.c.l.bf16 %v5213
          %v5278 = vunpack.c.l.bf16 %v5214
          %v5279 = vunpack.c.l.bf16 %v5215
          %v5280 = vunpack.c.l.bf16 %v5216
          %v5281 = vunpack.c.l.bf16 %v5217
          %v5282 = vunpack.c.l.bf16 %v5218
          %v5283 = vunpack.c.l.bf16 %v5219
          %v5284 = vunpack.c.l.bf16 %v5220
          %v5285 = vunpack.c.l.bf16 %v5221
          %v5286 = vunpack.c.l.bf16 %v5222
          %v5287 = vunpack.c.l.bf16 %v5223
          %v5288 = vunpack.c.l.bf16 %v5224
          %v5289 = vunpack.c.l.bf16 %v5225
          %v5290 = vunpack.c.l.bf16 %v5226
          %v5291 = vunpack.c.l.bf16 %v5227
          %v5292 = vunpack.c.l.bf16 %v5228
          %v5293 = vunpack.c.l.bf16 %v5229
          %v5294 = vunpack.c.l.bf16 %v5230
          %v5295 = vunpack.c.l.bf16 %v5231
          %v5296 = vunpack.c.l.bf16 %v5232
          %v5297 = vunpack.c.l.bf16 %v5233
          %v5298 = vunpack.c.l.bf16 %v5234
          %v5299 = vunpack.c.l.bf16 %v5235
          %v5300 = vunpack.c.l.bf16 %v5236
          %v5301 = vunpack.c.l.bf16 %v5237
          %v5302 = vunpack.c.l.bf16 %v5238
          %v5303 = vunpack.c.l.bf16 %v5239
          %v5304 = vunpack.c.l.bf16 %v5240
          %v5305 = vunpack.c.l.bf16 %v5241
          %v5306 = vunpack.c.l.bf16 %v5242
          %v5307 = vunpack.c.l.bf16 %v5243
          %v5308 = vunpack.c.l.bf16 %v5244
          %v5309 = vunpack.c.l.bf16 %v5245
          %v5310 = vunpack.c.l.bf16 %v5246
          %v5311 = vunpack.c.l.bf16 %v5247
          %v5312 = vunpack.c.l.bf16 %v5248
          %v5313 = vunpack.c.l.bf16 %v5249
          %v5314 = vunpack.c.l.bf16 %v5250
          %v5315 = vunpack.c.l.bf16 %v5251
          %v5316 = vunpack.c.l.bf16 %v5252
          %v5317 = vunpack.c.l.bf16 %v5253
          %v5318 = vunpack.c.l.bf16 %v5254
          %v5319 = vunpack.c.l.bf16 %v5255
          %v5320 = vunpack.c.l.bf16 %v5256
          %v5321 = vunpack.c.l.bf16 %v5257
          %v5322 = vunpack.c.l.bf16 %v5258
          %v5323 = vunpack.c.l.bf16 %v5259
          %v5324 = vunpack.c.l.bf16 %v5260
          %v5325 = vadd.f32 %v5261, %v5034
          %v5326 = vadd.f32 %v5262, %v5036
          %v5327 = vadd.f32 %v5263, %v5039
          %v5328 = vadd.f32 %v5264, %v5041
          %v5329 = vadd.f32 %v5265, %v5044
          %v5330 = vadd.f32 %v5266, %v5046
          %v5331 = vadd.f32 %v5267, %v5049
          %v5332 = vadd.f32 %v5268, %v5051
          %v5333 = vadd.f32 %v5269, %v5054
          %v5334 = vadd.f32 %v5270, %v5056
          %v5335 = vadd.f32 %v5271, %v5059
          %v5336 = vadd.f32 %v5272, %v5061
          %v5337 = vadd.f32 %v5273, %v5064
          %v5338 = vadd.f32 %v5274, %v5066
          %v5339 = vadd.f32 %v5275, %v5069
          %v5340 = vadd.f32 %v5276, %v5071
          %v5341 = vadd.f32 %v5277, %v5074
          %v5342 = vadd.f32 %v5278, %v5076
          %v5343 = vadd.f32 %v5279, %v5079
          %v5344 = vadd.f32 %v5280, %v5081
          %v5345 = vadd.f32 %v5281, %v5084
          %v5346 = vadd.f32 %v5282, %v5086
          %v5347 = vadd.f32 %v5283, %v5089
          %v5348 = vadd.f32 %v5284, %v5091
          %v5349 = vadd.f32 %v5285, %v5094
          %v5350 = vadd.f32 %v5286, %v5096
          %v5351 = vadd.f32 %v5287, %v5099
          %v5352 = vadd.f32 %v5288, %v5101
          %v5353 = vadd.f32 %v5289, %v5104
          %v5354 = vadd.f32 %v5290, %v5106
          %v5355 = vadd.f32 %v5291, %v5109
          %v5356 = vadd.f32 %v5292, %v5111
          %v5357 = vadd.f32 %v5293, %v5114
          %v5358 = vadd.f32 %v5294, %v5116
          %v5359 = vadd.f32 %v5295, %v5119
          %v5360 = vadd.f32 %v5296, %v5121
          %v5361 = vadd.f32 %v5297, %v5124
          %v5362 = vadd.f32 %v5298, %v5126
          %v5363 = vadd.f32 %v5299, %v5129
          %v5364 = vadd.f32 %v5300, %v5131
          %v5365 = vadd.f32 %v5301, %v5134
          %v5366 = vadd.f32 %v5302, %v5136
          %v5367 = vadd.f32 %v5303, %v5139
          %v5368 = vadd.f32 %v5304, %v5141
          %v5369 = vadd.f32 %v5305, %v5144
          %v5370 = vadd.f32 %v5306, %v5146
          %v5371 = vadd.f32 %v5307, %v5149
          %v5372 = vadd.f32 %v5308, %v5151
          %v5373 = vadd.f32 %v5309, %v5154
          %v5374 = vadd.f32 %v5310, %v5156
          %v5375 = vadd.f32 %v5311, %v5159
          %v5376 = vadd.f32 %v5312, %v5161
          %v5377 = vadd.f32 %v5313, %v5164
          %v5378 = vadd.f32 %v5314, %v5166
          %v5379 = vadd.f32 %v5315, %v5169
          %v5380 = vadd.f32 %v5316, %v5171
          %v5381 = vadd.f32 %v5317, %v5174
          %v5382 = vadd.f32 %v5318, %v5176
          %v5383 = vadd.f32 %v5319, %v5179
          %v5384 = vadd.f32 %v5320, %v5181
          %v5385 = vadd.f32 %v5321, %v5184
          %v5386 = vadd.f32 %v5322, %v5186
          %v5387 = vadd.f32 %v5323, %v5189
          %v5388 = vadd.f32 %v5324, %v5191
          %vm5389 = vcmask 523264
          %5390 = vst.msk [vmem:[%s446] sm:$0xff] %vm5389, %v5325
          %5391 = vst.msk [vmem:[%s446 + $0x8] sm:$0xff] %vm5389, %v5326
          %5392 = vst.msk [vmem:[%s446 + $0x10] sm:$0xff] %vm5389, %v5327
          %5393 = vst.msk [vmem:[%s446 + $0x18] sm:$0xff] %vm5389, %v5328
          %5394 = vst.msk [vmem:[%s446 + $0x20] sm:$0xff] %vm5389, %v5329
          %5395 = vst.msk [vmem:[%s446 + $0x28] sm:$0xff] %vm5389, %v5330
          %5396 = vst.msk [vmem:[%s446 + $0x30] sm:$0xff] %vm5389, %v5331
          %5397 = vst.msk [vmem:[%s446 + $0x38] sm:$0xff] %vm5389, %v5332
          %5398 = vst.msk [vmem:[%s446 + $0x40] sm:$0xff] %vm5389, %v5333
          %5399 = vst.msk [vmem:[%s446 + $0x48] sm:$0xff] %vm5389, %v5334
          %5400 = vst.msk [vmem:[%s446 + $0x50] sm:$0xff] %vm5389, %v5335
          %5401 = vst.msk [vmem:[%s446 + $0x58] sm:$0xff] %vm5389, %v5336
          %5402 = vst.msk [vmem:[%s446 + $0x60] sm:$0xff] %vm5389, %v5337
          %5403 = vst.msk [vmem:[%s446 + $0x68] sm:$0xff] %vm5389, %v5338
          %5404 = vst.msk [vmem:[%s446 + $0x70] sm:$0xff] %vm5389, %v5339
          %5405 = vst.msk [vmem:[%s446 + $0x78] sm:$0xff] %vm5389, %v5340
          %5406 = vst.msk [vmem:[%s446 + $0x80] sm:$0xff] %vm5389, %v5341
          %5407 = vst.msk [vmem:[%s446 + $0x88] sm:$0xff] %vm5389, %v5342
          %5408 = vst.msk [vmem:[%s446 + $0x90] sm:$0xff] %vm5389, %v5343
          %5409 = vst.msk [vmem:[%s446 + $0x98] sm:$0xff] %vm5389, %v5344
          %5410 = vst.msk [vmem:[%s446 + $0xa0] sm:$0xff] %vm5389, %v5345
          %5411 = vst.msk [vmem:[%s446 + $0xa8] sm:$0xff] %vm5389, %v5346
          %5412 = vst.msk [vmem:[%s446 + $0xb0] sm:$0xff] %vm5389, %v5347
          %5413 = vst.msk [vmem:[%s446 + $0xb8] sm:$0xff] %vm5389, %v5348
          %5414 = vst.msk [vmem:[%s446 + $0xc0] sm:$0xff] %vm5389, %v5349
          %5415 = vst.msk [vmem:[%s446 + $0xc8] sm:$0xff] %vm5389, %v5350
          %5416 = vst.msk [vmem:[%s446 + $0xd0] sm:$0xff] %vm5389, %v5351
          %5417 = vst.msk [vmem:[%s446 + $0xd8] sm:$0xff] %vm5389, %v5352
          %5418 = vst.msk [vmem:[%s446 + $0xe0] sm:$0xff] %vm5389, %v5353
          %5419 = vst.msk [vmem:[%s446 + $0xe8] sm:$0xff] %vm5389, %v5354
          %5420 = vst.msk [vmem:[%s446 + $0xf0] sm:$0xff] %vm5389, %v5355
          %5421 = vst.msk [vmem:[%s446 + $0xf8] sm:$0xff] %vm5389, %v5356
          %5422 = vst.msk [vmem:[%s446 + $0x100] sm:$0xff] %vm5389, %v5357
          %5423 = vst.msk [vmem:[%s446 + $0x108] sm:$0xff] %vm5389, %v5358
          %5424 = vst.msk [vmem:[%s446 + $0x110] sm:$0xff] %vm5389, %v5359
          %5425 = vst.msk [vmem:[%s446 + $0x118] sm:$0xff] %vm5389, %v5360
          %5426 = vst.msk [vmem:[%s446 + $0x120] sm:$0xff] %vm5389, %v5361
          %5427 = vst.msk [vmem:[%s446 + $0x128] sm:$0xff] %vm5389, %v5362
          %5428 = vst.msk [vmem:[%s446 + $0x130] sm:$0xff] %vm5389, %v5363
          %5429 = vst.msk [vmem:[%s446 + $0x138] sm:$0xff] %vm5389, %v5364
          %5430 = vst.msk [vmem:[%s446 + $0x140] sm:$0xff] %vm5389, %v5365
          %5431 = vst.msk [vmem:[%s446 + $0x148] sm:$0xff] %vm5389, %v5366
          %5432 = vst.msk [vmem:[%s446 + $0x150] sm:$0xff] %vm5389, %v5367
          %5433 = vst.msk [vmem:[%s446 + $0x158] sm:$0xff] %vm5389, %v5368
          %5434 = vst.msk [vmem:[%s446 + $0x160] sm:$0xff] %vm5389, %v5369
          %5435 = vst.msk [vmem:[%s446 + $0x168] sm:$0xff] %vm5389, %v5370
          %5436 = vst.msk [vmem:[%s446 + $0x170] sm:$0xff] %vm5389, %v5371
          %5437 = vst.msk [vmem:[%s446 + $0x178] sm:$0xff] %vm5389, %v5372
          %5438 = vst.msk [vmem:[%s446 + $0x180] sm:$0xff] %vm5389, %v5373
          %5439 = vst.msk [vmem:[%s446 + $0x188] sm:$0xff] %vm5389, %v5374
          %5440 = vst.msk [vmem:[%s446 + $0x190] sm:$0xff] %vm5389, %v5375
          %5441 = vst.msk [vmem:[%s446 + $0x198] sm:$0xff] %vm5389, %v5376
          %5442 = vst.msk [vmem:[%s446 + $0x1a0] sm:$0xff] %vm5389, %v5377
          %5443 = vst.msk [vmem:[%s446 + $0x1a8] sm:$0xff] %vm5389, %v5378
          %5444 = vst.msk [vmem:[%s446 + $0x1b0] sm:$0xff] %vm5389, %v5379
          %5445 = vst.msk [vmem:[%s446 + $0x1b8] sm:$0xff] %vm5389, %v5380
          %5446 = vst.msk [vmem:[%s446 + $0x1c0] sm:$0xff] %vm5389, %v5381
          %5447 = vst.msk [vmem:[%s446 + $0x1c8] sm:$0xff] %vm5389, %v5382
          %5448 = vst.msk [vmem:[%s446 + $0x1d0] sm:$0xff] %vm5389, %v5383
          %5449 = vst.msk [vmem:[%s446 + $0x1d8] sm:$0xff] %vm5389, %v5384
          %5450 = vst.msk [vmem:[%s446 + $0x1e0] sm:$0xff] %vm5389, %v5385
          %5451 = vst.msk [vmem:[%s446 + $0x1e8] sm:$0xff] %vm5389, %v5386
          %5452 = vst.msk [vmem:[%s446 + $0x1f0] sm:$0xff] %vm5389, %v5387
          %5453 = vst.msk [vmem:[%s446 + $0x1f8] sm:$0xff] %vm5389, %v5388
        $region52: #{upgto_v1_forward.3} parent=47 // pred_fallthru
          _
        %p5454 = scmp.gt.s32.totalorder %s24, 0
        // Predicated region
        $region53: #{upgto_v1_forward.3} parent=47 // pred_check
          %p5455 = pneg %p5454
        $region54: #{upgto_v1_forward.3} parent=47 // pred_check_branch
          %5457 = sbr.rel (%p5455) target = $region56
        $region55: #{upgto_v1_forward.3} parent=47 // pred_region
          %v5458 = vld [vmem:[%s446] sm:$0xff]
          %v5459 = vld [vmem:[%s446 + $0x8] sm:$0xff]
          %v5460 = vld [vmem:[%s446 + $0x10] sm:$0xff]
          %v5461 = vld [vmem:[%s446 + $0x18] sm:$0xff]
          %v5462 = vld [vmem:[%s446 + $0x20] sm:$0xff]
          %v5463 = vld [vmem:[%s446 + $0x28] sm:$0xff]
          %v5464 = vld [vmem:[%s446 + $0x30] sm:$0xff]
          %v5465 = vld [vmem:[%s446 + $0x38] sm:$0xff]
          %v5466 = vld [vmem:[%s446 + $0x40] sm:$0xff]
          %v5467 = vld [vmem:[%s446 + $0x48] sm:$0xff]
          %v5468 = vld [vmem:[%s446 + $0x50] sm:$0xff]
          %v5469 = vld [vmem:[%s446 + $0x58] sm:$0xff]
          %v5470 = vld [vmem:[%s446 + $0x60] sm:$0xff]
          %v5471 = vld [vmem:[%s446 + $0x68] sm:$0xff]
          %v5472 = vld [vmem:[%s446 + $0x70] sm:$0xff]
          %v5473 = vld [vmem:[%s446 + $0x78] sm:$0xff]
          %v5474 = vld [vmem:[%s446 + $0x80] sm:$0xff]
          %v5475 = vld [vmem:[%s446 + $0x88] sm:$0xff]
          %v5476 = vld [vmem:[%s446 + $0x90] sm:$0xff]
          %v5477 = vld [vmem:[%s446 + $0x98] sm:$0xff]
          %v5478 = vld [vmem:[%s446 + $0xa0] sm:$0xff]
          %v5479 = vld [vmem:[%s446 + $0xa8] sm:$0xff]
          %v5480 = vld [vmem:[%s446 + $0xb0] sm:$0xff]
          %v5481 = vld [vmem:[%s446 + $0xb8] sm:$0xff]
          %v5482 = vld [vmem:[%s446 + $0xc0] sm:$0xff]
          %v5483 = vld [vmem:[%s446 + $0xc8] sm:$0xff]
          %v5484 = vld [vmem:[%s446 + $0xd0] sm:$0xff]
          %v5485 = vld [vmem:[%s446 + $0xd8] sm:$0xff]
          %v5486 = vld [vmem:[%s446 + $0xe0] sm:$0xff]
          %v5487 = vld [vmem:[%s446 + $0xe8] sm:$0xff]
          %v5488 = vld [vmem:[%s446 + $0xf0] sm:$0xff]
          %v5489 = vld [vmem:[%s446 + $0xf8] sm:$0xff]
          %v5490 = vld [vmem:[%s446 + $0x100] sm:$0xff]
          %v5491 = vld [vmem:[%s446 + $0x108] sm:$0xff]
          %v5492 = vld [vmem:[%s446 + $0x110] sm:$0xff]
          %v5493 = vld [vmem:[%s446 + $0x118] sm:$0xff]
          %v5494 = vld [vmem:[%s446 + $0x120] sm:$0xff]
          %v5495 = vld [vmem:[%s446 + $0x128] sm:$0xff]
          %v5496 = vld [vmem:[%s446 + $0x130] sm:$0xff]
          %v5497 = vld [vmem:[%s446 + $0x138] sm:$0xff]
          %v5498 = vld [vmem:[%s446 + $0x140] sm:$0xff]
          %v5499 = vld [vmem:[%s446 + $0x148] sm:$0xff]
          %v5500 = vld [vmem:[%s446 + $0x150] sm:$0xff]
          %v5501 = vld [vmem:[%s446 + $0x158] sm:$0xff]
          %v5502 = vld [vmem:[%s446 + $0x160] sm:$0xff]
          %v5503 = vld [vmem:[%s446 + $0x168] sm:$0xff]
          %v5504 = vld [vmem:[%s446 + $0x170] sm:$0xff]
          %v5505 = vld [vmem:[%s446 + $0x178] sm:$0xff]
          %v5506 = vld [vmem:[%s446 + $0x180] sm:$0xff]
          %v5507 = vld [vmem:[%s446 + $0x188] sm:$0xff]
          %v5508 = vld [vmem:[%s446 + $0x190] sm:$0xff]
          %v5509 = vld [vmem:[%s446 + $0x198] sm:$0xff]
          %v5510 = vld [vmem:[%s446 + $0x1a0] sm:$0xff]
          %v5511 = vld [vmem:[%s446 + $0x1a8] sm:$0xff]
          %v5512 = vld [vmem:[%s446 + $0x1b0] sm:$0xff]
          %v5513 = vld [vmem:[%s446 + $0x1b8] sm:$0xff]
          %v5514 = vld [vmem:[%s446 + $0x1c0] sm:$0xff]
          %v5515 = vld [vmem:[%s446 + $0x1c8] sm:$0xff]
          %v5516 = vld [vmem:[%s446 + $0x1d0] sm:$0xff]
          %v5517 = vld [vmem:[%s446 + $0x1d8] sm:$0xff]
          %v5518 = vld [vmem:[%s446 + $0x1e0] sm:$0xff]
          %v5519 = vld [vmem:[%s446 + $0x1e8] sm:$0xff]
          %v5520 = vld [vmem:[%s446 + $0x1f0] sm:$0xff]
          %v5521 = vld [vmem:[%s446 + $0x1f8] sm:$0xff]
          %v5522 = vadd.f32 %v5458, %v5034
          %v5523 = vadd.f32 %v5459, %v5036
          %v5524 = vadd.f32 %v5460, %v5039
          %v5525 = vadd.f32 %v5461, %v5041
          %v5526 = vadd.f32 %v5462, %v5044
          %v5527 = vadd.f32 %v5463, %v5046
          %v5528 = vadd.f32 %v5464, %v5049
          %v5529 = vadd.f32 %v5465, %v5051
          %v5530 = vadd.f32 %v5466, %v5054
          %v5531 = vadd.f32 %v5467, %v5056
          %v5532 = vadd.f32 %v5468, %v5059
          %v5533 = vadd.f32 %v5469, %v5061
          %v5534 = vadd.f32 %v5470, %v5064
          %v5535 = vadd.f32 %v5471, %v5066
          %v5536 = vadd.f32 %v5472, %v5069
          %v5537 = vadd.f32 %v5473, %v5071
          %v5538 = vadd.f32 %v5474, %v5074
          %v5539 = vadd.f32 %v5475, %v5076
          %v5540 = vadd.f32 %v5476, %v5079
          %v5541 = vadd.f32 %v5477, %v5081
          %v5542 = vadd.f32 %v5478, %v5084
          %v5543 = vadd.f32 %v5479, %v5086
          %v5544 = vadd.f32 %v5480, %v5089
          %v5545 = vadd.f32 %v5481, %v5091
          %v5546 = vadd.f32 %v5482, %v5094
          %v5547 = vadd.f32 %v5483, %v5096
          %v5548 = vadd.f32 %v5484, %v5099
          %v5549 = vadd.f32 %v5485, %v5101
          %v5550 = vadd.f32 %v5486, %v5104
          %v5551 = vadd.f32 %v5487, %v5106
          %v5552 = vadd.f32 %v5488, %v5109
          %v5553 = vadd.f32 %v5489, %v5111
          %v5554 = vadd.f32 %v5490, %v5114
          %v5555 = vadd.f32 %v5491, %v5116
          %v5556 = vadd.f32 %v5492, %v5119
          %v5557 = vadd.f32 %v5493, %v5121
          %v5558 = vadd.f32 %v5494, %v5124
          %v5559 = vadd.f32 %v5495, %v5126
          %v5560 = vadd.f32 %v5496, %v5129
          %v5561 = vadd.f32 %v5497, %v5131
          %v5562 = vadd.f32 %v5498, %v5134
          %v5563 = vadd.f32 %v5499, %v5136
          %v5564 = vadd.f32 %v5500, %v5139
          %v5565 = vadd.f32 %v5501, %v5141
          %v5566 = vadd.f32 %v5502, %v5144
          %v5567 = vadd.f32 %v5503, %v5146
          %v5568 = vadd.f32 %v5504, %v5149
          %v5569 = vadd.f32 %v5505, %v5151
          %v5570 = vadd.f32 %v5506, %v5154
          %v5571 = vadd.f32 %v5507, %v5156
          %v5572 = vadd.f32 %v5508, %v5159
          %v5573 = vadd.f32 %v5509, %v5161
          %v5574 = vadd.f32 %v5510, %v5164
          %v5575 = vadd.f32 %v5511, %v5166
          %v5576 = vadd.f32 %v5512, %v5169
          %v5577 = vadd.f32 %v5513, %v5171
          %v5578 = vadd.f32 %v5514, %v5174
          %v5579 = vadd.f32 %v5515, %v5176
          %v5580 = vadd.f32 %v5516, %v5179
          %v5581 = vadd.f32 %v5517, %v5181
          %v5582 = vadd.f32 %v5518, %v5184
          %v5583 = vadd.f32 %v5519, %v5186
          %v5584 = vadd.f32 %v5520, %v5189
          %v5585 = vadd.f32 %v5521, %v5191
          %vm5586 = vcmask 523264
          %5587 = vst.msk [vmem:[%s446] sm:$0xff] %vm5586, %v5522
          %5588 = vst.msk [vmem:[%s446 + $0x8] sm:$0xff] %vm5586, %v5523
          %5589 = vst.msk [vmem:[%s446 + $0x10] sm:$0xff] %vm5586, %v5524
          %5590 = vst.msk [vmem:[%s446 + $0x18] sm:$0xff] %vm5586, %v5525
          %5591 = vst.msk [vmem:[%s446 + $0x20] sm:$0xff] %vm5586, %v5526
          %5592 = vst.msk [vmem:[%s446 + $0x28] sm:$0xff] %vm5586, %v5527
          %5593 = vst.msk [vmem:[%s446 + $0x30] sm:$0xff] %vm5586, %v5528
          %5594 = vst.msk [vmem:[%s446 + $0x38] sm:$0xff] %vm5586, %v5529
          %5595 = vst.msk [vmem:[%s446 + $0x40] sm:$0xff] %vm5586, %v5530
          %5596 = vst.msk [vmem:[%s446 + $0x48] sm:$0xff] %vm5586, %v5531
          %5597 = vst.msk [vmem:[%s446 + $0x50] sm:$0xff] %vm5586, %v5532
          %5598 = vst.msk [vmem:[%s446 + $0x58] sm:$0xff] %vm5586, %v5533
          %5599 = vst.msk [vmem:[%s446 + $0x60] sm:$0xff] %vm5586, %v5534
          %5600 = vst.msk [vmem:[%s446 + $0x68] sm:$0xff] %vm5586, %v5535
          %5601 = vst.msk [vmem:[%s446 + $0x70] sm:$0xff] %vm5586, %v5536
          %5602 = vst.msk [vmem:[%s446 + $0x78] sm:$0xff] %vm5586, %v5537
          %5603 = vst.msk [vmem:[%s446 + $0x80] sm:$0xff] %vm5586, %v5538
          %5604 = vst.msk [vmem:[%s446 + $0x88] sm:$0xff] %vm5586, %v5539
          %5605 = vst.msk [vmem:[%s446 + $0x90] sm:$0xff] %vm5586, %v5540
          %5606 = vst.msk [vmem:[%s446 + $0x98] sm:$0xff] %vm5586, %v5541
          %5607 = vst.msk [vmem:[%s446 + $0xa0] sm:$0xff] %vm5586, %v5542
          %5608 = vst.msk [vmem:[%s446 + $0xa8] sm:$0xff] %vm5586, %v5543
          %5609 = vst.msk [vmem:[%s446 + $0xb0] sm:$0xff] %vm5586, %v5544
          %5610 = vst.msk [vmem:[%s446 + $0xb8] sm:$0xff] %vm5586, %v5545
          %5611 = vst.msk [vmem:[%s446 + $0xc0] sm:$0xff] %vm5586, %v5546
          %5612 = vst.msk [vmem:[%s446 + $0xc8] sm:$0xff] %vm5586, %v5547
          %5613 = vst.msk [vmem:[%s446 + $0xd0] sm:$0xff] %vm5586, %v5548
          %5614 = vst.msk [vmem:[%s446 + $0xd8] sm:$0xff] %vm5586, %v5549
          %5615 = vst.msk [vmem:[%s446 + $0xe0] sm:$0xff] %vm5586, %v5550
          %5616 = vst.msk [vmem:[%s446 + $0xe8] sm:$0xff] %vm5586, %v5551
          %5617 = vst.msk [vmem:[%s446 + $0xf0] sm:$0xff] %vm5586, %v5552
          %5618 = vst.msk [vmem:[%s446 + $0xf8] sm:$0xff] %vm5586, %v5553
          %5619 = vst.msk [vmem:[%s446 + $0x100] sm:$0xff] %vm5586, %v5554
          %5620 = vst.msk [vmem:[%s446 + $0x108] sm:$0xff] %vm5586, %v5555
          %5621 = vst.msk [vmem:[%s446 + $0x110] sm:$0xff] %vm5586, %v5556
          %5622 = vst.msk [vmem:[%s446 + $0x118] sm:$0xff] %vm5586, %v5557
          %5623 = vst.msk [vmem:[%s446 + $0x120] sm:$0xff] %vm5586, %v5558
          %5624 = vst.msk [vmem:[%s446 + $0x128] sm:$0xff] %vm5586, %v5559
          %5625 = vst.msk [vmem:[%s446 + $0x130] sm:$0xff] %vm5586, %v5560
          %5626 = vst.msk [vmem:[%s446 + $0x138] sm:$0xff] %vm5586, %v5561
          %5627 = vst.msk [vmem:[%s446 + $0x140] sm:$0xff] %vm5586, %v5562
          %5628 = vst.msk [vmem:[%s446 + $0x148] sm:$0xff] %vm5586, %v5563
          %5629 = vst.msk [vmem:[%s446 + $0x150] sm:$0xff] %vm5586, %v5564
          %5630 = vst.msk [vmem:[%s446 + $0x158] sm:$0xff] %vm5586, %v5565
          %5631 = vst.msk [vmem:[%s446 + $0x160] sm:$0xff] %vm5586, %v5566
          %5632 = vst.msk [vmem:[%s446 + $0x168] sm:$0xff] %vm5586, %v5567
          %5633 = vst.msk [vmem:[%s446 + $0x170] sm:$0xff] %vm5586, %v5568
          %5634 = vst.msk [vmem:[%s446 + $0x178] sm:$0xff] %vm5586, %v5569
          %5635 = vst.msk [vmem:[%s446 + $0x180] sm:$0xff] %vm5586, %v5570
          %5636 = vst.msk [vmem:[%s446 + $0x188] sm:$0xff] %vm5586, %v5571
          %5637 = vst.msk [vmem:[%s446 + $0x190] sm:$0xff] %vm5586, %v5572
          %5638 = vst.msk [vmem:[%s446 + $0x198] sm:$0xff] %vm5586, %v5573
          %5639 = vst.msk [vmem:[%s446 + $0x1a0] sm:$0xff] %vm5586, %v5574
          %5640 = vst.msk [vmem:[%s446 + $0x1a8] sm:$0xff] %vm5586, %v5575
          %5641 = vst.msk [vmem:[%s446 + $0x1b0] sm:$0xff] %vm5586, %v5576
          %5642 = vst.msk [vmem:[%s446 + $0x1b8] sm:$0xff] %vm5586, %v5577
          %5643 = vst.msk [vmem:[%s446 + $0x1c0] sm:$0xff] %vm5586, %v5578
          %5644 = vst.msk [vmem:[%s446 + $0x1c8] sm:$0xff] %vm5586, %v5579
          %5645 = vst.msk [vmem:[%s446 + $0x1d0] sm:$0xff] %vm5586, %v5580
          %5646 = vst.msk [vmem:[%s446 + $0x1d8] sm:$0xff] %vm5586, %v5581
          %5647 = vst.msk [vmem:[%s446 + $0x1e0] sm:$0xff] %vm5586, %v5582
          %5648 = vst.msk [vmem:[%s446 + $0x1e8] sm:$0xff] %vm5586, %v5583
          %5649 = vst.msk [vmem:[%s446 + $0x1f0] sm:$0xff] %vm5586, %v5584
          %5650 = vst.msk [vmem:[%s446 + $0x1f8] sm:$0xff] %vm5586, %v5585
        $region56: #{upgto_v1_forward.3} parent=47 // pred_fallthru
          _
      $region48: #{upgto_v1_forward.3} parent=39 // pred_fallthru
        _
      %s5651 = smul.u32 64, %s23
      %p5652 = scmp.lt.s32.totalorder %s22, 1
      %s5653 = scalar_select %p5652, %s22, 1
      %p5654 = scmp.lt.s32.totalorder %s5651, 127
      %s5655 = scalar_select %p5654, %s5651, 127
      %s5656 = smul.addr %s5653, 128
      %s5657 = sadd.s32 %s5655, %s5656
      %s5658 = smul.addr %s5657, 8
      %s5659 = scalar_lea.vmem %s5, %s5658
      // Predicated region
      $region57: #{upgto_v1_forward.3} parent=39 // pred_check
        %p5660 = pneg %p206
      $region58: #{upgto_v1_forward.3} parent=39 // pred_check_branch
        %5662 = sbr.rel (%p5660) target = $region60
      $region59: #{upgto_v1_forward.3} parent=39 // pred_region
        %s5663 = smul.u32 64, %s23
      $region60: #{upgto_v1_forward.3} parent=39 // pred_fallthru
        _
    $region40: #{upgto_v1_forward.3} parent=5 // pred_fallthru
      _
    %p5664 = scmp.le.s32.totalorder 2, %s11
    // Predicated region
    $region61: #{upgto_v1_forward.3} parent=5 // pred_check
      %p5665 = pneg %p5664
    $region62: #{upgto_v1_forward.3} parent=5 // pred_check_branch
      %5667 = sbr.rel (%p5665) target = $region64
    $region63: #{upgto_v1_forward.3} parent=5 // pred_region
      %s5668 = ssub.s32 %s11, 2
      // Predicated region
      $region65: #{upgto_v1_forward.3} parent=63 // pred_check
        %p5669 = pneg %p212
      $region66: #{upgto_v1_forward.3} parent=63 // pred_check_branch
        %5671 = sbr.rel (%p5669) target = $region68
      $region67: #{upgto_v1_forward.3} parent=63 // pred_region
        %s5672 = smul.u32 64, %s27
        %p5673 = scmp.lt.s32.totalorder %s26, 1
        %s5674 = scalar_select %p5673, %s26, 1
        %p5675 = scmp.lt.s32.totalorder %s5672, 127
        %s5676 = scalar_select %p5675, %s5672, 127
        %s5677 = smul.addr %s5674, 128
        %s5678 = sadd.s32 %s5676, %s5677
        %s5679 = smul.addr %s5678, 8
        %s5680 = scalar_lea.vmem %s5, %s5679
      $region68: #{upgto_v1_forward.3} parent=63 // pred_fallthru
        _
    $region64: #{upgto_v1_forward.3} parent=5 // pred_fallthru
      _
  $region6: #{upgto_v1_forward.3} parent=0 // loop_footer
    %s15 = sadd.s32 1, %s11
  $region7: #{upgto_v1_forward.3} parent=0 // loop_footer_branch
    %10 = sbr.rel target = $region3
  $region8: #{upgto_v1_forward.3} parent=0 // loop_exit
    _

</llo_original>
